<compile_context>
chip_gen: v5e
topology: v5e:2x2
jax: 0.10.0
libtpu: 0.0.40
codegen_flags: <defaults>
</compile_context>

<pallas_src>
import jax
import jax.numpy as jnp
from jax.experimental import pallas as pl
from jax.experimental.pallas import tpu as pltpu


_VMEM_LIMIT = 40 * 1024 * 1024      # < v7x 64 MiB physical, > v5e/v6e defaults
_CONV_TM_CAP = 512                  # pooled-output rows per conv grid step
_FC_TM_CAP = 256                    # batch rows per fc grid step


def _round_up(x, m):
    return (x + m - 1) // m * m


# ---------------------------------------------------------------------------
# Pallas kernels
# ---------------------------------------------------------------------------
def _conv_pool_kernel(a_ref, w_ref, b_ref, o_ref):
    """Fused conv(im2col GEMM) + 2x2 maxpool + bias + ReLU for one row tile.

    a: (4, TM, K) bf16   im2col patches, axis 0 = position in the 2x2 window
    w: (K, Cout)  bf16   conv weight as (kh*kw*Cin, Cout)     (VMEM-resident)
    b: (1, Cout)  f32                                          (VMEM-resident)
    o: (TM, Cout) bf16   pooled, NHWC-flattened activation
    """
    p, tm, k = a_ref.shape
    # One MXU pass over all 4 pool positions: the 4 slabs are contiguous,
    # sublane-aligned row blocks, so this reshape is free.
    acc = jnp.dot(a_ref[...].reshape(p * tm, k), w_ref[...],
                  preferred_element_type=jnp.float32)
    acc = jnp.max(acc.reshape(p, tm, -1), axis=0)
    # pool(relu(x+b)) == relu(max_window(x)+b): bias per-channel, ReLU monotone
    o_ref[...] = jnp.maximum(acc + b_ref[...], 0.0).astype(o_ref.dtype)


def _fc_fused_kernel(x_ref, w1_ref, b1_ref, w2_ref, b2_ref, w3_ref, b3_ref,
                     o_ref):
    """fc1+ReLU -> fc2+ReLU -> fc3 for one batch-row tile; weights VMEM-resident."""
    h = jnp.dot(x_ref[...], w1_ref[...], preferred_element_type=jnp.float32)
    h = jnp.maximum(h + b1_ref[...], 0.0).astype(w2_ref.dtype)
    h = jnp.dot(h, w2_ref[...], preferred_element_type=jnp.float32)
    h = jnp.maximum(h + b2_ref[...], 0.0).astype(w3_ref.dtype)
    h = jnp.dot(h, w3_ref[...], preferred_element_type=jnp.float32) + b3_ref[...]
    o_ref[...] = h.astype(o_ref.dtype)


# ---------------------------------------------------------------------------
# Glue: im2col grouped by 2x2 pool-window position (XLA, fused under jit)
# ---------------------------------------------------------------------------
def _im2col_pool_nhwc(x, kh, kw):
    """x: (N,H,W,C) NHWC -> (4, N*Hp*Wp, kh*kw*C) patches for a valid stride-1
    conv followed by a 2x2/stride-2 max pool. K row order is (ki, kj, c),
    matching the weight prep in `prepare_params`."""
    N, H, W, C = x.shape
    Ho, Wo = H - kh + 1, W - kw + 1
    Hp, Wp = Ho // 2, Wo // 2
    cols = [x[:, ki:ki + Ho, kj:kj + Wo, :] for ki in range(kh) for kj in range(kw)]
    pat = jnp.stack(cols, axis=3)                      # (N, Ho, Wo, kh*kw, C)
    pat = pat.reshape(N, Ho, Wo, kh * kw * C)
    pat = pat[:, :2 * Hp, :2 * Wp, :]                  # crop odd edge (no-op here)
    pat = pat.reshape(N, Hp, 2, Wp, 2, kh * kw * C)
    pat = pat.transpose(2, 4, 0, 1, 3, 5)              # (2, 2, N, Hp, Wp, K)
    return pat.reshape(4, N * Hp * Wp, kh * kw * C), Hp, Wp


def conv_relu_pool(x_nhwc, w_mat, b_row, kh=5, kw=5):
    """Valid conv + bias + ReLU + 2x2 maxpool in one gridded Pallas call.
    x: (N,H,W,Cin) bf16 NHWC; w_mat: (kh*kw*Cin, Cout) bf16; b_row: (1,Cout) f32.
    Returns (N, Hp, Wp, Cout) bf16."""
    n = x_nhwc.shape[0]
    k, cout = w_mat.shape
    a, hp, wp = _im2col_pool_nhwc(x_nhwc, kh, kw)
    mp = a.shape[1]

    mp_pad = _round_up(mp, 16)                          # bf16 sublane packing
    tm = mp_pad if mp_pad <= _CONV_TM_CAP else _CONV_TM_CAP
    mp_pad = _round_up(mp_pad, tm)
    if mp_pad != mp:
        a = jnp.pad(a, ((0, 0), (0, mp_pad - mp), (0, 0)))

    out = pl.pallas_call(
        _conv_pool_kernel,
        out_shape=jax.ShapeDtypeStruct((mp_pad, cout), jnp.bfloat16),
        grid=(mp_pad // tm,),
        in_specs=[
            pl.BlockSpec((4, tm, k), lambda i: (0, i, 0)),
            pl.BlockSpec((k, cout), lambda i: (0, 0)),      # resident weight
            pl.BlockSpec((1, cout), lambda i: (0, 0)),      # resident bias
        ],
        out_specs=pl.BlockSpec((tm, cout), lambda i: (i, 0)),
        compiler_params=pltpu.CompilerParams(
            dimension_semantics=("parallel",),
            vmem_limit_bytes=_VMEM_LIMIT),
        cost_estimate=pl.CostEstimate(
            flops=2 * 4 * mp_pad * k * cout,
            transcendentals=0,
            bytes_accessed=int(a.size) * 2 + int(w_mat.size) * 2
                           + mp_pad * cout * 2),
    )(a, w_mat, b_row)
    return out[:mp].reshape(n, hp, wp, cout)


def fc_fused(x, params):
    """x: (M, 3200) bf16 -> (M, 10) f32 logits via one gridded Pallas call."""
    m, kin = x.shape
    h1 = params["fc1_w"].shape[1]
    h2 = params["fc2_w"].shape[1]
    n_out = params["fc3_w"].shape[1]

    m_pad = _round_up(m, 16)
    tm = m_pad if m_pad <= _FC_TM_CAP else _FC_TM_CAP
    m_pad = _round_up(m_pad, tm)
    if m_pad != m:
        x = jnp.pad(x, ((0, m_pad - m), (0, 0)))

    full = lambda arr: pl.BlockSpec(arr.shape, lambda i: (0, 0))  # resident
    out = pl.pallas_call(
        _fc_fused_kernel,
        out_shape=jax.ShapeDtypeStruct((m_pad, n_out), jnp.float32),
        grid=(m_pad // tm,),
        in_specs=[
            pl.BlockSpec((tm, kin), lambda i: (i, 0)),
            full(params["fc1_w"]), full(params["fc1_b"]),
            full(params["fc2_w"]), full(params["fc2_b"]),
            full(params["fc3_w"]), full(params["fc3_b"]),
        ],
        out_specs=pl.BlockSpec((tm, n_out), lambda i: (i, 0)),
        compiler_params=pltpu.CompilerParams(
            dimension_semantics=("parallel",),
            vmem_limit_bytes=_VMEM_LIMIT),
        cost_estimate=pl.CostEstimate(
            flops=2 * m_pad * (kin * h1 + h1 * h2 + h2 * n_out),
            transcendentals=0,
            bytes_accessed=m_pad * kin * 2
                           + int(params["fc1_w"].size) * 2
                           + int(params["fc2_w"].size) * 2
                           + int(params["fc3_w"].size) * 2
                           + m_pad * n_out * 4),
    )(x, params["fc1_w"], params["fc1_b"],
      params["fc2_w"], params["fc2_b"],
      params["fc3_w"], params["fc3_b"])
    return out[:m]


# ---------------------------------------------------------------------------
# Parameters (PyTorch layouts) and one-time layout preparation
# ---------------------------------------------------------------------------
def init_params(key):
    ks = jax.random.split(key, 10)

    def w(k, shape, scale=0.05):
        return jax.random.normal(k, shape, jnp.float32) * scale

    return {
        "conv1_w": w(ks[0], (64, 3, 5, 5)),    "conv1_b": w(ks[1], (64,)),
        "conv2_w": w(ks[2], (128, 64, 5, 5)),  "conv2_b": w(ks[3], (128,)),
        "fc1_w": w(ks[4], (256, 128 * 5 * 5)), "fc1_b": w(ks[5], (256,)),
        "fc2_w": w(ks[6], (128, 256)),         "fc2_b": w(ks[7], (128,)),
        "fc3_w": w(ks[8], (10, 128)),          "fc3_b": w(ks[9], (10,)),
    }


def prepare_params(p):
    """One-time (outside the jitted forward) layout prep:
       * conv weights -> (kh*kw*Cin, Cout) bf16 with (ki, kj, c) row order
       * fc weights pre-transposed to (K, N) bf16; fc1 columns permuted from
         PyTorch's (c, h, w) flatten order to the NHWC (h, w, c) order the
         conv2 kernel emits, so the in-jit flatten is a free reshape
       * biases kept f32 (added to the f32 accumulator inside the kernels)."""
    bf16 = jnp.bfloat16

    def conv_mat(w):
        co, ci, kh, kw = w.shape
        return jnp.transpose(w, (2, 3, 1, 0)).reshape(kh * kw * ci, co).astype(bf16)

    fc1_w = (p["fc1_w"].reshape(256, 128, 5, 5)
             .transpose(0, 2, 3, 1)              # (out, h, w, c)
             .reshape(256, 128 * 5 * 5).T        # (3200, 256), rows (h, w, c)
             ).astype(bf16)

    return {
        "conv1_w": conv_mat(p["conv1_w"]),  "conv1_b": p["conv1_b"].reshape(1, -1),
        "conv2_w": conv_mat(p["conv2_w"]),  "conv2_b": p["conv2_b"].reshape(1, -1),
        "fc1_w": fc1_w,                     "fc1_b": p["fc1_b"].reshape(1, -1),
        "fc2_w": p["fc2_w"].T.astype(bf16), "fc2_b": p["fc2_b"].reshape(1, -1),
        "fc3_w": p["fc3_w"].T.astype(bf16), "fc3_b": p["fc3_b"].reshape(1, -1),
    }


# ---------------------------------------------------------------------------
# Forward pass (3 pallas_calls total)
# ---------------------------------------------------------------------------
def cnn_forward(params, x_nchw):
    x = jnp.transpose(x_nchw, (0, 2, 3, 1)).astype(jnp.bfloat16)     # NHWC bf16
    h = conv_relu_pool(x, params["conv1_w"], params["conv1_b"])      # (N,14,14,64)
    h = conv_relu_pool(h, params["conv2_w"], params["conv2_b"])      # (N,5,5,128)
    h = h.reshape(h.shape[0], -1)                                    # (N,3200) (h,w,c)
    return fc_fused(h, params)                                       # (N,10) f32


if __name__ == "__main__":
    key = jax.random.PRNGKey(0)
    pkey, xkey = jax.random.split(key)
    params = prepare_params(init_params(pkey))
    # Input must be 3x32x32 so fc1 = Linear(128*5*5, 256) is consistent.
    x = jax.random.normal(xkey, (2, 3, 32, 32), jnp.float32)

    fwd = jax.jit(cnn_forward)
    out = fwd(params, x)
    jax.block_until_ready(out)
    assert out.shape == (2, 10) and out.dtype == jnp.float32
    print("KERNEL_OK")
</pallas_src>

<mosaic_0001>
module attributes {stable_mosaic.version = 11 : i64} {
  func.func @_conv_pool_kernel(%arg0: i32, %arg1: memref<4x400x75xbf16, #tpu.memory_space<vmem>>, %arg2: memref<75x64xbf16, #tpu.memory_space<vmem>>, %arg3: memref<1x64xf32, #tpu.memory_space<vmem>>, %arg4: memref<400x64xbf16, #tpu.memory_space<vmem>>) attributes {dimension_semantics = [#tpu.dimension_semantics<parallel>], iteration_bounds = array<i64: 1>, scalar_prefetch = 0 : i64, scratch_operands = 0 : i64, tpu.core_type = #tpu.core_type<tc>, window_params = [{transform_indices = @transform_0, window_bounds = array<i64: 4, 400, 75>}, {pipeline_mode = #tpu.pipeline_mode<synchronous>, transform_indices = @transform_1, window_bounds = array<i64: 75, 64>}, {pipeline_mode = #tpu.pipeline_mode<synchronous>, transform_indices = @transform_2, window_bounds = array<i64: 1, 64>}, {transform_indices = @transform_3, window_bounds = array<i64: 400, 64>}]} {
    %c0 = arith.constant 0 : index
    %c0_0 = arith.constant 0 : index
    %c0_1 = arith.constant 0 : index
    %0 = vector.load %arg1[%c0, %c0_0, %c0_1] : memref<4x400x75xbf16, #tpu.memory_space<vmem>>, vector<4x400x75xbf16>
    %1 = vector.shape_cast %0 : vector<4x400x75xbf16> to vector<1600x75xbf16>
    %c0_2 = arith.constant 0 : index
    %c0_3 = arith.constant 0 : index
    %2 = vector.load %arg2[%c0_2, %c0_3] : memref<75x64xbf16, #tpu.memory_space<vmem>>, vector<75x64xbf16>
    %cst = arith.constant dense<0.000000e+00> : vector<1600x64xf32>
    %3 = tpu.matmul %1, %2, %cst {dimension_numbers = #tpu.dot_dimension_numbers<[1], [0], [0], [1], [0, 0, 1, 1], [], []>} : vector<1600x75xbf16>, vector<75x64xbf16>, vector<1600x64xf32> -> vector<1600x64xf32>
    %4 = vector.shape_cast %3 : vector<1600x64xf32> to vector<4x400x64xf32>
    %cst_4 = arith.constant dense<0xFF800000> : vector<400x64xf32>
    %5 = vector.multi_reduction <maximumf>, %4, %cst_4 [0] : vector<4x400x64xf32> to vector<400x64xf32>
    %c0_5 = arith.constant 0 : index
    %c0_6 = arith.constant 0 : index
    %6 = vector.load %arg3[%c0_5, %c0_6] : memref<1x64xf32, #tpu.memory_space<vmem>>, vector<1x64xf32>
    %7 = vector.broadcast %6 : vector<1x64xf32> to vector<400x64xf32>
    %8 = arith.addf %5, %7 : vector<400x64xf32>
    %cst_7 = arith.constant 0.000000e+00 : f32
    %9 = vector.broadcast %cst_7 : f32 to vector<400x64xf32>
    %10 = arith.maximumf %8, %9 : vector<400x64xf32>
    %11 = arith.truncf %10 : vector<400x64xf32> to vector<400x64xbf16>
    %c0_8 = arith.constant 0 : index
    %c0_9 = arith.constant 0 : index
    %12 = vector.load %arg4[%c0_8, %c0_9] : memref<400x64xbf16, #tpu.memory_space<vmem>>, vector<400x64xbf16>
    tpu.vector_store %arg4[%c0_8, %c0_9], %11 {strides = array<i32>} : memref<400x64xbf16, #tpu.memory_space<vmem>>, vector<400x64xbf16>,
    return
  }
  func.func @transform_0(%arg0: i32) -> (i32, i32, i32) {
    %c0_i32 = arith.constant 0 : i32
    %c0_i32_0 = arith.constant 0 : i32
    %c0_i32_1 = arith.constant 0 : i32
    return %c0_i32, %arg0, %c0_i32_0 : i32, i32, i32
  }
  func.func @transform_1(%arg0: i32) -> (i32, i32) {
    %c0_i32 = arith.constant 0 : i32
    %c0_i32_0 = arith.constant 0 : i32
    %c0_i32_1 = arith.constant 0 : i32
    return %c0_i32, %c0_i32_0 : i32, i32
  }
  func.func @transform_2(%arg0: i32) -> (i32, i32) {
    %c0_i32 = arith.constant 0 : i32
    %c0_i32_0 = arith.constant 0 : i32
    %c0_i32_1 = arith.constant 0 : i32
    return %c0_i32, %c0_i32_0 : i32, i32
  }
  func.func @transform_3(%arg0: i32) -> (i32, i32) {
    %c0_i32 = arith.constant 0 : i32
    %c0_i32_0 = arith.constant 0 : i32
    return %arg0, %c0_i32 : i32, i32
  }
}

module attributes {stable_mosaic.version = 11 : i64} {
  func.func @_conv_pool_kernel(%arg0: i32, %arg1: memref<4x64x1600xbf16, #tpu.memory_space<vmem>>, %arg2: memref<1600x128xbf16, #tpu.memory_space<vmem>>, %arg3: memref<1x128xf32, #tpu.memory_space<vmem>>, %arg4: memref<64x128xbf16, #tpu.memory_space<vmem>>) attributes {dimension_semantics = [#tpu.dimension_semantics<parallel>], iteration_bounds = array<i64: 1>, scalar_prefetch = 0 : i64, scratch_operands = 0 : i64, tpu.core_type = #tpu.core_type<tc>, window_params = [{transform_indices = @transform_0, window_bounds = array<i64: 4, 64, 1600>}, {pipeline_mode = #tpu.pipeline_mode<synchronous>, transform_indices = @transform_1, window_bounds = array<i64: 1600, 128>}, {pipeline_mode = #tpu.pipeline_mode<synchronous>, transform_indices = @transform_2, window_bounds = array<i64: 1, 128>}, {transform_indices = @transform_3, window_bounds = array<i64: 64, 128>}]} {
    %c0 = arith.constant 0 : index
    %c0_0 = arith.constant 0 : index
    %c0_1 = arith.constant 0 : index
    %0 = vector.load %arg1[%c0, %c0_0, %c0_1] : memref<4x64x1600xbf16, #tpu.memory_space<vmem>>, vector<4x64x1600xbf16>
    %1 = vector.shape_cast %0 : vector<4x64x1600xbf16> to vector<256x1600xbf16>
    %c0_2 = arith.constant 0 : index
    %c0_3 = arith.constant 0 : index
    %2 = vector.load %arg2[%c0_2, %c0_3] : memref<1600x128xbf16, #tpu.memory_space<vmem>>, vector<1600x128xbf16>
    %cst = arith.constant dense<0.000000e+00> : vector<256x128xf32>
    %3 = tpu.matmul %1, %2, %cst {dimension_numbers = #tpu.dot_dimension_numbers<[1], [0], [0], [1], [0, 0, 1, 1], [], []>} : vector<256x1600xbf16>, vector<1600x128xbf16>, vector<256x128xf32> -> vector<256x128xf32>
    %4 = vector.shape_cast %3 : vector<256x128xf32> to vector<4x64x128xf32>
    %cst_4 = arith.constant dense<0xFF800000> : vector<64x128xf32>
    %5 = vector.multi_reduction <maximumf>, %4, %cst_4 [0] : vector<4x64x128xf32> to vector<64x128xf32>
    %c0_5 = arith.constant 0 : index
    %c0_6 = arith.constant 0 : index
    %6 = vector.load %arg3[%c0_5, %c0_6] : memref<1x128xf32, #tpu.memory_space<vmem>>, vector<1x128xf32>
    %7 = vector.broadcast %6 : vector<1x128xf32> to vector<64x128xf32>
    %8 = arith.addf %5, %7 : vector<64x128xf32>
    %cst_7 = arith.constant 0.000000e+00 : f32
    %9 = vector.broadcast %cst_7 : f32 to vector<64x128xf32>
    %10 = arith.maximumf %8, %9 : vector<64x128xf32>
    %11 = arith.truncf %10 : vector<64x128xf32> to vector<64x128xbf16>
    %c0_8 = arith.constant 0 : index
    %c0_9 = arith.constant 0 : index
    %12 = vector.load %arg4[%c0_8, %c0_9] : memref<64x128xbf16, #tpu.memory_space<vmem>>, vector<64x128xbf16>
    tpu.vector_store %arg4[%c0_8, %c0_9], %11 {strides = array<i32>} : memref<64x128xbf16, #tpu.memory_space<vmem>>, vector<64x128xbf16>,
    return
  }
  func.func @transform_0(%arg0: i32) -> (i32, i32, i32) {
    %c0_i32 = arith.constant 0 : i32
    %c0_i32_0 = arith.constant 0 : i32
    %c0_i32_1 = arith.constant 0 : i32
    return %c0_i32, %arg0, %c0_i32_0 : i32, i32, i32
  }
  func.func @transform_1(%arg0: i32) -> (i32, i32) {
    %c0_i32 = arith.constant 0 : i32
    %c0_i32_0 = arith.constant 0 : i32
    %c0_i32_1 = arith.constant 0 : i32
    return %c0_i32, %c0_i32_0 : i32, i32
  }
  func.func @transform_2(%arg0: i32) -> (i32, i32) {
    %c0_i32 = arith.constant 0 : i32
    %c0_i32_0 = arith.constant 0 : i32
    %c0_i32_1 = arith.constant 0 : i32
    return %c0_i32, %c0_i32_0 : i32, i32
  }
  func.func @transform_3(%arg0: i32) -> (i32, i32) {
    %c0_i32 = arith.constant 0 : i32
    %c0_i32_0 = arith.constant 0 : i32
    return %arg0, %c0_i32 : i32, i32
  }
}

module attributes {stable_mosaic.version = 11 : i64} {
  func.func @_fc_fused_kernel(%arg0: i32, %arg1: memref<16x3200xbf16, #tpu.memory_space<vmem>>, %arg2: memref<3200x256xbf16, #tpu.memory_space<vmem>>, %arg3: memref<1x256xf32, #tpu.memory_space<vmem>>, %arg4: memref<256x128xbf16, #tpu.memory_space<vmem>>, %arg5: memref<1x128xf32, #tpu.memory_space<vmem>>, %arg6: memref<128x10xbf16, #tpu.memory_space<vmem>>, %arg7: memref<1x10xf32, #tpu.memory_space<vmem>>, %arg8: memref<16x10xf32, #tpu.memory_space<vmem>>) attributes {dimension_semantics = [#tpu.dimension_semantics<parallel>], iteration_bounds = array<i64: 1>, scalar_prefetch = 0 : i64, scratch_operands = 0 : i64, tpu.core_type = #tpu.core_type<tc>, window_params = [{transform_indices = @transform_0, window_bounds = array<i64: 16, 3200>}, {pipeline_mode = #tpu.pipeline_mode<synchronous>, transform_indices = @transform_1, window_bounds = array<i64: 3200, 256>}, {pipeline_mode = #tpu.pipeline_mode<synchronous>, transform_indices = @transform_2, window_bounds = array<i64: 1, 256>}, {pipeline_mode = #tpu.pipeline_mode<synchronous>, transform_indices = @transform_3, window_bounds = array<i64: 256, 128>}, {pipeline_mode = #tpu.pipeline_mode<synchronous>, transform_indices = @transform_4, window_bounds = array<i64: 1, 128>}, {pipeline_mode = #tpu.pipeline_mode<synchronous>, transform_indices = @transform_5, window_bounds = array<i64: 128, 10>}, {pipeline_mode = #tpu.pipeline_mode<synchronous>, transform_indices = @transform_6, window_bounds = array<i64: 1, 10>}, {transform_indices = @transform_7, window_bounds = array<i64: 16, 10>}]} {
    %c0 = arith.constant 0 : index
    %c0_0 = arith.constant 0 : index
    %0 = vector.load %arg1[%c0, %c0_0] : memref<16x3200xbf16, #tpu.memory_space<vmem>>, vector<16x3200xbf16>
    %c0_1 = arith.constant 0 : index
    %c0_2 = arith.constant 0 : index
    %1 = vector.load %arg2[%c0_1, %c0_2] : memref<3200x256xbf16, #tpu.memory_space<vmem>>, vector<3200x256xbf16>
    %cst = arith.constant dense<0.000000e+00> : vector<16x256xf32>
    %2 = tpu.matmul %0, %1, %cst {dimension_numbers = #tpu.dot_dimension_numbers<[1], [0], [0], [1], [0, 0, 1, 1], [], []>} : vector<16x3200xbf16>, vector<3200x256xbf16>, vector<16x256xf32> -> vector<16x256xf32>
    %c0_3 = arith.constant 0 : index
    %c0_4 = arith.constant 0 : index
    %3 = vector.load %arg3[%c0_3, %c0_4] : memref<1x256xf32, #tpu.memory_space<vmem>>, vector<1x256xf32>
    %4 = vector.broadcast %3 : vector<1x256xf32> to vector<16x256xf32>
    %5 = arith.addf %2, %4 : vector<16x256xf32>
    %cst_5 = arith.constant 0.000000e+00 : f32
    %6 = vector.broadcast %cst_5 : f32 to vector<16x256xf32>
    %7 = arith.maximumf %5, %6 : vector<16x256xf32>
    %8 = arith.truncf %7 : vector<16x256xf32> to vector<16x256xbf16>
    %c0_6 = arith.constant 0 : index
    %c0_7 = arith.constant 0 : index
    %9 = vector.load %arg4[%c0_6, %c0_7] : memref<256x128xbf16, #tpu.memory_space<vmem>>, vector<256x128xbf16>
    %cst_8 = arith.constant dense<0.000000e+00> : vector<16x128xf32>
    %10 = tpu.matmul %8, %9, %cst_8 {dimension_numbers = #tpu.dot_dimension_numbers<[1], [0], [0], [1], [0, 0, 1, 1], [], []>} : vector<16x256xbf16>, vector<256x128xbf16>, vector<16x128xf32> -> vector<16x128xf32>
    %c0_9 = arith.constant 0 : index
    %c0_10 = arith.constant 0 : index
    %11 = vector.load %arg5[%c0_9, %c0_10] : memref<1x128xf32, #tpu.memory_space<vmem>>, vector<1x128xf32>
    %12 = vector.broadcast %11 : vector<1x128xf32> to vector<16x128xf32>
    %13 = arith.addf %10, %12 : vector<16x128xf32>
    %cst_11 = arith.constant 0.000000e+00 : f32
    %14 = vector.broadcast %cst_11 : f32 to vector<16x128xf32>
    %15 = arith.maximumf %13, %14 : vector<16x128xf32>
    %16 = arith.truncf %15 : vector<16x128xf32> to vector<16x128xbf16>
    %c0_12 = arith.constant 0 : index
    %c0_13 = arith.constant 0 : index
    %17 = vector.load %arg6[%c0_12, %c0_13] : memref<128x10xbf16, #tpu.memory_space<vmem>>, vector<128x10xbf16>
    %cst_14 = arith.constant dense<0.000000e+00> : vector<16x10xf32>
    %18 = tpu.matmul %16, %17, %cst_14 {dimension_numbers = #tpu.dot_dimension_numbers<[1], [0], [0], [1], [0, 0, 1, 1], [], []>} : vector<16x128xbf16>, vector<128x10xbf16>, vector<16x10xf32> -> vector<16x10xf32>
    %c0_15 = arith.constant 0 : index
    %c0_16 = arith.constant 0 : index
    %19 = vector.load %arg7[%c0_15, %c0_16] : memref<1x10xf32, #tpu.memory_space<vmem>>, vector<1x10xf32>
    %20 = vector.broadcast %19 : vector<1x10xf32> to vector<16x10xf32>
    %21 = arith.addf %18, %20 : vector<16x10xf32>
    %c0_17 = arith.constant 0 : index
    %c0_18 = arith.constant 0 : index
    %22 = vector.load %arg8[%c0_17, %c0_18] : memref<16x10xf32, #tpu.memory_space<vmem>>, vector<16x10xf32>
    tpu.vector_store %arg8[%c0_17, %c0_18], %21 {strides = array<i32>} : memref<16x10xf32, #tpu.memory_space<vmem>>, vector<16x10xf32>,
    return
  }
  func.func @transform_0(%arg0: i32) -> (i32, i32) {
    %c0_i32 = arith.constant 0 : i32
    %c0_i32_0 = arith.constant 0 : i32
    return %arg0, %c0_i32 : i32, i32
  }
  func.func @transform_1(%arg0: i32) -> (i32, i32) {
    %c0_i32 = arith.constant 0 : i32
    %c0_i32_0 = arith.constant 0 : i32
    %c0_i32_1 = arith.constant 0 : i32
    return %c0_i32, %c0_i32_0 : i32, i32
  }
  func.func @transform_2(%arg0: i32) -> (i32, i32) {
    %c0_i32 = arith.constant 0 : i32
    %c0_i32_0 = arith.constant 0 : i32
    %c0_i32_1 = arith.constant 0 : i32
    return %c0_i32, %c0_i32_0 : i32, i32
  }
  func.func @transform_3(%arg0: i32) -> (i32, i32) {
    %c0_i32 = arith.constant 0 : i32
    %c0_i32_0 = arith.constant 0 : i32
    %c0_i32_1 = arith.constant 0 : i32
    return %c0_i32, %c0_i32_0 : i32, i32
  }
  func.func @transform_4(%arg0: i32) -> (i32, i32) {
    %c0_i32 = arith.constant 0 : i32
    %c0_i32_0 = arith.constant 0 : i32
    %c0_i32_1 = arith.constant 0 : i32
    return %c0_i32, %c0_i32_0 : i32, i32
  }
  func.func @transform_5(%arg0: i32) -> (i32, i32) {
    %c0_i32 = arith.constant 0 : i32
    %c0_i32_0 = arith.constant 0 : i32
    %c0_i32_1 = arith.constant 0 : i32
    return %c0_i32, %c0_i32_0 : i32, i32
  }
  func.func @transform_6(%arg0: i32) -> (i32, i32) {
    %c0_i32 = arith.constant 0 : i32
    %c0_i32_0 = arith.constant 0 : i32
    %c0_i32_1 = arith.constant 0 : i32
    return %c0_i32, %c0_i32_0 : i32, i32
  }
  func.func @transform_7(%arg0: i32) -> (i32, i32) {
    %c0_i32 = arith.constant 0 : i32
    %c0_i32_0 = arith.constant 0 : i32
    return %arg0, %c0_i32 : i32, i32
  }
}

</mosaic_0001>

<llo_original>
// kernel: cnn_forward.3
$region0: #{cnn_forward.3}
  #allocation0 [shape = 'u32[]', space=smem, size = 0x4, offset = 0x4, fixed_abs, tag = 'smem constant byte address 0x4 - core index']
  #allocation1 [shape = 'u32[72,128]{1,0:T(1,128)}', space=vmem, size = 0x9000, scoped, tag = 'internal scratch']
  %s0 = inlined_call_operand.vmem [shape: bf16[4,400,75], index: 0, kind: input, shape index: {}]
  %s1 = inlined_call_operand.vmem [shape: bf16[75,64], index: 1, kind: input, shape index: {}]
  %s2 = inlined_call_operand.vmem [shape: f32[1,64], index: 2, kind: input, shape index: {}]
  %s3 = inlined_call_operand.vmem [shape: bf16[400,64], index: 3, kind: output, shape index: {}]
  %s4 = sld [smem:[#allocation0]]
  $region22: #{cnn_forward.3} parent=0
    _
  %s6 = ssub.s32 1, %s4
  %s7 = scalar_select 0, %s6, %s4
  // Predicated region
  $region2: #{cnn_forward.3} parent=0 // pred_check
    _
  $region3: #{cnn_forward.3} parent=0 // pred_check_branch
    %9 = sbr.rel (0) target = $region5
  $region4: #{cnn_forward.3} parent=0 // pred_region
    _
  $region5: #{cnn_forward.3} parent=0 // pred_fallthru
    _
  // Predicated region
  $region6: #{cnn_forward.3} parent=0 // pred_check
    _
  $region7: #{cnn_forward.3} parent=0 // pred_check_branch
    %11 = sbr.rel (0) target = $region9
  $region8: #{cnn_forward.3} parent=0 // pred_region
    _
  $region9: #{cnn_forward.3} parent=0 // pred_fallthru
    _
  // Predicated region
  $region10: #{cnn_forward.3} parent=0 // pred_check
    _
  $region11: #{cnn_forward.3} parent=0 // pred_check_branch
    %13 = sbr.rel (0) target = $region13
  $region12: #{cnn_forward.3} parent=0 // pred_region
    _
  $region13: #{cnn_forward.3} parent=0 // pred_fallthru
    _
  %v15 = vld [vmem:[%s0] sm:$0xf]
  %v16 = vld [vmem:[%s0 + $0x4] sm:$0xf]
  %v17 = vld [vmem:[%s0 + $0x8] sm:$0xf]
  %v18 = vld [vmem:[%s0 + $0xc] sm:$0xf]
  %v19 = vld [vmem:[%s0 + $0x10] sm:$0xf]
  %v20 = vld [vmem:[%s0 + $0x14] sm:$0xf]
  %v21 = vld [vmem:[%s0 + $0x18] sm:$0xf]
  %v22 = vld [vmem:[%s0 + $0x1c] sm:$0xf]
  %v23 = vld [vmem:[%s0 + $0x20] sm:$0xf]
  %v24 = vld [vmem:[%s0 + $0x24] sm:$0xf]
  %v25 = vld [vmem:[%s0 + $0x28] sm:$0xf]
  %v26 = vld [vmem:[%s0 + $0x2c] sm:$0xf]
  %v27 = vld [vmem:[%s0 + $0x30] sm:$0xf]
  %v28 = vld [vmem:[%s0 + $0x34] sm:$0xf]
  %v29 = vld [vmem:[%s0 + $0x38] sm:$0xf]
  %v30 = vld [vmem:[%s0 + $0x3c] sm:$0xf]
  %v31 = vld [vmem:[%s0 + $0x40] sm:$0xf]
  %v32 = vld [vmem:[%s0 + $0x44] sm:$0xf]
  %v33 = vld [vmem:[%s0 + $0x48] sm:$0xf]
  %v34 = vld [vmem:[%s0 + $0x4c] sm:$0xf]
  %v35 = vld [vmem:[%s0 + $0x50] sm:$0xf]
  %v36 = vld [vmem:[%s0 + $0x54] sm:$0xf]
  %v37 = vld [vmem:[%s0 + $0x58] sm:$0xf]
  %v38 = vld [vmem:[%s0 + $0x5c] sm:$0xf]
  %v39 = vld [vmem:[%s0 + $0x60] sm:$0xf]
  %v40 = vld [vmem:[%s0 + $0x64] sm:$0xf]
  %v41 = vld [vmem:[%s0 + $0x68] sm:$0xf]
  %v42 = vld [vmem:[%s0 + $0x6c] sm:$0xf]
  %v43 = vld [vmem:[%s0 + $0x70] sm:$0xf]
  %v44 = vld [vmem:[%s0 + $0x74] sm:$0xf]
  %v45 = vld [vmem:[%s0 + $0x78] sm:$0xf]
  %v46 = vld [vmem:[%s0 + $0x7c] sm:$0xf]
  %v47 = vld [vmem:[%s0 + $0x80] sm:$0xf]
  %v48 = vld [vmem:[%s0 + $0x84] sm:$0xf]
  %v49 = vld [vmem:[%s0 + $0x88] sm:$0xf]
  %v50 = vld [vmem:[%s0 + $0x8c] sm:$0xf]
  %v51 = vld [vmem:[%s0 + $0x90] sm:$0xf]
  %v52 = vld [vmem:[%s0 + $0x94] sm:$0xf]
  %v53 = vld [vmem:[%s0 + $0x98] sm:$0xf]
  %v54 = vld [vmem:[%s0 + $0x9c] sm:$0xf]
  %v55 = vld [vmem:[%s0 + $0xa0] sm:$0xf]
  %v56 = vld [vmem:[%s0 + $0xa4] sm:$0xf]
  %v57 = vld [vmem:[%s0 + $0xa8] sm:$0xf]
  %v58 = vld [vmem:[%s0 + $0xac] sm:$0xf]
  %v59 = vld [vmem:[%s0 + $0xb0] sm:$0xf]
  %v60 = vld [vmem:[%s0 + $0xb4] sm:$0xf]
  %v61 = vld [vmem:[%s0 + $0xb8] sm:$0xf]
  %v62 = vld [vmem:[%s0 + $0xbc] sm:$0xf]
  %v63 = vld [vmem:[%s0 + $0xc0] sm:$0xf]
  %v64 = vld [vmem:[%s0 + $0xc4] sm:$0xf]
  %v65 = vld [vmem:[%s0 + $0xc8] sm:$0xf]
  %v66 = vld [vmem:[%s0 + $0xcc] sm:$0xf]
  %v67 = vld [vmem:[%s0 + $0xd0] sm:$0xf]
  %v68 = vld [vmem:[%s0 + $0xd4] sm:$0xf]
  %v69 = vld [vmem:[%s0 + $0xd8] sm:$0xf]
  %v70 = vld [vmem:[%s0 + $0xdc] sm:$0xf]
  %v71 = vld [vmem:[%s0 + $0xe0] sm:$0xf]
  %v72 = vld [vmem:[%s0 + $0xe4] sm:$0xf]
  %v73 = vld [vmem:[%s0 + $0xe8] sm:$0xf]
  %v74 = vld [vmem:[%s0 + $0xec] sm:$0xf]
  %v75 = vld [vmem:[%s0 + $0xf0] sm:$0xf]
  %v76 = vld [vmem:[%s0 + $0xf4] sm:$0xf]
  %v77 = vld [vmem:[%s0 + $0xf8] sm:$0xf]
  %v78 = vld [vmem:[%s0 + $0xfc] sm:$0xf]
  %v79 = vld [vmem:[%s0 + $0x100] sm:$0xf]
  %v80 = vld [vmem:[%s0 + $0x104] sm:$0xf]
  %v81 = vld [vmem:[%s0 + $0x108] sm:$0xf]
  %v82 = vld [vmem:[%s0 + $0x10c] sm:$0xf]
  %v83 = vld [vmem:[%s0 + $0x110] sm:$0xf]
  %v84 = vld [vmem:[%s0 + $0x114] sm:$0xf]
  %v85 = vld [vmem:[%s0 + $0x118] sm:$0xf]
  %v86 = vld [vmem:[%s0 + $0x11c] sm:$0xf]
  %v87 = vld [vmem:[%s0 + $0x120] sm:$0xf]
  %v88 = vld [vmem:[%s0 + $0x124] sm:$0xf]
  %v89 = vld [vmem:[%s0 + $0x128] sm:$0xf]
  %v90 = vld [vmem:[%s0 + $0x12c] sm:$0xf]
  %v91 = vld [vmem:[%s0 + $0x130] sm:$0xf]
  %v92 = vld [vmem:[%s0 + $0x134] sm:$0xf]
  %v93 = vld [vmem:[%s0 + $0x138] sm:$0xf]
  %v94 = vld [vmem:[%s0 + $0x13c] sm:$0xf]
  %v95 = vld [vmem:[%s0 + $0x140] sm:$0xf]
  %v96 = vld [vmem:[%s0 + $0x144] sm:$0xf]
  %v97 = vld [vmem:[%s0 + $0x148] sm:$0xf]
  %v98 = vld [vmem:[%s0 + $0x14c] sm:$0xf]
  %v99 = vld [vmem:[%s0 + $0x150] sm:$0xf]
  %v100 = vld [vmem:[%s0 + $0x154] sm:$0xf]
  %v101 = vld [vmem:[%s0 + $0x158] sm:$0xf]
  %v102 = vld [vmem:[%s0 + $0x15c] sm:$0xf]
  %v103 = vld [vmem:[%s0 + $0x160] sm:$0xf]
  %v104 = vld [vmem:[%s0 + $0x164] sm:$0xf]
  %v105 = vld [vmem:[%s0 + $0x168] sm:$0xf]
  %v106 = vld [vmem:[%s0 + $0x16c] sm:$0xf]
  %v107 = vld [vmem:[%s0 + $0x170] sm:$0xf]
  %v108 = vld [vmem:[%s0 + $0x174] sm:$0xf]
  %v109 = vld [vmem:[%s0 + $0x178] sm:$0xf]
  %v110 = vld [vmem:[%s0 + $0x17c] sm:$0xf]
  %v111 = vld [vmem:[%s0 + $0x180] sm:$0xf]
  %v112 = vld [vmem:[%s0 + $0x184] sm:$0xf]
  %v113 = vld [vmem:[%s0 + $0x188] sm:$0xf]
  %v114 = vld [vmem:[%s0 + $0x18c] sm:$0xf]
  %v115 = vld [vmem:[%s0 + $0x190] sm:$0xf]
  %v116 = vld [vmem:[%s0 + $0x194] sm:$0xf]
  %v117 = vld [vmem:[%s0 + $0x198] sm:$0xf]
  %v118 = vld [vmem:[%s0 + $0x19c] sm:$0xf]
  %v119 = vld [vmem:[%s0 + $0x1a0] sm:$0xf]
  %v120 = vld [vmem:[%s0 + $0x1a4] sm:$0xf]
  %v121 = vld [vmem:[%s0 + $0x1a8] sm:$0xf]
  %v122 = vld [vmem:[%s0 + $0x1ac] sm:$0xf]
  %v123 = vld [vmem:[%s0 + $0x1b0] sm:$0xf]
  %v124 = vld [vmem:[%s0 + $0x1b4] sm:$0xf]
  %v125 = vld [vmem:[%s0 + $0x1b8] sm:$0xf]
  %v126 = vld [vmem:[%s0 + $0x1bc] sm:$0xf]
  %v127 = vld [vmem:[%s0 + $0x1c0] sm:$0xf]
  %v128 = vld [vmem:[%s0 + $0x1c4] sm:$0xf]
  %v129 = vld [vmem:[%s0 + $0x1c8] sm:$0xf]
  %v130 = vld [vmem:[%s0 + $0x1cc] sm:$0xf]
  %v131 = vld [vmem:[%s0 + $0x1d0] sm:$0xf]
  %v132 = vld [vmem:[%s0 + $0x1d4] sm:$0xf]
  %v133 = vld [vmem:[%s0 + $0x1d8] sm:$0xf]
  %v134 = vld [vmem:[%s0 + $0x1dc] sm:$0xf]
  %v135 = vld [vmem:[%s0 + $0x1e0] sm:$0xf]
  %v136 = vld [vmem:[%s0 + $0x1e4] sm:$0xf]
  %v137 = vld [vmem:[%s0 + $0x1e8] sm:$0xf]
  %v138 = vld [vmem:[%s0 + $0x1ec] sm:$0xf]
  %v139 = vld [vmem:[%s0 + $0x1f0] sm:$0xf]
  %v140 = vld [vmem:[%s0 + $0x1f4] sm:$0xf]
  %v141 = vld [vmem:[%s0 + $0x1f8] sm:$0xf]
  %v142 = vld [vmem:[%s0 + $0x1fc] sm:$0xf]
  %v143 = vld [vmem:[%s0 + $0x200] sm:$0xf]
  %v144 = vld [vmem:[%s0 + $0x204] sm:$0xf]
  %v145 = vld [vmem:[%s0 + $0x208] sm:$0xf]
  %v146 = vld [vmem:[%s0 + $0x20c] sm:$0xf]
  %v147 = vld [vmem:[%s0 + $0x210] sm:$0xf]
  %v148 = vld [vmem:[%s0 + $0x214] sm:$0xf]
  %v149 = vld [vmem:[%s0 + $0x218] sm:$0xf]
  %v150 = vld [vmem:[%s0 + $0x21c] sm:$0xf]
  %v151 = vld [vmem:[%s0 + $0x220] sm:$0xf]
  %v152 = vld [vmem:[%s0 + $0x224] sm:$0xf]
  %v153 = vld [vmem:[%s0 + $0x228] sm:$0xf]
  %v154 = vld [vmem:[%s0 + $0x22c] sm:$0xf]
  %v155 = vld [vmem:[%s0 + $0x230] sm:$0xf]
  %v156 = vld [vmem:[%s0 + $0x234] sm:$0xf]
  %v157 = vld [vmem:[%s0 + $0x238] sm:$0xf]
  %v158 = vld [vmem:[%s0 + $0x23c] sm:$0xf]
  %v159 = vld [vmem:[%s0 + $0x240] sm:$0xf]
  %v160 = vld [vmem:[%s0 + $0x244] sm:$0xf]
  %v161 = vld [vmem:[%s0 + $0x248] sm:$0xf]
  %v162 = vld [vmem:[%s0 + $0x24c] sm:$0xf]
  %v163 = vld [vmem:[%s0 + $0x250] sm:$0xf]
  %v164 = vld [vmem:[%s0 + $0x254] sm:$0xf]
  %v165 = vld [vmem:[%s0 + $0x258] sm:$0xf]
  %v166 = vld [vmem:[%s0 + $0x25c] sm:$0xf]
  %v167 = vld [vmem:[%s0 + $0x260] sm:$0xf]
  %v168 = vld [vmem:[%s0 + $0x264] sm:$0xf]
  %v169 = vld [vmem:[%s0 + $0x268] sm:$0xf]
  %v170 = vld [vmem:[%s0 + $0x26c] sm:$0xf]
  %v171 = vld [vmem:[%s0 + $0x270] sm:$0xf]
  %v172 = vld [vmem:[%s0 + $0x274] sm:$0xf]
  %v173 = vld [vmem:[%s0 + $0x278] sm:$0xf]
  %v174 = vld [vmem:[%s0 + $0x27c] sm:$0xf]
  %v175 = vld [vmem:[%s0 + $0x280] sm:$0xf]
  %v176 = vld [vmem:[%s0 + $0x284] sm:$0xf]
  %v177 = vld [vmem:[%s0 + $0x288] sm:$0xf]
  %v178 = vld [vmem:[%s0 + $0x28c] sm:$0xf]
  %v179 = vld [vmem:[%s0 + $0x290] sm:$0xf]
  %v180 = vld [vmem:[%s0 + $0x294] sm:$0xf]
  %v181 = vld [vmem:[%s0 + $0x298] sm:$0xf]
  %v182 = vld [vmem:[%s0 + $0x29c] sm:$0xf]
  %v183 = vld [vmem:[%s0 + $0x2a0] sm:$0xf]
  %v184 = vld [vmem:[%s0 + $0x2a4] sm:$0xf]
  %v185 = vld [vmem:[%s0 + $0x2a8] sm:$0xf]
  %v186 = vld [vmem:[%s0 + $0x2ac] sm:$0xf]
  %v187 = vld [vmem:[%s0 + $0x2b0] sm:$0xf]
  %v188 = vld [vmem:[%s0 + $0x2b4] sm:$0xf]
  %v189 = vld [vmem:[%s0 + $0x2b8] sm:$0xf]
  %v190 = vld [vmem:[%s0 + $0x2bc] sm:$0xf]
  %v191 = vld [vmem:[%s0 + $0x2c0] sm:$0xf]
  %v192 = vld [vmem:[%s0 + $0x2c4] sm:$0xf]
  %v193 = vld [vmem:[%s0 + $0x2c8] sm:$0xf]
  %v194 = vld [vmem:[%s0 + $0x2cc] sm:$0xf]
  %v195 = vld [vmem:[%s0 + $0x2d0] sm:$0xf]
  %v196 = vld [vmem:[%s0 + $0x2d4] sm:$0xf]
  %v197 = vld [vmem:[%s0 + $0x2d8] sm:$0xf]
  %v198 = vld [vmem:[%s0 + $0x2dc] sm:$0xf]
  %v199 = vld [vmem:[%s0 + $0x2e0] sm:$0xf]
  %v200 = vld [vmem:[%s0 + $0x2e4] sm:$0xf]
  %v201 = vld [vmem:[%s0 + $0x2e8] sm:$0xf]
  %v202 = vld [vmem:[%s0 + $0x2ec] sm:$0xf]
  %v203 = vld [vmem:[%s0 + $0x2f0] sm:$0xf]
  %v204 = vld [vmem:[%s0 + $0x2f4] sm:$0xf]
  %v205 = vld [vmem:[%s0 + $0x2f8] sm:$0xf]
  %v206 = vld [vmem:[%s0 + $0x2fc] sm:$0xf]
  %v207 = vld [vmem:[%s0 + $0x300] sm:$0xf]
  %v208 = vld [vmem:[%s0 + $0x304] sm:$0xf]
  %v209 = vld [vmem:[%s0 + $0x308] sm:$0xf]
  %v210 = vld [vmem:[%s0 + $0x30c] sm:$0xf]
  %v211 = vld [vmem:[%s0 + $0x310] sm:$0xf]
  %v212 = vld [vmem:[%s0 + $0x314] sm:$0xf]
  %v213 = vld [vmem:[%s0 + $0x318] sm:$0xf]
  %v214 = vld [vmem:[%s0 + $0x31c] sm:$0xf]
  %v215 = vld [vmem:[%s1] sm:$0xf]
  %v216 = vld [vmem:[%s1 + $0x4] sm:$0xf]
  %v217 = vld [vmem:[%s1 + $0x8] sm:$0xf]
  %v218 = vld [vmem:[%s1 + $0xc] sm:$0xf]
  %v219 = vld [vmem:[%s1 + $0x10] sm:$0xf]
  %v220 = vld [vmem:[%s1 + $0x14] sm:$0xf]
  %v221 = vld [vmem:[%s1 + $0x18] sm:$0xf]
  %v222 = vld [vmem:[%s1 + $0x1c] sm:$0xf]
  %v223 = vld [vmem:[%s1 + $0x20] sm:$0xf]
  %v224 = vld [vmem:[%s1 + $0x24] sm:$0x3]
  %v425 = vunpack.c.l.b16 %v15
  %v426 = vunpack.c.l.b16 %v16
  %v427 = vunpack.c.l.b16 %v17
  %v428 = vunpack.c.l.b16 %v18
  %v429 = vunpack.c.l.b16 %v19
  %v430 = vunpack.c.l.b16 %v20
  %v431 = vunpack.c.l.b16 %v21
  %v432 = vunpack.c.l.b16 %v22
  %v433 = vunpack.c.l.b16 %v23
  %v434 = vunpack.c.l.b16 %v24
  %v435 = vunpack.c.l.b16 %v25
  %v436 = vunpack.c.l.b16 %v26
  %v437 = vunpack.c.l.b16 %v27
  %v438 = vunpack.c.l.b16 %v28
  %v439 = vunpack.c.l.b16 %v29
  %v440 = vunpack.c.l.b16 %v30
  %v441 = vunpack.c.l.b16 %v31
  %v442 = vunpack.c.l.b16 %v32
  %v443 = vunpack.c.l.b16 %v33
  %v444 = vunpack.c.l.b16 %v34
  %v445 = vunpack.c.l.b16 %v35
  %v446 = vunpack.c.l.b16 %v36
  %v447 = vunpack.c.l.b16 %v37
  %v448 = vunpack.c.l.b16 %v38
  %v449 = vunpack.c.l.b16 %v39
  %v450 = vunpack.c.l.b16 %v40
  %v451 = vunpack.c.l.b16 %v41
  %v452 = vunpack.c.l.b16 %v42
  %v453 = vunpack.c.l.b16 %v43
  %v454 = vunpack.c.l.b16 %v44
  %v455 = vunpack.c.l.b16 %v45
  %v456 = vunpack.c.l.b16 %v46
  %v457 = vunpack.c.l.b16 %v47
  %v458 = vunpack.c.l.b16 %v48
  %v459 = vunpack.c.l.b16 %v49
  %v460 = vunpack.c.l.b16 %v50
  %v461 = vunpack.c.l.b16 %v51
  %v462 = vunpack.c.l.b16 %v52
  %v463 = vunpack.c.l.b16 %v53
  %v464 = vunpack.c.l.b16 %v54
  %v465 = vunpack.c.l.b16 %v55
  %v466 = vunpack.c.l.b16 %v56
  %v467 = vunpack.c.l.b16 %v57
  %v468 = vunpack.c.l.b16 %v58
  %v469 = vunpack.c.l.b16 %v59
  %v470 = vunpack.c.l.b16 %v60
  %v471 = vunpack.c.l.b16 %v61
  %v472 = vunpack.c.l.b16 %v62
  %v473 = vunpack.c.l.b16 %v63
  %v474 = vunpack.c.l.b16 %v64
  %v475 = vunpack.c.l.b16 %v65
  %v476 = vunpack.c.l.b16 %v66
  %v477 = vunpack.c.l.b16 %v67
  %v478 = vunpack.c.l.b16 %v68
  %v479 = vunpack.c.l.b16 %v69
  %v480 = vunpack.c.l.b16 %v70
  %v481 = vunpack.c.l.b16 %v71
  %v482 = vunpack.c.l.b16 %v72
  %v483 = vunpack.c.l.b16 %v73
  %v484 = vunpack.c.l.b16 %v74
  %v485 = vunpack.c.l.b16 %v75
  %v486 = vunpack.c.l.b16 %v76
  %v487 = vunpack.c.l.b16 %v77
  %v488 = vunpack.c.l.b16 %v78
  %v489 = vunpack.c.l.b16 %v79
  %v490 = vunpack.c.l.b16 %v80
  %v491 = vunpack.c.l.b16 %v81
  %v492 = vunpack.c.l.b16 %v82
  %v493 = vunpack.c.l.b16 %v83
  %v494 = vunpack.c.l.b16 %v84
  %v495 = vunpack.c.l.b16 %v85
  %v496 = vunpack.c.l.b16 %v86
  %v497 = vunpack.c.l.b16 %v87
  %v498 = vunpack.c.l.b16 %v88
  %v499 = vunpack.c.l.b16 %v89
  %v500 = vunpack.c.l.b16 %v90
  %v501 = vunpack.c.l.b16 %v91
  %v502 = vunpack.c.l.b16 %v92
  %v503 = vunpack.c.l.b16 %v93
  %v504 = vunpack.c.l.b16 %v94
  %v505 = vunpack.c.l.b16 %v95
  %v506 = vunpack.c.l.b16 %v96
  %v507 = vunpack.c.l.b16 %v97
  %v508 = vunpack.c.l.b16 %v98
  %v509 = vunpack.c.l.b16 %v99
  %v510 = vunpack.c.l.b16 %v100
  %v511 = vunpack.c.l.b16 %v101
  %v512 = vunpack.c.l.b16 %v102
  %v513 = vunpack.c.l.b16 %v103
  %v514 = vunpack.c.l.b16 %v104
  %v515 = vunpack.c.l.b16 %v105
  %v516 = vunpack.c.l.b16 %v106
  %v517 = vunpack.c.l.b16 %v107
  %v518 = vunpack.c.l.b16 %v108
  %v519 = vunpack.c.l.b16 %v109
  %v520 = vunpack.c.l.b16 %v110
  %v521 = vunpack.c.l.b16 %v111
  %v522 = vunpack.c.l.b16 %v112
  %v523 = vunpack.c.l.b16 %v113
  %v524 = vunpack.c.l.b16 %v114
  %v525 = vunpack.c.l.b16 %v115
  %v526 = vunpack.c.l.b16 %v116
  %v527 = vunpack.c.l.b16 %v117
  %v528 = vunpack.c.l.b16 %v118
  %v529 = vunpack.c.l.b16 %v119
  %v530 = vunpack.c.l.b16 %v120
  %v531 = vunpack.c.l.b16 %v121
  %v532 = vunpack.c.l.b16 %v122
  %v533 = vunpack.c.l.b16 %v123
  %v534 = vunpack.c.l.b16 %v124
  %v535 = vunpack.c.l.b16 %v125
  %v536 = vunpack.c.l.b16 %v126
  %v537 = vunpack.c.l.b16 %v127
  %v538 = vunpack.c.l.b16 %v128
  %v539 = vunpack.c.l.b16 %v129
  %v540 = vunpack.c.l.b16 %v130
  %v541 = vunpack.c.l.b16 %v131
  %v542 = vunpack.c.l.b16 %v132
  %v543 = vunpack.c.l.b16 %v133
  %v544 = vunpack.c.l.b16 %v134
  %v545 = vunpack.c.l.b16 %v135
  %v546 = vunpack.c.l.b16 %v136
  %v547 = vunpack.c.l.b16 %v137
  %v548 = vunpack.c.l.b16 %v138
  %v549 = vunpack.c.l.b16 %v139
  %v550 = vunpack.c.l.b16 %v140
  %v551 = vunpack.c.l.b16 %v141
  %v552 = vunpack.c.l.b16 %v142
  %v553 = vunpack.c.l.b16 %v143
  %v554 = vunpack.c.l.b16 %v144
  %v555 = vunpack.c.l.b16 %v145
  %v556 = vunpack.c.l.b16 %v146
  %v557 = vunpack.c.l.b16 %v147
  %v558 = vunpack.c.l.b16 %v148
  %v559 = vunpack.c.l.b16 %v149
  %v560 = vunpack.c.l.b16 %v150
  %v561 = vunpack.c.l.b16 %v151
  %v562 = vunpack.c.l.b16 %v152
  %v563 = vunpack.c.l.b16 %v153
  %v564 = vunpack.c.l.b16 %v154
  %v565 = vunpack.c.l.b16 %v155
  %v566 = vunpack.c.l.b16 %v156
  %v567 = vunpack.c.l.b16 %v157
  %v568 = vunpack.c.l.b16 %v158
  %v569 = vunpack.c.l.b16 %v159
  %v570 = vunpack.c.l.b16 %v160
  %v571 = vunpack.c.l.b16 %v161
  %v572 = vunpack.c.l.b16 %v162
  %v573 = vunpack.c.l.b16 %v163
  %v574 = vunpack.c.l.b16 %v164
  %v575 = vunpack.c.l.b16 %v165
  %v576 = vunpack.c.l.b16 %v166
  %v577 = vunpack.c.l.b16 %v167
  %v578 = vunpack.c.l.b16 %v168
  %v579 = vunpack.c.l.b16 %v169
  %v580 = vunpack.c.l.b16 %v170
  %v581 = vunpack.c.l.b16 %v171
  %v582 = vunpack.c.l.b16 %v172
  %v583 = vunpack.c.l.b16 %v173
  %v584 = vunpack.c.l.b16 %v174
  %v585 = vunpack.c.l.b16 %v175
  %v586 = vunpack.c.l.b16 %v176
  %v587 = vunpack.c.l.b16 %v177
  %v588 = vunpack.c.l.b16 %v178
  %v589 = vunpack.c.l.b16 %v179
  %v590 = vunpack.c.l.b16 %v180
  %v591 = vunpack.c.l.b16 %v181
  %v592 = vunpack.c.l.b16 %v182
  %v593 = vunpack.c.l.b16 %v183
  %v594 = vunpack.c.l.b16 %v184
  %v595 = vunpack.c.l.b16 %v185
  %v596 = vunpack.c.l.b16 %v186
  %v597 = vunpack.c.l.b16 %v187
  %v598 = vunpack.c.l.b16 %v188
  %v599 = vunpack.c.l.b16 %v189
  %v600 = vunpack.c.l.b16 %v190
  %v601 = vunpack.c.l.b16 %v191
  %v602 = vunpack.c.l.b16 %v192
  %v603 = vunpack.c.l.b16 %v193
  %v604 = vunpack.c.l.b16 %v194
  %v605 = vunpack.c.l.b16 %v195
  %v606 = vunpack.c.l.b16 %v196
  %v607 = vunpack.c.l.b16 %v197
  %v608 = vunpack.c.l.b16 %v198
  %v609 = vunpack.c.l.b16 %v199
  %v610 = vunpack.c.l.b16 %v200
  %v611 = vunpack.c.l.b16 %v201
  %v612 = vunpack.c.l.b16 %v202
  %v613 = vunpack.c.l.b16 %v203
  %v614 = vunpack.c.l.b16 %v204
  %v615 = vunpack.c.l.b16 %v205
  %v616 = vunpack.c.l.b16 %v206
  %v617 = vunpack.c.l.b16 %v207
  %v618 = vunpack.c.l.b16 %v208
  %v619 = vunpack.c.l.b16 %v209
  %v620 = vunpack.c.l.b16 %v210
  %v621 = vunpack.c.l.b16 %v211
  %v622 = vunpack.c.l.b16 %v212
  %v623 = vunpack.c.l.b16 %v213
  %v624 = vunpack.c.l.b16 %v214
  %v625 = vpack.c.b16 %v426, %v425
  %v626 = vpack.c.b16 %v428, %v427
  %v627 = vpack.c.b16 %v430, %v429
  %v628 = vpack.c.b16 %v432, %v431
  %v629 = vpack.c.b16 %v434, %v433
  %v630 = vpack.c.b16 %v436, %v435
  %v631 = vpack.c.b16 %v438, %v437
  %v632 = vpack.c.b16 %v440, %v439
  %v633 = vpack.c.b16 %v442, %v441
  %v634 = vpack.c.b16 %v444, %v443
  %v635 = vpack.c.b16 %v446, %v445
  %v636 = vpack.c.b16 %v448, %v447
  %v637 = vpack.c.b16 %v450, %v449
  %v638 = vpack.c.b16 %v452, %v451
  %v639 = vpack.c.b16 %v454, %v453
  %v640 = vpack.c.b16 %v456, %v455
  %v641 = vpack.c.b16 %v458, %v457
  %v642 = vpack.c.b16 %v460, %v459
  %v643 = vpack.c.b16 %v462, %v461
  %v644 = vpack.c.b16 %v464, %v463
  %v645 = vpack.c.b16 %v466, %v465
  %v646 = vpack.c.b16 %v468, %v467
  %v647 = vpack.c.b16 %v470, %v469
  %v648 = vpack.c.b16 %v472, %v471
  %v649 = vpack.c.b16 %v474, %v473
  %v650 = vpack.c.b16 %v476, %v475
  %v651 = vpack.c.b16 %v478, %v477
  %v652 = vpack.c.b16 %v480, %v479
  %v653 = vpack.c.b16 %v482, %v481
  %v654 = vpack.c.b16 %v484, %v483
  %v655 = vpack.c.b16 %v486, %v485
  %v656 = vpack.c.b16 %v488, %v487
  %v657 = vpack.c.b16 %v490, %v489
  %v658 = vpack.c.b16 %v492, %v491
  %v659 = vpack.c.b16 %v494, %v493
  %v660 = vpack.c.b16 %v496, %v495
  %v661 = vpack.c.b16 %v498, %v497
  %v662 = vpack.c.b16 %v500, %v499
  %v663 = vpack.c.b16 %v502, %v501
  %v664 = vpack.c.b16 %v504, %v503
  %v665 = vpack.c.b16 %v506, %v505
  %v666 = vpack.c.b16 %v508, %v507
  %v667 = vpack.c.b16 %v510, %v509
  %v668 = vpack.c.b16 %v512, %v511
  %v669 = vpack.c.b16 %v514, %v513
  %v670 = vpack.c.b16 %v516, %v515
  %v671 = vpack.c.b16 %v518, %v517
  %v672 = vpack.c.b16 %v520, %v519
  %v673 = vpack.c.b16 %v522, %v521
  %v674 = vpack.c.b16 %v524, %v523
  %v675 = vpack.c.b16 %v526, %v525
  %v676 = vpack.c.b16 %v528, %v527
  %v677 = vpack.c.b16 %v530, %v529
  %v678 = vpack.c.b16 %v532, %v531
  %v679 = vpack.c.b16 %v534, %v533
  %v680 = vpack.c.b16 %v536, %v535
  %v681 = vpack.c.b16 %v538, %v537
  %v682 = vpack.c.b16 %v540, %v539
  %v683 = vpack.c.b16 %v542, %v541
  %v684 = vpack.c.b16 %v544, %v543
  %v685 = vpack.c.b16 %v546, %v545
  %v686 = vpack.c.b16 %v548, %v547
  %v687 = vpack.c.b16 %v550, %v549
  %v688 = vpack.c.b16 %v552, %v551
  %v689 = vpack.c.b16 %v554, %v553
  %v690 = vpack.c.b16 %v556, %v555
  %v691 = vpack.c.b16 %v558, %v557
  %v692 = vpack.c.b16 %v560, %v559
  %v693 = vpack.c.b16 %v562, %v561
  %v694 = vpack.c.b16 %v564, %v563
  %v695 = vpack.c.b16 %v566, %v565
  %v696 = vpack.c.b16 %v568, %v567
  %v697 = vpack.c.b16 %v570, %v569
  %v698 = vpack.c.b16 %v572, %v571
  %v699 = vpack.c.b16 %v574, %v573
  %v700 = vpack.c.b16 %v576, %v575
  %v701 = vpack.c.b16 %v578, %v577
  %v702 = vpack.c.b16 %v580, %v579
  %v703 = vpack.c.b16 %v582, %v581
  %v704 = vpack.c.b16 %v584, %v583
  %v705 = vpack.c.b16 %v586, %v585
  %v706 = vpack.c.b16 %v588, %v587
  %v707 = vpack.c.b16 %v590, %v589
  %v708 = vpack.c.b16 %v592, %v591
  %v709 = vpack.c.b16 %v594, %v593
  %v710 = vpack.c.b16 %v596, %v595
  %v711 = vpack.c.b16 %v598, %v597
  %v712 = vpack.c.b16 %v600, %v599
  %v713 = vpack.c.b16 %v602, %v601
  %v714 = vpack.c.b16 %v604, %v603
  %v715 = vpack.c.b16 %v606, %v605
  %v716 = vpack.c.b16 %v608, %v607
  %v717 = vpack.c.b16 %v610, %v609
  %v718 = vpack.c.b16 %v612, %v611
  %v719 = vpack.c.b16 %v614, %v613
  %v720 = vpack.c.b16 %v616, %v615
  %v721 = vpack.c.b16 %v618, %v617
  %v722 = vpack.c.b16 %v620, %v619
  %v723 = vpack.c.b16 %v622, %v621
  %v724 = vpack.c.b16 %v624, %v623
  %v735 = vunpack.c.l.b16 %v215
  %v736 = vunpack.c.l.b16 %v216
  %v737 = vunpack.c.l.b16 %v217
  %v738 = vunpack.c.l.b16 %v218
  %v739 = vunpack.c.l.b16 %v219
  %v740 = vunpack.c.l.b16 %v220
  %v741 = vunpack.c.l.b16 %v221
  %v742 = vunpack.c.l.b16 %v222
  %v743 = vunpack.c.l.b16 %v223
  %v744 = vunpack.c.l.b16 %v224
  %v745 = vpack.c.b16 %v736, %v735
  %v746 = vpack.c.b16 %v738, %v737
  %v747 = vpack.c.b16 %v740, %v739
  %v748 = vpack.c.b16 %v742, %v741
  %v749 = vpack.c.b16 %v744, %v743
  %vm754 = vcmask 613376
  %v756 = vsel %vm754, %v625, 0
  %v759 = vsel %vm754, %v626, 0
  %v762 = vsel %vm754, %v627, 0
  %v765 = vsel %vm754, %v628, 0
  %v768 = vsel %vm754, %v629, 0
  %v771 = vsel %vm754, %v630, 0
  %v774 = vsel %vm754, %v631, 0
  %v777 = vsel %vm754, %v632, 0
  %v780 = vsel %vm754, %v633, 0
  %v783 = vsel %vm754, %v634, 0
  %v786 = vsel %vm754, %v635, 0
  %v789 = vsel %vm754, %v636, 0
  %v792 = vsel %vm754, %v637, 0
  %v795 = vsel %vm754, %v638, 0
  %v798 = vsel %vm754, %v639, 0
  %v801 = vsel %vm754, %v640, 0
  %v804 = vsel %vm754, %v641, 0
  %v807 = vsel %vm754, %v642, 0
  %v810 = vsel %vm754, %v643, 0
  %v813 = vsel %vm754, %v644, 0
  %v816 = vsel %vm754, %v645, 0
  %v819 = vsel %vm754, %v646, 0
  %v822 = vsel %vm754, %v647, 0
  %v825 = vsel %vm754, %v648, 0
  %v828 = vsel %vm754, %v649, 0
  %v831 = vsel %vm754, %v650, 0
  %v834 = vsel %vm754, %v651, 0
  %v837 = vsel %vm754, %v652, 0
  %v840 = vsel %vm754, %v653, 0
  %v843 = vsel %vm754, %v654, 0
  %v846 = vsel %vm754, %v655, 0
  %v849 = vsel %vm754, %v656, 0
  %v852 = vsel %vm754, %v657, 0
  %v855 = vsel %vm754, %v658, 0
  %v858 = vsel %vm754, %v659, 0
  %v861 = vsel %vm754, %v660, 0
  %v864 = vsel %vm754, %v661, 0
  %v867 = vsel %vm754, %v662, 0
  %v870 = vsel %vm754, %v663, 0
  %v873 = vsel %vm754, %v664, 0
  %v876 = vsel %vm754, %v665, 0
  %v879 = vsel %vm754, %v666, 0
  %v882 = vsel %vm754, %v667, 0
  %v885 = vsel %vm754, %v668, 0
  %v888 = vsel %vm754, %v669, 0
  %v891 = vsel %vm754, %v670, 0
  %v894 = vsel %vm754, %v671, 0
  %v897 = vsel %vm754, %v672, 0
  %v900 = vsel %vm754, %v673, 0
  %v903 = vsel %vm754, %v674, 0
  %v906 = vsel %vm754, %v675, 0
  %v909 = vsel %vm754, %v676, 0
  %v912 = vsel %vm754, %v677, 0
  %v915 = vsel %vm754, %v678, 0
  %v918 = vsel %vm754, %v679, 0
  %v921 = vsel %vm754, %v680, 0
  %v924 = vsel %vm754, %v681, 0
  %v927 = vsel %vm754, %v682, 0
  %v930 = vsel %vm754, %v683, 0
  %v933 = vsel %vm754, %v684, 0
  %v936 = vsel %vm754, %v685, 0
  %v939 = vsel %vm754, %v686, 0
  %v942 = vsel %vm754, %v687, 0
  %v945 = vsel %vm754, %v688, 0
  %v948 = vsel %vm754, %v689, 0
  %v951 = vsel %vm754, %v690, 0
  %v954 = vsel %vm754, %v691, 0
  %v957 = vsel %vm754, %v692, 0
  %v960 = vsel %vm754, %v693, 0
  %v963 = vsel %vm754, %v694, 0
  %v966 = vsel %vm754, %v695, 0
  %v969 = vsel %vm754, %v696, 0
  %v972 = vsel %vm754, %v697, 0
  %v975 = vsel %vm754, %v698, 0
  %v978 = vsel %vm754, %v699, 0
  %v981 = vsel %vm754, %v700, 0
  %v984 = vsel %vm754, %v701, 0
  %v987 = vsel %vm754, %v702, 0
  %v990 = vsel %vm754, %v703, 0
  %v993 = vsel %vm754, %v704, 0
  %v996 = vsel %vm754, %v705, 0
  %v999 = vsel %vm754, %v706, 0
  %v1002 = vsel %vm754, %v707, 0
  %v1005 = vsel %vm754, %v708, 0
  %v1008 = vsel %vm754, %v709, 0
  %v1011 = vsel %vm754, %v710, 0
  %v1014 = vsel %vm754, %v711, 0
  %v1017 = vsel %vm754, %v712, 0
  %v1020 = vsel %vm754, %v713, 0
  %v1023 = vsel %vm754, %v714, 0
  %v1026 = vsel %vm754, %v715, 0
  %v1029 = vsel %vm754, %v716, 0
  %v1032 = vsel %vm754, %v717, 0
  %v1035 = vsel %vm754, %v718, 0
  %v1038 = vsel %vm754, %v719, 0
  %v1041 = vsel %vm754, %v720, 0
  %v1044 = vsel %vm754, %v721, 0
  %v1047 = vsel %vm754, %v722, 0
  %v1050 = vsel %vm754, %v723, 0
  %v1053 = vsel %vm754, %v724, 0
  %vm1055 = vcmask 1044480
  %vm1056 = vcmask 1045504
  %v1057 = vsel %vm1055, 4294967295, 65535
  %v1058 = vsel %vm1056, %v1057, 0
  %v1060 = vand.u32 %v749, %v1058
  %1062 = vmatpush.bf16.msra.mxu0 0
  %1063 = vmatpush.bf16.msra.mxu0 0
  %1064 = vmatpush.bf16.msra.mxu0 0
  %1065 = vmatpush.bf16.msra.mxu0 %v1060
  %1066 = vmatpush.bf16.msra.mxu0 %v748
  %1067 = vmatpush.bf16.msra.mxu0 %v747
  %1068 = vmatpush.bf16.msra.mxu0 %v746
  %1069 = vmatpush.bf16.msra.mxu0 %v745
  %1070 = vmatmul.bf16.gmra.mxu0 %v756
  %v1071 = vpop.f32.mrf.mxu0
  %v1072 = vadd.f32 0.0, %v1071
  %v1073 = vpop.f32.mrf.mxu0
  %v1074 = vadd.f32 0.0, %v1073
  %1075 = vmatmul.bf16.gmra.mxu0 %v759
  %v1076 = vpop.f32.mrf.mxu0
  %v1077 = vadd.f32 0.0, %v1076
  %v1078 = vpop.f32.mrf.mxu0
  %v1079 = vadd.f32 0.0, %v1078
  %1080 = vmatmul.bf16.gmra.mxu0 %v762
  %v1081 = vpop.f32.mrf.mxu0
  %v1082 = vadd.f32 0.0, %v1081
  %v1083 = vpop.f32.mrf.mxu0
  %v1084 = vadd.f32 0.0, %v1083
  %1085 = vmatmul.bf16.gmra.mxu0 %v765
  %v1086 = vpop.f32.mrf.mxu0
  %v1087 = vadd.f32 0.0, %v1086
  %v1088 = vpop.f32.mrf.mxu0
  %v1089 = vadd.f32 0.0, %v1088
  %1090 = vmatmul.bf16.gmra.mxu0 %v768
  %v1091 = vpop.f32.mrf.mxu0
  %v1092 = vadd.f32 0.0, %v1091
  %v1093 = vpop.f32.mrf.mxu0
  %v1094 = vadd.f32 0.0, %v1093
  %1095 = vmatmul.bf16.gmra.mxu0 %v771
  %v1096 = vpop.f32.mrf.mxu0
  %v1097 = vadd.f32 0.0, %v1096
  %v1098 = vpop.f32.mrf.mxu0
  %v1099 = vadd.f32 0.0, %v1098
  %1100 = vmatmul.bf16.gmra.mxu0 %v774
  %v1101 = vpop.f32.mrf.mxu0
  %v1102 = vadd.f32 0.0, %v1101
  %v1103 = vpop.f32.mrf.mxu0
  %v1104 = vadd.f32 0.0, %v1103
  %1105 = vmatmul.bf16.gmra.mxu0 %v777
  %v1106 = vpop.f32.mrf.mxu0
  %v1107 = vadd.f32 0.0, %v1106
  %v1108 = vpop.f32.mrf.mxu0
  %v1109 = vadd.f32 0.0, %v1108
  %1110 = vmatmul.bf16.gmra.mxu0 %v780
  %v1111 = vpop.f32.mrf.mxu0
  %v1112 = vadd.f32 0.0, %v1111
  %v1113 = vpop.f32.mrf.mxu0
  %v1114 = vadd.f32 0.0, %v1113
  %1115 = vmatmul.bf16.gmra.mxu0 %v783
  %v1116 = vpop.f32.mrf.mxu0
  %v1117 = vadd.f32 0.0, %v1116
  %v1118 = vpop.f32.mrf.mxu0
  %v1119 = vadd.f32 0.0, %v1118
  %1120 = vmatmul.bf16.gmra.mxu0 %v786
  %v1121 = vpop.f32.mrf.mxu0
  %v1122 = vadd.f32 0.0, %v1121
  %v1123 = vpop.f32.mrf.mxu0
  %v1124 = vadd.f32 0.0, %v1123
  %1125 = vmatmul.bf16.gmra.mxu0 %v789
  %v1126 = vpop.f32.mrf.mxu0
  %v1127 = vadd.f32 0.0, %v1126
  %v1128 = vpop.f32.mrf.mxu0
  %v1129 = vadd.f32 0.0, %v1128
  %1130 = vmatmul.bf16.gmra.mxu0 %v792
  %v1131 = vpop.f32.mrf.mxu0
  %v1132 = vadd.f32 0.0, %v1131
  %v1133 = vpop.f32.mrf.mxu0
  %v1134 = vadd.f32 0.0, %v1133
  %1135 = vmatmul.bf16.gmra.mxu0 %v795
  %v1136 = vpop.f32.mrf.mxu0
  %v1137 = vadd.f32 0.0, %v1136
  %v1138 = vpop.f32.mrf.mxu0
  %v1139 = vadd.f32 0.0, %v1138
  %1140 = vmatmul.bf16.gmra.mxu0 %v798
  %v1141 = vpop.f32.mrf.mxu0
  %v1142 = vadd.f32 0.0, %v1141
  %v1143 = vpop.f32.mrf.mxu0
  %v1144 = vadd.f32 0.0, %v1143
  %1145 = vmatmul.bf16.gmra.mxu0 %v801
  %v1146 = vpop.f32.mrf.mxu0
  %v1147 = vadd.f32 0.0, %v1146
  %v1148 = vpop.f32.mrf.mxu0
  %v1149 = vadd.f32 0.0, %v1148
  %1150 = vmatmul.bf16.gmra.mxu0 %v804
  %v1151 = vpop.f32.mrf.mxu0
  %v1152 = vadd.f32 0.0, %v1151
  %v1153 = vpop.f32.mrf.mxu0
  %v1154 = vadd.f32 0.0, %v1153
  %1155 = vmatmul.bf16.gmra.mxu0 %v807
  %v1156 = vpop.f32.mrf.mxu0
  %v1157 = vadd.f32 0.0, %v1156
  %v1158 = vpop.f32.mrf.mxu0
  %v1159 = vadd.f32 0.0, %v1158
  %1160 = vmatmul.bf16.gmra.mxu0 %v810
  %v1161 = vpop.f32.mrf.mxu0
  %v1162 = vadd.f32 0.0, %v1161
  %v1163 = vpop.f32.mrf.mxu0
  %v1164 = vadd.f32 0.0, %v1163
  %1165 = vmatmul.bf16.gmra.mxu0 %v813
  %v1166 = vpop.f32.mrf.mxu0
  %v1167 = vadd.f32 0.0, %v1166
  %v1168 = vpop.f32.mrf.mxu0
  %v1169 = vadd.f32 0.0, %v1168
  %1170 = vmatmul.bf16.gmra.mxu0 %v816
  %v1171 = vpop.f32.mrf.mxu0
  %v1172 = vadd.f32 0.0, %v1171
  %v1173 = vpop.f32.mrf.mxu0
  %v1174 = vadd.f32 0.0, %v1173
  %1175 = vmatmul.bf16.gmra.mxu0 %v819
  %v1176 = vpop.f32.mrf.mxu0
  %v1177 = vadd.f32 0.0, %v1176
  %v1178 = vpop.f32.mrf.mxu0
  %v1179 = vadd.f32 0.0, %v1178
  %1180 = vmatmul.bf16.gmra.mxu0 %v822
  %v1181 = vpop.f32.mrf.mxu0
  %v1182 = vadd.f32 0.0, %v1181
  %v1183 = vpop.f32.mrf.mxu0
  %v1184 = vadd.f32 0.0, %v1183
  %1185 = vmatmul.bf16.gmra.mxu0 %v825
  %v1186 = vpop.f32.mrf.mxu0
  %v1187 = vadd.f32 0.0, %v1186
  %v1188 = vpop.f32.mrf.mxu0
  %v1189 = vadd.f32 0.0, %v1188
  %1190 = vmatmul.bf16.gmra.mxu0 %v828
  %v1191 = vpop.f32.mrf.mxu0
  %v1192 = vadd.f32 0.0, %v1191
  %v1193 = vpop.f32.mrf.mxu0
  %v1194 = vadd.f32 0.0, %v1193
  %1195 = vmatmul.bf16.gmra.mxu0 %v831
  %v1196 = vpop.f32.mrf.mxu0
  %v1197 = vadd.f32 0.0, %v1196
  %v1198 = vpop.f32.mrf.mxu0
  %v1199 = vadd.f32 0.0, %v1198
  %1200 = vmatmul.bf16.gmra.mxu0 %v834
  %v1201 = vpop.f32.mrf.mxu0
  %v1202 = vadd.f32 0.0, %v1201
  %v1203 = vpop.f32.mrf.mxu0
  %v1204 = vadd.f32 0.0, %v1203
  %1205 = vmatmul.bf16.gmra.mxu0 %v837
  %v1206 = vpop.f32.mrf.mxu0
  %v1207 = vadd.f32 0.0, %v1206
  %v1208 = vpop.f32.mrf.mxu0
  %v1209 = vadd.f32 0.0, %v1208
  %1210 = vmatmul.bf16.gmra.mxu0 %v840
  %v1211 = vpop.f32.mrf.mxu0
  %v1212 = vadd.f32 0.0, %v1211
  %v1213 = vpop.f32.mrf.mxu0
  %v1214 = vadd.f32 0.0, %v1213
  %1215 = vmatmul.bf16.gmra.mxu0 %v843
  %v1216 = vpop.f32.mrf.mxu0
  %v1217 = vadd.f32 0.0, %v1216
  %v1218 = vpop.f32.mrf.mxu0
  %v1219 = vadd.f32 0.0, %v1218
  %1220 = vmatmul.bf16.gmra.mxu0 %v846
  %v1221 = vpop.f32.mrf.mxu0
  %v1222 = vadd.f32 0.0, %v1221
  %v1223 = vpop.f32.mrf.mxu0
  %v1224 = vadd.f32 0.0, %v1223
  %1225 = vmatmul.bf16.gmra.mxu0 %v849
  %v1226 = vpop.f32.mrf.mxu0
  %v1227 = vadd.f32 0.0, %v1226
  %v1228 = vpop.f32.mrf.mxu0
  %v1229 = vadd.f32 0.0, %v1228
  %1230 = vmatmul.bf16.gmra.mxu0 %v852
  %v1231 = vpop.f32.mrf.mxu0
  %v1232 = vadd.f32 0.0, %v1231
  %v1233 = vpop.f32.mrf.mxu0
  %v1234 = vadd.f32 0.0, %v1233
  %1235 = vmatmul.bf16.gmra.mxu0 %v855
  %v1236 = vpop.f32.mrf.mxu0
  %v1237 = vadd.f32 0.0, %v1236
  %v1238 = vpop.f32.mrf.mxu0
  %v1239 = vadd.f32 0.0, %v1238
  %1240 = vmatmul.bf16.gmra.mxu0 %v858
  %v1241 = vpop.f32.mrf.mxu0
  %v1242 = vadd.f32 0.0, %v1241
  %v1243 = vpop.f32.mrf.mxu0
  %v1244 = vadd.f32 0.0, %v1243
  %1245 = vmatmul.bf16.gmra.mxu0 %v861
  %v1246 = vpop.f32.mrf.mxu0
  %v1247 = vadd.f32 0.0, %v1246
  %v1248 = vpop.f32.mrf.mxu0
  %v1249 = vadd.f32 0.0, %v1248
  %1250 = vmatmul.bf16.gmra.mxu0 %v864
  %v1251 = vpop.f32.mrf.mxu0
  %v1252 = vadd.f32 0.0, %v1251
  %v1253 = vpop.f32.mrf.mxu0
  %v1254 = vadd.f32 0.0, %v1253
  %1255 = vmatmul.bf16.gmra.mxu0 %v867
  %v1256 = vpop.f32.mrf.mxu0
  %v1257 = vadd.f32 0.0, %v1256
  %v1258 = vpop.f32.mrf.mxu0
  %v1259 = vadd.f32 0.0, %v1258
  %1260 = vmatmul.bf16.gmra.mxu0 %v870
  %v1261 = vpop.f32.mrf.mxu0
  %v1262 = vadd.f32 0.0, %v1261
  %v1263 = vpop.f32.mrf.mxu0
  %v1264 = vadd.f32 0.0, %v1263
  %1265 = vmatmul.bf16.gmra.mxu0 %v873
  %v1266 = vpop.f32.mrf.mxu0
  %v1267 = vadd.f32 0.0, %v1266
  %v1268 = vpop.f32.mrf.mxu0
  %v1269 = vadd.f32 0.0, %v1268
  %1270 = vmatmul.bf16.gmra.mxu0 %v876
  %v1271 = vpop.f32.mrf.mxu0
  %v1272 = vadd.f32 0.0, %v1271
  %v1273 = vpop.f32.mrf.mxu0
  %v1274 = vadd.f32 0.0, %v1273
  %1275 = vmatmul.bf16.gmra.mxu0 %v879
  %v1276 = vpop.f32.mrf.mxu0
  %v1277 = vadd.f32 0.0, %v1276
  %v1278 = vpop.f32.mrf.mxu0
  %v1279 = vadd.f32 0.0, %v1278
  %1280 = vmatmul.bf16.gmra.mxu0 %v882
  %v1281 = vpop.f32.mrf.mxu0
  %v1282 = vadd.f32 0.0, %v1281
  %v1283 = vpop.f32.mrf.mxu0
  %v1284 = vadd.f32 0.0, %v1283
  %1285 = vmatmul.bf16.gmra.mxu0 %v885
  %v1286 = vpop.f32.mrf.mxu0
  %v1287 = vadd.f32 0.0, %v1286
  %v1288 = vpop.f32.mrf.mxu0
  %v1289 = vadd.f32 0.0, %v1288
  %1290 = vmatmul.bf16.gmra.mxu0 %v888
  %v1291 = vpop.f32.mrf.mxu0
  %v1292 = vadd.f32 0.0, %v1291
  %v1293 = vpop.f32.mrf.mxu0
  %v1294 = vadd.f32 0.0, %v1293
  %1295 = vmatmul.bf16.gmra.mxu0 %v891
  %v1296 = vpop.f32.mrf.mxu0
  %v1297 = vadd.f32 0.0, %v1296
  %v1298 = vpop.f32.mrf.mxu0
  %v1299 = vadd.f32 0.0, %v1298
  %1300 = vmatmul.bf16.gmra.mxu0 %v894
  %v1301 = vpop.f32.mrf.mxu0
  %v1302 = vadd.f32 0.0, %v1301
  %v1303 = vpop.f32.mrf.mxu0
  %v1304 = vadd.f32 0.0, %v1303
  %1305 = vmatmul.bf16.gmra.mxu0 %v897
  %v1306 = vpop.f32.mrf.mxu0
  %v1307 = vadd.f32 0.0, %v1306
  %v1308 = vpop.f32.mrf.mxu0
  %v1309 = vadd.f32 0.0, %v1308
  %1310 = vmatmul.bf16.gmra.mxu0 %v900
  %v1311 = vpop.f32.mrf.mxu0
  %v1312 = vadd.f32 0.0, %v1311
  %v1313 = vpop.f32.mrf.mxu0
  %v1314 = vadd.f32 0.0, %v1313
  %1315 = vmatmul.bf16.gmra.mxu0 %v903
  %v1316 = vpop.f32.mrf.mxu0
  %v1317 = vadd.f32 0.0, %v1316
  %v1318 = vpop.f32.mrf.mxu0
  %v1319 = vadd.f32 0.0, %v1318
  %1320 = vmatmul.bf16.gmra.mxu0 %v906
  %v1321 = vpop.f32.mrf.mxu0
  %v1322 = vadd.f32 0.0, %v1321
  %v1323 = vpop.f32.mrf.mxu0
  %v1324 = vadd.f32 0.0, %v1323
  %1325 = vmatmul.bf16.gmra.mxu0 %v909
  %v1326 = vpop.f32.mrf.mxu0
  %v1327 = vadd.f32 0.0, %v1326
  %v1328 = vpop.f32.mrf.mxu0
  %v1329 = vadd.f32 0.0, %v1328
  %1330 = vmatmul.bf16.gmra.mxu0 %v912
  %v1331 = vpop.f32.mrf.mxu0
  %v1332 = vadd.f32 0.0, %v1331
  %v1333 = vpop.f32.mrf.mxu0
  %v1334 = vadd.f32 0.0, %v1333
  %1335 = vmatmul.bf16.gmra.mxu0 %v915
  %v1336 = vpop.f32.mrf.mxu0
  %v1337 = vadd.f32 0.0, %v1336
  %v1338 = vpop.f32.mrf.mxu0
  %v1339 = vadd.f32 0.0, %v1338
  %1340 = vmatmul.bf16.gmra.mxu0 %v918
  %v1341 = vpop.f32.mrf.mxu0
  %v1342 = vadd.f32 0.0, %v1341
  %v1343 = vpop.f32.mrf.mxu0
  %v1344 = vadd.f32 0.0, %v1343
  %1345 = vmatmul.bf16.gmra.mxu0 %v921
  %v1346 = vpop.f32.mrf.mxu0
  %v1347 = vadd.f32 0.0, %v1346
  %v1348 = vpop.f32.mrf.mxu0
  %v1349 = vadd.f32 0.0, %v1348
  %1350 = vmatmul.bf16.gmra.mxu0 %v924
  %v1351 = vpop.f32.mrf.mxu0
  %v1352 = vadd.f32 0.0, %v1351
  %v1353 = vpop.f32.mrf.mxu0
  %v1354 = vadd.f32 0.0, %v1353
  %1355 = vmatmul.bf16.gmra.mxu0 %v927
  %v1356 = vpop.f32.mrf.mxu0
  %v1357 = vadd.f32 0.0, %v1356
  %v1358 = vpop.f32.mrf.mxu0
  %v1359 = vadd.f32 0.0, %v1358
  %1360 = vmatmul.bf16.gmra.mxu0 %v930
  %v1361 = vpop.f32.mrf.mxu0
  %v1362 = vadd.f32 0.0, %v1361
  %v1363 = vpop.f32.mrf.mxu0
  %v1364 = vadd.f32 0.0, %v1363
  %1365 = vmatmul.bf16.gmra.mxu0 %v933
  %v1366 = vpop.f32.mrf.mxu0
  %v1367 = vadd.f32 0.0, %v1366
  %v1368 = vpop.f32.mrf.mxu0
  %v1369 = vadd.f32 0.0, %v1368
  %1370 = vmatmul.bf16.gmra.mxu0 %v936
  %v1371 = vpop.f32.mrf.mxu0
  %v1372 = vadd.f32 0.0, %v1371
  %v1373 = vpop.f32.mrf.mxu0
  %v1374 = vadd.f32 0.0, %v1373
  %1375 = vmatmul.bf16.gmra.mxu0 %v939
  %v1376 = vpop.f32.mrf.mxu0
  %v1377 = vadd.f32 0.0, %v1376
  %v1378 = vpop.f32.mrf.mxu0
  %v1379 = vadd.f32 0.0, %v1378
  %1380 = vmatmul.bf16.gmra.mxu0 %v942
  %v1381 = vpop.f32.mrf.mxu0
  %v1382 = vadd.f32 0.0, %v1381
  %v1383 = vpop.f32.mrf.mxu0
  %v1384 = vadd.f32 0.0, %v1383
  %1385 = vmatmul.bf16.gmra.mxu0 %v945
  %v1386 = vpop.f32.mrf.mxu0
  %v1387 = vadd.f32 0.0, %v1386
  %v1388 = vpop.f32.mrf.mxu0
  %v1389 = vadd.f32 0.0, %v1388
  %1390 = vmatmul.bf16.gmra.mxu0 %v948
  %v1391 = vpop.f32.mrf.mxu0
  %v1392 = vadd.f32 0.0, %v1391
  %v1393 = vpop.f32.mrf.mxu0
  %v1394 = vadd.f32 0.0, %v1393
  %1395 = vmatmul.bf16.gmra.mxu0 %v951
  %v1396 = vpop.f32.mrf.mxu0
  %v1397 = vadd.f32 0.0, %v1396
  %v1398 = vpop.f32.mrf.mxu0
  %v1399 = vadd.f32 0.0, %v1398
  %1400 = vmatmul.bf16.gmra.mxu0 %v954
  %v1401 = vpop.f32.mrf.mxu0
  %v1402 = vadd.f32 0.0, %v1401
  %v1403 = vpop.f32.mrf.mxu0
  %v1404 = vadd.f32 0.0, %v1403
  %1405 = vmatmul.bf16.gmra.mxu0 %v957
  %v1406 = vpop.f32.mrf.mxu0
  %v1407 = vadd.f32 0.0, %v1406
  %v1408 = vpop.f32.mrf.mxu0
  %v1409 = vadd.f32 0.0, %v1408
  %1410 = vmatmul.bf16.gmra.mxu0 %v960
  %v1411 = vpop.f32.mrf.mxu0
  %v1412 = vadd.f32 0.0, %v1411
  %v1413 = vpop.f32.mrf.mxu0
  %v1414 = vadd.f32 0.0, %v1413
  %1415 = vmatmul.bf16.gmra.mxu0 %v963
  %v1416 = vpop.f32.mrf.mxu0
  %v1417 = vadd.f32 0.0, %v1416
  %v1418 = vpop.f32.mrf.mxu0
  %v1419 = vadd.f32 0.0, %v1418
  %1420 = vmatmul.bf16.gmra.mxu0 %v966
  %v1421 = vpop.f32.mrf.mxu0
  %v1422 = vadd.f32 0.0, %v1421
  %v1423 = vpop.f32.mrf.mxu0
  %v1424 = vadd.f32 0.0, %v1423
  %1425 = vmatmul.bf16.gmra.mxu0 %v969
  %v1426 = vpop.f32.mrf.mxu0
  %v1427 = vadd.f32 0.0, %v1426
  %v1428 = vpop.f32.mrf.mxu0
  %v1429 = vadd.f32 0.0, %v1428
  %1430 = vmatmul.bf16.gmra.mxu0 %v972
  %v1431 = vpop.f32.mrf.mxu0
  %v1432 = vadd.f32 0.0, %v1431
  %v1433 = vpop.f32.mrf.mxu0
  %v1434 = vadd.f32 0.0, %v1433
  %1435 = vmatmul.bf16.gmra.mxu0 %v975
  %v1436 = vpop.f32.mrf.mxu0
  %v1437 = vadd.f32 0.0, %v1436
  %v1438 = vpop.f32.mrf.mxu0
  %v1439 = vadd.f32 0.0, %v1438
  %1440 = vmatmul.bf16.gmra.mxu0 %v978
  %v1441 = vpop.f32.mrf.mxu0
  %v1442 = vadd.f32 0.0, %v1441
  %v1443 = vpop.f32.mrf.mxu0
  %v1444 = vadd.f32 0.0, %v1443
  %1445 = vmatmul.bf16.gmra.mxu0 %v981
  %v1446 = vpop.f32.mrf.mxu0
  %v1447 = vadd.f32 0.0, %v1446
  %v1448 = vpop.f32.mrf.mxu0
  %v1449 = vadd.f32 0.0, %v1448
  %1450 = vmatmul.bf16.gmra.mxu0 %v984
  %v1451 = vpop.f32.mrf.mxu0
  %v1452 = vadd.f32 0.0, %v1451
  %v1453 = vpop.f32.mrf.mxu0
  %v1454 = vadd.f32 0.0, %v1453
  %1455 = vmatmul.bf16.gmra.mxu0 %v987
  %v1456 = vpop.f32.mrf.mxu0
  %v1457 = vadd.f32 0.0, %v1456
  %v1458 = vpop.f32.mrf.mxu0
  %v1459 = vadd.f32 0.0, %v1458
  %1460 = vmatmul.bf16.gmra.mxu0 %v990
  %v1461 = vpop.f32.mrf.mxu0
  %v1462 = vadd.f32 0.0, %v1461
  %v1463 = vpop.f32.mrf.mxu0
  %v1464 = vadd.f32 0.0, %v1463
  %1465 = vmatmul.bf16.gmra.mxu0 %v993
  %v1466 = vpop.f32.mrf.mxu0
  %v1467 = vadd.f32 0.0, %v1466
  %v1468 = vpop.f32.mrf.mxu0
  %v1469 = vadd.f32 0.0, %v1468
  %1470 = vmatmul.bf16.gmra.mxu0 %v996
  %v1471 = vpop.f32.mrf.mxu0
  %v1472 = vadd.f32 0.0, %v1471
  %v1473 = vpop.f32.mrf.mxu0
  %v1474 = vadd.f32 0.0, %v1473
  %1475 = vmatmul.bf16.gmra.mxu0 %v999
  %v1476 = vpop.f32.mrf.mxu0
  %v1477 = vadd.f32 0.0, %v1476
  %v1478 = vpop.f32.mrf.mxu0
  %v1479 = vadd.f32 0.0, %v1478
  %1480 = vmatmul.bf16.gmra.mxu0 %v1002
  %v1481 = vpop.f32.mrf.mxu0
  %v1482 = vadd.f32 0.0, %v1481
  %v1483 = vpop.f32.mrf.mxu0
  %v1484 = vadd.f32 0.0, %v1483
  %1485 = vmatmul.bf16.gmra.mxu0 %v1005
  %v1486 = vpop.f32.mrf.mxu0
  %v1487 = vadd.f32 0.0, %v1486
  %v1488 = vpop.f32.mrf.mxu0
  %v1489 = vadd.f32 0.0, %v1488
  %1490 = vmatmul.bf16.gmra.mxu0 %v1008
  %v1491 = vpop.f32.mrf.mxu0
  %v1492 = vadd.f32 0.0, %v1491
  %v1493 = vpop.f32.mrf.mxu0
  %v1494 = vadd.f32 0.0, %v1493
  %1495 = vmatmul.bf16.gmra.mxu0 %v1011
  %v1496 = vpop.f32.mrf.mxu0
  %v1497 = vadd.f32 0.0, %v1496
  %v1498 = vpop.f32.mrf.mxu0
  %v1499 = vadd.f32 0.0, %v1498
  %1500 = vmatmul.bf16.gmra.mxu0 %v1014
  %v1501 = vpop.f32.mrf.mxu0
  %v1502 = vadd.f32 0.0, %v1501
  %v1503 = vpop.f32.mrf.mxu0
  %v1504 = vadd.f32 0.0, %v1503
  %1505 = vmatmul.bf16.gmra.mxu0 %v1017
  %v1506 = vpop.f32.mrf.mxu0
  %v1507 = vadd.f32 0.0, %v1506
  %v1508 = vpop.f32.mrf.mxu0
  %v1509 = vadd.f32 0.0, %v1508
  %1510 = vmatmul.bf16.gmra.mxu0 %v1020
  %v1511 = vpop.f32.mrf.mxu0
  %v1512 = vadd.f32 0.0, %v1511
  %v1513 = vpop.f32.mrf.mxu0
  %v1514 = vadd.f32 0.0, %v1513
  %1515 = vmatmul.bf16.gmra.mxu0 %v1023
  %v1516 = vpop.f32.mrf.mxu0
  %v1517 = vadd.f32 0.0, %v1516
  %v1518 = vpop.f32.mrf.mxu0
  %v1519 = vadd.f32 0.0, %v1518
  %1520 = vmatmul.bf16.gmra.mxu0 %v1026
  %v1521 = vpop.f32.mrf.mxu0
  %v1522 = vadd.f32 0.0, %v1521
  %v1523 = vpop.f32.mrf.mxu0
  %v1524 = vadd.f32 0.0, %v1523
  %1525 = vmatmul.bf16.gmra.mxu0 %v1029
  %v1526 = vpop.f32.mrf.mxu0
  %v1527 = vadd.f32 0.0, %v1526
  %v1528 = vpop.f32.mrf.mxu0
  %v1529 = vadd.f32 0.0, %v1528
  %1530 = vmatmul.bf16.gmra.mxu0 %v1032
  %v1531 = vpop.f32.mrf.mxu0
  %v1532 = vadd.f32 0.0, %v1531
  %v1533 = vpop.f32.mrf.mxu0
  %v1534 = vadd.f32 0.0, %v1533
  %1535 = vmatmul.bf16.gmra.mxu0 %v1035
  %v1536 = vpop.f32.mrf.mxu0
  %v1537 = vadd.f32 0.0, %v1536
  %v1538 = vpop.f32.mrf.mxu0
  %v1539 = vadd.f32 0.0, %v1538
  %1540 = vmatmul.bf16.gmra.mxu0 %v1038
  %v1541 = vpop.f32.mrf.mxu0
  %v1542 = vadd.f32 0.0, %v1541
  %v1543 = vpop.f32.mrf.mxu0
  %v1544 = vadd.f32 0.0, %v1543
  %1545 = vmatmul.bf16.gmra.mxu0 %v1041
  %v1546 = vpop.f32.mrf.mxu0
  %v1547 = vadd.f32 0.0, %v1546
  %v1548 = vpop.f32.mrf.mxu0
  %v1549 = vadd.f32 0.0, %v1548
  %1550 = vmatmul.bf16.gmra.mxu0 %v1044
  %v1551 = vpop.f32.mrf.mxu0
  %v1552 = vadd.f32 0.0, %v1551
  %v1553 = vpop.f32.mrf.mxu0
  %v1554 = vadd.f32 0.0, %v1553
  %1555 = vmatmul.bf16.gmra.mxu0 %v1047
  %v1556 = vpop.f32.mrf.mxu0
  %v1557 = vadd.f32 0.0, %v1556
  %v1558 = vpop.f32.mrf.mxu0
  %v1559 = vadd.f32 0.0, %v1558
  %1560 = vmatmul.bf16.gmra.mxu0 %v1050
  %v1561 = vpop.f32.mrf.mxu0
  %v1562 = vadd.f32 0.0, %v1561
  %v1563 = vpop.f32.mrf.mxu0
  %v1564 = vadd.f32 0.0, %v1563
  %1565 = vmatmul.bf16.gmra.mxu0 %v1053
  %v1566 = vpop.f32.mrf.mxu0
  %v1567 = vadd.f32 0.0, %v1566
  %v1568 = vpop.f32.mrf.mxu0
  %v1569 = vadd.f32 0.0, %v1568
  %1570 = vdwg.mxu0
  %vm1571 = vcmask 523264
  %v1572 = vsel %vm1571, %v1072, -inf
  %v1573 = vsel %vm1571, %v1197, -inf
  %v1574 = vmax.f32 %v1572, %v1573
  %v1575 = vsel %vm1571, %v1322, -inf
  %v1576 = vmax.f32 %v1574, %v1575
  %v1577 = vsel %vm1571, %v1447, -inf
  %v1578 = vmax.f32 %v1576, %v1577
  %v1579 = vsel %vm1571, %v1074, -inf
  %v1580 = vsel %vm1571, %v1199, -inf
  %v1581 = vmax.f32 %v1579, %v1580
  %v1582 = vsel %vm1571, %v1324, -inf
  %v1583 = vmax.f32 %v1581, %v1582
  %v1584 = vsel %vm1571, %v1449, -inf
  %v1585 = vmax.f32 %v1583, %v1584
  %v1586 = vsel %vm1571, %v1077, -inf
  %v1587 = vsel %vm1571, %v1202, -inf
  %v1588 = vmax.f32 %v1586, %v1587
  %v1589 = vsel %vm1571, %v1327, -inf
  %v1590 = vmax.f32 %v1588, %v1589
  %v1591 = vsel %vm1571, %v1452, -inf
  %v1592 = vmax.f32 %v1590, %v1591
  %v1593 = vsel %vm1571, %v1079, -inf
  %v1594 = vsel %vm1571, %v1204, -inf
  %v1595 = vmax.f32 %v1593, %v1594
  %v1596 = vsel %vm1571, %v1329, -inf
  %v1597 = vmax.f32 %v1595, %v1596
  %v1598 = vsel %vm1571, %v1454, -inf
  %v1599 = vmax.f32 %v1597, %v1598
  %v1600 = vsel %vm1571, %v1082, -inf
  %v1601 = vsel %vm1571, %v1207, -inf
  %v1602 = vmax.f32 %v1600, %v1601
  %v1603 = vsel %vm1571, %v1332, -inf
  %v1604 = vmax.f32 %v1602, %v1603
  %v1605 = vsel %vm1571, %v1457, -inf
  %v1606 = vmax.f32 %v1604, %v1605
  %v1607 = vsel %vm1571, %v1084, -inf
  %v1608 = vsel %vm1571, %v1209, -inf
  %v1609 = vmax.f32 %v1607, %v1608
  %v1610 = vsel %vm1571, %v1334, -inf
  %v1611 = vmax.f32 %v1609, %v1610
  %v1612 = vsel %vm1571, %v1459, -inf
  %v1613 = vmax.f32 %v1611, %v1612
  %v1614 = vsel %vm1571, %v1087, -inf
  %v1615 = vsel %vm1571, %v1212, -inf
  %v1616 = vmax.f32 %v1614, %v1615
  %v1617 = vsel %vm1571, %v1337, -inf
  %v1618 = vmax.f32 %v1616, %v1617
  %v1619 = vsel %vm1571, %v1462, -inf
  %v1620 = vmax.f32 %v1618, %v1619
  %v1621 = vsel %vm1571, %v1089, -inf
  %v1622 = vsel %vm1571, %v1214, -inf
  %v1623 = vmax.f32 %v1621, %v1622
  %v1624 = vsel %vm1571, %v1339, -inf
  %v1625 = vmax.f32 %v1623, %v1624
  %v1626 = vsel %vm1571, %v1464, -inf
  %v1627 = vmax.f32 %v1625, %v1626
  %v1628 = vsel %vm1571, %v1092, -inf
  %v1629 = vsel %vm1571, %v1217, -inf
  %v1630 = vmax.f32 %v1628, %v1629
  %v1631 = vsel %vm1571, %v1342, -inf
  %v1632 = vmax.f32 %v1630, %v1631
  %v1633 = vsel %vm1571, %v1467, -inf
  %v1634 = vmax.f32 %v1632, %v1633
  %v1635 = vsel %vm1571, %v1094, -inf
  %v1636 = vsel %vm1571, %v1219, -inf
  %v1637 = vmax.f32 %v1635, %v1636
  %v1638 = vsel %vm1571, %v1344, -inf
  %v1639 = vmax.f32 %v1637, %v1638
  %v1640 = vsel %vm1571, %v1469, -inf
  %v1641 = vmax.f32 %v1639, %v1640
  %v1642 = vsel %vm1571, %v1097, -inf
  %v1643 = vsel %vm1571, %v1222, -inf
  %v1644 = vmax.f32 %v1642, %v1643
  %v1645 = vsel %vm1571, %v1347, -inf
  %v1646 = vmax.f32 %v1644, %v1645
  %v1647 = vsel %vm1571, %v1472, -inf
  %v1648 = vmax.f32 %v1646, %v1647
  %v1649 = vsel %vm1571, %v1099, -inf
  %v1650 = vsel %vm1571, %v1224, -inf
  %v1651 = vmax.f32 %v1649, %v1650
  %v1652 = vsel %vm1571, %v1349, -inf
  %v1653 = vmax.f32 %v1651, %v1652
  %v1654 = vsel %vm1571, %v1474, -inf
  %v1655 = vmax.f32 %v1653, %v1654
  %v1656 = vsel %vm1571, %v1102, -inf
  %v1657 = vsel %vm1571, %v1227, -inf
  %v1658 = vmax.f32 %v1656, %v1657
  %v1659 = vsel %vm1571, %v1352, -inf
  %v1660 = vmax.f32 %v1658, %v1659
  %v1661 = vsel %vm1571, %v1477, -inf
  %v1662 = vmax.f32 %v1660, %v1661
  %v1663 = vsel %vm1571, %v1104, -inf
  %v1664 = vsel %vm1571, %v1229, -inf
  %v1665 = vmax.f32 %v1663, %v1664
  %v1666 = vsel %vm1571, %v1354, -inf
  %v1667 = vmax.f32 %v1665, %v1666
  %v1668 = vsel %vm1571, %v1479, -inf
  %v1669 = vmax.f32 %v1667, %v1668
  %v1670 = vsel %vm1571, %v1107, -inf
  %v1671 = vsel %vm1571, %v1232, -inf
  %v1672 = vmax.f32 %v1670, %v1671
  %v1673 = vsel %vm1571, %v1357, -inf
  %v1674 = vmax.f32 %v1672, %v1673
  %v1675 = vsel %vm1571, %v1482, -inf
  %v1676 = vmax.f32 %v1674, %v1675
  %v1677 = vsel %vm1571, %v1109, -inf
  %v1678 = vsel %vm1571, %v1234, -inf
  %v1679 = vmax.f32 %v1677, %v1678
  %v1680 = vsel %vm1571, %v1359, -inf
  %v1681 = vmax.f32 %v1679, %v1680
  %v1682 = vsel %vm1571, %v1484, -inf
  %v1683 = vmax.f32 %v1681, %v1682
  %v1684 = vsel %vm1571, %v1112, -inf
  %v1685 = vsel %vm1571, %v1237, -inf
  %v1686 = vmax.f32 %v1684, %v1685
  %v1687 = vsel %vm1571, %v1362, -inf
  %v1688 = vmax.f32 %v1686, %v1687
  %v1689 = vsel %vm1571, %v1487, -inf
  %v1690 = vmax.f32 %v1688, %v1689
  %v1691 = vsel %vm1571, %v1114, -inf
  %v1692 = vsel %vm1571, %v1239, -inf
  %v1693 = vmax.f32 %v1691, %v1692
  %v1694 = vsel %vm1571, %v1364, -inf
  %v1695 = vmax.f32 %v1693, %v1694
  %v1696 = vsel %vm1571, %v1489, -inf
  %v1697 = vmax.f32 %v1695, %v1696
  %v1698 = vsel %vm1571, %v1117, -inf
  %v1699 = vsel %vm1571, %v1242, -inf
  %v1700 = vmax.f32 %v1698, %v1699
  %v1701 = vsel %vm1571, %v1367, -inf
  %v1702 = vmax.f32 %v1700, %v1701
  %v1703 = vsel %vm1571, %v1492, -inf
  %v1704 = vmax.f32 %v1702, %v1703
  %v1705 = vsel %vm1571, %v1119, -inf
  %v1706 = vsel %vm1571, %v1244, -inf
  %v1707 = vmax.f32 %v1705, %v1706
  %v1708 = vsel %vm1571, %v1369, -inf
  %v1709 = vmax.f32 %v1707, %v1708
  %v1710 = vsel %vm1571, %v1494, -inf
  %v1711 = vmax.f32 %v1709, %v1710
  %v1712 = vsel %vm1571, %v1122, -inf
  %v1713 = vsel %vm1571, %v1247, -inf
  %v1714 = vmax.f32 %v1712, %v1713
  %v1715 = vsel %vm1571, %v1372, -inf
  %v1716 = vmax.f32 %v1714, %v1715
  %v1717 = vsel %vm1571, %v1497, -inf
  %v1718 = vmax.f32 %v1716, %v1717
  %v1719 = vsel %vm1571, %v1124, -inf
  %v1720 = vsel %vm1571, %v1249, -inf
  %v1721 = vmax.f32 %v1719, %v1720
  %v1722 = vsel %vm1571, %v1374, -inf
  %v1723 = vmax.f32 %v1721, %v1722
  %v1724 = vsel %vm1571, %v1499, -inf
  %v1725 = vmax.f32 %v1723, %v1724
  %v1726 = vsel %vm1571, %v1127, -inf
  %v1727 = vsel %vm1571, %v1252, -inf
  %v1728 = vmax.f32 %v1726, %v1727
  %v1729 = vsel %vm1571, %v1377, -inf
  %v1730 = vmax.f32 %v1728, %v1729
  %v1731 = vsel %vm1571, %v1502, -inf
  %v1732 = vmax.f32 %v1730, %v1731
  %v1733 = vsel %vm1571, %v1129, -inf
  %v1734 = vsel %vm1571, %v1254, -inf
  %v1735 = vmax.f32 %v1733, %v1734
  %v1736 = vsel %vm1571, %v1379, -inf
  %v1737 = vmax.f32 %v1735, %v1736
  %v1738 = vsel %vm1571, %v1504, -inf
  %v1739 = vmax.f32 %v1737, %v1738
  %v1740 = vsel %vm1571, %v1132, -inf
  %v1741 = vsel %vm1571, %v1257, -inf
  %v1742 = vmax.f32 %v1740, %v1741
  %v1743 = vsel %vm1571, %v1382, -inf
  %v1744 = vmax.f32 %v1742, %v1743
  %v1745 = vsel %vm1571, %v1507, -inf
  %v1746 = vmax.f32 %v1744, %v1745
  %v1747 = vsel %vm1571, %v1134, -inf
  %v1748 = vsel %vm1571, %v1259, -inf
  %v1749 = vmax.f32 %v1747, %v1748
  %v1750 = vsel %vm1571, %v1384, -inf
  %v1751 = vmax.f32 %v1749, %v1750
  %v1752 = vsel %vm1571, %v1509, -inf
  %v1753 = vmax.f32 %v1751, %v1752
  %v1754 = vsel %vm1571, %v1137, -inf
  %v1755 = vsel %vm1571, %v1262, -inf
  %v1756 = vmax.f32 %v1754, %v1755
  %v1757 = vsel %vm1571, %v1387, -inf
  %v1758 = vmax.f32 %v1756, %v1757
  %v1759 = vsel %vm1571, %v1512, -inf
  %v1760 = vmax.f32 %v1758, %v1759
  %v1761 = vsel %vm1571, %v1139, -inf
  %v1762 = vsel %vm1571, %v1264, -inf
  %v1763 = vmax.f32 %v1761, %v1762
  %v1764 = vsel %vm1571, %v1389, -inf
  %v1765 = vmax.f32 %v1763, %v1764
  %v1766 = vsel %vm1571, %v1514, -inf
  %v1767 = vmax.f32 %v1765, %v1766
  %v1768 = vsel %vm1571, %v1142, -inf
  %v1769 = vsel %vm1571, %v1267, -inf
  %v1770 = vmax.f32 %v1768, %v1769
  %v1771 = vsel %vm1571, %v1392, -inf
  %v1772 = vmax.f32 %v1770, %v1771
  %v1773 = vsel %vm1571, %v1517, -inf
  %v1774 = vmax.f32 %v1772, %v1773
  %v1775 = vsel %vm1571, %v1144, -inf
  %v1776 = vsel %vm1571, %v1269, -inf
  %v1777 = vmax.f32 %v1775, %v1776
  %v1778 = vsel %vm1571, %v1394, -inf
  %v1779 = vmax.f32 %v1777, %v1778
  %v1780 = vsel %vm1571, %v1519, -inf
  %v1781 = vmax.f32 %v1779, %v1780
  %v1782 = vsel %vm1571, %v1147, -inf
  %v1783 = vsel %vm1571, %v1272, -inf
  %v1784 = vmax.f32 %v1782, %v1783
  %v1785 = vsel %vm1571, %v1397, -inf
  %v1786 = vmax.f32 %v1784, %v1785
  %v1787 = vsel %vm1571, %v1522, -inf
  %v1788 = vmax.f32 %v1786, %v1787
  %v1789 = vsel %vm1571, %v1149, -inf
  %v1790 = vsel %vm1571, %v1274, -inf
  %v1791 = vmax.f32 %v1789, %v1790
  %v1792 = vsel %vm1571, %v1399, -inf
  %v1793 = vmax.f32 %v1791, %v1792
  %v1794 = vsel %vm1571, %v1524, -inf
  %v1795 = vmax.f32 %v1793, %v1794
  %v1796 = vsel %vm1571, %v1152, -inf
  %v1797 = vsel %vm1571, %v1277, -inf
  %v1798 = vmax.f32 %v1796, %v1797
  %v1799 = vsel %vm1571, %v1402, -inf
  %v1800 = vmax.f32 %v1798, %v1799
  %v1801 = vsel %vm1571, %v1527, -inf
  %v1802 = vmax.f32 %v1800, %v1801
  %v1803 = vsel %vm1571, %v1154, -inf
  %v1804 = vsel %vm1571, %v1279, -inf
  %v1805 = vmax.f32 %v1803, %v1804
  %v1806 = vsel %vm1571, %v1404, -inf
  %v1807 = vmax.f32 %v1805, %v1806
  %v1808 = vsel %vm1571, %v1529, -inf
  %v1809 = vmax.f32 %v1807, %v1808
  %v1810 = vsel %vm1571, %v1157, -inf
  %v1811 = vsel %vm1571, %v1282, -inf
  %v1812 = vmax.f32 %v1810, %v1811
  %v1813 = vsel %vm1571, %v1407, -inf
  %v1814 = vmax.f32 %v1812, %v1813
  %v1815 = vsel %vm1571, %v1532, -inf
  %v1816 = vmax.f32 %v1814, %v1815
  %v1817 = vsel %vm1571, %v1159, -inf
  %v1818 = vsel %vm1571, %v1284, -inf
  %v1819 = vmax.f32 %v1817, %v1818
  %v1820 = vsel %vm1571, %v1409, -inf
  %v1821 = vmax.f32 %v1819, %v1820
  %v1822 = vsel %vm1571, %v1534, -inf
  %v1823 = vmax.f32 %v1821, %v1822
  %v1824 = vsel %vm1571, %v1162, -inf
  %v1825 = vsel %vm1571, %v1287, -inf
  %v1826 = vmax.f32 %v1824, %v1825
  %v1827 = vsel %vm1571, %v1412, -inf
  %v1828 = vmax.f32 %v1826, %v1827
  %v1829 = vsel %vm1571, %v1537, -inf
  %v1830 = vmax.f32 %v1828, %v1829
  %v1831 = vsel %vm1571, %v1164, -inf
  %v1832 = vsel %vm1571, %v1289, -inf
  %v1833 = vmax.f32 %v1831, %v1832
  %v1834 = vsel %vm1571, %v1414, -inf
  %v1835 = vmax.f32 %v1833, %v1834
  %v1836 = vsel %vm1571, %v1539, -inf
  %v1837 = vmax.f32 %v1835, %v1836
  %v1838 = vsel %vm1571, %v1167, -inf
  %v1839 = vsel %vm1571, %v1292, -inf
  %v1840 = vmax.f32 %v1838, %v1839
  %v1841 = vsel %vm1571, %v1417, -inf
  %v1842 = vmax.f32 %v1840, %v1841
  %v1843 = vsel %vm1571, %v1542, -inf
  %v1844 = vmax.f32 %v1842, %v1843
  %v1845 = vsel %vm1571, %v1169, -inf
  %v1846 = vsel %vm1571, %v1294, -inf
  %v1847 = vmax.f32 %v1845, %v1846
  %v1848 = vsel %vm1571, %v1419, -inf
  %v1849 = vmax.f32 %v1847, %v1848
  %v1850 = vsel %vm1571, %v1544, -inf
  %v1851 = vmax.f32 %v1849, %v1850
  %v1852 = vsel %vm1571, %v1172, -inf
  %v1853 = vsel %vm1571, %v1297, -inf
  %v1854 = vmax.f32 %v1852, %v1853
  %v1855 = vsel %vm1571, %v1422, -inf
  %v1856 = vmax.f32 %v1854, %v1855
  %v1857 = vsel %vm1571, %v1547, -inf
  %v1858 = vmax.f32 %v1856, %v1857
  %v1859 = vsel %vm1571, %v1174, -inf
  %v1860 = vsel %vm1571, %v1299, -inf
  %v1861 = vmax.f32 %v1859, %v1860
  %v1862 = vsel %vm1571, %v1424, -inf
  %v1863 = vmax.f32 %v1861, %v1862
  %v1864 = vsel %vm1571, %v1549, -inf
  %v1865 = vmax.f32 %v1863, %v1864
  %v1866 = vsel %vm1571, %v1177, -inf
  %v1867 = vsel %vm1571, %v1302, -inf
  %v1868 = vmax.f32 %v1866, %v1867
  %v1869 = vsel %vm1571, %v1427, -inf
  %v1870 = vmax.f32 %v1868, %v1869
  %v1871 = vsel %vm1571, %v1552, -inf
  %v1872 = vmax.f32 %v1870, %v1871
  %v1873 = vsel %vm1571, %v1179, -inf
  %v1874 = vsel %vm1571, %v1304, -inf
  %v1875 = vmax.f32 %v1873, %v1874
  %v1876 = vsel %vm1571, %v1429, -inf
  %v1877 = vmax.f32 %v1875, %v1876
  %v1878 = vsel %vm1571, %v1554, -inf
  %v1879 = vmax.f32 %v1877, %v1878
  %v1880 = vsel %vm1571, %v1182, -inf
  %v1881 = vsel %vm1571, %v1307, -inf
  %v1882 = vmax.f32 %v1880, %v1881
  %v1883 = vsel %vm1571, %v1432, -inf
  %v1884 = vmax.f32 %v1882, %v1883
  %v1885 = vsel %vm1571, %v1557, -inf
  %v1886 = vmax.f32 %v1884, %v1885
  %v1887 = vsel %vm1571, %v1184, -inf
  %v1888 = vsel %vm1571, %v1309, -inf
  %v1889 = vmax.f32 %v1887, %v1888
  %v1890 = vsel %vm1571, %v1434, -inf
  %v1891 = vmax.f32 %v1889, %v1890
  %v1892 = vsel %vm1571, %v1559, -inf
  %v1893 = vmax.f32 %v1891, %v1892
  %v1894 = vsel %vm1571, %v1187, -inf
  %v1895 = vsel %vm1571, %v1312, -inf
  %v1896 = vmax.f32 %v1894, %v1895
  %v1897 = vsel %vm1571, %v1437, -inf
  %v1898 = vmax.f32 %v1896, %v1897
  %v1899 = vsel %vm1571, %v1562, -inf
  %v1900 = vmax.f32 %v1898, %v1899
  %v1901 = vsel %vm1571, %v1189, -inf
  %v1902 = vsel %vm1571, %v1314, -inf
  %v1903 = vmax.f32 %v1901, %v1902
  %v1904 = vsel %vm1571, %v1439, -inf
  %v1905 = vmax.f32 %v1903, %v1904
  %v1906 = vsel %vm1571, %v1564, -inf
  %v1907 = vmax.f32 %v1905, %v1906
  %v1908 = vsel %vm1571, %v1192, -inf
  %v1909 = vsel %vm1571, %v1317, -inf
  %v1910 = vmax.f32 %v1908, %v1909
  %v1911 = vsel %vm1571, %v1442, -inf
  %v1912 = vmax.f32 %v1910, %v1911
  %v1913 = vsel %vm1571, %v1567, -inf
  %v1914 = vmax.f32 %v1912, %v1913
  %v1915 = vsel %vm1571, %v1194, -inf
  %v1916 = vsel %vm1571, %v1319, -inf
  %v1917 = vmax.f32 %v1915, %v1916
  %v1918 = vsel %vm1571, %v1444, -inf
  %v1919 = vmax.f32 %v1917, %v1918
  %v1920 = vsel %vm1571, %v1569, -inf
  %v1921 = vmax.f32 %v1919, %v1920
  %v1922 = vld [vmem:[%s2] sm:$0x1]
  %v1924 = vperm.slane %v1922, 0
  %v1926 = vadd.f32 %v1578, %v1924
  %v1927 = vadd.f32 %v1585, %v1924
  %v1928 = vadd.f32 %v1592, %v1924
  %v1929 = vadd.f32 %v1599, %v1924
  %v1930 = vadd.f32 %v1606, %v1924
  %v1931 = vadd.f32 %v1613, %v1924
  %v1932 = vadd.f32 %v1620, %v1924
  %v1933 = vadd.f32 %v1627, %v1924
  %v1934 = vadd.f32 %v1634, %v1924
  %v1935 = vadd.f32 %v1641, %v1924
  %v1936 = vadd.f32 %v1648, %v1924
  %v1937 = vadd.f32 %v1655, %v1924
  %v1938 = vadd.f32 %v1662, %v1924
  %v1939 = vadd.f32 %v1669, %v1924
  %v1940 = vadd.f32 %v1676, %v1924
  %v1941 = vadd.f32 %v1683, %v1924
  %v1942 = vadd.f32 %v1690, %v1924
  %v1943 = vadd.f32 %v1697, %v1924
  %v1944 = vadd.f32 %v1704, %v1924
  %v1945 = vadd.f32 %v1711, %v1924
  %v1946 = vadd.f32 %v1718, %v1924
  %v1947 = vadd.f32 %v1725, %v1924
  %v1948 = vadd.f32 %v1732, %v1924
  %v1949 = vadd.f32 %v1739, %v1924
  %v1950 = vadd.f32 %v1746, %v1924
  %v1951 = vadd.f32 %v1753, %v1924
  %v1952 = vadd.f32 %v1760, %v1924
  %v1953 = vadd.f32 %v1767, %v1924
  %v1954 = vadd.f32 %v1774, %v1924
  %v1955 = vadd.f32 %v1781, %v1924
  %v1956 = vadd.f32 %v1788, %v1924
  %v1957 = vadd.f32 %v1795, %v1924
  %v1958 = vadd.f32 %v1802, %v1924
  %v1959 = vadd.f32 %v1809, %v1924
  %v1960 = vadd.f32 %v1816, %v1924
  %v1961 = vadd.f32 %v1823, %v1924
  %v1962 = vadd.f32 %v1830, %v1924
  %v1963 = vadd.f32 %v1837, %v1924
  %v1964 = vadd.f32 %v1844, %v1924
  %v1965 = vadd.f32 %v1851, %v1924
  %v1966 = vadd.f32 %v1858, %v1924
  %v1967 = vadd.f32 %v1865, %v1924
  %v1968 = vadd.f32 %v1872, %v1924
  %v1969 = vadd.f32 %v1879, %v1924
  %v1970 = vadd.f32 %v1886, %v1924
  %v1971 = vadd.f32 %v1893, %v1924
  %v1972 = vadd.f32 %v1900, %v1924
  %v1973 = vadd.f32 %v1907, %v1924
  %v1974 = vadd.f32 %v1914, %v1924
  %v1975 = vadd.f32 %v1921, %v1924
  %v1976 = vmax.f32 %v1926, 0.0
  %v1977 = vmax.f32 %v1927, 0.0
  %v1978 = vmax.f32 %v1928, 0.0
  %v1979 = vmax.f32 %v1929, 0.0
  %v1980 = vmax.f32 %v1930, 0.0
  %v1981 = vmax.f32 %v1931, 0.0
  %v1982 = vmax.f32 %v1932, 0.0
  %v1983 = vmax.f32 %v1933, 0.0
  %v1984 = vmax.f32 %v1934, 0.0
  %v1985 = vmax.f32 %v1935, 0.0
  %v1986 = vmax.f32 %v1936, 0.0
  %v1987 = vmax.f32 %v1937, 0.0
  %v1988 = vmax.f32 %v1938, 0.0
  %v1989 = vmax.f32 %v1939, 0.0
  %v1990 = vmax.f32 %v1940, 0.0
  %v1991 = vmax.f32 %v1941, 0.0
  %v1992 = vmax.f32 %v1942, 0.0
  %v1993 = vmax.f32 %v1943, 0.0
  %v1994 = vmax.f32 %v1944, 0.0
  %v1995 = vmax.f32 %v1945, 0.0
  %v1996 = vmax.f32 %v1946, 0.0
  %v1997 = vmax.f32 %v1947, 0.0
  %v1998 = vmax.f32 %v1948, 0.0
  %v1999 = vmax.f32 %v1949, 0.0
  %v2000 = vmax.f32 %v1950, 0.0
  %v2001 = vmax.f32 %v1951, 0.0
  %v2002 = vmax.f32 %v1952, 0.0
  %v2003 = vmax.f32 %v1953, 0.0
  %v2004 = vmax.f32 %v1954, 0.0
  %v2005 = vmax.f32 %v1955, 0.0
  %v2006 = vmax.f32 %v1956, 0.0
  %v2007 = vmax.f32 %v1957, 0.0
  %v2008 = vmax.f32 %v1958, 0.0
  %v2009 = vmax.f32 %v1959, 0.0
  %v2010 = vmax.f32 %v1960, 0.0
  %v2011 = vmax.f32 %v1961, 0.0
  %v2012 = vmax.f32 %v1962, 0.0
  %v2013 = vmax.f32 %v1963, 0.0
  %v2014 = vmax.f32 %v1964, 0.0
  %v2015 = vmax.f32 %v1965, 0.0
  %v2016 = vmax.f32 %v1966, 0.0
  %v2017 = vmax.f32 %v1967, 0.0
  %v2018 = vmax.f32 %v1968, 0.0
  %v2019 = vmax.f32 %v1969, 0.0
  %v2020 = vmax.f32 %v1970, 0.0
  %v2021 = vmax.f32 %v1971, 0.0
  %v2022 = vmax.f32 %v1972, 0.0
  %v2023 = vmax.f32 %v1973, 0.0
  %v2024 = vmax.f32 %v1974, 0.0
  %v2025 = vmax.f32 %v1975, 0.0
  %v2026 = vpack.c.bf16 %v1976, %v1976
  %v2027 = vpack.c.bf16 %v1977, %v1977
  %v2028 = vpack.c.bf16 %v1978, %v1978
  %v2029 = vpack.c.bf16 %v1979, %v1979
  %v2030 = vpack.c.bf16 %v1980, %v1980
  %v2031 = vpack.c.bf16 %v1981, %v1981
  %v2032 = vpack.c.bf16 %v1982, %v1982
  %v2033 = vpack.c.bf16 %v1983, %v1983
  %v2034 = vpack.c.bf16 %v1984, %v1984
  %v2035 = vpack.c.bf16 %v1985, %v1985
  %v2036 = vpack.c.bf16 %v1986, %v1986
  %v2037 = vpack.c.bf16 %v1987, %v1987
  %v2038 = vpack.c.bf16 %v1988, %v1988
  %v2039 = vpack.c.bf16 %v1989, %v1989
  %v2040 = vpack.c.bf16 %v1990, %v1990
  %v2041 = vpack.c.bf16 %v1991, %v1991
  %v2042 = vpack.c.bf16 %v1992, %v1992
  %v2043 = vpack.c.bf16 %v1993, %v1993
  %v2044 = vpack.c.bf16 %v1994, %v1994
  %v2045 = vpack.c.bf16 %v1995, %v1995
  %v2046 = vpack.c.bf16 %v1996, %v1996
  %v2047 = vpack.c.bf16 %v1997, %v1997
  %v2048 = vpack.c.bf16 %v1998, %v1998
  %v2049 = vpack.c.bf16 %v1999, %v1999
  %v2050 = vpack.c.bf16 %v2000, %v2000
  %v2051 = vpack.c.bf16 %v2001, %v2001
  %v2052 = vpack.c.bf16 %v2002, %v2002
  %v2053 = vpack.c.bf16 %v2003, %v2003
  %v2054 = vpack.c.bf16 %v2004, %v2004
  %v2055 = vpack.c.bf16 %v2005, %v2005
  %v2056 = vpack.c.bf16 %v2006, %v2006
  %v2057 = vpack.c.bf16 %v2007, %v2007
  %v2058 = vpack.c.bf16 %v2008, %v2008
  %v2059 = vpack.c.bf16 %v2009, %v2009
  %v2060 = vpack.c.bf16 %v2010, %v2010
  %v2061 = vpack.c.bf16 %v2011, %v2011
  %v2062 = vpack.c.bf16 %v2012, %v2012
  %v2063 = vpack.c.bf16 %v2013, %v2013
  %v2064 = vpack.c.bf16 %v2014, %v2014
  %v2065 = vpack.c.bf16 %v2015, %v2015
  %v2066 = vpack.c.bf16 %v2016, %v2016
  %v2067 = vpack.c.bf16 %v2017, %v2017
  %v2068 = vpack.c.bf16 %v2018, %v2018
  %v2069 = vpack.c.bf16 %v2019, %v2019
  %v2070 = vpack.c.bf16 %v2020, %v2020
  %v2071 = vpack.c.bf16 %v2021, %v2021
  %v2072 = vpack.c.bf16 %v2022, %v2022
  %v2073 = vpack.c.bf16 %v2023, %v2023
  %v2074 = vpack.c.bf16 %v2024, %v2024
  %v2075 = vpack.c.bf16 %v2025, %v2025
  %vm2076 = vcmask 519168
  %2077 = vst.msk [vmem:[%s3] sm:$0xf] %vm2076, %v2026
  %2078 = vst.msk [vmem:[%s3 + $0x4] sm:$0xf] %vm2076, %v2027
  %2079 = vst.msk [vmem:[%s3 + $0x8] sm:$0xf] %vm2076, %v2028
  %2080 = vst.msk [vmem:[%s3 + $0xc] sm:$0xf] %vm2076, %v2029
  %2081 = vst.msk [vmem:[%s3 + $0x10] sm:$0xf] %vm2076, %v2030
  %2082 = vst.msk [vmem:[%s3 + $0x14] sm:$0xf] %vm2076, %v2031
  %2083 = vst.msk [vmem:[%s3 + $0x18] sm:$0xf] %vm2076, %v2032
  %2084 = vst.msk [vmem:[%s3 + $0x1c] sm:$0xf] %vm2076, %v2033
  %2085 = vst.msk [vmem:[%s3 + $0x20] sm:$0xf] %vm2076, %v2034
  %2086 = vst.msk [vmem:[%s3 + $0x24] sm:$0xf] %vm2076, %v2035
  %2087 = vst.msk [vmem:[%s3 + $0x28] sm:$0xf] %vm2076, %v2036
  %2088 = vst.msk [vmem:[%s3 + $0x2c] sm:$0xf] %vm2076, %v2037
  %2089 = vst.msk [vmem:[%s3 + $0x30] sm:$0xf] %vm2076, %v2038
  %2090 = vst.msk [vmem:[%s3 + $0x34] sm:$0xf] %vm2076, %v2039
  %2091 = vst.msk [vmem:[%s3 + $0x38] sm:$0xf] %vm2076, %v2040
  %2092 = vst.msk [vmem:[%s3 + $0x3c] sm:$0xf] %vm2076, %v2041
  %2093 = vst.msk [vmem:[%s3 + $0x40] sm:$0xf] %vm2076, %v2042
  %2094 = vst.msk [vmem:[%s3 + $0x44] sm:$0xf] %vm2076, %v2043
  %2095 = vst.msk [vmem:[%s3 + $0x48] sm:$0xf] %vm2076, %v2044
  %2096 = vst.msk [vmem:[%s3 + $0x4c] sm:$0xf] %vm2076, %v2045
  %2097 = vst.msk [vmem:[%s3 + $0x50] sm:$0xf] %vm2076, %v2046
  %2098 = vst.msk [vmem:[%s3 + $0x54] sm:$0xf] %vm2076, %v2047
  %2099 = vst.msk [vmem:[%s3 + $0x58] sm:$0xf] %vm2076, %v2048
  %2100 = vst.msk [vmem:[%s3 + $0x5c] sm:$0xf] %vm2076, %v2049
  %2101 = vst.msk [vmem:[%s3 + $0x60] sm:$0xf] %vm2076, %v2050
  %2102 = vst.msk [vmem:[%s3 + $0x64] sm:$0xf] %vm2076, %v2051
  %2103 = vst.msk [vmem:[%s3 + $0x68] sm:$0xf] %vm2076, %v2052
  %2104 = vst.msk [vmem:[%s3 + $0x6c] sm:$0xf] %vm2076, %v2053
  %2105 = vst.msk [vmem:[%s3 + $0x70] sm:$0xf] %vm2076, %v2054
  %2106 = vst.msk [vmem:[%s3 + $0x74] sm:$0xf] %vm2076, %v2055
  %2107 = vst.msk [vmem:[%s3 + $0x78] sm:$0xf] %vm2076, %v2056
  %2108 = vst.msk [vmem:[%s3 + $0x7c] sm:$0xf] %vm2076, %v2057
  %2109 = vst.msk [vmem:[%s3 + $0x80] sm:$0xf] %vm2076, %v2058
  %2110 = vst.msk [vmem:[%s3 + $0x84] sm:$0xf] %vm2076, %v2059
  %2111 = vst.msk [vmem:[%s3 + $0x88] sm:$0xf] %vm2076, %v2060
  %2112 = vst.msk [vmem:[%s3 + $0x8c] sm:$0xf] %vm2076, %v2061
  %2113 = vst.msk [vmem:[%s3 + $0x90] sm:$0xf] %vm2076, %v2062
  %2114 = vst.msk [vmem:[%s3 + $0x94] sm:$0xf] %vm2076, %v2063
  %2115 = vst.msk [vmem:[%s3 + $0x98] sm:$0xf] %vm2076, %v2064
  %2116 = vst.msk [vmem:[%s3 + $0x9c] sm:$0xf] %vm2076, %v2065
  %2117 = vst.msk [vmem:[%s3 + $0xa0] sm:$0xf] %vm2076, %v2066
  %2118 = vst.msk [vmem:[%s3 + $0xa4] sm:$0xf] %vm2076, %v2067
  %2119 = vst.msk [vmem:[%s3 + $0xa8] sm:$0xf] %vm2076, %v2068
  %2120 = vst.msk [vmem:[%s3 + $0xac] sm:$0xf] %vm2076, %v2069
  %2121 = vst.msk [vmem:[%s3 + $0xb0] sm:$0xf] %vm2076, %v2070
  %2122 = vst.msk [vmem:[%s3 + $0xb4] sm:$0xf] %vm2076, %v2071
  %2123 = vst.msk [vmem:[%s3 + $0xb8] sm:$0xf] %vm2076, %v2072
  %2124 = vst.msk [vmem:[%s3 + $0xbc] sm:$0xf] %vm2076, %v2073
  %2125 = vst.msk [vmem:[%s3 + $0xc0] sm:$0xf] %vm2076, %v2074
  %2126 = vst.msk [vmem:[%s3 + $0xc4] sm:$0xf] %vm2076, %v2075
  // Predicated region
  $region14: #{cnn_forward.3} parent=0 // pred_check
    _
  $region15: #{cnn_forward.3} parent=0 // pred_check_branch
    %2128 = sbr.rel (0) target = $region17
  $region16: #{cnn_forward.3} parent=0 // pred_region
    _
  $region17: #{cnn_forward.3} parent=0 // pred_fallthru
    _
  // Predicated region
  $region18: #{cnn_forward.3} parent=0 // pred_check
    _
  $region19: #{cnn_forward.3} parent=0 // pred_check_branch
    %2130 = sbr.rel (0) target = $region21
  $region20: #{cnn_forward.3} parent=0 // pred_region
    _
  $region21: #{cnn_forward.3} parent=0 // pred_fallthru
    _

// kernel: cnn_forward.4
$region0: #{cnn_forward.4}
  #allocation0 [shape = 'u32[]', space=smem, size = 0x4, offset = 0x4, fixed_abs, tag = 'smem constant byte address 0x4 - core index']
  #allocation1 [shape = 'u32[72,128]{1,0:T(1,128)}', space=vmem, size = 0x9000, scoped, tag = 'internal scratch']
  %s0 = inlined_call_operand.vmem [shape: bf16[4,64,1600], index: 0, kind: input, shape index: {}]
  %s1 = inlined_call_operand.vmem [shape: bf16[1600,128], index: 1, kind: input, shape index: {}]
  %s2 = inlined_call_operand.vmem [shape: f32[1,128], index: 2, kind: input, shape index: {}]
  %s3 = inlined_call_operand.vmem [shape: bf16[64,128], index: 3, kind: output, shape index: {}]
  %s4 = sld [smem:[#allocation0]]
  $region22: #{cnn_forward.4} parent=0
    _
  %s6 = ssub.s32 1, %s4
  %s7 = scalar_select 0, %s6, %s4
  // Predicated region
  $region2: #{cnn_forward.4} parent=0 // pred_check
    _
  $region3: #{cnn_forward.4} parent=0 // pred_check_branch
    %9 = sbr.rel (0) target = $region5
  $region4: #{cnn_forward.4} parent=0 // pred_region
    _
  $region5: #{cnn_forward.4} parent=0 // pred_fallthru
    _
  // Predicated region
  $region6: #{cnn_forward.4} parent=0 // pred_check
    _
  $region7: #{cnn_forward.4} parent=0 // pred_check_branch
    %11 = sbr.rel (0) target = $region9
  $region8: #{cnn_forward.4} parent=0 // pred_region
    _
  $region9: #{cnn_forward.4} parent=0 // pred_fallthru
    _
  // Predicated region
  $region10: #{cnn_forward.4} parent=0 // pred_check
    _
  $region11: #{cnn_forward.4} parent=0 // pred_check_branch
    %13 = sbr.rel (0) target = $region13
  $region12: #{cnn_forward.4} parent=0 // pred_region
    _
  $region13: #{cnn_forward.4} parent=0 // pred_fallthru
    _
  %v15 = vld [vmem:[%s0] sm:$0xff]
  %v16 = vld [vmem:[%s0 + $0x8] sm:$0xff]
  %v17 = vld [vmem:[%s0 + $0x10] sm:$0xff]
  %v18 = vld [vmem:[%s0 + $0x18] sm:$0xff]
  %v19 = vld [vmem:[%s0 + $0x20] sm:$0xff]
  %v20 = vld [vmem:[%s0 + $0x28] sm:$0xff]
  %v21 = vld [vmem:[%s0 + $0x30] sm:$0xf]
  %v22 = vld [vmem:[%s0 + $0x34] sm:$0xff]
  %v23 = vld [vmem:[%s0 + $0x3c] sm:$0xff]
  %v24 = vld [vmem:[%s0 + $0x44] sm:$0xff]
  %v25 = vld [vmem:[%s0 + $0x4c] sm:$0xff]
  %v26 = vld [vmem:[%s0 + $0x54] sm:$0xff]
  %v27 = vld [vmem:[%s0 + $0x5c] sm:$0xff]
  %v28 = vld [vmem:[%s0 + $0x64] sm:$0xf]
  %v29 = vld [vmem:[%s0 + $0x68] sm:$0xff]
  %v30 = vld [vmem:[%s0 + $0x70] sm:$0xff]
  %v31 = vld [vmem:[%s0 + $0x78] sm:$0xff]
  %v32 = vld [vmem:[%s0 + $0x80] sm:$0xff]
  %v33 = vld [vmem:[%s0 + $0x88] sm:$0xff]
  %v34 = vld [vmem:[%s0 + $0x90] sm:$0xff]
  %v35 = vld [vmem:[%s0 + $0x98] sm:$0xf]
  %v36 = vld [vmem:[%s0 + $0x9c] sm:$0xff]
  %v37 = vld [vmem:[%s0 + $0xa4] sm:$0xff]
  %v38 = vld [vmem:[%s0 + $0xac] sm:$0xff]
  %v39 = vld [vmem:[%s0 + $0xb4] sm:$0xff]
  %v40 = vld [vmem:[%s0 + $0xbc] sm:$0xff]
  %v41 = vld [vmem:[%s0 + $0xc4] sm:$0xff]
  %v42 = vld [vmem:[%s0 + $0xcc] sm:$0xf]
  %v43 = vld [vmem:[%s0 + $0xd0] sm:$0xff]
  %v44 = vld [vmem:[%s0 + $0xd8] sm:$0xff]
  %v45 = vld [vmem:[%s0 + $0xe0] sm:$0xff]
  %v46 = vld [vmem:[%s0 + $0xe8] sm:$0xff]
  %v47 = vld [vmem:[%s0 + $0xf0] sm:$0xff]
  %v48 = vld [vmem:[%s0 + $0xf8] sm:$0xff]
  %v49 = vld [vmem:[%s0 + $0x100] sm:$0xf]
  %v50 = vld [vmem:[%s0 + $0x104] sm:$0xff]
  %v51 = vld [vmem:[%s0 + $0x10c] sm:$0xff]
  %v52 = vld [vmem:[%s0 + $0x114] sm:$0xff]
  %v53 = vld [vmem:[%s0 + $0x11c] sm:$0xff]
  %v54 = vld [vmem:[%s0 + $0x124] sm:$0xff]
  %v55 = vld [vmem:[%s0 + $0x12c] sm:$0xff]
  %v56 = vld [vmem:[%s0 + $0x134] sm:$0xf]
  %v57 = vld [vmem:[%s0 + $0x138] sm:$0xff]
  %v58 = vld [vmem:[%s0 + $0x140] sm:$0xff]
  %v59 = vld [vmem:[%s0 + $0x148] sm:$0xff]
  %v60 = vld [vmem:[%s0 + $0x150] sm:$0xff]
  %v61 = vld [vmem:[%s0 + $0x158] sm:$0xff]
  %v62 = vld [vmem:[%s0 + $0x160] sm:$0xff]
  %v63 = vld [vmem:[%s0 + $0x168] sm:$0xf]
  %v64 = vld [vmem:[%s0 + $0x16c] sm:$0xff]
  %v65 = vld [vmem:[%s0 + $0x174] sm:$0xff]
  %v66 = vld [vmem:[%s0 + $0x17c] sm:$0xff]
  %v67 = vld [vmem:[%s0 + $0x184] sm:$0xff]
  %v68 = vld [vmem:[%s0 + $0x18c] sm:$0xff]
  %v69 = vld [vmem:[%s0 + $0x194] sm:$0xff]
  %v70 = vld [vmem:[%s0 + $0x19c] sm:$0xf]
  %v71 = vld [vmem:[%s0 + $0x1a0] sm:$0xff]
  %v72 = vld [vmem:[%s0 + $0x1a8] sm:$0xff]
  %v73 = vld [vmem:[%s0 + $0x1b0] sm:$0xff]
  %v74 = vld [vmem:[%s0 + $0x1b8] sm:$0xff]
  %v75 = vld [vmem:[%s0 + $0x1c0] sm:$0xff]
  %v76 = vld [vmem:[%s0 + $0x1c8] sm:$0xff]
  %v77 = vld [vmem:[%s0 + $0x1d0] sm:$0xf]
  %v78 = vld [vmem:[%s0 + $0x1d4] sm:$0xff]
  %v79 = vld [vmem:[%s0 + $0x1dc] sm:$0xff]
  %v80 = vld [vmem:[%s0 + $0x1e4] sm:$0xff]
  %v81 = vld [vmem:[%s0 + $0x1ec] sm:$0xff]
  %v82 = vld [vmem:[%s0 + $0x1f4] sm:$0xff]
  %v83 = vld [vmem:[%s0 + $0x1fc] sm:$0xff]
  %v84 = vld [vmem:[%s0 + $0x204] sm:$0xf]
  %v85 = vld [vmem:[%s0 + $0x208] sm:$0xff]
  %v86 = vld [vmem:[%s0 + $0x210] sm:$0xff]
  %v87 = vld [vmem:[%s0 + $0x218] sm:$0xff]
  %v88 = vld [vmem:[%s0 + $0x220] sm:$0xff]
  %v89 = vld [vmem:[%s0 + $0x228] sm:$0xff]
  %v90 = vld [vmem:[%s0 + $0x230] sm:$0xff]
  %v91 = vld [vmem:[%s0 + $0x238] sm:$0xf]
  %v92 = vld [vmem:[%s0 + $0x23c] sm:$0xff]
  %v93 = vld [vmem:[%s0 + $0x244] sm:$0xff]
  %v94 = vld [vmem:[%s0 + $0x24c] sm:$0xff]
  %v95 = vld [vmem:[%s0 + $0x254] sm:$0xff]
  %v96 = vld [vmem:[%s0 + $0x25c] sm:$0xff]
  %v97 = vld [vmem:[%s0 + $0x264] sm:$0xff]
  %v98 = vld [vmem:[%s0 + $0x26c] sm:$0xf]
  %v99 = vld [vmem:[%s0 + $0x270] sm:$0xff]
  %v100 = vld [vmem:[%s0 + $0x278] sm:$0xff]
  %v101 = vld [vmem:[%s0 + $0x280] sm:$0xff]
  %v102 = vld [vmem:[%s0 + $0x288] sm:$0xff]
  %v103 = vld [vmem:[%s0 + $0x290] sm:$0xff]
  %v104 = vld [vmem:[%s0 + $0x298] sm:$0xff]
  %v105 = vld [vmem:[%s0 + $0x2a0] sm:$0xf]
  %v106 = vld [vmem:[%s0 + $0x2a4] sm:$0xff]
  %v107 = vld [vmem:[%s0 + $0x2ac] sm:$0xff]
  %v108 = vld [vmem:[%s0 + $0x2b4] sm:$0xff]
  %v109 = vld [vmem:[%s0 + $0x2bc] sm:$0xff]
  %v110 = vld [vmem:[%s0 + $0x2c4] sm:$0xff]
  %v111 = vld [vmem:[%s0 + $0x2cc] sm:$0xff]
  %v112 = vld [vmem:[%s0 + $0x2d4] sm:$0xf]
  %v113 = vld [vmem:[%s0 + $0x2d8] sm:$0xff]
  %v114 = vld [vmem:[%s0 + $0x2e0] sm:$0xff]
  %v115 = vld [vmem:[%s0 + $0x2e8] sm:$0xff]
  %v116 = vld [vmem:[%s0 + $0x2f0] sm:$0xff]
  %v117 = vld [vmem:[%s0 + $0x2f8] sm:$0xff]
  %v118 = vld [vmem:[%s0 + $0x300] sm:$0xff]
  %v119 = vld [vmem:[%s0 + $0x308] sm:$0xf]
  %v120 = vld [vmem:[%s0 + $0x30c] sm:$0xff]
  %v121 = vld [vmem:[%s0 + $0x314] sm:$0xff]
  %v122 = vld [vmem:[%s0 + $0x31c] sm:$0xff]
  %v123 = vld [vmem:[%s0 + $0x324] sm:$0xff]
  %v124 = vld [vmem:[%s0 + $0x32c] sm:$0xff]
  %v125 = vld [vmem:[%s0 + $0x334] sm:$0xff]
  %v126 = vld [vmem:[%s0 + $0x33c] sm:$0xf]
  %v127 = vld [vmem:[%s0 + $0x340] sm:$0xff]
  %v128 = vld [vmem:[%s0 + $0x348] sm:$0xff]
  %v129 = vld [vmem:[%s0 + $0x350] sm:$0xff]
  %v130 = vld [vmem:[%s0 + $0x358] sm:$0xff]
  %v131 = vld [vmem:[%s0 + $0x360] sm:$0xff]
  %v132 = vld [vmem:[%s0 + $0x368] sm:$0xff]
  %v133 = vld [vmem:[%s0 + $0x370] sm:$0xf]
  %v134 = vld [vmem:[%s0 + $0x374] sm:$0xff]
  %v135 = vld [vmem:[%s0 + $0x37c] sm:$0xff]
  %v136 = vld [vmem:[%s0 + $0x384] sm:$0xff]
  %v137 = vld [vmem:[%s0 + $0x38c] sm:$0xff]
  %v138 = vld [vmem:[%s0 + $0x394] sm:$0xff]
  %v139 = vld [vmem:[%s0 + $0x39c] sm:$0xff]
  %v140 = vld [vmem:[%s0 + $0x3a4] sm:$0xf]
  %v141 = vld [vmem:[%s0 + $0x3a8] sm:$0xff]
  %v142 = vld [vmem:[%s0 + $0x3b0] sm:$0xff]
  %v143 = vld [vmem:[%s0 + $0x3b8] sm:$0xff]
  %v144 = vld [vmem:[%s0 + $0x3c0] sm:$0xff]
  %v145 = vld [vmem:[%s0 + $0x3c8] sm:$0xff]
  %v146 = vld [vmem:[%s0 + $0x3d0] sm:$0xff]
  %v147 = vld [vmem:[%s0 + $0x3d8] sm:$0xf]
  %v148 = vld [vmem:[%s0 + $0x3dc] sm:$0xff]
  %v149 = vld [vmem:[%s0 + $0x3e4] sm:$0xff]
  %v150 = vld [vmem:[%s0 + $0x3ec] sm:$0xff]
  %v151 = vld [vmem:[%s0 + $0x3f4] sm:$0xff]
  %v152 = vld [vmem:[%s0 + $0x3fc] sm:$0xff]
  %v153 = vld [vmem:[%s0 + $0x404] sm:$0xff]
  %v154 = vld [vmem:[%s0 + $0x40c] sm:$0xf]
  %v155 = vld [vmem:[%s0 + $0x410] sm:$0xff]
  %v156 = vld [vmem:[%s0 + $0x418] sm:$0xff]
  %v157 = vld [vmem:[%s0 + $0x420] sm:$0xff]
  %v158 = vld [vmem:[%s0 + $0x428] sm:$0xff]
  %v159 = vld [vmem:[%s0 + $0x430] sm:$0xff]
  %v160 = vld [vmem:[%s0 + $0x438] sm:$0xff]
  %v161 = vld [vmem:[%s0 + $0x440] sm:$0xf]
  %v162 = vld [vmem:[%s0 + $0x444] sm:$0xff]
  %v163 = vld [vmem:[%s0 + $0x44c] sm:$0xff]
  %v164 = vld [vmem:[%s0 + $0x454] sm:$0xff]
  %v165 = vld [vmem:[%s0 + $0x45c] sm:$0xff]
  %v166 = vld [vmem:[%s0 + $0x464] sm:$0xff]
  %v167 = vld [vmem:[%s0 + $0x46c] sm:$0xff]
  %v168 = vld [vmem:[%s0 + $0x474] sm:$0xf]
  %v169 = vld [vmem:[%s0 + $0x478] sm:$0xff]
  %v170 = vld [vmem:[%s0 + $0x480] sm:$0xff]
  %v171 = vld [vmem:[%s0 + $0x488] sm:$0xff]
  %v172 = vld [vmem:[%s0 + $0x490] sm:$0xff]
  %v173 = vld [vmem:[%s0 + $0x498] sm:$0xff]
  %v174 = vld [vmem:[%s0 + $0x4a0] sm:$0xff]
  %v175 = vld [vmem:[%s0 + $0x4a8] sm:$0xf]
  %v176 = vld [vmem:[%s0 + $0x4ac] sm:$0xff]
  %v177 = vld [vmem:[%s0 + $0x4b4] sm:$0xff]
  %v178 = vld [vmem:[%s0 + $0x4bc] sm:$0xff]
  %v179 = vld [vmem:[%s0 + $0x4c4] sm:$0xff]
  %v180 = vld [vmem:[%s0 + $0x4cc] sm:$0xff]
  %v181 = vld [vmem:[%s0 + $0x4d4] sm:$0xff]
  %v182 = vld [vmem:[%s0 + $0x4dc] sm:$0xf]
  %v183 = vld [vmem:[%s0 + $0x4e0] sm:$0xff]
  %v184 = vld [vmem:[%s0 + $0x4e8] sm:$0xff]
  %v185 = vld [vmem:[%s0 + $0x4f0] sm:$0xff]
  %v186 = vld [vmem:[%s0 + $0x4f8] sm:$0xff]
  %v187 = vld [vmem:[%s0 + $0x500] sm:$0xff]
  %v188 = vld [vmem:[%s0 + $0x508] sm:$0xff]
  %v189 = vld [vmem:[%s0 + $0x510] sm:$0xf]
  %v190 = vld [vmem:[%s0 + $0x514] sm:$0xff]
  %v191 = vld [vmem:[%s0 + $0x51c] sm:$0xff]
  %v192 = vld [vmem:[%s0 + $0x524] sm:$0xff]
  %v193 = vld [vmem:[%s0 + $0x52c] sm:$0xff]
  %v194 = vld [vmem:[%s0 + $0x534] sm:$0xff]
  %v195 = vld [vmem:[%s0 + $0x53c] sm:$0xff]
  %v196 = vld [vmem:[%s0 + $0x544] sm:$0xf]
  %v197 = vld [vmem:[%s0 + $0x548] sm:$0xff]
  %v198 = vld [vmem:[%s0 + $0x550] sm:$0xff]
  %v199 = vld [vmem:[%s0 + $0x558] sm:$0xff]
  %v200 = vld [vmem:[%s0 + $0x560] sm:$0xff]
  %v201 = vld [vmem:[%s0 + $0x568] sm:$0xff]
  %v202 = vld [vmem:[%s0 + $0x570] sm:$0xff]
  %v203 = vld [vmem:[%s0 + $0x578] sm:$0xf]
  %v204 = vld [vmem:[%s0 + $0x57c] sm:$0xff]
  %v205 = vld [vmem:[%s0 + $0x584] sm:$0xff]
  %v206 = vld [vmem:[%s0 + $0x58c] sm:$0xff]
  %v207 = vld [vmem:[%s0 + $0x594] sm:$0xff]
  %v208 = vld [vmem:[%s0 + $0x59c] sm:$0xff]
  %v209 = vld [vmem:[%s0 + $0x5a4] sm:$0xff]
  %v210 = vld [vmem:[%s0 + $0x5ac] sm:$0xf]
  %v211 = vld [vmem:[%s0 + $0x5b0] sm:$0xff]
  %v212 = vld [vmem:[%s0 + $0x5b8] sm:$0xff]
  %v213 = vld [vmem:[%s0 + $0x5c0] sm:$0xff]
  %v214 = vld [vmem:[%s0 + $0x5c8] sm:$0xff]
  %v215 = vld [vmem:[%s0 + $0x5d0] sm:$0xff]
  %v216 = vld [vmem:[%s0 + $0x5d8] sm:$0xff]
  %v217 = vld [vmem:[%s0 + $0x5e0] sm:$0xf]
  %v218 = vld [vmem:[%s0 + $0x5e4] sm:$0xff]
  %v219 = vld [vmem:[%s0 + $0x5ec] sm:$0xff]
  %v220 = vld [vmem:[%s0 + $0x5f4] sm:$0xff]
  %v221 = vld [vmem:[%s0 + $0x5fc] sm:$0xff]
  %v222 = vld [vmem:[%s0 + $0x604] sm:$0xff]
  %v223 = vld [vmem:[%s0 + $0x60c] sm:$0xff]
  %v224 = vld [vmem:[%s0 + $0x614] sm:$0xf]
  %v225 = vld [vmem:[%s0 + $0x618] sm:$0xff]
  %v226 = vld [vmem:[%s0 + $0x620] sm:$0xff]
  %v227 = vld [vmem:[%s0 + $0x628] sm:$0xff]
  %v228 = vld [vmem:[%s0 + $0x630] sm:$0xff]
  %v229 = vld [vmem:[%s0 + $0x638] sm:$0xff]
  %v230 = vld [vmem:[%s0 + $0x640] sm:$0xff]
  %v231 = vld [vmem:[%s0 + $0x648] sm:$0xf]
  %v232 = vld [vmem:[%s0 + $0x64c] sm:$0xff]
  %v233 = vld [vmem:[%s0 + $0x654] sm:$0xff]
  %v234 = vld [vmem:[%s0 + $0x65c] sm:$0xff]
  %v235 = vld [vmem:[%s0 + $0x664] sm:$0xff]
  %v236 = vld [vmem:[%s0 + $0x66c] sm:$0xff]
  %v237 = vld [vmem:[%s0 + $0x674] sm:$0xff]
  %v238 = vld [vmem:[%s0 + $0x67c] sm:$0xf]
  %v239 = vld [vmem:[%s1] sm:$0xf]
  %v240 = vld [vmem:[%s1 + $0x4] sm:$0xf]
  %v241 = vld [vmem:[%s1 + $0x8] sm:$0xf]
  %v242 = vld [vmem:[%s1 + $0xc] sm:$0xf]
  %v243 = vld [vmem:[%s1 + $0x10] sm:$0xf]
  %v244 = vld [vmem:[%s1 + $0x14] sm:$0xf]
  %v245 = vld [vmem:[%s1 + $0x18] sm:$0xf]
  %v246 = vld [vmem:[%s1 + $0x1c] sm:$0xf]
  %v247 = vld [vmem:[%s1 + $0x20] sm:$0xf]
  %v248 = vld [vmem:[%s1 + $0x24] sm:$0xf]
  %v249 = vld [vmem:[%s1 + $0x28] sm:$0xf]
  %v250 = vld [vmem:[%s1 + $0x2c] sm:$0xf]
  %v251 = vld [vmem:[%s1 + $0x30] sm:$0xf]
  %v252 = vld [vmem:[%s1 + $0x34] sm:$0xf]
  %v253 = vld [vmem:[%s1 + $0x38] sm:$0xf]
  %v254 = vld [vmem:[%s1 + $0x3c] sm:$0xf]
  %v255 = vld [vmem:[%s1 + $0x40] sm:$0xf]
  %v256 = vld [vmem:[%s1 + $0x44] sm:$0xf]
  %v257 = vld [vmem:[%s1 + $0x48] sm:$0xf]
  %v258 = vld [vmem:[%s1 + $0x4c] sm:$0xf]
  %v259 = vld [vmem:[%s1 + $0x50] sm:$0xf]
  %v260 = vld [vmem:[%s1 + $0x54] sm:$0xf]
  %v261 = vld [vmem:[%s1 + $0x58] sm:$0xf]
  %v262 = vld [vmem:[%s1 + $0x5c] sm:$0xf]
  %v263 = vld [vmem:[%s1 + $0x60] sm:$0xf]
  %v264 = vld [vmem:[%s1 + $0x64] sm:$0xf]
  %v265 = vld [vmem:[%s1 + $0x68] sm:$0xf]
  %v266 = vld [vmem:[%s1 + $0x6c] sm:$0xf]
  %v267 = vld [vmem:[%s1 + $0x70] sm:$0xf]
  %v268 = vld [vmem:[%s1 + $0x74] sm:$0xf]
  %v269 = vld [vmem:[%s1 + $0x78] sm:$0xf]
  %v270 = vld [vmem:[%s1 + $0x7c] sm:$0xf]
  %v271 = vld [vmem:[%s1 + $0x80] sm:$0xf]
  %v272 = vld [vmem:[%s1 + $0x84] sm:$0xf]
  %v273 = vld [vmem:[%s1 + $0x88] sm:$0xf]
  %v274 = vld [vmem:[%s1 + $0x8c] sm:$0xf]
  %v275 = vld [vmem:[%s1 + $0x90] sm:$0xf]
  %v276 = vld [vmem:[%s1 + $0x94] sm:$0xf]
  %v277 = vld [vmem:[%s1 + $0x98] sm:$0xf]
  %v278 = vld [vmem:[%s1 + $0x9c] sm:$0xf]
  %v279 = vld [vmem:[%s1 + $0xa0] sm:$0xf]
  %v280 = vld [vmem:[%s1 + $0xa4] sm:$0xf]
  %v281 = vld [vmem:[%s1 + $0xa8] sm:$0xf]
  %v282 = vld [vmem:[%s1 + $0xac] sm:$0xf]
  %v283 = vld [vmem:[%s1 + $0xb0] sm:$0xf]
  %v284 = vld [vmem:[%s1 + $0xb4] sm:$0xf]
  %v285 = vld [vmem:[%s1 + $0xb8] sm:$0xf]
  %v286 = vld [vmem:[%s1 + $0xbc] sm:$0xf]
  %v287 = vld [vmem:[%s1 + $0xc0] sm:$0xf]
  %v288 = vld [vmem:[%s1 + $0xc4] sm:$0xf]
  %v289 = vld [vmem:[%s1 + $0xc8] sm:$0xf]
  %v290 = vld [vmem:[%s1 + $0xcc] sm:$0xf]
  %v291 = vld [vmem:[%s1 + $0xd0] sm:$0xf]
  %v292 = vld [vmem:[%s1 + $0xd4] sm:$0xf]
  %v293 = vld [vmem:[%s1 + $0xd8] sm:$0xf]
  %v294 = vld [vmem:[%s1 + $0xdc] sm:$0xf]
  %v295 = vld [vmem:[%s1 + $0xe0] sm:$0xf]
  %v296 = vld [vmem:[%s1 + $0xe4] sm:$0xf]
  %v297 = vld [vmem:[%s1 + $0xe8] sm:$0xf]
  %v298 = vld [vmem:[%s1 + $0xec] sm:$0xf]
  %v299 = vld [vmem:[%s1 + $0xf0] sm:$0xf]
  %v300 = vld [vmem:[%s1 + $0xf4] sm:$0xf]
  %v301 = vld [vmem:[%s1 + $0xf8] sm:$0xf]
  %v302 = vld [vmem:[%s1 + $0xfc] sm:$0xf]
  %v303 = vld [vmem:[%s1 + $0x100] sm:$0xf]
  %v304 = vld [vmem:[%s1 + $0x104] sm:$0xf]
  %v305 = vld [vmem:[%s1 + $0x108] sm:$0xf]
  %v306 = vld [vmem:[%s1 + $0x10c] sm:$0xf]
  %v307 = vld [vmem:[%s1 + $0x110] sm:$0xf]
  %v308 = vld [vmem:[%s1 + $0x114] sm:$0xf]
  %v309 = vld [vmem:[%s1 + $0x118] sm:$0xf]
  %v310 = vld [vmem:[%s1 + $0x11c] sm:$0xf]
  %v311 = vld [vmem:[%s1 + $0x120] sm:$0xf]
  %v312 = vld [vmem:[%s1 + $0x124] sm:$0xf]
  %v313 = vld [vmem:[%s1 + $0x128] sm:$0xf]
  %v314 = vld [vmem:[%s1 + $0x12c] sm:$0xf]
  %v315 = vld [vmem:[%s1 + $0x130] sm:$0xf]
  %v316 = vld [vmem:[%s1 + $0x134] sm:$0xf]
  %v317 = vld [vmem:[%s1 + $0x138] sm:$0xf]
  %v318 = vld [vmem:[%s1 + $0x13c] sm:$0xf]
  %v319 = vld [vmem:[%s1 + $0x140] sm:$0xf]
  %v320 = vld [vmem:[%s1 + $0x144] sm:$0xf]
  %v321 = vld [vmem:[%s1 + $0x148] sm:$0xf]
  %v322 = vld [vmem:[%s1 + $0x14c] sm:$0xf]
  %v323 = vld [vmem:[%s1 + $0x150] sm:$0xf]
  %v324 = vld [vmem:[%s1 + $0x154] sm:$0xf]
  %v325 = vld [vmem:[%s1 + $0x158] sm:$0xf]
  %v326 = vld [vmem:[%s1 + $0x15c] sm:$0xf]
  %v327 = vld [vmem:[%s1 + $0x160] sm:$0xf]
  %v328 = vld [vmem:[%s1 + $0x164] sm:$0xf]
  %v329 = vld [vmem:[%s1 + $0x168] sm:$0xf]
  %v330 = vld [vmem:[%s1 + $0x16c] sm:$0xf]
  %v331 = vld [vmem:[%s1 + $0x170] sm:$0xf]
  %v332 = vld [vmem:[%s1 + $0x174] sm:$0xf]
  %v333 = vld [vmem:[%s1 + $0x178] sm:$0xf]
  %v334 = vld [vmem:[%s1 + $0x17c] sm:$0xf]
  %v335 = vld [vmem:[%s1 + $0x180] sm:$0xf]
  %v336 = vld [vmem:[%s1 + $0x184] sm:$0xf]
  %v337 = vld [vmem:[%s1 + $0x188] sm:$0xf]
  %v338 = vld [vmem:[%s1 + $0x18c] sm:$0xf]
  %v339 = vld [vmem:[%s1 + $0x190] sm:$0xf]
  %v340 = vld [vmem:[%s1 + $0x194] sm:$0xf]
  %v341 = vld [vmem:[%s1 + $0x198] sm:$0xf]
  %v342 = vld [vmem:[%s1 + $0x19c] sm:$0xf]
  %v343 = vld [vmem:[%s1 + $0x1a0] sm:$0xf]
  %v344 = vld [vmem:[%s1 + $0x1a4] sm:$0xf]
  %v345 = vld [vmem:[%s1 + $0x1a8] sm:$0xf]
  %v346 = vld [vmem:[%s1 + $0x1ac] sm:$0xf]
  %v347 = vld [vmem:[%s1 + $0x1b0] sm:$0xf]
  %v348 = vld [vmem:[%s1 + $0x1b4] sm:$0xf]
  %v349 = vld [vmem:[%s1 + $0x1b8] sm:$0xf]
  %v350 = vld [vmem:[%s1 + $0x1bc] sm:$0xf]
  %v351 = vld [vmem:[%s1 + $0x1c0] sm:$0xf]
  %v352 = vld [vmem:[%s1 + $0x1c4] sm:$0xf]
  %v353 = vld [vmem:[%s1 + $0x1c8] sm:$0xf]
  %v354 = vld [vmem:[%s1 + $0x1cc] sm:$0xf]
  %v355 = vld [vmem:[%s1 + $0x1d0] sm:$0xf]
  %v356 = vld [vmem:[%s1 + $0x1d4] sm:$0xf]
  %v357 = vld [vmem:[%s1 + $0x1d8] sm:$0xf]
  %v358 = vld [vmem:[%s1 + $0x1dc] sm:$0xf]
  %v359 = vld [vmem:[%s1 + $0x1e0] sm:$0xf]
  %v360 = vld [vmem:[%s1 + $0x1e4] sm:$0xf]
  %v361 = vld [vmem:[%s1 + $0x1e8] sm:$0xf]
  %v362 = vld [vmem:[%s1 + $0x1ec] sm:$0xf]
  %v363 = vld [vmem:[%s1 + $0x1f0] sm:$0xf]
  %v364 = vld [vmem:[%s1 + $0x1f4] sm:$0xf]
  %v365 = vld [vmem:[%s1 + $0x1f8] sm:$0xf]
  %v366 = vld [vmem:[%s1 + $0x1fc] sm:$0xf]
  %v367 = vld [vmem:[%s1 + $0x200] sm:$0xf]
  %v368 = vld [vmem:[%s1 + $0x204] sm:$0xf]
  %v369 = vld [vmem:[%s1 + $0x208] sm:$0xf]
  %v370 = vld [vmem:[%s1 + $0x20c] sm:$0xf]
  %v371 = vld [vmem:[%s1 + $0x210] sm:$0xf]
  %v372 = vld [vmem:[%s1 + $0x214] sm:$0xf]
  %v373 = vld [vmem:[%s1 + $0x218] sm:$0xf]
  %v374 = vld [vmem:[%s1 + $0x21c] sm:$0xf]
  %v375 = vld [vmem:[%s1 + $0x220] sm:$0xf]
  %v376 = vld [vmem:[%s1 + $0x224] sm:$0xf]
  %v377 = vld [vmem:[%s1 + $0x228] sm:$0xf]
  %v378 = vld [vmem:[%s1 + $0x22c] sm:$0xf]
  %v379 = vld [vmem:[%s1 + $0x230] sm:$0xf]
  %v380 = vld [vmem:[%s1 + $0x234] sm:$0xf]
  %v381 = vld [vmem:[%s1 + $0x238] sm:$0xf]
  %v382 = vld [vmem:[%s1 + $0x23c] sm:$0xf]
  %v383 = vld [vmem:[%s1 + $0x240] sm:$0xf]
  %v384 = vld [vmem:[%s1 + $0x244] sm:$0xf]
  %v385 = vld [vmem:[%s1 + $0x248] sm:$0xf]
  %v386 = vld [vmem:[%s1 + $0x24c] sm:$0xf]
  %v387 = vld [vmem:[%s1 + $0x250] sm:$0xf]
  %v388 = vld [vmem:[%s1 + $0x254] sm:$0xf]
  %v389 = vld [vmem:[%s1 + $0x258] sm:$0xf]
  %v390 = vld [vmem:[%s1 + $0x25c] sm:$0xf]
  %v391 = vld [vmem:[%s1 + $0x260] sm:$0xf]
  %v392 = vld [vmem:[%s1 + $0x264] sm:$0xf]
  %v393 = vld [vmem:[%s1 + $0x268] sm:$0xf]
  %v394 = vld [vmem:[%s1 + $0x26c] sm:$0xf]
  %v395 = vld [vmem:[%s1 + $0x270] sm:$0xf]
  %v396 = vld [vmem:[%s1 + $0x274] sm:$0xf]
  %v397 = vld [vmem:[%s1 + $0x278] sm:$0xf]
  %v398 = vld [vmem:[%s1 + $0x27c] sm:$0xf]
  %v399 = vld [vmem:[%s1 + $0x280] sm:$0xf]
  %v400 = vld [vmem:[%s1 + $0x284] sm:$0xf]
  %v401 = vld [vmem:[%s1 + $0x288] sm:$0xf]
  %v402 = vld [vmem:[%s1 + $0x28c] sm:$0xf]
  %v403 = vld [vmem:[%s1 + $0x290] sm:$0xf]
  %v404 = vld [vmem:[%s1 + $0x294] sm:$0xf]
  %v405 = vld [vmem:[%s1 + $0x298] sm:$0xf]
  %v406 = vld [vmem:[%s1 + $0x29c] sm:$0xf]
  %v407 = vld [vmem:[%s1 + $0x2a0] sm:$0xf]
  %v408 = vld [vmem:[%s1 + $0x2a4] sm:$0xf]
  %v409 = vld [vmem:[%s1 + $0x2a8] sm:$0xf]
  %v410 = vld [vmem:[%s1 + $0x2ac] sm:$0xf]
  %v411 = vld [vmem:[%s1 + $0x2b0] sm:$0xf]
  %v412 = vld [vmem:[%s1 + $0x2b4] sm:$0xf]
  %v413 = vld [vmem:[%s1 + $0x2b8] sm:$0xf]
  %v414 = vld [vmem:[%s1 + $0x2bc] sm:$0xf]
  %v415 = vld [vmem:[%s1 + $0x2c0] sm:$0xf]
  %v416 = vld [vmem:[%s1 + $0x2c4] sm:$0xf]
  %v417 = vld [vmem:[%s1 + $0x2c8] sm:$0xf]
  %v418 = vld [vmem:[%s1 + $0x2cc] sm:$0xf]
  %v419 = vld [vmem:[%s1 + $0x2d0] sm:$0xf]
  %v420 = vld [vmem:[%s1 + $0x2d4] sm:$0xf]
  %v421 = vld [vmem:[%s1 + $0x2d8] sm:$0xf]
  %v422 = vld [vmem:[%s1 + $0x2dc] sm:$0xf]
  %v423 = vld [vmem:[%s1 + $0x2e0] sm:$0xf]
  %v424 = vld [vmem:[%s1 + $0x2e4] sm:$0xf]
  %v425 = vld [vmem:[%s1 + $0x2e8] sm:$0xf]
  %v426 = vld [vmem:[%s1 + $0x2ec] sm:$0xf]
  %v427 = vld [vmem:[%s1 + $0x2f0] sm:$0xf]
  %v428 = vld [vmem:[%s1 + $0x2f4] sm:$0xf]
  %v429 = vld [vmem:[%s1 + $0x2f8] sm:$0xf]
  %v430 = vld [vmem:[%s1 + $0x2fc] sm:$0xf]
  %v431 = vld [vmem:[%s1 + $0x300] sm:$0xf]
  %v432 = vld [vmem:[%s1 + $0x304] sm:$0xf]
  %v433 = vld [vmem:[%s1 + $0x308] sm:$0xf]
  %v434 = vld [vmem:[%s1 + $0x30c] sm:$0xf]
  %v435 = vld [vmem:[%s1 + $0x310] sm:$0xf]
  %v436 = vld [vmem:[%s1 + $0x314] sm:$0xf]
  %v437 = vld [vmem:[%s1 + $0x318] sm:$0xf]
  %v438 = vld [vmem:[%s1 + $0x31c] sm:$0xf]
  %v663 = vunpack.c.l.b16 %v15
  %v664 = vunpack.c.h.b16 %v15
  %v665 = vunpack.c.l.b16 %v16
  %v666 = vunpack.c.h.b16 %v16
  %v667 = vunpack.c.l.b16 %v17
  %v668 = vunpack.c.h.b16 %v17
  %v669 = vunpack.c.l.b16 %v18
  %v670 = vunpack.c.h.b16 %v18
  %v671 = vunpack.c.l.b16 %v19
  %v672 = vunpack.c.h.b16 %v19
  %v673 = vunpack.c.l.b16 %v20
  %v674 = vunpack.c.h.b16 %v20
  %v675 = vunpack.c.l.b16 %v21
  %v676 = vunpack.c.l.b16 %v22
  %v677 = vunpack.c.h.b16 %v22
  %v678 = vunpack.c.l.b16 %v23
  %v679 = vunpack.c.h.b16 %v23
  %v680 = vunpack.c.l.b16 %v24
  %v681 = vunpack.c.h.b16 %v24
  %v682 = vunpack.c.l.b16 %v25
  %v683 = vunpack.c.h.b16 %v25
  %v684 = vunpack.c.l.b16 %v26
  %v685 = vunpack.c.h.b16 %v26
  %v686 = vunpack.c.l.b16 %v27
  %v687 = vunpack.c.h.b16 %v27
  %v688 = vunpack.c.l.b16 %v28
  %v689 = vunpack.c.l.b16 %v29
  %v690 = vunpack.c.h.b16 %v29
  %v691 = vunpack.c.l.b16 %v30
  %v692 = vunpack.c.h.b16 %v30
  %v693 = vunpack.c.l.b16 %v31
  %v694 = vunpack.c.h.b16 %v31
  %v695 = vunpack.c.l.b16 %v32
  %v696 = vunpack.c.h.b16 %v32
  %v697 = vunpack.c.l.b16 %v33
  %v698 = vunpack.c.h.b16 %v33
  %v699 = vunpack.c.l.b16 %v34
  %v700 = vunpack.c.h.b16 %v34
  %v701 = vunpack.c.l.b16 %v35
  %v702 = vunpack.c.l.b16 %v36
  %v703 = vunpack.c.h.b16 %v36
  %v704 = vunpack.c.l.b16 %v37
  %v705 = vunpack.c.h.b16 %v37
  %v706 = vunpack.c.l.b16 %v38
  %v707 = vunpack.c.h.b16 %v38
  %v708 = vunpack.c.l.b16 %v39
  %v709 = vunpack.c.h.b16 %v39
  %v710 = vunpack.c.l.b16 %v40
  %v711 = vunpack.c.h.b16 %v40
  %v712 = vunpack.c.l.b16 %v41
  %v713 = vunpack.c.h.b16 %v41
  %v714 = vunpack.c.l.b16 %v42
  %v715 = vunpack.c.l.b16 %v43
  %v716 = vunpack.c.h.b16 %v43
  %v717 = vunpack.c.l.b16 %v44
  %v718 = vunpack.c.h.b16 %v44
  %v719 = vunpack.c.l.b16 %v45
  %v720 = vunpack.c.h.b16 %v45
  %v721 = vunpack.c.l.b16 %v46
  %v722 = vunpack.c.h.b16 %v46
  %v723 = vunpack.c.l.b16 %v47
  %v724 = vunpack.c.h.b16 %v47
  %v725 = vunpack.c.l.b16 %v48
  %v726 = vunpack.c.h.b16 %v48
  %v727 = vunpack.c.l.b16 %v49
  %v728 = vunpack.c.l.b16 %v50
  %v729 = vunpack.c.h.b16 %v50
  %v730 = vunpack.c.l.b16 %v51
  %v731 = vunpack.c.h.b16 %v51
  %v732 = vunpack.c.l.b16 %v52
  %v733 = vunpack.c.h.b16 %v52
  %v734 = vunpack.c.l.b16 %v53
  %v735 = vunpack.c.h.b16 %v53
  %v736 = vunpack.c.l.b16 %v54
  %v737 = vunpack.c.h.b16 %v54
  %v738 = vunpack.c.l.b16 %v55
  %v739 = vunpack.c.h.b16 %v55
  %v740 = vunpack.c.l.b16 %v56
  %v741 = vunpack.c.l.b16 %v57
  %v742 = vunpack.c.h.b16 %v57
  %v743 = vunpack.c.l.b16 %v58
  %v744 = vunpack.c.h.b16 %v58
  %v745 = vunpack.c.l.b16 %v59
  %v746 = vunpack.c.h.b16 %v59
  %v747 = vunpack.c.l.b16 %v60
  %v748 = vunpack.c.h.b16 %v60
  %v749 = vunpack.c.l.b16 %v61
  %v750 = vunpack.c.h.b16 %v61
  %v751 = vunpack.c.l.b16 %v62
  %v752 = vunpack.c.h.b16 %v62
  %v753 = vunpack.c.l.b16 %v63
  %v754 = vunpack.c.l.b16 %v64
  %v755 = vunpack.c.h.b16 %v64
  %v756 = vunpack.c.l.b16 %v65
  %v757 = vunpack.c.h.b16 %v65
  %v758 = vunpack.c.l.b16 %v66
  %v759 = vunpack.c.h.b16 %v66
  %v760 = vunpack.c.l.b16 %v67
  %v761 = vunpack.c.h.b16 %v67
  %v762 = vunpack.c.l.b16 %v68
  %v763 = vunpack.c.h.b16 %v68
  %v764 = vunpack.c.l.b16 %v69
  %v765 = vunpack.c.h.b16 %v69
  %v766 = vunpack.c.l.b16 %v70
  %v767 = vunpack.c.l.b16 %v71
  %v768 = vunpack.c.h.b16 %v71
  %v769 = vunpack.c.l.b16 %v72
  %v770 = vunpack.c.h.b16 %v72
  %v771 = vunpack.c.l.b16 %v73
  %v772 = vunpack.c.h.b16 %v73
  %v773 = vunpack.c.l.b16 %v74
  %v774 = vunpack.c.h.b16 %v74
  %v775 = vunpack.c.l.b16 %v75
  %v776 = vunpack.c.h.b16 %v75
  %v777 = vunpack.c.l.b16 %v76
  %v778 = vunpack.c.h.b16 %v76
  %v779 = vunpack.c.l.b16 %v77
  %v780 = vunpack.c.l.b16 %v78
  %v781 = vunpack.c.h.b16 %v78
  %v782 = vunpack.c.l.b16 %v79
  %v783 = vunpack.c.h.b16 %v79
  %v784 = vunpack.c.l.b16 %v80
  %v785 = vunpack.c.h.b16 %v80
  %v786 = vunpack.c.l.b16 %v81
  %v787 = vunpack.c.h.b16 %v81
  %v788 = vunpack.c.l.b16 %v82
  %v789 = vunpack.c.h.b16 %v82
  %v790 = vunpack.c.l.b16 %v83
  %v791 = vunpack.c.h.b16 %v83
  %v792 = vunpack.c.l.b16 %v84
  %v793 = vunpack.c.l.b16 %v85
  %v794 = vunpack.c.h.b16 %v85
  %v795 = vunpack.c.l.b16 %v86
  %v796 = vunpack.c.h.b16 %v86
  %v797 = vunpack.c.l.b16 %v87
  %v798 = vunpack.c.h.b16 %v87
  %v799 = vunpack.c.l.b16 %v88
  %v800 = vunpack.c.h.b16 %v88
  %v801 = vunpack.c.l.b16 %v89
  %v802 = vunpack.c.h.b16 %v89
  %v803 = vunpack.c.l.b16 %v90
  %v804 = vunpack.c.h.b16 %v90
  %v805 = vunpack.c.l.b16 %v91
  %v806 = vunpack.c.l.b16 %v92
  %v807 = vunpack.c.h.b16 %v92
  %v808 = vunpack.c.l.b16 %v93
  %v809 = vunpack.c.h.b16 %v93
  %v810 = vunpack.c.l.b16 %v94
  %v811 = vunpack.c.h.b16 %v94
  %v812 = vunpack.c.l.b16 %v95
  %v813 = vunpack.c.h.b16 %v95
  %v814 = vunpack.c.l.b16 %v96
  %v815 = vunpack.c.h.b16 %v96
  %v816 = vunpack.c.l.b16 %v97
  %v817 = vunpack.c.h.b16 %v97
  %v818 = vunpack.c.l.b16 %v98
  %v819 = vunpack.c.l.b16 %v99
  %v820 = vunpack.c.h.b16 %v99
  %v821 = vunpack.c.l.b16 %v100
  %v822 = vunpack.c.h.b16 %v100
  %v823 = vunpack.c.l.b16 %v101
  %v824 = vunpack.c.h.b16 %v101
  %v825 = vunpack.c.l.b16 %v102
  %v826 = vunpack.c.h.b16 %v102
  %v827 = vunpack.c.l.b16 %v103
  %v828 = vunpack.c.h.b16 %v103
  %v829 = vunpack.c.l.b16 %v104
  %v830 = vunpack.c.h.b16 %v104
  %v831 = vunpack.c.l.b16 %v105
  %v832 = vunpack.c.l.b16 %v106
  %v833 = vunpack.c.h.b16 %v106
  %v834 = vunpack.c.l.b16 %v107
  %v835 = vunpack.c.h.b16 %v107
  %v836 = vunpack.c.l.b16 %v108
  %v837 = vunpack.c.h.b16 %v108
  %v838 = vunpack.c.l.b16 %v109
  %v839 = vunpack.c.h.b16 %v109
  %v840 = vunpack.c.l.b16 %v110
  %v841 = vunpack.c.h.b16 %v110
  %v842 = vunpack.c.l.b16 %v111
  %v843 = vunpack.c.h.b16 %v111
  %v844 = vunpack.c.l.b16 %v112
  %v845 = vunpack.c.l.b16 %v113
  %v846 = vunpack.c.h.b16 %v113
  %v847 = vunpack.c.l.b16 %v114
  %v848 = vunpack.c.h.b16 %v114
  %v849 = vunpack.c.l.b16 %v115
  %v850 = vunpack.c.h.b16 %v115
  %v851 = vunpack.c.l.b16 %v116
  %v852 = vunpack.c.h.b16 %v116
  %v853 = vunpack.c.l.b16 %v117
  %v854 = vunpack.c.h.b16 %v117
  %v855 = vunpack.c.l.b16 %v118
  %v856 = vunpack.c.h.b16 %v118
  %v857 = vunpack.c.l.b16 %v119
  %v858 = vunpack.c.l.b16 %v120
  %v859 = vunpack.c.h.b16 %v120
  %v860 = vunpack.c.l.b16 %v121
  %v861 = vunpack.c.h.b16 %v121
  %v862 = vunpack.c.l.b16 %v122
  %v863 = vunpack.c.h.b16 %v122
  %v864 = vunpack.c.l.b16 %v123
  %v865 = vunpack.c.h.b16 %v123
  %v866 = vunpack.c.l.b16 %v124
  %v867 = vunpack.c.h.b16 %v124
  %v868 = vunpack.c.l.b16 %v125
  %v869 = vunpack.c.h.b16 %v125
  %v870 = vunpack.c.l.b16 %v126
  %v871 = vunpack.c.l.b16 %v127
  %v872 = vunpack.c.h.b16 %v127
  %v873 = vunpack.c.l.b16 %v128
  %v874 = vunpack.c.h.b16 %v128
  %v875 = vunpack.c.l.b16 %v129
  %v876 = vunpack.c.h.b16 %v129
  %v877 = vunpack.c.l.b16 %v130
  %v878 = vunpack.c.h.b16 %v130
  %v879 = vunpack.c.l.b16 %v131
  %v880 = vunpack.c.h.b16 %v131
  %v881 = vunpack.c.l.b16 %v132
  %v882 = vunpack.c.h.b16 %v132
  %v883 = vunpack.c.l.b16 %v133
  %v884 = vunpack.c.l.b16 %v134
  %v885 = vunpack.c.h.b16 %v134
  %v886 = vunpack.c.l.b16 %v135
  %v887 = vunpack.c.h.b16 %v135
  %v888 = vunpack.c.l.b16 %v136
  %v889 = vunpack.c.h.b16 %v136
  %v890 = vunpack.c.l.b16 %v137
  %v891 = vunpack.c.h.b16 %v137
  %v892 = vunpack.c.l.b16 %v138
  %v893 = vunpack.c.h.b16 %v138
  %v894 = vunpack.c.l.b16 %v139
  %v895 = vunpack.c.h.b16 %v139
  %v896 = vunpack.c.l.b16 %v140
  %v897 = vunpack.c.l.b16 %v141
  %v898 = vunpack.c.h.b16 %v141
  %v899 = vunpack.c.l.b16 %v142
  %v900 = vunpack.c.h.b16 %v142
  %v901 = vunpack.c.l.b16 %v143
  %v902 = vunpack.c.h.b16 %v143
  %v903 = vunpack.c.l.b16 %v144
  %v904 = vunpack.c.h.b16 %v144
  %v905 = vunpack.c.l.b16 %v145
  %v906 = vunpack.c.h.b16 %v145
  %v907 = vunpack.c.l.b16 %v146
  %v908 = vunpack.c.h.b16 %v146
  %v909 = vunpack.c.l.b16 %v147
  %v910 = vunpack.c.l.b16 %v148
  %v911 = vunpack.c.h.b16 %v148
  %v912 = vunpack.c.l.b16 %v149
  %v913 = vunpack.c.h.b16 %v149
  %v914 = vunpack.c.l.b16 %v150
  %v915 = vunpack.c.h.b16 %v150
  %v916 = vunpack.c.l.b16 %v151
  %v917 = vunpack.c.h.b16 %v151
  %v918 = vunpack.c.l.b16 %v152
  %v919 = vunpack.c.h.b16 %v152
  %v920 = vunpack.c.l.b16 %v153
  %v921 = vunpack.c.h.b16 %v153
  %v922 = vunpack.c.l.b16 %v154
  %v923 = vunpack.c.l.b16 %v155
  %v924 = vunpack.c.h.b16 %v155
  %v925 = vunpack.c.l.b16 %v156
  %v926 = vunpack.c.h.b16 %v156
  %v927 = vunpack.c.l.b16 %v157
  %v928 = vunpack.c.h.b16 %v157
  %v929 = vunpack.c.l.b16 %v158
  %v930 = vunpack.c.h.b16 %v158
  %v931 = vunpack.c.l.b16 %v159
  %v932 = vunpack.c.h.b16 %v159
  %v933 = vunpack.c.l.b16 %v160
  %v934 = vunpack.c.h.b16 %v160
  %v935 = vunpack.c.l.b16 %v161
  %v936 = vunpack.c.l.b16 %v162
  %v937 = vunpack.c.h.b16 %v162
  %v938 = vunpack.c.l.b16 %v163
  %v939 = vunpack.c.h.b16 %v163
  %v940 = vunpack.c.l.b16 %v164
  %v941 = vunpack.c.h.b16 %v164
  %v942 = vunpack.c.l.b16 %v165
  %v943 = vunpack.c.h.b16 %v165
  %v944 = vunpack.c.l.b16 %v166
  %v945 = vunpack.c.h.b16 %v166
  %v946 = vunpack.c.l.b16 %v167
  %v947 = vunpack.c.h.b16 %v167
  %v948 = vunpack.c.l.b16 %v168
  %v949 = vunpack.c.l.b16 %v169
  %v950 = vunpack.c.h.b16 %v169
  %v951 = vunpack.c.l.b16 %v170
  %v952 = vunpack.c.h.b16 %v170
  %v953 = vunpack.c.l.b16 %v171
  %v954 = vunpack.c.h.b16 %v171
  %v955 = vunpack.c.l.b16 %v172
  %v956 = vunpack.c.h.b16 %v172
  %v957 = vunpack.c.l.b16 %v173
  %v958 = vunpack.c.h.b16 %v173
  %v959 = vunpack.c.l.b16 %v174
  %v960 = vunpack.c.h.b16 %v174
  %v961 = vunpack.c.l.b16 %v175
  %v962 = vunpack.c.l.b16 %v176
  %v963 = vunpack.c.h.b16 %v176
  %v964 = vunpack.c.l.b16 %v177
  %v965 = vunpack.c.h.b16 %v177
  %v966 = vunpack.c.l.b16 %v178
  %v967 = vunpack.c.h.b16 %v178
  %v968 = vunpack.c.l.b16 %v179
  %v969 = vunpack.c.h.b16 %v179
  %v970 = vunpack.c.l.b16 %v180
  %v971 = vunpack.c.h.b16 %v180
  %v972 = vunpack.c.l.b16 %v181
  %v973 = vunpack.c.h.b16 %v181
  %v974 = vunpack.c.l.b16 %v182
  %v975 = vunpack.c.l.b16 %v183
  %v976 = vunpack.c.h.b16 %v183
  %v977 = vunpack.c.l.b16 %v184
  %v978 = vunpack.c.h.b16 %v184
  %v979 = vunpack.c.l.b16 %v185
  %v980 = vunpack.c.h.b16 %v185
  %v981 = vunpack.c.l.b16 %v186
  %v982 = vunpack.c.h.b16 %v186
  %v983 = vunpack.c.l.b16 %v187
  %v984 = vunpack.c.h.b16 %v187
  %v985 = vunpack.c.l.b16 %v188
  %v986 = vunpack.c.h.b16 %v188
  %v987 = vunpack.c.l.b16 %v189
  %v988 = vunpack.c.l.b16 %v190
  %v989 = vunpack.c.h.b16 %v190
  %v990 = vunpack.c.l.b16 %v191
  %v991 = vunpack.c.h.b16 %v191
  %v992 = vunpack.c.l.b16 %v192
  %v993 = vunpack.c.h.b16 %v192
  %v994 = vunpack.c.l.b16 %v193
  %v995 = vunpack.c.h.b16 %v193
  %v996 = vunpack.c.l.b16 %v194
  %v997 = vunpack.c.h.b16 %v194
  %v998 = vunpack.c.l.b16 %v195
  %v999 = vunpack.c.h.b16 %v195
  %v1000 = vunpack.c.l.b16 %v196
  %v1001 = vunpack.c.l.b16 %v197
  %v1002 = vunpack.c.h.b16 %v197
  %v1003 = vunpack.c.l.b16 %v198
  %v1004 = vunpack.c.h.b16 %v198
  %v1005 = vunpack.c.l.b16 %v199
  %v1006 = vunpack.c.h.b16 %v199
  %v1007 = vunpack.c.l.b16 %v200
  %v1008 = vunpack.c.h.b16 %v200
  %v1009 = vunpack.c.l.b16 %v201
  %v1010 = vunpack.c.h.b16 %v201
  %v1011 = vunpack.c.l.b16 %v202
  %v1012 = vunpack.c.h.b16 %v202
  %v1013 = vunpack.c.l.b16 %v203
  %v1014 = vunpack.c.l.b16 %v204
  %v1015 = vunpack.c.h.b16 %v204
  %v1016 = vunpack.c.l.b16 %v205
  %v1017 = vunpack.c.h.b16 %v205
  %v1018 = vunpack.c.l.b16 %v206
  %v1019 = vunpack.c.h.b16 %v206
  %v1020 = vunpack.c.l.b16 %v207
  %v1021 = vunpack.c.h.b16 %v207
  %v1022 = vunpack.c.l.b16 %v208
  %v1023 = vunpack.c.h.b16 %v208
  %v1024 = vunpack.c.l.b16 %v209
  %v1025 = vunpack.c.h.b16 %v209
  %v1026 = vunpack.c.l.b16 %v210
  %v1027 = vunpack.c.l.b16 %v211
  %v1028 = vunpack.c.h.b16 %v211
  %v1029 = vunpack.c.l.b16 %v212
  %v1030 = vunpack.c.h.b16 %v212
  %v1031 = vunpack.c.l.b16 %v213
  %v1032 = vunpack.c.h.b16 %v213
  %v1033 = vunpack.c.l.b16 %v214
  %v1034 = vunpack.c.h.b16 %v214
  %v1035 = vunpack.c.l.b16 %v215
  %v1036 = vunpack.c.h.b16 %v215
  %v1037 = vunpack.c.l.b16 %v216
  %v1038 = vunpack.c.h.b16 %v216
  %v1039 = vunpack.c.l.b16 %v217
  %v1040 = vunpack.c.l.b16 %v218
  %v1041 = vunpack.c.h.b16 %v218
  %v1042 = vunpack.c.l.b16 %v219
  %v1043 = vunpack.c.h.b16 %v219
  %v1044 = vunpack.c.l.b16 %v220
  %v1045 = vunpack.c.h.b16 %v220
  %v1046 = vunpack.c.l.b16 %v221
  %v1047 = vunpack.c.h.b16 %v221
  %v1048 = vunpack.c.l.b16 %v222
  %v1049 = vunpack.c.h.b16 %v222
  %v1050 = vunpack.c.l.b16 %v223
  %v1051 = vunpack.c.h.b16 %v223
  %v1052 = vunpack.c.l.b16 %v224
  %v1053 = vunpack.c.l.b16 %v225
  %v1054 = vunpack.c.h.b16 %v225
  %v1055 = vunpack.c.l.b16 %v226
  %v1056 = vunpack.c.h.b16 %v226
  %v1057 = vunpack.c.l.b16 %v227
  %v1058 = vunpack.c.h.b16 %v227
  %v1059 = vunpack.c.l.b16 %v228
  %v1060 = vunpack.c.h.b16 %v228
  %v1061 = vunpack.c.l.b16 %v229
  %v1062 = vunpack.c.h.b16 %v229
  %v1063 = vunpack.c.l.b16 %v230
  %v1064 = vunpack.c.h.b16 %v230
  %v1065 = vunpack.c.l.b16 %v231
  %v1066 = vunpack.c.l.b16 %v232
  %v1067 = vunpack.c.h.b16 %v232
  %v1068 = vunpack.c.l.b16 %v233
  %v1069 = vunpack.c.h.b16 %v233
  %v1070 = vunpack.c.l.b16 %v234
  %v1071 = vunpack.c.h.b16 %v234
  %v1072 = vunpack.c.l.b16 %v235
  %v1073 = vunpack.c.h.b16 %v235
  %v1074 = vunpack.c.l.b16 %v236
  %v1075 = vunpack.c.h.b16 %v236
  %v1076 = vunpack.c.l.b16 %v237
  %v1077 = vunpack.c.h.b16 %v237
  %v1078 = vunpack.c.l.b16 %v238
  %v1079 = vpack.c.b16 %v676, %v663
  %v1080 = vpack.c.b16 %v677, %v664
  %v1081 = vpack.c.b16 %v678, %v665
  %v1082 = vpack.c.b16 %v679, %v666
  %v1083 = vpack.c.b16 %v680, %v667
  %v1084 = vpack.c.b16 %v681, %v668
  %v1085 = vpack.c.b16 %v682, %v669
  %v1086 = vpack.c.b16 %v683, %v670
  %v1087 = vpack.c.b16 %v684, %v671
  %v1088 = vpack.c.b16 %v685, %v672
  %v1089 = vpack.c.b16 %v686, %v673
  %v1090 = vpack.c.b16 %v687, %v674
  %v1091 = vpack.c.b16 %v688, %v675
  %v1092 = vpack.c.b16 %v702, %v689
  %v1093 = vpack.c.b16 %v703, %v690
  %v1094 = vpack.c.b16 %v704, %v691
  %v1095 = vpack.c.b16 %v705, %v692
  %v1096 = vpack.c.b16 %v706, %v693
  %v1097 = vpack.c.b16 %v707, %v694
  %v1098 = vpack.c.b16 %v708, %v695
  %v1099 = vpack.c.b16 %v709, %v696
  %v1100 = vpack.c.b16 %v710, %v697
  %v1101 = vpack.c.b16 %v711, %v698
  %v1102 = vpack.c.b16 %v712, %v699
  %v1103 = vpack.c.b16 %v713, %v700
  %v1104 = vpack.c.b16 %v714, %v701
  %v1105 = vpack.c.b16 %v728, %v715
  %v1106 = vpack.c.b16 %v729, %v716
  %v1107 = vpack.c.b16 %v730, %v717
  %v1108 = vpack.c.b16 %v731, %v718
  %v1109 = vpack.c.b16 %v732, %v719
  %v1110 = vpack.c.b16 %v733, %v720
  %v1111 = vpack.c.b16 %v734, %v721
  %v1112 = vpack.c.b16 %v735, %v722
  %v1113 = vpack.c.b16 %v736, %v723
  %v1114 = vpack.c.b16 %v737, %v724
  %v1115 = vpack.c.b16 %v738, %v725
  %v1116 = vpack.c.b16 %v739, %v726
  %v1117 = vpack.c.b16 %v740, %v727
  %v1118 = vpack.c.b16 %v754, %v741
  %v1119 = vpack.c.b16 %v755, %v742
  %v1120 = vpack.c.b16 %v756, %v743
  %v1121 = vpack.c.b16 %v757, %v744
  %v1122 = vpack.c.b16 %v758, %v745
  %v1123 = vpack.c.b16 %v759, %v746
  %v1124 = vpack.c.b16 %v760, %v747
  %v1125 = vpack.c.b16 %v761, %v748
  %v1126 = vpack.c.b16 %v762, %v749
  %v1127 = vpack.c.b16 %v763, %v750
  %v1128 = vpack.c.b16 %v764, %v751
  %v1129 = vpack.c.b16 %v765, %v752
  %v1130 = vpack.c.b16 %v766, %v753
  %v1131 = vpack.c.b16 %v780, %v767
  %v1132 = vpack.c.b16 %v781, %v768
  %v1133 = vpack.c.b16 %v782, %v769
  %v1134 = vpack.c.b16 %v783, %v770
  %v1135 = vpack.c.b16 %v784, %v771
  %v1136 = vpack.c.b16 %v785, %v772
  %v1137 = vpack.c.b16 %v786, %v773
  %v1138 = vpack.c.b16 %v787, %v774
  %v1139 = vpack.c.b16 %v788, %v775
  %v1140 = vpack.c.b16 %v789, %v776
  %v1141 = vpack.c.b16 %v790, %v777
  %v1142 = vpack.c.b16 %v791, %v778
  %v1143 = vpack.c.b16 %v792, %v779
  %v1144 = vpack.c.b16 %v806, %v793
  %v1145 = vpack.c.b16 %v807, %v794
  %v1146 = vpack.c.b16 %v808, %v795
  %v1147 = vpack.c.b16 %v809, %v796
  %v1148 = vpack.c.b16 %v810, %v797
  %v1149 = vpack.c.b16 %v811, %v798
  %v1150 = vpack.c.b16 %v812, %v799
  %v1151 = vpack.c.b16 %v813, %v800
  %v1152 = vpack.c.b16 %v814, %v801
  %v1153 = vpack.c.b16 %v815, %v802
  %v1154 = vpack.c.b16 %v816, %v803
  %v1155 = vpack.c.b16 %v817, %v804
  %v1156 = vpack.c.b16 %v818, %v805
  %v1157 = vpack.c.b16 %v832, %v819
  %v1158 = vpack.c.b16 %v833, %v820
  %v1159 = vpack.c.b16 %v834, %v821
  %v1160 = vpack.c.b16 %v835, %v822
  %v1161 = vpack.c.b16 %v836, %v823
  %v1162 = vpack.c.b16 %v837, %v824
  %v1163 = vpack.c.b16 %v838, %v825
  %v1164 = vpack.c.b16 %v839, %v826
  %v1165 = vpack.c.b16 %v840, %v827
  %v1166 = vpack.c.b16 %v841, %v828
  %v1167 = vpack.c.b16 %v842, %v829
  %v1168 = vpack.c.b16 %v843, %v830
  %v1169 = vpack.c.b16 %v844, %v831
  %v1170 = vpack.c.b16 %v858, %v845
  %v1171 = vpack.c.b16 %v859, %v846
  %v1172 = vpack.c.b16 %v860, %v847
  %v1173 = vpack.c.b16 %v861, %v848
  %v1174 = vpack.c.b16 %v862, %v849
  %v1175 = vpack.c.b16 %v863, %v850
  %v1176 = vpack.c.b16 %v864, %v851
  %v1177 = vpack.c.b16 %v865, %v852
  %v1178 = vpack.c.b16 %v866, %v853
  %v1179 = vpack.c.b16 %v867, %v854
  %v1180 = vpack.c.b16 %v868, %v855
  %v1181 = vpack.c.b16 %v869, %v856
  %v1182 = vpack.c.b16 %v870, %v857
  %v1183 = vpack.c.b16 %v884, %v871
  %v1184 = vpack.c.b16 %v885, %v872
  %v1185 = vpack.c.b16 %v886, %v873
  %v1186 = vpack.c.b16 %v887, %v874
  %v1187 = vpack.c.b16 %v888, %v875
  %v1188 = vpack.c.b16 %v889, %v876
  %v1189 = vpack.c.b16 %v890, %v877
  %v1190 = vpack.c.b16 %v891, %v878
  %v1191 = vpack.c.b16 %v892, %v879
  %v1192 = vpack.c.b16 %v893, %v880
  %v1193 = vpack.c.b16 %v894, %v881
  %v1194 = vpack.c.b16 %v895, %v882
  %v1195 = vpack.c.b16 %v896, %v883
  %v1196 = vpack.c.b16 %v910, %v897
  %v1197 = vpack.c.b16 %v911, %v898
  %v1198 = vpack.c.b16 %v912, %v899
  %v1199 = vpack.c.b16 %v913, %v900
  %v1200 = vpack.c.b16 %v914, %v901
  %v1201 = vpack.c.b16 %v915, %v902
  %v1202 = vpack.c.b16 %v916, %v903
  %v1203 = vpack.c.b16 %v917, %v904
  %v1204 = vpack.c.b16 %v918, %v905
  %v1205 = vpack.c.b16 %v919, %v906
  %v1206 = vpack.c.b16 %v920, %v907
  %v1207 = vpack.c.b16 %v921, %v908
  %v1208 = vpack.c.b16 %v922, %v909
  %v1209 = vpack.c.b16 %v936, %v923
  %v1210 = vpack.c.b16 %v937, %v924
  %v1211 = vpack.c.b16 %v938, %v925
  %v1212 = vpack.c.b16 %v939, %v926
  %v1213 = vpack.c.b16 %v940, %v927
  %v1214 = vpack.c.b16 %v941, %v928
  %v1215 = vpack.c.b16 %v942, %v929
  %v1216 = vpack.c.b16 %v943, %v930
  %v1217 = vpack.c.b16 %v944, %v931
  %v1218 = vpack.c.b16 %v945, %v932
  %v1219 = vpack.c.b16 %v946, %v933
  %v1220 = vpack.c.b16 %v947, %v934
  %v1221 = vpack.c.b16 %v948, %v935
  %v1222 = vpack.c.b16 %v962, %v949
  %v1223 = vpack.c.b16 %v963, %v950
  %v1224 = vpack.c.b16 %v964, %v951
  %v1225 = vpack.c.b16 %v965, %v952
  %v1226 = vpack.c.b16 %v966, %v953
  %v1227 = vpack.c.b16 %v967, %v954
  %v1228 = vpack.c.b16 %v968, %v955
  %v1229 = vpack.c.b16 %v969, %v956
  %v1230 = vpack.c.b16 %v970, %v957
  %v1231 = vpack.c.b16 %v971, %v958
  %v1232 = vpack.c.b16 %v972, %v959
  %v1233 = vpack.c.b16 %v973, %v960
  %v1234 = vpack.c.b16 %v974, %v961
  %v1235 = vpack.c.b16 %v988, %v975
  %v1236 = vpack.c.b16 %v989, %v976
  %v1237 = vpack.c.b16 %v990, %v977
  %v1238 = vpack.c.b16 %v991, %v978
  %v1239 = vpack.c.b16 %v992, %v979
  %v1240 = vpack.c.b16 %v993, %v980
  %v1241 = vpack.c.b16 %v994, %v981
  %v1242 = vpack.c.b16 %v995, %v982
  %v1243 = vpack.c.b16 %v996, %v983
  %v1244 = vpack.c.b16 %v997, %v984
  %v1245 = vpack.c.b16 %v998, %v985
  %v1246 = vpack.c.b16 %v999, %v986
  %v1247 = vpack.c.b16 %v1000, %v987
  %v1248 = vpack.c.b16 %v1014, %v1001
  %v1249 = vpack.c.b16 %v1015, %v1002
  %v1250 = vpack.c.b16 %v1016, %v1003
  %v1251 = vpack.c.b16 %v1017, %v1004
  %v1252 = vpack.c.b16 %v1018, %v1005
  %v1253 = vpack.c.b16 %v1019, %v1006
  %v1254 = vpack.c.b16 %v1020, %v1007
  %v1255 = vpack.c.b16 %v1021, %v1008
  %v1256 = vpack.c.b16 %v1022, %v1009
  %v1257 = vpack.c.b16 %v1023, %v1010
  %v1258 = vpack.c.b16 %v1024, %v1011
  %v1259 = vpack.c.b16 %v1025, %v1012
  %v1260 = vpack.c.b16 %v1026, %v1013
  %v1261 = vpack.c.b16 %v1040, %v1027
  %v1262 = vpack.c.b16 %v1041, %v1028
  %v1263 = vpack.c.b16 %v1042, %v1029
  %v1264 = vpack.c.b16 %v1043, %v1030
  %v1265 = vpack.c.b16 %v1044, %v1031
  %v1266 = vpack.c.b16 %v1045, %v1032
  %v1267 = vpack.c.b16 %v1046, %v1033
  %v1268 = vpack.c.b16 %v1047, %v1034
  %v1269 = vpack.c.b16 %v1048, %v1035
  %v1270 = vpack.c.b16 %v1049, %v1036
  %v1271 = vpack.c.b16 %v1050, %v1037
  %v1272 = vpack.c.b16 %v1051, %v1038
  %v1273 = vpack.c.b16 %v1052, %v1039
  %v1274 = vpack.c.b16 %v1066, %v1053
  %v1275 = vpack.c.b16 %v1067, %v1054
  %v1276 = vpack.c.b16 %v1068, %v1055
  %v1277 = vpack.c.b16 %v1069, %v1056
  %v1278 = vpack.c.b16 %v1070, %v1057
  %v1279 = vpack.c.b16 %v1071, %v1058
  %v1280 = vpack.c.b16 %v1072, %v1059
  %v1281 = vpack.c.b16 %v1073, %v1060
  %v1282 = vpack.c.b16 %v1074, %v1061
  %v1283 = vpack.c.b16 %v1075, %v1062
  %v1284 = vpack.c.b16 %v1076, %v1063
  %v1285 = vpack.c.b16 %v1077, %v1064
  %v1286 = vpack.c.b16 %v1078, %v1065
  %v1679 = vunpack.c.l.b16 %v239
  %v1680 = vunpack.c.l.b16 %v240
  %v1681 = vunpack.c.l.b16 %v241
  %v1682 = vunpack.c.l.b16 %v242
  %v1683 = vunpack.c.l.b16 %v243
  %v1684 = vunpack.c.l.b16 %v244
  %v1685 = vunpack.c.l.b16 %v245
  %v1686 = vunpack.c.l.b16 %v246
  %v1687 = vunpack.c.l.b16 %v247
  %v1688 = vunpack.c.l.b16 %v248
  %v1689 = vunpack.c.l.b16 %v249
  %v1690 = vunpack.c.l.b16 %v250
  %v1691 = vunpack.c.l.b16 %v251
  %v1692 = vunpack.c.l.b16 %v252
  %v1693 = vunpack.c.l.b16 %v253
  %v1694 = vunpack.c.l.b16 %v254
  %v1695 = vunpack.c.l.b16 %v255
  %v1696 = vunpack.c.l.b16 %v256
  %v1697 = vunpack.c.l.b16 %v257
  %v1698 = vunpack.c.l.b16 %v258
  %v1699 = vunpack.c.l.b16 %v259
  %v1700 = vunpack.c.l.b16 %v260
  %v1701 = vunpack.c.l.b16 %v261
  %v1702 = vunpack.c.l.b16 %v262
  %v1703 = vunpack.c.l.b16 %v263
  %v1704 = vunpack.c.l.b16 %v264
  %v1705 = vunpack.c.l.b16 %v265
  %v1706 = vunpack.c.l.b16 %v266
  %v1707 = vunpack.c.l.b16 %v267
  %v1708 = vunpack.c.l.b16 %v268
  %v1709 = vunpack.c.l.b16 %v269
  %v1710 = vunpack.c.l.b16 %v270
  %v1711 = vunpack.c.l.b16 %v271
  %v1712 = vunpack.c.l.b16 %v272
  %v1713 = vunpack.c.l.b16 %v273
  %v1714 = vunpack.c.l.b16 %v274
  %v1715 = vunpack.c.l.b16 %v275
  %v1716 = vunpack.c.l.b16 %v276
  %v1717 = vunpack.c.l.b16 %v277
  %v1718 = vunpack.c.l.b16 %v278
  %v1719 = vunpack.c.l.b16 %v279
  %v1720 = vunpack.c.l.b16 %v280
  %v1721 = vunpack.c.l.b16 %v281
  %v1722 = vunpack.c.l.b16 %v282
  %v1723 = vunpack.c.l.b16 %v283
  %v1724 = vunpack.c.l.b16 %v284
  %v1725 = vunpack.c.l.b16 %v285
  %v1726 = vunpack.c.l.b16 %v286
  %v1727 = vunpack.c.l.b16 %v287
  %v1728 = vunpack.c.l.b16 %v288
  %v1729 = vunpack.c.l.b16 %v289
  %v1730 = vunpack.c.l.b16 %v290
  %v1731 = vunpack.c.l.b16 %v291
  %v1732 = vunpack.c.l.b16 %v292
  %v1733 = vunpack.c.l.b16 %v293
  %v1734 = vunpack.c.l.b16 %v294
  %v1735 = vunpack.c.l.b16 %v295
  %v1736 = vunpack.c.l.b16 %v296
  %v1737 = vunpack.c.l.b16 %v297
  %v1738 = vunpack.c.l.b16 %v298
  %v1739 = vunpack.c.l.b16 %v299
  %v1740 = vunpack.c.l.b16 %v300
  %v1741 = vunpack.c.l.b16 %v301
  %v1742 = vunpack.c.l.b16 %v302
  %v1743 = vunpack.c.l.b16 %v303
  %v1744 = vunpack.c.l.b16 %v304
  %v1745 = vunpack.c.l.b16 %v305
  %v1746 = vunpack.c.l.b16 %v306
  %v1747 = vunpack.c.l.b16 %v307
  %v1748 = vunpack.c.l.b16 %v308
  %v1749 = vunpack.c.l.b16 %v309
  %v1750 = vunpack.c.l.b16 %v310
  %v1751 = vunpack.c.l.b16 %v311
  %v1752 = vunpack.c.l.b16 %v312
  %v1753 = vunpack.c.l.b16 %v313
  %v1754 = vunpack.c.l.b16 %v314
  %v1755 = vunpack.c.l.b16 %v315
  %v1756 = vunpack.c.l.b16 %v316
  %v1757 = vunpack.c.l.b16 %v317
  %v1758 = vunpack.c.l.b16 %v318
  %v1759 = vunpack.c.l.b16 %v319
  %v1760 = vunpack.c.l.b16 %v320
  %v1761 = vunpack.c.l.b16 %v321
  %v1762 = vunpack.c.l.b16 %v322
  %v1763 = vunpack.c.l.b16 %v323
  %v1764 = vunpack.c.l.b16 %v324
  %v1765 = vunpack.c.l.b16 %v325
  %v1766 = vunpack.c.l.b16 %v326
  %v1767 = vunpack.c.l.b16 %v327
  %v1768 = vunpack.c.l.b16 %v328
  %v1769 = vunpack.c.l.b16 %v329
  %v1770 = vunpack.c.l.b16 %v330
  %v1771 = vunpack.c.l.b16 %v331
  %v1772 = vunpack.c.l.b16 %v332
  %v1773 = vunpack.c.l.b16 %v333
  %v1774 = vunpack.c.l.b16 %v334
  %v1775 = vunpack.c.l.b16 %v335
  %v1776 = vunpack.c.l.b16 %v336
  %v1777 = vunpack.c.l.b16 %v337
  %v1778 = vunpack.c.l.b16 %v338
  %v1779 = vunpack.c.l.b16 %v339
  %v1780 = vunpack.c.l.b16 %v340
  %v1781 = vunpack.c.l.b16 %v341
  %v1782 = vunpack.c.l.b16 %v342
  %v1783 = vunpack.c.l.b16 %v343
  %v1784 = vunpack.c.l.b16 %v344
  %v1785 = vunpack.c.l.b16 %v345
  %v1786 = vunpack.c.l.b16 %v346
  %v1787 = vunpack.c.l.b16 %v347
  %v1788 = vunpack.c.l.b16 %v348
  %v1789 = vunpack.c.l.b16 %v349
  %v1790 = vunpack.c.l.b16 %v350
  %v1791 = vunpack.c.l.b16 %v351
  %v1792 = vunpack.c.l.b16 %v352
  %v1793 = vunpack.c.l.b16 %v353
  %v1794 = vunpack.c.l.b16 %v354
  %v1795 = vunpack.c.l.b16 %v355
  %v1796 = vunpack.c.l.b16 %v356
  %v1797 = vunpack.c.l.b16 %v357
  %v1798 = vunpack.c.l.b16 %v358
  %v1799 = vunpack.c.l.b16 %v359
  %v1800 = vunpack.c.l.b16 %v360
  %v1801 = vunpack.c.l.b16 %v361
  %v1802 = vunpack.c.l.b16 %v362
  %v1803 = vunpack.c.l.b16 %v363
  %v1804 = vunpack.c.l.b16 %v364
  %v1805 = vunpack.c.l.b16 %v365
  %v1806 = vunpack.c.l.b16 %v366
  %v1807 = vunpack.c.l.b16 %v367
  %v1808 = vunpack.c.l.b16 %v368
  %v1809 = vunpack.c.l.b16 %v369
  %v1810 = vunpack.c.l.b16 %v370
  %v1811 = vunpack.c.l.b16 %v371
  %v1812 = vunpack.c.l.b16 %v372
  %v1813 = vunpack.c.l.b16 %v373
  %v1814 = vunpack.c.l.b16 %v374
  %v1815 = vunpack.c.l.b16 %v375
  %v1816 = vunpack.c.l.b16 %v376
  %v1817 = vunpack.c.l.b16 %v377
  %v1818 = vunpack.c.l.b16 %v378
  %v1819 = vunpack.c.l.b16 %v379
  %v1820 = vunpack.c.l.b16 %v380
  %v1821 = vunpack.c.l.b16 %v381
  %v1822 = vunpack.c.l.b16 %v382
  %v1823 = vunpack.c.l.b16 %v383
  %v1824 = vunpack.c.l.b16 %v384
  %v1825 = vunpack.c.l.b16 %v385
  %v1826 = vunpack.c.l.b16 %v386
  %v1827 = vunpack.c.l.b16 %v387
  %v1828 = vunpack.c.l.b16 %v388
  %v1829 = vunpack.c.l.b16 %v389
  %v1830 = vunpack.c.l.b16 %v390
  %v1831 = vunpack.c.l.b16 %v391
  %v1832 = vunpack.c.l.b16 %v392
  %v1833 = vunpack.c.l.b16 %v393
  %v1834 = vunpack.c.l.b16 %v394
  %v1835 = vunpack.c.l.b16 %v395
  %v1836 = vunpack.c.l.b16 %v396
  %v1837 = vunpack.c.l.b16 %v397
  %v1838 = vunpack.c.l.b16 %v398
  %v1839 = vunpack.c.l.b16 %v399
  %v1840 = vunpack.c.l.b16 %v400
  %v1841 = vunpack.c.l.b16 %v401
  %v1842 = vunpack.c.l.b16 %v402
  %v1843 = vunpack.c.l.b16 %v403
  %v1844 = vunpack.c.l.b16 %v404
  %v1845 = vunpack.c.l.b16 %v405
  %v1846 = vunpack.c.l.b16 %v406
  %v1847 = vunpack.c.l.b16 %v407
  %v1848 = vunpack.c.l.b16 %v408
  %v1849 = vunpack.c.l.b16 %v409
  %v1850 = vunpack.c.l.b16 %v410
  %v1851 = vunpack.c.l.b16 %v411
  %v1852 = vunpack.c.l.b16 %v412
  %v1853 = vunpack.c.l.b16 %v413
  %v1854 = vunpack.c.l.b16 %v414
  %v1855 = vunpack.c.l.b16 %v415
  %v1856 = vunpack.c.l.b16 %v416
  %v1857 = vunpack.c.l.b16 %v417
  %v1858 = vunpack.c.l.b16 %v418
  %v1859 = vunpack.c.l.b16 %v419
  %v1860 = vunpack.c.l.b16 %v420
  %v1861 = vunpack.c.l.b16 %v421
  %v1862 = vunpack.c.l.b16 %v422
  %v1863 = vunpack.c.l.b16 %v423
  %v1864 = vunpack.c.l.b16 %v424
  %v1865 = vunpack.c.l.b16 %v425
  %v1866 = vunpack.c.l.b16 %v426
  %v1867 = vunpack.c.l.b16 %v427
  %v1868 = vunpack.c.l.b16 %v428
  %v1869 = vunpack.c.l.b16 %v429
  %v1870 = vunpack.c.l.b16 %v430
  %v1871 = vunpack.c.l.b16 %v431
  %v1872 = vunpack.c.l.b16 %v432
  %v1873 = vunpack.c.l.b16 %v433
  %v1874 = vunpack.c.l.b16 %v434
  %v1875 = vunpack.c.l.b16 %v435
  %v1876 = vunpack.c.l.b16 %v436
  %v1877 = vunpack.c.l.b16 %v437
  %v1878 = vunpack.c.l.b16 %v438
  %v1879 = vpack.c.b16 %v1680, %v1679
  %v1880 = vpack.c.b16 %v1682, %v1681
  %v1881 = vpack.c.b16 %v1684, %v1683
  %v1882 = vpack.c.b16 %v1686, %v1685
  %v1883 = vpack.c.b16 %v1688, %v1687
  %v1884 = vpack.c.b16 %v1690, %v1689
  %v1885 = vpack.c.b16 %v1692, %v1691
  %v1886 = vpack.c.b16 %v1694, %v1693
  %v1887 = vpack.c.b16 %v1696, %v1695
  %v1888 = vpack.c.b16 %v1698, %v1697
  %v1889 = vpack.c.b16 %v1700, %v1699
  %v1890 = vpack.c.b16 %v1702, %v1701
  %v1891 = vpack.c.b16 %v1704, %v1703
  %v1892 = vpack.c.b16 %v1706, %v1705
  %v1893 = vpack.c.b16 %v1708, %v1707
  %v1894 = vpack.c.b16 %v1710, %v1709
  %v1895 = vpack.c.b16 %v1712, %v1711
  %v1896 = vpack.c.b16 %v1714, %v1713
  %v1897 = vpack.c.b16 %v1716, %v1715
  %v1898 = vpack.c.b16 %v1718, %v1717
  %v1899 = vpack.c.b16 %v1720, %v1719
  %v1900 = vpack.c.b16 %v1722, %v1721
  %v1901 = vpack.c.b16 %v1724, %v1723
  %v1902 = vpack.c.b16 %v1726, %v1725
  %v1903 = vpack.c.b16 %v1728, %v1727
  %v1904 = vpack.c.b16 %v1730, %v1729
  %v1905 = vpack.c.b16 %v1732, %v1731
  %v1906 = vpack.c.b16 %v1734, %v1733
  %v1907 = vpack.c.b16 %v1736, %v1735
  %v1908 = vpack.c.b16 %v1738, %v1737
  %v1909 = vpack.c.b16 %v1740, %v1739
  %v1910 = vpack.c.b16 %v1742, %v1741
  %v1911 = vpack.c.b16 %v1744, %v1743
  %v1912 = vpack.c.b16 %v1746, %v1745
  %v1913 = vpack.c.b16 %v1748, %v1747
  %v1914 = vpack.c.b16 %v1750, %v1749
  %v1915 = vpack.c.b16 %v1752, %v1751
  %v1916 = vpack.c.b16 %v1754, %v1753
  %v1917 = vpack.c.b16 %v1756, %v1755
  %v1918 = vpack.c.b16 %v1758, %v1757
  %v1919 = vpack.c.b16 %v1760, %v1759
  %v1920 = vpack.c.b16 %v1762, %v1761
  %v1921 = vpack.c.b16 %v1764, %v1763
  %v1922 = vpack.c.b16 %v1766, %v1765
  %v1923 = vpack.c.b16 %v1768, %v1767
  %v1924 = vpack.c.b16 %v1770, %v1769
  %v1925 = vpack.c.b16 %v1772, %v1771
  %v1926 = vpack.c.b16 %v1774, %v1773
  %v1927 = vpack.c.b16 %v1776, %v1775
  %v1928 = vpack.c.b16 %v1778, %v1777
  %v1929 = vpack.c.b16 %v1780, %v1779
  %v1930 = vpack.c.b16 %v1782, %v1781
  %v1931 = vpack.c.b16 %v1784, %v1783
  %v1932 = vpack.c.b16 %v1786, %v1785
  %v1933 = vpack.c.b16 %v1788, %v1787
  %v1934 = vpack.c.b16 %v1790, %v1789
  %v1935 = vpack.c.b16 %v1792, %v1791
  %v1936 = vpack.c.b16 %v1794, %v1793
  %v1937 = vpack.c.b16 %v1796, %v1795
  %v1938 = vpack.c.b16 %v1798, %v1797
  %v1939 = vpack.c.b16 %v1800, %v1799
  %v1940 = vpack.c.b16 %v1802, %v1801
  %v1941 = vpack.c.b16 %v1804, %v1803
  %v1942 = vpack.c.b16 %v1806, %v1805
  %v1943 = vpack.c.b16 %v1808, %v1807
  %v1944 = vpack.c.b16 %v1810, %v1809
  %v1945 = vpack.c.b16 %v1812, %v1811
  %v1946 = vpack.c.b16 %v1814, %v1813
  %v1947 = vpack.c.b16 %v1816, %v1815
  %v1948 = vpack.c.b16 %v1818, %v1817
  %v1949 = vpack.c.b16 %v1820, %v1819
  %v1950 = vpack.c.b16 %v1822, %v1821
  %v1951 = vpack.c.b16 %v1824, %v1823
  %v1952 = vpack.c.b16 %v1826, %v1825
  %v1953 = vpack.c.b16 %v1828, %v1827
  %v1954 = vpack.c.b16 %v1830, %v1829
  %v1955 = vpack.c.b16 %v1832, %v1831
  %v1956 = vpack.c.b16 %v1834, %v1833
  %v1957 = vpack.c.b16 %v1836, %v1835
  %v1958 = vpack.c.b16 %v1838, %v1837
  %v1959 = vpack.c.b16 %v1840, %v1839
  %v1960 = vpack.c.b16 %v1842, %v1841
  %v1961 = vpack.c.b16 %v1844, %v1843
  %v1962 = vpack.c.b16 %v1846, %v1845
  %v1963 = vpack.c.b16 %v1848, %v1847
  %v1964 = vpack.c.b16 %v1850, %v1849
  %v1965 = vpack.c.b16 %v1852, %v1851
  %v1966 = vpack.c.b16 %v1854, %v1853
  %v1967 = vpack.c.b16 %v1856, %v1855
  %v1968 = vpack.c.b16 %v1858, %v1857
  %v1969 = vpack.c.b16 %v1860, %v1859
  %v1970 = vpack.c.b16 %v1862, %v1861
  %v1971 = vpack.c.b16 %v1864, %v1863
  %v1972 = vpack.c.b16 %v1866, %v1865
  %v1973 = vpack.c.b16 %v1868, %v1867
  %v1974 = vpack.c.b16 %v1870, %v1869
  %v1975 = vpack.c.b16 %v1872, %v1871
  %v1976 = vpack.c.b16 %v1874, %v1873
  %v1977 = vpack.c.b16 %v1876, %v1875
  %v1978 = vpack.c.b16 %v1878, %v1877
  %vm2079 = vcmask 523264
  %v2081 = vsel %vm2079, %v1091, 0
  %v2084 = vsel %vm2079, %v1104, 0
  %v2087 = vsel %vm2079, %v1117, 0
  %v2090 = vsel %vm2079, %v1130, 0
  %v2093 = vsel %vm2079, %v1143, 0
  %v2096 = vsel %vm2079, %v1156, 0
  %v2099 = vsel %vm2079, %v1169, 0
  %v2102 = vsel %vm2079, %v1182, 0
  %v2105 = vsel %vm2079, %v1195, 0
  %v2108 = vsel %vm2079, %v1208, 0
  %v2111 = vsel %vm2079, %v1221, 0
  %v2114 = vsel %vm2079, %v1234, 0
  %v2117 = vsel %vm2079, %v1247, 0
  %v2120 = vsel %vm2079, %v1260, 0
  %v2123 = vsel %vm2079, %v1273, 0
  %v2126 = vsel %vm2079, %v1286, 0
  %2128 = vmatpush.bf16.msra.mxu0 %v1886
  %2129 = vmatpush.bf16.msra.mxu0 %v1885
  %2130 = vmatpush.bf16.msra.mxu0 %v1884
  %2131 = vmatpush.bf16.msra.mxu0 %v1883
  %2132 = vmatpush.bf16.msra.mxu0 %v1882
  %2133 = vmatpush.bf16.msra.mxu0 %v1881
  %2134 = vmatpush.bf16.msra.mxu0 %v1880
  %2135 = vmatpush.bf16.msra.mxu0 %v1879
  %2136 = vmatmul.bf16.gmra.mxu0 %v1079
  %v2137 = vpop.f32.mrf.mxu0
  %v2138 = vadd.f32 0.0, %v2137
  %v2139 = vpop.f32.mrf.mxu0
  %v2140 = vadd.f32 0.0, %v2139
  %2141 = vmatmul.bf16.gmra.mxu0 %v1092
  %v2142 = vpop.f32.mrf.mxu0
  %v2143 = vadd.f32 0.0, %v2142
  %v2144 = vpop.f32.mrf.mxu0
  %v2145 = vadd.f32 0.0, %v2144
  %2146 = vmatmul.bf16.gmra.mxu0 %v1105
  %v2147 = vpop.f32.mrf.mxu0
  %v2148 = vadd.f32 0.0, %v2147
  %v2149 = vpop.f32.mrf.mxu0
  %v2150 = vadd.f32 0.0, %v2149
  %2151 = vmatmul.bf16.gmra.mxu0 %v1118
  %v2152 = vpop.f32.mrf.mxu0
  %v2153 = vadd.f32 0.0, %v2152
  %v2154 = vpop.f32.mrf.mxu0
  %v2155 = vadd.f32 0.0, %v2154
  %2156 = vmatmul.bf16.gmra.mxu0 %v1131
  %v2157 = vpop.f32.mrf.mxu0
  %v2158 = vadd.f32 0.0, %v2157
  %v2159 = vpop.f32.mrf.mxu0
  %v2160 = vadd.f32 0.0, %v2159
  %2161 = vmatmul.bf16.gmra.mxu0 %v1144
  %v2162 = vpop.f32.mrf.mxu0
  %v2163 = vadd.f32 0.0, %v2162
  %v2164 = vpop.f32.mrf.mxu0
  %v2165 = vadd.f32 0.0, %v2164
  %2166 = vmatmul.bf16.gmra.mxu0 %v1157
  %v2167 = vpop.f32.mrf.mxu0
  %v2168 = vadd.f32 0.0, %v2167
  %v2169 = vpop.f32.mrf.mxu0
  %v2170 = vadd.f32 0.0, %v2169
  %2171 = vmatmul.bf16.gmra.mxu0 %v1170
  %v2172 = vpop.f32.mrf.mxu0
  %v2173 = vadd.f32 0.0, %v2172
  %v2174 = vpop.f32.mrf.mxu0
  %v2175 = vadd.f32 0.0, %v2174
  %2176 = vmatmul.bf16.gmra.mxu0 %v1183
  %v2177 = vpop.f32.mrf.mxu0
  %v2178 = vadd.f32 0.0, %v2177
  %v2179 = vpop.f32.mrf.mxu0
  %v2180 = vadd.f32 0.0, %v2179
  %2181 = vmatmul.bf16.gmra.mxu0 %v1196
  %v2182 = vpop.f32.mrf.mxu0
  %v2183 = vadd.f32 0.0, %v2182
  %v2184 = vpop.f32.mrf.mxu0
  %v2185 = vadd.f32 0.0, %v2184
  %2186 = vmatmul.bf16.gmra.mxu0 %v1209
  %v2187 = vpop.f32.mrf.mxu0
  %v2188 = vadd.f32 0.0, %v2187
  %v2189 = vpop.f32.mrf.mxu0
  %v2190 = vadd.f32 0.0, %v2189
  %2191 = vmatmul.bf16.gmra.mxu0 %v1222
  %v2192 = vpop.f32.mrf.mxu0
  %v2193 = vadd.f32 0.0, %v2192
  %v2194 = vpop.f32.mrf.mxu0
  %v2195 = vadd.f32 0.0, %v2194
  %2196 = vmatmul.bf16.gmra.mxu0 %v1235
  %v2197 = vpop.f32.mrf.mxu0
  %v2198 = vadd.f32 0.0, %v2197
  %v2199 = vpop.f32.mrf.mxu0
  %v2200 = vadd.f32 0.0, %v2199
  %2201 = vmatmul.bf16.gmra.mxu0 %v1248
  %v2202 = vpop.f32.mrf.mxu0
  %v2203 = vadd.f32 0.0, %v2202
  %v2204 = vpop.f32.mrf.mxu0
  %v2205 = vadd.f32 0.0, %v2204
  %2206 = vmatmul.bf16.gmra.mxu0 %v1261
  %v2207 = vpop.f32.mrf.mxu0
  %v2208 = vadd.f32 0.0, %v2207
  %v2209 = vpop.f32.mrf.mxu0
  %v2210 = vadd.f32 0.0, %v2209
  %2211 = vmatmul.bf16.gmra.mxu0 %v1274
  %v2212 = vpop.f32.mrf.mxu0
  %v2213 = vadd.f32 0.0, %v2212
  %v2214 = vpop.f32.mrf.mxu0
  %v2215 = vadd.f32 0.0, %v2214
  %2216 = vdwg.mxu0
  %2217 = vmatpush.bf16.msra.mxu0 %v1894
  %2218 = vmatpush.bf16.msra.mxu0 %v1893
  %2219 = vmatpush.bf16.msra.mxu0 %v1892
  %2220 = vmatpush.bf16.msra.mxu0 %v1891
  %2221 = vmatpush.bf16.msra.mxu0 %v1890
  %2222 = vmatpush.bf16.msra.mxu0 %v1889
  %2223 = vmatpush.bf16.msra.mxu0 %v1888
  %2224 = vmatpush.bf16.msra.mxu0 %v1887
  %2225 = vmatmul.bf16.gmra.mxu0 %v1080
  %v2226 = vpop.f32.mrf.mxu0
  %v2227 = vadd.f32 %v2138, %v2226
  %v2228 = vpop.f32.mrf.mxu0
  %v2229 = vadd.f32 %v2140, %v2228
  %2230 = vmatmul.bf16.gmra.mxu0 %v1093
  %v2231 = vpop.f32.mrf.mxu0
  %v2232 = vadd.f32 %v2143, %v2231
  %v2233 = vpop.f32.mrf.mxu0
  %v2234 = vadd.f32 %v2145, %v2233
  %2235 = vmatmul.bf16.gmra.mxu0 %v1106
  %v2236 = vpop.f32.mrf.mxu0
  %v2237 = vadd.f32 %v2148, %v2236
  %v2238 = vpop.f32.mrf.mxu0
  %v2239 = vadd.f32 %v2150, %v2238
  %2240 = vmatmul.bf16.gmra.mxu0 %v1119
  %v2241 = vpop.f32.mrf.mxu0
  %v2242 = vadd.f32 %v2153, %v2241
  %v2243 = vpop.f32.mrf.mxu0
  %v2244 = vadd.f32 %v2155, %v2243
  %2245 = vmatmul.bf16.gmra.mxu0 %v1132
  %v2246 = vpop.f32.mrf.mxu0
  %v2247 = vadd.f32 %v2158, %v2246
  %v2248 = vpop.f32.mrf.mxu0
  %v2249 = vadd.f32 %v2160, %v2248
  %2250 = vmatmul.bf16.gmra.mxu0 %v1145
  %v2251 = vpop.f32.mrf.mxu0
  %v2252 = vadd.f32 %v2163, %v2251
  %v2253 = vpop.f32.mrf.mxu0
  %v2254 = vadd.f32 %v2165, %v2253
  %2255 = vmatmul.bf16.gmra.mxu0 %v1158
  %v2256 = vpop.f32.mrf.mxu0
  %v2257 = vadd.f32 %v2168, %v2256
  %v2258 = vpop.f32.mrf.mxu0
  %v2259 = vadd.f32 %v2170, %v2258
  %2260 = vmatmul.bf16.gmra.mxu0 %v1171
  %v2261 = vpop.f32.mrf.mxu0
  %v2262 = vadd.f32 %v2173, %v2261
  %v2263 = vpop.f32.mrf.mxu0
  %v2264 = vadd.f32 %v2175, %v2263
  %2265 = vmatmul.bf16.gmra.mxu0 %v1184
  %v2266 = vpop.f32.mrf.mxu0
  %v2267 = vadd.f32 %v2178, %v2266
  %v2268 = vpop.f32.mrf.mxu0
  %v2269 = vadd.f32 %v2180, %v2268
  %2270 = vmatmul.bf16.gmra.mxu0 %v1197
  %v2271 = vpop.f32.mrf.mxu0
  %v2272 = vadd.f32 %v2183, %v2271
  %v2273 = vpop.f32.mrf.mxu0
  %v2274 = vadd.f32 %v2185, %v2273
  %2275 = vmatmul.bf16.gmra.mxu0 %v1210
  %v2276 = vpop.f32.mrf.mxu0
  %v2277 = vadd.f32 %v2188, %v2276
  %v2278 = vpop.f32.mrf.mxu0
  %v2279 = vadd.f32 %v2190, %v2278
  %2280 = vmatmul.bf16.gmra.mxu0 %v1223
  %v2281 = vpop.f32.mrf.mxu0
  %v2282 = vadd.f32 %v2193, %v2281
  %v2283 = vpop.f32.mrf.mxu0
  %v2284 = vadd.f32 %v2195, %v2283
  %2285 = vmatmul.bf16.gmra.mxu0 %v1236
  %v2286 = vpop.f32.mrf.mxu0
  %v2287 = vadd.f32 %v2198, %v2286
  %v2288 = vpop.f32.mrf.mxu0
  %v2289 = vadd.f32 %v2200, %v2288
  %2290 = vmatmul.bf16.gmra.mxu0 %v1249
  %v2291 = vpop.f32.mrf.mxu0
  %v2292 = vadd.f32 %v2203, %v2291
  %v2293 = vpop.f32.mrf.mxu0
  %v2294 = vadd.f32 %v2205, %v2293
  %2295 = vmatmul.bf16.gmra.mxu0 %v1262
  %v2296 = vpop.f32.mrf.mxu0
  %v2297 = vadd.f32 %v2208, %v2296
  %v2298 = vpop.f32.mrf.mxu0
  %v2299 = vadd.f32 %v2210, %v2298
  %2300 = vmatmul.bf16.gmra.mxu0 %v1275
  %v2301 = vpop.f32.mrf.mxu0
  %v2302 = vadd.f32 %v2213, %v2301
  %v2303 = vpop.f32.mrf.mxu0
  %v2304 = vadd.f32 %v2215, %v2303
  %2305 = vdwg.mxu0
  %2306 = vmatpush.bf16.msra.mxu0 %v1902
  %2307 = vmatpush.bf16.msra.mxu0 %v1901
  %2308 = vmatpush.bf16.msra.mxu0 %v1900
  %2309 = vmatpush.bf16.msra.mxu0 %v1899
  %2310 = vmatpush.bf16.msra.mxu0 %v1898
  %2311 = vmatpush.bf16.msra.mxu0 %v1897
  %2312 = vmatpush.bf16.msra.mxu0 %v1896
  %2313 = vmatpush.bf16.msra.mxu0 %v1895
  %2314 = vmatmul.bf16.gmra.mxu0 %v1081
  %v2315 = vpop.f32.mrf.mxu0
  %v2316 = vadd.f32 %v2227, %v2315
  %v2317 = vpop.f32.mrf.mxu0
  %v2318 = vadd.f32 %v2229, %v2317
  %2319 = vmatmul.bf16.gmra.mxu0 %v1094
  %v2320 = vpop.f32.mrf.mxu0
  %v2321 = vadd.f32 %v2232, %v2320
  %v2322 = vpop.f32.mrf.mxu0
  %v2323 = vadd.f32 %v2234, %v2322
  %2324 = vmatmul.bf16.gmra.mxu0 %v1107
  %v2325 = vpop.f32.mrf.mxu0
  %v2326 = vadd.f32 %v2237, %v2325
  %v2327 = vpop.f32.mrf.mxu0
  %v2328 = vadd.f32 %v2239, %v2327
  %2329 = vmatmul.bf16.gmra.mxu0 %v1120
  %v2330 = vpop.f32.mrf.mxu0
  %v2331 = vadd.f32 %v2242, %v2330
  %v2332 = vpop.f32.mrf.mxu0
  %v2333 = vadd.f32 %v2244, %v2332
  %2334 = vmatmul.bf16.gmra.mxu0 %v1133
  %v2335 = vpop.f32.mrf.mxu0
  %v2336 = vadd.f32 %v2247, %v2335
  %v2337 = vpop.f32.mrf.mxu0
  %v2338 = vadd.f32 %v2249, %v2337
  %2339 = vmatmul.bf16.gmra.mxu0 %v1146
  %v2340 = vpop.f32.mrf.mxu0
  %v2341 = vadd.f32 %v2252, %v2340
  %v2342 = vpop.f32.mrf.mxu0
  %v2343 = vadd.f32 %v2254, %v2342
  %2344 = vmatmul.bf16.gmra.mxu0 %v1159
  %v2345 = vpop.f32.mrf.mxu0
  %v2346 = vadd.f32 %v2257, %v2345
  %v2347 = vpop.f32.mrf.mxu0
  %v2348 = vadd.f32 %v2259, %v2347
  %2349 = vmatmul.bf16.gmra.mxu0 %v1172
  %v2350 = vpop.f32.mrf.mxu0
  %v2351 = vadd.f32 %v2262, %v2350
  %v2352 = vpop.f32.mrf.mxu0
  %v2353 = vadd.f32 %v2264, %v2352
  %2354 = vmatmul.bf16.gmra.mxu0 %v1185
  %v2355 = vpop.f32.mrf.mxu0
  %v2356 = vadd.f32 %v2267, %v2355
  %v2357 = vpop.f32.mrf.mxu0
  %v2358 = vadd.f32 %v2269, %v2357
  %2359 = vmatmul.bf16.gmra.mxu0 %v1198
  %v2360 = vpop.f32.mrf.mxu0
  %v2361 = vadd.f32 %v2272, %v2360
  %v2362 = vpop.f32.mrf.mxu0
  %v2363 = vadd.f32 %v2274, %v2362
  %2364 = vmatmul.bf16.gmra.mxu0 %v1211
  %v2365 = vpop.f32.mrf.mxu0
  %v2366 = vadd.f32 %v2277, %v2365
  %v2367 = vpop.f32.mrf.mxu0
  %v2368 = vadd.f32 %v2279, %v2367
  %2369 = vmatmul.bf16.gmra.mxu0 %v1224
  %v2370 = vpop.f32.mrf.mxu0
  %v2371 = vadd.f32 %v2282, %v2370
  %v2372 = vpop.f32.mrf.mxu0
  %v2373 = vadd.f32 %v2284, %v2372
  %2374 = vmatmul.bf16.gmra.mxu0 %v1237
  %v2375 = vpop.f32.mrf.mxu0
  %v2376 = vadd.f32 %v2287, %v2375
  %v2377 = vpop.f32.mrf.mxu0
  %v2378 = vadd.f32 %v2289, %v2377
  %2379 = vmatmul.bf16.gmra.mxu0 %v1250
  %v2380 = vpop.f32.mrf.mxu0
  %v2381 = vadd.f32 %v2292, %v2380
  %v2382 = vpop.f32.mrf.mxu0
  %v2383 = vadd.f32 %v2294, %v2382
  %2384 = vmatmul.bf16.gmra.mxu0 %v1263
  %v2385 = vpop.f32.mrf.mxu0
  %v2386 = vadd.f32 %v2297, %v2385
  %v2387 = vpop.f32.mrf.mxu0
  %v2388 = vadd.f32 %v2299, %v2387
  %2389 = vmatmul.bf16.gmra.mxu0 %v1276
  %v2390 = vpop.f32.mrf.mxu0
  %v2391 = vadd.f32 %v2302, %v2390
  %v2392 = vpop.f32.mrf.mxu0
  %v2393 = vadd.f32 %v2304, %v2392
  %2394 = vdwg.mxu0
  %2395 = vmatpush.bf16.msra.mxu0 %v1910
  %2396 = vmatpush.bf16.msra.mxu0 %v1909
  %2397 = vmatpush.bf16.msra.mxu0 %v1908
  %2398 = vmatpush.bf16.msra.mxu0 %v1907
  %2399 = vmatpush.bf16.msra.mxu0 %v1906
  %2400 = vmatpush.bf16.msra.mxu0 %v1905
  %2401 = vmatpush.bf16.msra.mxu0 %v1904
  %2402 = vmatpush.bf16.msra.mxu0 %v1903
  %2403 = vmatmul.bf16.gmra.mxu0 %v1082
  %v2404 = vpop.f32.mrf.mxu0
  %v2405 = vadd.f32 %v2316, %v2404
  %v2406 = vpop.f32.mrf.mxu0
  %v2407 = vadd.f32 %v2318, %v2406
  %2408 = vmatmul.bf16.gmra.mxu0 %v1095
  %v2409 = vpop.f32.mrf.mxu0
  %v2410 = vadd.f32 %v2321, %v2409
  %v2411 = vpop.f32.mrf.mxu0
  %v2412 = vadd.f32 %v2323, %v2411
  %2413 = vmatmul.bf16.gmra.mxu0 %v1108
  %v2414 = vpop.f32.mrf.mxu0
  %v2415 = vadd.f32 %v2326, %v2414
  %v2416 = vpop.f32.mrf.mxu0
  %v2417 = vadd.f32 %v2328, %v2416
  %2418 = vmatmul.bf16.gmra.mxu0 %v1121
  %v2419 = vpop.f32.mrf.mxu0
  %v2420 = vadd.f32 %v2331, %v2419
  %v2421 = vpop.f32.mrf.mxu0
  %v2422 = vadd.f32 %v2333, %v2421
  %2423 = vmatmul.bf16.gmra.mxu0 %v1134
  %v2424 = vpop.f32.mrf.mxu0
  %v2425 = vadd.f32 %v2336, %v2424
  %v2426 = vpop.f32.mrf.mxu0
  %v2427 = vadd.f32 %v2338, %v2426
  %2428 = vmatmul.bf16.gmra.mxu0 %v1147
  %v2429 = vpop.f32.mrf.mxu0
  %v2430 = vadd.f32 %v2341, %v2429
  %v2431 = vpop.f32.mrf.mxu0
  %v2432 = vadd.f32 %v2343, %v2431
  %2433 = vmatmul.bf16.gmra.mxu0 %v1160
  %v2434 = vpop.f32.mrf.mxu0
  %v2435 = vadd.f32 %v2346, %v2434
  %v2436 = vpop.f32.mrf.mxu0
  %v2437 = vadd.f32 %v2348, %v2436
  %2438 = vmatmul.bf16.gmra.mxu0 %v1173
  %v2439 = vpop.f32.mrf.mxu0
  %v2440 = vadd.f32 %v2351, %v2439
  %v2441 = vpop.f32.mrf.mxu0
  %v2442 = vadd.f32 %v2353, %v2441
  %2443 = vmatmul.bf16.gmra.mxu0 %v1186
  %v2444 = vpop.f32.mrf.mxu0
  %v2445 = vadd.f32 %v2356, %v2444
  %v2446 = vpop.f32.mrf.mxu0
  %v2447 = vadd.f32 %v2358, %v2446
  %2448 = vmatmul.bf16.gmra.mxu0 %v1199
  %v2449 = vpop.f32.mrf.mxu0
  %v2450 = vadd.f32 %v2361, %v2449
  %v2451 = vpop.f32.mrf.mxu0
  %v2452 = vadd.f32 %v2363, %v2451
  %2453 = vmatmul.bf16.gmra.mxu0 %v1212
  %v2454 = vpop.f32.mrf.mxu0
  %v2455 = vadd.f32 %v2366, %v2454
  %v2456 = vpop.f32.mrf.mxu0
  %v2457 = vadd.f32 %v2368, %v2456
  %2458 = vmatmul.bf16.gmra.mxu0 %v1225
  %v2459 = vpop.f32.mrf.mxu0
  %v2460 = vadd.f32 %v2371, %v2459
  %v2461 = vpop.f32.mrf.mxu0
  %v2462 = vadd.f32 %v2373, %v2461
  %2463 = vmatmul.bf16.gmra.mxu0 %v1238
  %v2464 = vpop.f32.mrf.mxu0
  %v2465 = vadd.f32 %v2376, %v2464
  %v2466 = vpop.f32.mrf.mxu0
  %v2467 = vadd.f32 %v2378, %v2466
  %2468 = vmatmul.bf16.gmra.mxu0 %v1251
  %v2469 = vpop.f32.mrf.mxu0
  %v2470 = vadd.f32 %v2381, %v2469
  %v2471 = vpop.f32.mrf.mxu0
  %v2472 = vadd.f32 %v2383, %v2471
  %2473 = vmatmul.bf16.gmra.mxu0 %v1264
  %v2474 = vpop.f32.mrf.mxu0
  %v2475 = vadd.f32 %v2386, %v2474
  %v2476 = vpop.f32.mrf.mxu0
  %v2477 = vadd.f32 %v2388, %v2476
  %2478 = vmatmul.bf16.gmra.mxu0 %v1277
  %v2479 = vpop.f32.mrf.mxu0
  %v2480 = vadd.f32 %v2391, %v2479
  %v2481 = vpop.f32.mrf.mxu0
  %v2482 = vadd.f32 %v2393, %v2481
  %2483 = vdwg.mxu0
  %2484 = vmatpush.bf16.msra.mxu0 %v1918
  %2485 = vmatpush.bf16.msra.mxu0 %v1917
  %2486 = vmatpush.bf16.msra.mxu0 %v1916
  %2487 = vmatpush.bf16.msra.mxu0 %v1915
  %2488 = vmatpush.bf16.msra.mxu0 %v1914
  %2489 = vmatpush.bf16.msra.mxu0 %v1913
  %2490 = vmatpush.bf16.msra.mxu0 %v1912
  %2491 = vmatpush.bf16.msra.mxu0 %v1911
  %2492 = vmatmul.bf16.gmra.mxu0 %v1083
  %v2493 = vpop.f32.mrf.mxu0
  %v2494 = vadd.f32 %v2405, %v2493
  %v2495 = vpop.f32.mrf.mxu0
  %v2496 = vadd.f32 %v2407, %v2495
  %2497 = vmatmul.bf16.gmra.mxu0 %v1096
  %v2498 = vpop.f32.mrf.mxu0
  %v2499 = vadd.f32 %v2410, %v2498
  %v2500 = vpop.f32.mrf.mxu0
  %v2501 = vadd.f32 %v2412, %v2500
  %2502 = vmatmul.bf16.gmra.mxu0 %v1109
  %v2503 = vpop.f32.mrf.mxu0
  %v2504 = vadd.f32 %v2415, %v2503
  %v2505 = vpop.f32.mrf.mxu0
  %v2506 = vadd.f32 %v2417, %v2505
  %2507 = vmatmul.bf16.gmra.mxu0 %v1122
  %v2508 = vpop.f32.mrf.mxu0
  %v2509 = vadd.f32 %v2420, %v2508
  %v2510 = vpop.f32.mrf.mxu0
  %v2511 = vadd.f32 %v2422, %v2510
  %2512 = vmatmul.bf16.gmra.mxu0 %v1135
  %v2513 = vpop.f32.mrf.mxu0
  %v2514 = vadd.f32 %v2425, %v2513
  %v2515 = vpop.f32.mrf.mxu0
  %v2516 = vadd.f32 %v2427, %v2515
  %2517 = vmatmul.bf16.gmra.mxu0 %v1148
  %v2518 = vpop.f32.mrf.mxu0
  %v2519 = vadd.f32 %v2430, %v2518
  %v2520 = vpop.f32.mrf.mxu0
  %v2521 = vadd.f32 %v2432, %v2520
  %2522 = vmatmul.bf16.gmra.mxu0 %v1161
  %v2523 = vpop.f32.mrf.mxu0
  %v2524 = vadd.f32 %v2435, %v2523
  %v2525 = vpop.f32.mrf.mxu0
  %v2526 = vadd.f32 %v2437, %v2525
  %2527 = vmatmul.bf16.gmra.mxu0 %v1174
  %v2528 = vpop.f32.mrf.mxu0
  %v2529 = vadd.f32 %v2440, %v2528
  %v2530 = vpop.f32.mrf.mxu0
  %v2531 = vadd.f32 %v2442, %v2530
  %2532 = vmatmul.bf16.gmra.mxu0 %v1187
  %v2533 = vpop.f32.mrf.mxu0
  %v2534 = vadd.f32 %v2445, %v2533
  %v2535 = vpop.f32.mrf.mxu0
  %v2536 = vadd.f32 %v2447, %v2535
  %2537 = vmatmul.bf16.gmra.mxu0 %v1200
  %v2538 = vpop.f32.mrf.mxu0
  %v2539 = vadd.f32 %v2450, %v2538
  %v2540 = vpop.f32.mrf.mxu0
  %v2541 = vadd.f32 %v2452, %v2540
  %2542 = vmatmul.bf16.gmra.mxu0 %v1213
  %v2543 = vpop.f32.mrf.mxu0
  %v2544 = vadd.f32 %v2455, %v2543
  %v2545 = vpop.f32.mrf.mxu0
  %v2546 = vadd.f32 %v2457, %v2545
  %2547 = vmatmul.bf16.gmra.mxu0 %v1226
  %v2548 = vpop.f32.mrf.mxu0
  %v2549 = vadd.f32 %v2460, %v2548
  %v2550 = vpop.f32.mrf.mxu0
  %v2551 = vadd.f32 %v2462, %v2550
  %2552 = vmatmul.bf16.gmra.mxu0 %v1239
  %v2553 = vpop.f32.mrf.mxu0
  %v2554 = vadd.f32 %v2465, %v2553
  %v2555 = vpop.f32.mrf.mxu0
  %v2556 = vadd.f32 %v2467, %v2555
  %2557 = vmatmul.bf16.gmra.mxu0 %v1252
  %v2558 = vpop.f32.mrf.mxu0
  %v2559 = vadd.f32 %v2470, %v2558
  %v2560 = vpop.f32.mrf.mxu0
  %v2561 = vadd.f32 %v2472, %v2560
  %2562 = vmatmul.bf16.gmra.mxu0 %v1265
  %v2563 = vpop.f32.mrf.mxu0
  %v2564 = vadd.f32 %v2475, %v2563
  %v2565 = vpop.f32.mrf.mxu0
  %v2566 = vadd.f32 %v2477, %v2565
  %2567 = vmatmul.bf16.gmra.mxu0 %v1278
  %v2568 = vpop.f32.mrf.mxu0
  %v2569 = vadd.f32 %v2480, %v2568
  %v2570 = vpop.f32.mrf.mxu0
  %v2571 = vadd.f32 %v2482, %v2570
  %2572 = vdwg.mxu0
  %2573 = vmatpush.bf16.msra.mxu0 %v1926
  %2574 = vmatpush.bf16.msra.mxu0 %v1925
  %2575 = vmatpush.bf16.msra.mxu0 %v1924
  %2576 = vmatpush.bf16.msra.mxu0 %v1923
  %2577 = vmatpush.bf16.msra.mxu0 %v1922
  %2578 = vmatpush.bf16.msra.mxu0 %v1921
  %2579 = vmatpush.bf16.msra.mxu0 %v1920
  %2580 = vmatpush.bf16.msra.mxu0 %v1919
  %2581 = vmatmul.bf16.gmra.mxu0 %v1084
  %v2582 = vpop.f32.mrf.mxu0
  %v2583 = vadd.f32 %v2494, %v2582
  %v2584 = vpop.f32.mrf.mxu0
  %v2585 = vadd.f32 %v2496, %v2584
  %2586 = vmatmul.bf16.gmra.mxu0 %v1097
  %v2587 = vpop.f32.mrf.mxu0
  %v2588 = vadd.f32 %v2499, %v2587
  %v2589 = vpop.f32.mrf.mxu0
  %v2590 = vadd.f32 %v2501, %v2589
  %2591 = vmatmul.bf16.gmra.mxu0 %v1110
  %v2592 = vpop.f32.mrf.mxu0
  %v2593 = vadd.f32 %v2504, %v2592
  %v2594 = vpop.f32.mrf.mxu0
  %v2595 = vadd.f32 %v2506, %v2594
  %2596 = vmatmul.bf16.gmra.mxu0 %v1123
  %v2597 = vpop.f32.mrf.mxu0
  %v2598 = vadd.f32 %v2509, %v2597
  %v2599 = vpop.f32.mrf.mxu0
  %v2600 = vadd.f32 %v2511, %v2599
  %2601 = vmatmul.bf16.gmra.mxu0 %v1136
  %v2602 = vpop.f32.mrf.mxu0
  %v2603 = vadd.f32 %v2514, %v2602
  %v2604 = vpop.f32.mrf.mxu0
  %v2605 = vadd.f32 %v2516, %v2604
  %2606 = vmatmul.bf16.gmra.mxu0 %v1149
  %v2607 = vpop.f32.mrf.mxu0
  %v2608 = vadd.f32 %v2519, %v2607
  %v2609 = vpop.f32.mrf.mxu0
  %v2610 = vadd.f32 %v2521, %v2609
  %2611 = vmatmul.bf16.gmra.mxu0 %v1162
  %v2612 = vpop.f32.mrf.mxu0
  %v2613 = vadd.f32 %v2524, %v2612
  %v2614 = vpop.f32.mrf.mxu0
  %v2615 = vadd.f32 %v2526, %v2614
  %2616 = vmatmul.bf16.gmra.mxu0 %v1175
  %v2617 = vpop.f32.mrf.mxu0
  %v2618 = vadd.f32 %v2529, %v2617
  %v2619 = vpop.f32.mrf.mxu0
  %v2620 = vadd.f32 %v2531, %v2619
  %2621 = vmatmul.bf16.gmra.mxu0 %v1188
  %v2622 = vpop.f32.mrf.mxu0
  %v2623 = vadd.f32 %v2534, %v2622
  %v2624 = vpop.f32.mrf.mxu0
  %v2625 = vadd.f32 %v2536, %v2624
  %2626 = vmatmul.bf16.gmra.mxu0 %v1201
  %v2627 = vpop.f32.mrf.mxu0
  %v2628 = vadd.f32 %v2539, %v2627
  %v2629 = vpop.f32.mrf.mxu0
  %v2630 = vadd.f32 %v2541, %v2629
  %2631 = vmatmul.bf16.gmra.mxu0 %v1214
  %v2632 = vpop.f32.mrf.mxu0
  %v2633 = vadd.f32 %v2544, %v2632
  %v2634 = vpop.f32.mrf.mxu0
  %v2635 = vadd.f32 %v2546, %v2634
  %2636 = vmatmul.bf16.gmra.mxu0 %v1227
  %v2637 = vpop.f32.mrf.mxu0
  %v2638 = vadd.f32 %v2549, %v2637
  %v2639 = vpop.f32.mrf.mxu0
  %v2640 = vadd.f32 %v2551, %v2639
  %2641 = vmatmul.bf16.gmra.mxu0 %v1240
  %v2642 = vpop.f32.mrf.mxu0
  %v2643 = vadd.f32 %v2554, %v2642
  %v2644 = vpop.f32.mrf.mxu0
  %v2645 = vadd.f32 %v2556, %v2644
  %2646 = vmatmul.bf16.gmra.mxu0 %v1253
  %v2647 = vpop.f32.mrf.mxu0
  %v2648 = vadd.f32 %v2559, %v2647
  %v2649 = vpop.f32.mrf.mxu0
  %v2650 = vadd.f32 %v2561, %v2649
  %2651 = vmatmul.bf16.gmra.mxu0 %v1266
  %v2652 = vpop.f32.mrf.mxu0
  %v2653 = vadd.f32 %v2564, %v2652
  %v2654 = vpop.f32.mrf.mxu0
  %v2655 = vadd.f32 %v2566, %v2654
  %2656 = vmatmul.bf16.gmra.mxu0 %v1279
  %v2657 = vpop.f32.mrf.mxu0
  %v2658 = vadd.f32 %v2569, %v2657
  %v2659 = vpop.f32.mrf.mxu0
  %v2660 = vadd.f32 %v2571, %v2659
  %2661 = vdwg.mxu0
  %2662 = vmatpush.bf16.msra.mxu0 %v1934
  %2663 = vmatpush.bf16.msra.mxu0 %v1933
  %2664 = vmatpush.bf16.msra.mxu0 %v1932
  %2665 = vmatpush.bf16.msra.mxu0 %v1931
  %2666 = vmatpush.bf16.msra.mxu0 %v1930
  %2667 = vmatpush.bf16.msra.mxu0 %v1929
  %2668 = vmatpush.bf16.msra.mxu0 %v1928
  %2669 = vmatpush.bf16.msra.mxu0 %v1927
  %2670 = vmatmul.bf16.gmra.mxu0 %v1085
  %v2671 = vpop.f32.mrf.mxu0
  %v2672 = vadd.f32 %v2583, %v2671
  %v2673 = vpop.f32.mrf.mxu0
  %v2674 = vadd.f32 %v2585, %v2673
  %2675 = vmatmul.bf16.gmra.mxu0 %v1098
  %v2676 = vpop.f32.mrf.mxu0
  %v2677 = vadd.f32 %v2588, %v2676
  %v2678 = vpop.f32.mrf.mxu0
  %v2679 = vadd.f32 %v2590, %v2678
  %2680 = vmatmul.bf16.gmra.mxu0 %v1111
  %v2681 = vpop.f32.mrf.mxu0
  %v2682 = vadd.f32 %v2593, %v2681
  %v2683 = vpop.f32.mrf.mxu0
  %v2684 = vadd.f32 %v2595, %v2683
  %2685 = vmatmul.bf16.gmra.mxu0 %v1124
  %v2686 = vpop.f32.mrf.mxu0
  %v2687 = vadd.f32 %v2598, %v2686
  %v2688 = vpop.f32.mrf.mxu0
  %v2689 = vadd.f32 %v2600, %v2688
  %2690 = vmatmul.bf16.gmra.mxu0 %v1137
  %v2691 = vpop.f32.mrf.mxu0
  %v2692 = vadd.f32 %v2603, %v2691
  %v2693 = vpop.f32.mrf.mxu0
  %v2694 = vadd.f32 %v2605, %v2693
  %2695 = vmatmul.bf16.gmra.mxu0 %v1150
  %v2696 = vpop.f32.mrf.mxu0
  %v2697 = vadd.f32 %v2608, %v2696
  %v2698 = vpop.f32.mrf.mxu0
  %v2699 = vadd.f32 %v2610, %v2698
  %2700 = vmatmul.bf16.gmra.mxu0 %v1163
  %v2701 = vpop.f32.mrf.mxu0
  %v2702 = vadd.f32 %v2613, %v2701
  %v2703 = vpop.f32.mrf.mxu0
  %v2704 = vadd.f32 %v2615, %v2703
  %2705 = vmatmul.bf16.gmra.mxu0 %v1176
  %v2706 = vpop.f32.mrf.mxu0
  %v2707 = vadd.f32 %v2618, %v2706
  %v2708 = vpop.f32.mrf.mxu0
  %v2709 = vadd.f32 %v2620, %v2708
  %2710 = vmatmul.bf16.gmra.mxu0 %v1189
  %v2711 = vpop.f32.mrf.mxu0
  %v2712 = vadd.f32 %v2623, %v2711
  %v2713 = vpop.f32.mrf.mxu0
  %v2714 = vadd.f32 %v2625, %v2713
  %2715 = vmatmul.bf16.gmra.mxu0 %v1202
  %v2716 = vpop.f32.mrf.mxu0
  %v2717 = vadd.f32 %v2628, %v2716
  %v2718 = vpop.f32.mrf.mxu0
  %v2719 = vadd.f32 %v2630, %v2718
  %2720 = vmatmul.bf16.gmra.mxu0 %v1215
  %v2721 = vpop.f32.mrf.mxu0
  %v2722 = vadd.f32 %v2633, %v2721
  %v2723 = vpop.f32.mrf.mxu0
  %v2724 = vadd.f32 %v2635, %v2723
  %2725 = vmatmul.bf16.gmra.mxu0 %v1228
  %v2726 = vpop.f32.mrf.mxu0
  %v2727 = vadd.f32 %v2638, %v2726
  %v2728 = vpop.f32.mrf.mxu0
  %v2729 = vadd.f32 %v2640, %v2728
  %2730 = vmatmul.bf16.gmra.mxu0 %v1241
  %v2731 = vpop.f32.mrf.mxu0
  %v2732 = vadd.f32 %v2643, %v2731
  %v2733 = vpop.f32.mrf.mxu0
  %v2734 = vadd.f32 %v2645, %v2733
  %2735 = vmatmul.bf16.gmra.mxu0 %v1254
  %v2736 = vpop.f32.mrf.mxu0
  %v2737 = vadd.f32 %v2648, %v2736
  %v2738 = vpop.f32.mrf.mxu0
  %v2739 = vadd.f32 %v2650, %v2738
  %2740 = vmatmul.bf16.gmra.mxu0 %v1267
  %v2741 = vpop.f32.mrf.mxu0
  %v2742 = vadd.f32 %v2653, %v2741
  %v2743 = vpop.f32.mrf.mxu0
  %v2744 = vadd.f32 %v2655, %v2743
  %2745 = vmatmul.bf16.gmra.mxu0 %v1280
  %v2746 = vpop.f32.mrf.mxu0
  %v2747 = vadd.f32 %v2658, %v2746
  %v2748 = vpop.f32.mrf.mxu0
  %v2749 = vadd.f32 %v2660, %v2748
  %2750 = vdwg.mxu0
  %2751 = vmatpush.bf16.msra.mxu0 %v1942
  %2752 = vmatpush.bf16.msra.mxu0 %v1941
  %2753 = vmatpush.bf16.msra.mxu0 %v1940
  %2754 = vmatpush.bf16.msra.mxu0 %v1939
  %2755 = vmatpush.bf16.msra.mxu0 %v1938
  %2756 = vmatpush.bf16.msra.mxu0 %v1937
  %2757 = vmatpush.bf16.msra.mxu0 %v1936
  %2758 = vmatpush.bf16.msra.mxu0 %v1935
  %2759 = vmatmul.bf16.gmra.mxu0 %v1086
  %v2760 = vpop.f32.mrf.mxu0
  %v2761 = vadd.f32 %v2672, %v2760
  %v2762 = vpop.f32.mrf.mxu0
  %v2763 = vadd.f32 %v2674, %v2762
  %2764 = vmatmul.bf16.gmra.mxu0 %v1099
  %v2765 = vpop.f32.mrf.mxu0
  %v2766 = vadd.f32 %v2677, %v2765
  %v2767 = vpop.f32.mrf.mxu0
  %v2768 = vadd.f32 %v2679, %v2767
  %2769 = vmatmul.bf16.gmra.mxu0 %v1112
  %v2770 = vpop.f32.mrf.mxu0
  %v2771 = vadd.f32 %v2682, %v2770
  %v2772 = vpop.f32.mrf.mxu0
  %v2773 = vadd.f32 %v2684, %v2772
  %2774 = vmatmul.bf16.gmra.mxu0 %v1125
  %v2775 = vpop.f32.mrf.mxu0
  %v2776 = vadd.f32 %v2687, %v2775
  %v2777 = vpop.f32.mrf.mxu0
  %v2778 = vadd.f32 %v2689, %v2777
  %2779 = vmatmul.bf16.gmra.mxu0 %v1138
  %v2780 = vpop.f32.mrf.mxu0
  %v2781 = vadd.f32 %v2692, %v2780
  %v2782 = vpop.f32.mrf.mxu0
  %v2783 = vadd.f32 %v2694, %v2782
  %2784 = vmatmul.bf16.gmra.mxu0 %v1151
  %v2785 = vpop.f32.mrf.mxu0
  %v2786 = vadd.f32 %v2697, %v2785
  %v2787 = vpop.f32.mrf.mxu0
  %v2788 = vadd.f32 %v2699, %v2787
  %2789 = vmatmul.bf16.gmra.mxu0 %v1164
  %v2790 = vpop.f32.mrf.mxu0
  %v2791 = vadd.f32 %v2702, %v2790
  %v2792 = vpop.f32.mrf.mxu0
  %v2793 = vadd.f32 %v2704, %v2792
  %2794 = vmatmul.bf16.gmra.mxu0 %v1177
  %v2795 = vpop.f32.mrf.mxu0
  %v2796 = vadd.f32 %v2707, %v2795
  %v2797 = vpop.f32.mrf.mxu0
  %v2798 = vadd.f32 %v2709, %v2797
  %2799 = vmatmul.bf16.gmra.mxu0 %v1190
  %v2800 = vpop.f32.mrf.mxu0
  %v2801 = vadd.f32 %v2712, %v2800
  %v2802 = vpop.f32.mrf.mxu0
  %v2803 = vadd.f32 %v2714, %v2802
  %2804 = vmatmul.bf16.gmra.mxu0 %v1203
  %v2805 = vpop.f32.mrf.mxu0
  %v2806 = vadd.f32 %v2717, %v2805
  %v2807 = vpop.f32.mrf.mxu0
  %v2808 = vadd.f32 %v2719, %v2807
  %2809 = vmatmul.bf16.gmra.mxu0 %v1216
  %v2810 = vpop.f32.mrf.mxu0
  %v2811 = vadd.f32 %v2722, %v2810
  %v2812 = vpop.f32.mrf.mxu0
  %v2813 = vadd.f32 %v2724, %v2812
  %2814 = vmatmul.bf16.gmra.mxu0 %v1229
  %v2815 = vpop.f32.mrf.mxu0
  %v2816 = vadd.f32 %v2727, %v2815
  %v2817 = vpop.f32.mrf.mxu0
  %v2818 = vadd.f32 %v2729, %v2817
  %2819 = vmatmul.bf16.gmra.mxu0 %v1242
  %v2820 = vpop.f32.mrf.mxu0
  %v2821 = vadd.f32 %v2732, %v2820
  %v2822 = vpop.f32.mrf.mxu0
  %v2823 = vadd.f32 %v2734, %v2822
  %2824 = vmatmul.bf16.gmra.mxu0 %v1255
  %v2825 = vpop.f32.mrf.mxu0
  %v2826 = vadd.f32 %v2737, %v2825
  %v2827 = vpop.f32.mrf.mxu0
  %v2828 = vadd.f32 %v2739, %v2827
  %2829 = vmatmul.bf16.gmra.mxu0 %v1268
  %v2830 = vpop.f32.mrf.mxu0
  %v2831 = vadd.f32 %v2742, %v2830
  %v2832 = vpop.f32.mrf.mxu0
  %v2833 = vadd.f32 %v2744, %v2832
  %2834 = vmatmul.bf16.gmra.mxu0 %v1281
  %v2835 = vpop.f32.mrf.mxu0
  %v2836 = vadd.f32 %v2747, %v2835
  %v2837 = vpop.f32.mrf.mxu0
  %v2838 = vadd.f32 %v2749, %v2837
  %2839 = vdwg.mxu0
  %2840 = vmatpush.bf16.msra.mxu0 %v1950
  %2841 = vmatpush.bf16.msra.mxu0 %v1949
  %2842 = vmatpush.bf16.msra.mxu0 %v1948
  %2843 = vmatpush.bf16.msra.mxu0 %v1947
  %2844 = vmatpush.bf16.msra.mxu0 %v1946
  %2845 = vmatpush.bf16.msra.mxu0 %v1945
  %2846 = vmatpush.bf16.msra.mxu0 %v1944
  %2847 = vmatpush.bf16.msra.mxu0 %v1943
  %2848 = vmatmul.bf16.gmra.mxu0 %v1087
  %v2849 = vpop.f32.mrf.mxu0
  %v2850 = vadd.f32 %v2761, %v2849
  %v2851 = vpop.f32.mrf.mxu0
  %v2852 = vadd.f32 %v2763, %v2851
  %2853 = vmatmul.bf16.gmra.mxu0 %v1100
  %v2854 = vpop.f32.mrf.mxu0
  %v2855 = vadd.f32 %v2766, %v2854
  %v2856 = vpop.f32.mrf.mxu0
  %v2857 = vadd.f32 %v2768, %v2856
  %2858 = vmatmul.bf16.gmra.mxu0 %v1113
  %v2859 = vpop.f32.mrf.mxu0
  %v2860 = vadd.f32 %v2771, %v2859
  %v2861 = vpop.f32.mrf.mxu0
  %v2862 = vadd.f32 %v2773, %v2861
  %2863 = vmatmul.bf16.gmra.mxu0 %v1126
  %v2864 = vpop.f32.mrf.mxu0
  %v2865 = vadd.f32 %v2776, %v2864
  %v2866 = vpop.f32.mrf.mxu0
  %v2867 = vadd.f32 %v2778, %v2866
  %2868 = vmatmul.bf16.gmra.mxu0 %v1139
  %v2869 = vpop.f32.mrf.mxu0
  %v2870 = vadd.f32 %v2781, %v2869
  %v2871 = vpop.f32.mrf.mxu0
  %v2872 = vadd.f32 %v2783, %v2871
  %2873 = vmatmul.bf16.gmra.mxu0 %v1152
  %v2874 = vpop.f32.mrf.mxu0
  %v2875 = vadd.f32 %v2786, %v2874
  %v2876 = vpop.f32.mrf.mxu0
  %v2877 = vadd.f32 %v2788, %v2876
  %2878 = vmatmul.bf16.gmra.mxu0 %v1165
  %v2879 = vpop.f32.mrf.mxu0
  %v2880 = vadd.f32 %v2791, %v2879
  %v2881 = vpop.f32.mrf.mxu0
  %v2882 = vadd.f32 %v2793, %v2881
  %2883 = vmatmul.bf16.gmra.mxu0 %v1178
  %v2884 = vpop.f32.mrf.mxu0
  %v2885 = vadd.f32 %v2796, %v2884
  %v2886 = vpop.f32.mrf.mxu0
  %v2887 = vadd.f32 %v2798, %v2886
  %2888 = vmatmul.bf16.gmra.mxu0 %v1191
  %v2889 = vpop.f32.mrf.mxu0
  %v2890 = vadd.f32 %v2801, %v2889
  %v2891 = vpop.f32.mrf.mxu0
  %v2892 = vadd.f32 %v2803, %v2891
  %2893 = vmatmul.bf16.gmra.mxu0 %v1204
  %v2894 = vpop.f32.mrf.mxu0
  %v2895 = vadd.f32 %v2806, %v2894
  %v2896 = vpop.f32.mrf.mxu0
  %v2897 = vadd.f32 %v2808, %v2896
  %2898 = vmatmul.bf16.gmra.mxu0 %v1217
  %v2899 = vpop.f32.mrf.mxu0
  %v2900 = vadd.f32 %v2811, %v2899
  %v2901 = vpop.f32.mrf.mxu0
  %v2902 = vadd.f32 %v2813, %v2901
  %2903 = vmatmul.bf16.gmra.mxu0 %v1230
  %v2904 = vpop.f32.mrf.mxu0
  %v2905 = vadd.f32 %v2816, %v2904
  %v2906 = vpop.f32.mrf.mxu0
  %v2907 = vadd.f32 %v2818, %v2906
  %2908 = vmatmul.bf16.gmra.mxu0 %v1243
  %v2909 = vpop.f32.mrf.mxu0
  %v2910 = vadd.f32 %v2821, %v2909
  %v2911 = vpop.f32.mrf.mxu0
  %v2912 = vadd.f32 %v2823, %v2911
  %2913 = vmatmul.bf16.gmra.mxu0 %v1256
  %v2914 = vpop.f32.mrf.mxu0
  %v2915 = vadd.f32 %v2826, %v2914
  %v2916 = vpop.f32.mrf.mxu0
  %v2917 = vadd.f32 %v2828, %v2916
  %2918 = vmatmul.bf16.gmra.mxu0 %v1269
  %v2919 = vpop.f32.mrf.mxu0
  %v2920 = vadd.f32 %v2831, %v2919
  %v2921 = vpop.f32.mrf.mxu0
  %v2922 = vadd.f32 %v2833, %v2921
  %2923 = vmatmul.bf16.gmra.mxu0 %v1282
  %v2924 = vpop.f32.mrf.mxu0
  %v2925 = vadd.f32 %v2836, %v2924
  %v2926 = vpop.f32.mrf.mxu0
  %v2927 = vadd.f32 %v2838, %v2926
  %2928 = vdwg.mxu0
  %2929 = vmatpush.bf16.msra.mxu0 %v1958
  %2930 = vmatpush.bf16.msra.mxu0 %v1957
  %2931 = vmatpush.bf16.msra.mxu0 %v1956
  %2932 = vmatpush.bf16.msra.mxu0 %v1955
  %2933 = vmatpush.bf16.msra.mxu0 %v1954
  %2934 = vmatpush.bf16.msra.mxu0 %v1953
  %2935 = vmatpush.bf16.msra.mxu0 %v1952
  %2936 = vmatpush.bf16.msra.mxu0 %v1951
  %2937 = vmatmul.bf16.gmra.mxu0 %v1088
  %v2938 = vpop.f32.mrf.mxu0
  %v2939 = vadd.f32 %v2850, %v2938
  %v2940 = vpop.f32.mrf.mxu0
  %v2941 = vadd.f32 %v2852, %v2940
  %2942 = vmatmul.bf16.gmra.mxu0 %v1101
  %v2943 = vpop.f32.mrf.mxu0
  %v2944 = vadd.f32 %v2855, %v2943
  %v2945 = vpop.f32.mrf.mxu0
  %v2946 = vadd.f32 %v2857, %v2945
  %2947 = vmatmul.bf16.gmra.mxu0 %v1114
  %v2948 = vpop.f32.mrf.mxu0
  %v2949 = vadd.f32 %v2860, %v2948
  %v2950 = vpop.f32.mrf.mxu0
  %v2951 = vadd.f32 %v2862, %v2950
  %2952 = vmatmul.bf16.gmra.mxu0 %v1127
  %v2953 = vpop.f32.mrf.mxu0
  %v2954 = vadd.f32 %v2865, %v2953
  %v2955 = vpop.f32.mrf.mxu0
  %v2956 = vadd.f32 %v2867, %v2955
  %2957 = vmatmul.bf16.gmra.mxu0 %v1140
  %v2958 = vpop.f32.mrf.mxu0
  %v2959 = vadd.f32 %v2870, %v2958
  %v2960 = vpop.f32.mrf.mxu0
  %v2961 = vadd.f32 %v2872, %v2960
  %2962 = vmatmul.bf16.gmra.mxu0 %v1153
  %v2963 = vpop.f32.mrf.mxu0
  %v2964 = vadd.f32 %v2875, %v2963
  %v2965 = vpop.f32.mrf.mxu0
  %v2966 = vadd.f32 %v2877, %v2965
  %2967 = vmatmul.bf16.gmra.mxu0 %v1166
  %v2968 = vpop.f32.mrf.mxu0
  %v2969 = vadd.f32 %v2880, %v2968
  %v2970 = vpop.f32.mrf.mxu0
  %v2971 = vadd.f32 %v2882, %v2970
  %2972 = vmatmul.bf16.gmra.mxu0 %v1179
  %v2973 = vpop.f32.mrf.mxu0
  %v2974 = vadd.f32 %v2885, %v2973
  %v2975 = vpop.f32.mrf.mxu0
  %v2976 = vadd.f32 %v2887, %v2975
  %2977 = vmatmul.bf16.gmra.mxu0 %v1192
  %v2978 = vpop.f32.mrf.mxu0
  %v2979 = vadd.f32 %v2890, %v2978
  %v2980 = vpop.f32.mrf.mxu0
  %v2981 = vadd.f32 %v2892, %v2980
  %2982 = vmatmul.bf16.gmra.mxu0 %v1205
  %v2983 = vpop.f32.mrf.mxu0
  %v2984 = vadd.f32 %v2895, %v2983
  %v2985 = vpop.f32.mrf.mxu0
  %v2986 = vadd.f32 %v2897, %v2985
  %2987 = vmatmul.bf16.gmra.mxu0 %v1218
  %v2988 = vpop.f32.mrf.mxu0
  %v2989 = vadd.f32 %v2900, %v2988
  %v2990 = vpop.f32.mrf.mxu0
  %v2991 = vadd.f32 %v2902, %v2990
  %2992 = vmatmul.bf16.gmra.mxu0 %v1231
  %v2993 = vpop.f32.mrf.mxu0
  %v2994 = vadd.f32 %v2905, %v2993
  %v2995 = vpop.f32.mrf.mxu0
  %v2996 = vadd.f32 %v2907, %v2995
  %2997 = vmatmul.bf16.gmra.mxu0 %v1244
  %v2998 = vpop.f32.mrf.mxu0
  %v2999 = vadd.f32 %v2910, %v2998
  %v3000 = vpop.f32.mrf.mxu0
  %v3001 = vadd.f32 %v2912, %v3000
  %3002 = vmatmul.bf16.gmra.mxu0 %v1257
  %v3003 = vpop.f32.mrf.mxu0
  %v3004 = vadd.f32 %v2915, %v3003
  %v3005 = vpop.f32.mrf.mxu0
  %v3006 = vadd.f32 %v2917, %v3005
  %3007 = vmatmul.bf16.gmra.mxu0 %v1270
  %v3008 = vpop.f32.mrf.mxu0
  %v3009 = vadd.f32 %v2920, %v3008
  %v3010 = vpop.f32.mrf.mxu0
  %v3011 = vadd.f32 %v2922, %v3010
  %3012 = vmatmul.bf16.gmra.mxu0 %v1283
  %v3013 = vpop.f32.mrf.mxu0
  %v3014 = vadd.f32 %v2925, %v3013
  %v3015 = vpop.f32.mrf.mxu0
  %v3016 = vadd.f32 %v2927, %v3015
  %3017 = vdwg.mxu0
  %3018 = vmatpush.bf16.msra.mxu0 %v1966
  %3019 = vmatpush.bf16.msra.mxu0 %v1965
  %3020 = vmatpush.bf16.msra.mxu0 %v1964
  %3021 = vmatpush.bf16.msra.mxu0 %v1963
  %3022 = vmatpush.bf16.msra.mxu0 %v1962
  %3023 = vmatpush.bf16.msra.mxu0 %v1961
  %3024 = vmatpush.bf16.msra.mxu0 %v1960
  %3025 = vmatpush.bf16.msra.mxu0 %v1959
  %3026 = vmatmul.bf16.gmra.mxu0 %v1089
  %v3027 = vpop.f32.mrf.mxu0
  %v3028 = vadd.f32 %v2939, %v3027
  %v3029 = vpop.f32.mrf.mxu0
  %v3030 = vadd.f32 %v2941, %v3029
  %3031 = vmatmul.bf16.gmra.mxu0 %v1102
  %v3032 = vpop.f32.mrf.mxu0
  %v3033 = vadd.f32 %v2944, %v3032
  %v3034 = vpop.f32.mrf.mxu0
  %v3035 = vadd.f32 %v2946, %v3034
  %3036 = vmatmul.bf16.gmra.mxu0 %v1115
  %v3037 = vpop.f32.mrf.mxu0
  %v3038 = vadd.f32 %v2949, %v3037
  %v3039 = vpop.f32.mrf.mxu0
  %v3040 = vadd.f32 %v2951, %v3039
  %3041 = vmatmul.bf16.gmra.mxu0 %v1128
  %v3042 = vpop.f32.mrf.mxu0
  %v3043 = vadd.f32 %v2954, %v3042
  %v3044 = vpop.f32.mrf.mxu0
  %v3045 = vadd.f32 %v2956, %v3044
  %3046 = vmatmul.bf16.gmra.mxu0 %v1141
  %v3047 = vpop.f32.mrf.mxu0
  %v3048 = vadd.f32 %v2959, %v3047
  %v3049 = vpop.f32.mrf.mxu0
  %v3050 = vadd.f32 %v2961, %v3049
  %3051 = vmatmul.bf16.gmra.mxu0 %v1154
  %v3052 = vpop.f32.mrf.mxu0
  %v3053 = vadd.f32 %v2964, %v3052
  %v3054 = vpop.f32.mrf.mxu0
  %v3055 = vadd.f32 %v2966, %v3054
  %3056 = vmatmul.bf16.gmra.mxu0 %v1167
  %v3057 = vpop.f32.mrf.mxu0
  %v3058 = vadd.f32 %v2969, %v3057
  %v3059 = vpop.f32.mrf.mxu0
  %v3060 = vadd.f32 %v2971, %v3059
  %3061 = vmatmul.bf16.gmra.mxu0 %v1180
  %v3062 = vpop.f32.mrf.mxu0
  %v3063 = vadd.f32 %v2974, %v3062
  %v3064 = vpop.f32.mrf.mxu0
  %v3065 = vadd.f32 %v2976, %v3064
  %3066 = vmatmul.bf16.gmra.mxu0 %v1193
  %v3067 = vpop.f32.mrf.mxu0
  %v3068 = vadd.f32 %v2979, %v3067
  %v3069 = vpop.f32.mrf.mxu0
  %v3070 = vadd.f32 %v2981, %v3069
  %3071 = vmatmul.bf16.gmra.mxu0 %v1206
  %v3072 = vpop.f32.mrf.mxu0
  %v3073 = vadd.f32 %v2984, %v3072
  %v3074 = vpop.f32.mrf.mxu0
  %v3075 = vadd.f32 %v2986, %v3074
  %3076 = vmatmul.bf16.gmra.mxu0 %v1219
  %v3077 = vpop.f32.mrf.mxu0
  %v3078 = vadd.f32 %v2989, %v3077
  %v3079 = vpop.f32.mrf.mxu0
  %v3080 = vadd.f32 %v2991, %v3079
  %3081 = vmatmul.bf16.gmra.mxu0 %v1232
  %v3082 = vpop.f32.mrf.mxu0
  %v3083 = vadd.f32 %v2994, %v3082
  %v3084 = vpop.f32.mrf.mxu0
  %v3085 = vadd.f32 %v2996, %v3084
  %3086 = vmatmul.bf16.gmra.mxu0 %v1245
  %v3087 = vpop.f32.mrf.mxu0
  %v3088 = vadd.f32 %v2999, %v3087
  %v3089 = vpop.f32.mrf.mxu0
  %v3090 = vadd.f32 %v3001, %v3089
  %3091 = vmatmul.bf16.gmra.mxu0 %v1258
  %v3092 = vpop.f32.mrf.mxu0
  %v3093 = vadd.f32 %v3004, %v3092
  %v3094 = vpop.f32.mrf.mxu0
  %v3095 = vadd.f32 %v3006, %v3094
  %3096 = vmatmul.bf16.gmra.mxu0 %v1271
  %v3097 = vpop.f32.mrf.mxu0
  %v3098 = vadd.f32 %v3009, %v3097
  %v3099 = vpop.f32.mrf.mxu0
  %v3100 = vadd.f32 %v3011, %v3099
  %3101 = vmatmul.bf16.gmra.mxu0 %v1284
  %v3102 = vpop.f32.mrf.mxu0
  %v3103 = vadd.f32 %v3014, %v3102
  %v3104 = vpop.f32.mrf.mxu0
  %v3105 = vadd.f32 %v3016, %v3104
  %3106 = vdwg.mxu0
  %3107 = vmatpush.bf16.msra.mxu0 %v1974
  %3108 = vmatpush.bf16.msra.mxu0 %v1973
  %3109 = vmatpush.bf16.msra.mxu0 %v1972
  %3110 = vmatpush.bf16.msra.mxu0 %v1971
  %3111 = vmatpush.bf16.msra.mxu0 %v1970
  %3112 = vmatpush.bf16.msra.mxu0 %v1969
  %3113 = vmatpush.bf16.msra.mxu0 %v1968
  %3114 = vmatpush.bf16.msra.mxu0 %v1967
  %3115 = vmatmul.bf16.gmra.mxu0 %v1090
  %v3116 = vpop.f32.mrf.mxu0
  %v3117 = vadd.f32 %v3028, %v3116
  %v3118 = vpop.f32.mrf.mxu0
  %v3119 = vadd.f32 %v3030, %v3118
  %3120 = vmatmul.bf16.gmra.mxu0 %v1103
  %v3121 = vpop.f32.mrf.mxu0
  %v3122 = vadd.f32 %v3033, %v3121
  %v3123 = vpop.f32.mrf.mxu0
  %v3124 = vadd.f32 %v3035, %v3123
  %3125 = vmatmul.bf16.gmra.mxu0 %v1116
  %v3126 = vpop.f32.mrf.mxu0
  %v3127 = vadd.f32 %v3038, %v3126
  %v3128 = vpop.f32.mrf.mxu0
  %v3129 = vadd.f32 %v3040, %v3128
  %3130 = vmatmul.bf16.gmra.mxu0 %v1129
  %v3131 = vpop.f32.mrf.mxu0
  %v3132 = vadd.f32 %v3043, %v3131
  %v3133 = vpop.f32.mrf.mxu0
  %v3134 = vadd.f32 %v3045, %v3133
  %3135 = vmatmul.bf16.gmra.mxu0 %v1142
  %v3136 = vpop.f32.mrf.mxu0
  %v3137 = vadd.f32 %v3048, %v3136
  %v3138 = vpop.f32.mrf.mxu0
  %v3139 = vadd.f32 %v3050, %v3138
  %3140 = vmatmul.bf16.gmra.mxu0 %v1155
  %v3141 = vpop.f32.mrf.mxu0
  %v3142 = vadd.f32 %v3053, %v3141
  %v3143 = vpop.f32.mrf.mxu0
  %v3144 = vadd.f32 %v3055, %v3143
  %3145 = vmatmul.bf16.gmra.mxu0 %v1168
  %v3146 = vpop.f32.mrf.mxu0
  %v3147 = vadd.f32 %v3058, %v3146
  %v3148 = vpop.f32.mrf.mxu0
  %v3149 = vadd.f32 %v3060, %v3148
  %3150 = vmatmul.bf16.gmra.mxu0 %v1181
  %v3151 = vpop.f32.mrf.mxu0
  %v3152 = vadd.f32 %v3063, %v3151
  %v3153 = vpop.f32.mrf.mxu0
  %v3154 = vadd.f32 %v3065, %v3153
  %3155 = vmatmul.bf16.gmra.mxu0 %v1194
  %v3156 = vpop.f32.mrf.mxu0
  %v3157 = vadd.f32 %v3068, %v3156
  %v3158 = vpop.f32.mrf.mxu0
  %v3159 = vadd.f32 %v3070, %v3158
  %3160 = vmatmul.bf16.gmra.mxu0 %v1207
  %v3161 = vpop.f32.mrf.mxu0
  %v3162 = vadd.f32 %v3073, %v3161
  %v3163 = vpop.f32.mrf.mxu0
  %v3164 = vadd.f32 %v3075, %v3163
  %3165 = vmatmul.bf16.gmra.mxu0 %v1220
  %v3166 = vpop.f32.mrf.mxu0
  %v3167 = vadd.f32 %v3078, %v3166
  %v3168 = vpop.f32.mrf.mxu0
  %v3169 = vadd.f32 %v3080, %v3168
  %3170 = vmatmul.bf16.gmra.mxu0 %v1233
  %v3171 = vpop.f32.mrf.mxu0
  %v3172 = vadd.f32 %v3083, %v3171
  %v3173 = vpop.f32.mrf.mxu0
  %v3174 = vadd.f32 %v3085, %v3173
  %3175 = vmatmul.bf16.gmra.mxu0 %v1246
  %v3176 = vpop.f32.mrf.mxu0
  %v3177 = vadd.f32 %v3088, %v3176
  %v3178 = vpop.f32.mrf.mxu0
  %v3179 = vadd.f32 %v3090, %v3178
  %3180 = vmatmul.bf16.gmra.mxu0 %v1259
  %v3181 = vpop.f32.mrf.mxu0
  %v3182 = vadd.f32 %v3093, %v3181
  %v3183 = vpop.f32.mrf.mxu0
  %v3184 = vadd.f32 %v3095, %v3183
  %3185 = vmatmul.bf16.gmra.mxu0 %v1272
  %v3186 = vpop.f32.mrf.mxu0
  %v3187 = vadd.f32 %v3098, %v3186
  %v3188 = vpop.f32.mrf.mxu0
  %v3189 = vadd.f32 %v3100, %v3188
  %3190 = vmatmul.bf16.gmra.mxu0 %v1285
  %v3191 = vpop.f32.mrf.mxu0
  %v3192 = vadd.f32 %v3103, %v3191
  %v3193 = vpop.f32.mrf.mxu0
  %v3194 = vadd.f32 %v3105, %v3193
  %3195 = vdwg.mxu0
  %3196 = vmatpush.bf16.msra.mxu0 0
  %3197 = vmatpush.bf16.msra.mxu0 0
  %3198 = vmatpush.bf16.msra.mxu0 0
  %3199 = vmatpush.bf16.msra.mxu0 0
  %3200 = vmatpush.bf16.msra.mxu0 %v1978
  %3201 = vmatpush.bf16.msra.mxu0 %v1977
  %3202 = vmatpush.bf16.msra.mxu0 %v1976
  %3203 = vmatpush.bf16.msra.mxu0 %v1975
  %3204 = vmatmul.bf16.gmra.mxu0 %v2081
  %v3205 = vpop.f32.mrf.mxu0
  %v3206 = vadd.f32 %v3117, %v3205
  %v3207 = vpop.f32.mrf.mxu0
  %v3208 = vadd.f32 %v3119, %v3207
  %3209 = vmatmul.bf16.gmra.mxu0 %v2084
  %v3210 = vpop.f32.mrf.mxu0
  %v3211 = vadd.f32 %v3122, %v3210
  %v3212 = vpop.f32.mrf.mxu0
  %v3213 = vadd.f32 %v3124, %v3212
  %3214 = vmatmul.bf16.gmra.mxu0 %v2087
  %v3215 = vpop.f32.mrf.mxu0
  %v3216 = vadd.f32 %v3127, %v3215
  %v3217 = vpop.f32.mrf.mxu0
  %v3218 = vadd.f32 %v3129, %v3217
  %3219 = vmatmul.bf16.gmra.mxu0 %v2090
  %v3220 = vpop.f32.mrf.mxu0
  %v3221 = vadd.f32 %v3132, %v3220
  %v3222 = vpop.f32.mrf.mxu0
  %v3223 = vadd.f32 %v3134, %v3222
  %3224 = vmatmul.bf16.gmra.mxu0 %v2093
  %v3225 = vpop.f32.mrf.mxu0
  %v3226 = vadd.f32 %v3137, %v3225
  %v3227 = vpop.f32.mrf.mxu0
  %v3228 = vadd.f32 %v3139, %v3227
  %3229 = vmatmul.bf16.gmra.mxu0 %v2096
  %v3230 = vpop.f32.mrf.mxu0
  %v3231 = vadd.f32 %v3142, %v3230
  %v3232 = vpop.f32.mrf.mxu0
  %v3233 = vadd.f32 %v3144, %v3232
  %3234 = vmatmul.bf16.gmra.mxu0 %v2099
  %v3235 = vpop.f32.mrf.mxu0
  %v3236 = vadd.f32 %v3147, %v3235
  %v3237 = vpop.f32.mrf.mxu0
  %v3238 = vadd.f32 %v3149, %v3237
  %3239 = vmatmul.bf16.gmra.mxu0 %v2102
  %v3240 = vpop.f32.mrf.mxu0
  %v3241 = vadd.f32 %v3152, %v3240
  %v3242 = vpop.f32.mrf.mxu0
  %v3243 = vadd.f32 %v3154, %v3242
  %3244 = vmatmul.bf16.gmra.mxu0 %v2105
  %v3245 = vpop.f32.mrf.mxu0
  %v3246 = vadd.f32 %v3157, %v3245
  %v3247 = vpop.f32.mrf.mxu0
  %v3248 = vadd.f32 %v3159, %v3247
  %3249 = vmatmul.bf16.gmra.mxu0 %v2108
  %v3250 = vpop.f32.mrf.mxu0
  %v3251 = vadd.f32 %v3162, %v3250
  %v3252 = vpop.f32.mrf.mxu0
  %v3253 = vadd.f32 %v3164, %v3252
  %3254 = vmatmul.bf16.gmra.mxu0 %v2111
  %v3255 = vpop.f32.mrf.mxu0
  %v3256 = vadd.f32 %v3167, %v3255
  %v3257 = vpop.f32.mrf.mxu0
  %v3258 = vadd.f32 %v3169, %v3257
  %3259 = vmatmul.bf16.gmra.mxu0 %v2114
  %v3260 = vpop.f32.mrf.mxu0
  %v3261 = vadd.f32 %v3172, %v3260
  %v3262 = vpop.f32.mrf.mxu0
  %v3263 = vadd.f32 %v3174, %v3262
  %3264 = vmatmul.bf16.gmra.mxu0 %v2117
  %v3265 = vpop.f32.mrf.mxu0
  %v3266 = vadd.f32 %v3177, %v3265
  %v3267 = vpop.f32.mrf.mxu0
  %v3268 = vadd.f32 %v3179, %v3267
  %3269 = vmatmul.bf16.gmra.mxu0 %v2120
  %v3270 = vpop.f32.mrf.mxu0
  %v3271 = vadd.f32 %v3182, %v3270
  %v3272 = vpop.f32.mrf.mxu0
  %v3273 = vadd.f32 %v3184, %v3272
  %3274 = vmatmul.bf16.gmra.mxu0 %v2123
  %v3275 = vpop.f32.mrf.mxu0
  %v3276 = vadd.f32 %v3187, %v3275
  %v3277 = vpop.f32.mrf.mxu0
  %v3278 = vadd.f32 %v3189, %v3277
  %3279 = vmatmul.bf16.gmra.mxu0 %v2126
  %v3280 = vpop.f32.mrf.mxu0
  %v3281 = vadd.f32 %v3192, %v3280
  %v3282 = vpop.f32.mrf.mxu0
  %v3283 = vadd.f32 %v3194, %v3282
  %3284 = vdwg.mxu0
  %v3285 = vmax.f32 %v3206, %v3226
  %v3286 = vmax.f32 %v3285, %v3246
  %v3287 = vmax.f32 %v3286, %v3266
  %v3288 = vmax.f32 %v3208, %v3228
  %v3289 = vmax.f32 %v3288, %v3248
  %v3290 = vmax.f32 %v3289, %v3268
  %v3291 = vmax.f32 %v3211, %v3231
  %v3292 = vmax.f32 %v3291, %v3251
  %v3293 = vmax.f32 %v3292, %v3271
  %v3294 = vmax.f32 %v3213, %v3233
  %v3295 = vmax.f32 %v3294, %v3253
  %v3296 = vmax.f32 %v3295, %v3273
  %v3297 = vmax.f32 %v3216, %v3236
  %v3298 = vmax.f32 %v3297, %v3256
  %v3299 = vmax.f32 %v3298, %v3276
  %v3300 = vmax.f32 %v3218, %v3238
  %v3301 = vmax.f32 %v3300, %v3258
  %v3302 = vmax.f32 %v3301, %v3278
  %v3303 = vmax.f32 %v3221, %v3241
  %v3304 = vmax.f32 %v3303, %v3261
  %v3305 = vmax.f32 %v3304, %v3281
  %v3306 = vmax.f32 %v3223, %v3243
  %v3307 = vmax.f32 %v3306, %v3263
  %v3308 = vmax.f32 %v3307, %v3283
  %v3309 = vld [vmem:[%s2] sm:$0x1]
  %v3311 = vperm.slane %v3309, 0
  %v3313 = vadd.f32 %v3287, %v3311
  %v3314 = vadd.f32 %v3290, %v3311
  %v3315 = vadd.f32 %v3293, %v3311
  %v3316 = vadd.f32 %v3296, %v3311
  %v3317 = vadd.f32 %v3299, %v3311
  %v3318 = vadd.f32 %v3302, %v3311
  %v3319 = vadd.f32 %v3305, %v3311
  %v3320 = vadd.f32 %v3308, %v3311
  %v3321 = vmax.f32 %v3313, 0.0
  %v3322 = vmax.f32 %v3314, 0.0
  %v3323 = vmax.f32 %v3315, 0.0
  %v3324 = vmax.f32 %v3316, 0.0
  %v3325 = vmax.f32 %v3317, 0.0
  %v3326 = vmax.f32 %v3318, 0.0
  %v3327 = vmax.f32 %v3319, 0.0
  %v3328 = vmax.f32 %v3320, 0.0
  %v3329 = vpack.c.bf16 %v3321, %v3321
  %v3330 = vpack.c.bf16 %v3322, %v3322
  %v3331 = vpack.c.bf16 %v3323, %v3323
  %v3332 = vpack.c.bf16 %v3324, %v3324
  %v3333 = vpack.c.bf16 %v3325, %v3325
  %v3334 = vpack.c.bf16 %v3326, %v3326
  %v3335 = vpack.c.bf16 %v3327, %v3327
  %v3336 = vpack.c.bf16 %v3328, %v3328
  %3337 = vst [vmem:[%s3] sm:$0xf] %v3329
  %3338 = vst [vmem:[%s3 + $0x4] sm:$0xf] %v3330
  %3339 = vst [vmem:[%s3 + $0x8] sm:$0xf] %v3331
  %3340 = vst [vmem:[%s3 + $0xc] sm:$0xf] %v3332
  %3341 = vst [vmem:[%s3 + $0x10] sm:$0xf] %v3333
  %3342 = vst [vmem:[%s3 + $0x14] sm:$0xf] %v3334
  %3343 = vst [vmem:[%s3 + $0x18] sm:$0xf] %v3335
  %3344 = vst [vmem:[%s3 + $0x1c] sm:$0xf] %v3336
  // Predicated region
  $region14: #{cnn_forward.4} parent=0 // pred_check
    _
  $region15: #{cnn_forward.4} parent=0 // pred_check_branch
    %3346 = sbr.rel (0) target = $region17
  $region16: #{cnn_forward.4} parent=0 // pred_region
    _
  $region17: #{cnn_forward.4} parent=0 // pred_fallthru
    _
  // Predicated region
  $region18: #{cnn_forward.4} parent=0 // pred_check
    _
  $region19: #{cnn_forward.4} parent=0 // pred_check_branch
    %3348 = sbr.rel (0) target = $region21
  $region20: #{cnn_forward.4} parent=0 // pred_region
    _
  $region21: #{cnn_forward.4} parent=0 // pred_fallthru
    _

// kernel: cnn_forward.5
$region0: #{cnn_forward.5}
  #allocation0 [shape = 'u32[]', space=smem, size = 0x4, offset = 0x4, fixed_abs, tag = 'smem constant byte address 0x4 - core index']
  #allocation1 [shape = 'u32[72,128]{1,0:T(1,128)}', space=vmem, size = 0x9000, scoped, tag = 'internal scratch']
  %s0 = inlined_call_operand.vmem [shape: bf16[16,3200], index: 0, kind: input, shape index: {}]
  %s1 = inlined_call_operand.vmem [shape: bf16[3200,256], index: 1, kind: input, shape index: {}]
  %s2 = inlined_call_operand.vmem [shape: f32[1,256], index: 2, kind: input, shape index: {}]
  %s3 = inlined_call_operand.vmem [shape: bf16[256,128], index: 3, kind: input, shape index: {}]
  %s4 = inlined_call_operand.vmem [shape: f32[1,128], index: 4, kind: input, shape index: {}]
  %s5 = inlined_call_operand.vmem [shape: bf16[128,10], index: 5, kind: input, shape index: {}]
  %s6 = inlined_call_operand.vmem [shape: f32[1,10], index: 6, kind: input, shape index: {}]
  %s7 = inlined_call_operand.vmem [shape: f32[16,10], index: 7, kind: output, shape index: {}]
  %s8 = sld [smem:[#allocation0]]
  $region38: #{cnn_forward.5} parent=0
    _
  %s10 = ssub.s32 1, %s8
  %s11 = scalar_select 0, %s10, %s8
  // Predicated region
  $region2: #{cnn_forward.5} parent=0 // pred_check
    _
  $region3: #{cnn_forward.5} parent=0 // pred_check_branch
    %13 = sbr.rel (0) target = $region5
  $region4: #{cnn_forward.5} parent=0 // pred_region
    _
  $region5: #{cnn_forward.5} parent=0 // pred_fallthru
    _
  // Predicated region
  $region6: #{cnn_forward.5} parent=0 // pred_check
    _
  $region7: #{cnn_forward.5} parent=0 // pred_check_branch
    %15 = sbr.rel (0) target = $region9
  $region8: #{cnn_forward.5} parent=0 // pred_region
    _
  $region9: #{cnn_forward.5} parent=0 // pred_fallthru
    _
  // Predicated region
  $region10: #{cnn_forward.5} parent=0 // pred_check
    _
  $region11: #{cnn_forward.5} parent=0 // pred_check_branch
    %17 = sbr.rel (0) target = $region13
  $region12: #{cnn_forward.5} parent=0 // pred_region
    _
  $region13: #{cnn_forward.5} parent=0 // pred_fallthru
    _
  // Predicated region
  $region14: #{cnn_forward.5} parent=0 // pred_check
    _
  $region15: #{cnn_forward.5} parent=0 // pred_check_branch
    %19 = sbr.rel (0) target = $region17
  $region16: #{cnn_forward.5} parent=0 // pred_region
    _
  $region17: #{cnn_forward.5} parent=0 // pred_fallthru
    _
  // Predicated region
  $region18: #{cnn_forward.5} parent=0 // pred_check
    _
  $region19: #{cnn_forward.5} parent=0 // pred_check_branch
    %21 = sbr.rel (0) target = $region21
  $region20: #{cnn_forward.5} parent=0 // pred_region
    _
  $region21: #{cnn_forward.5} parent=0 // pred_fallthru
    _
  // Predicated region
  $region22: #{cnn_forward.5} parent=0 // pred_check
    _
  $region23: #{cnn_forward.5} parent=0 // pred_check_branch
    %23 = sbr.rel (0) target = $region25
  $region24: #{cnn_forward.5} parent=0 // pred_region
    _
  $region25: #{cnn_forward.5} parent=0 // pred_fallthru
    _
  // Predicated region
  $region26: #{cnn_forward.5} parent=0 // pred_check
    _
  $region27: #{cnn_forward.5} parent=0 // pred_check_branch
    %25 = sbr.rel (0) target = $region29
  $region28: #{cnn_forward.5} parent=0 // pred_region
    _
  $region29: #{cnn_forward.5} parent=0 // pred_fallthru
    _
  %v26 = vld [vmem:[%s0] sm:$0xff]
  %v27 = vld [vmem:[%s0 + $0x8] sm:$0xff]
  %v28 = vld [vmem:[%s0 + $0x10] sm:$0xff]
  %v29 = vld [vmem:[%s0 + $0x18] sm:$0xff]
  %v30 = vld [vmem:[%s0 + $0x20] sm:$0xff]
  %v31 = vld [vmem:[%s0 + $0x28] sm:$0xff]
  %v32 = vld [vmem:[%s0 + $0x30] sm:$0xff]
  %v33 = vld [vmem:[%s0 + $0x38] sm:$0xff]
  %v34 = vld [vmem:[%s0 + $0x40] sm:$0xff]
  %v35 = vld [vmem:[%s0 + $0x48] sm:$0xff]
  %v36 = vld [vmem:[%s0 + $0x50] sm:$0xff]
  %v37 = vld [vmem:[%s0 + $0x58] sm:$0xff]
  %v38 = vld [vmem:[%s0 + $0x60] sm:$0xf]
  %v39 = vld [vmem:[%s0 + $0x64] sm:$0xff]
  %v40 = vld [vmem:[%s0 + $0x6c] sm:$0xff]
  %v41 = vld [vmem:[%s0 + $0x74] sm:$0xff]
  %v42 = vld [vmem:[%s0 + $0x7c] sm:$0xff]
  %v43 = vld [vmem:[%s0 + $0x84] sm:$0xff]
  %v44 = vld [vmem:[%s0 + $0x8c] sm:$0xff]
  %v45 = vld [vmem:[%s0 + $0x94] sm:$0xff]
  %v46 = vld [vmem:[%s0 + $0x9c] sm:$0xff]
  %v47 = vld [vmem:[%s0 + $0xa4] sm:$0xff]
  %v48 = vld [vmem:[%s0 + $0xac] sm:$0xff]
  %v49 = vld [vmem:[%s0 + $0xb4] sm:$0xff]
  %v50 = vld [vmem:[%s0 + $0xbc] sm:$0xff]
  %v51 = vld [vmem:[%s0 + $0xc4] sm:$0xf]
  %v52 = vld [vmem:[%s1] sm:$0xff]
  %v53 = vld [vmem:[%s1 + $0x8] sm:$0xff]
  %v54 = vld [vmem:[%s1 + $0x10] sm:$0xff]
  %v55 = vld [vmem:[%s1 + $0x18] sm:$0xff]
  %v56 = vld [vmem:[%s1 + $0x20] sm:$0xff]
  %v57 = vld [vmem:[%s1 + $0x28] sm:$0xff]
  %v58 = vld [vmem:[%s1 + $0x30] sm:$0xff]
  %v59 = vld [vmem:[%s1 + $0x38] sm:$0xff]
  %v60 = vld [vmem:[%s1 + $0x40] sm:$0xff]
  %v61 = vld [vmem:[%s1 + $0x48] sm:$0xff]
  %v62 = vld [vmem:[%s1 + $0x50] sm:$0xff]
  %v63 = vld [vmem:[%s1 + $0x58] sm:$0xff]
  %v64 = vld [vmem:[%s1 + $0x60] sm:$0xff]
  %v65 = vld [vmem:[%s1 + $0x68] sm:$0xff]
  %v66 = vld [vmem:[%s1 + $0x70] sm:$0xff]
  %v67 = vld [vmem:[%s1 + $0x78] sm:$0xff]
  %v68 = vld [vmem:[%s1 + $0x80] sm:$0xff]
  %v69 = vld [vmem:[%s1 + $0x88] sm:$0xff]
  %v70 = vld [vmem:[%s1 + $0x90] sm:$0xff]
  %v71 = vld [vmem:[%s1 + $0x98] sm:$0xff]
  %v72 = vld [vmem:[%s1 + $0xa0] sm:$0xff]
  %v73 = vld [vmem:[%s1 + $0xa8] sm:$0xff]
  %v74 = vld [vmem:[%s1 + $0xb0] sm:$0xff]
  %v75 = vld [vmem:[%s1 + $0xb8] sm:$0xff]
  %v76 = vld [vmem:[%s1 + $0xc0] sm:$0xff]
  %v77 = vld [vmem:[%s1 + $0xc8] sm:$0xff]
  %v78 = vld [vmem:[%s1 + $0xd0] sm:$0xff]
  %v79 = vld [vmem:[%s1 + $0xd8] sm:$0xff]
  %v80 = vld [vmem:[%s1 + $0xe0] sm:$0xff]
  %v81 = vld [vmem:[%s1 + $0xe8] sm:$0xff]
  %v82 = vld [vmem:[%s1 + $0xf0] sm:$0xff]
  %v83 = vld [vmem:[%s1 + $0xf8] sm:$0xff]
  %v84 = vld [vmem:[%s1 + $0x100] sm:$0xff]
  %v85 = vld [vmem:[%s1 + $0x108] sm:$0xff]
  %v86 = vld [vmem:[%s1 + $0x110] sm:$0xff]
  %v87 = vld [vmem:[%s1 + $0x118] sm:$0xff]
  %v88 = vld [vmem:[%s1 + $0x120] sm:$0xff]
  %v89 = vld [vmem:[%s1 + $0x128] sm:$0xff]
  %v90 = vld [vmem:[%s1 + $0x130] sm:$0xff]
  %v91 = vld [vmem:[%s1 + $0x138] sm:$0xff]
  %v92 = vld [vmem:[%s1 + $0x140] sm:$0xff]
  %v93 = vld [vmem:[%s1 + $0x148] sm:$0xff]
  %v94 = vld [vmem:[%s1 + $0x150] sm:$0xff]
  %v95 = vld [vmem:[%s1 + $0x158] sm:$0xff]
  %v96 = vld [vmem:[%s1 + $0x160] sm:$0xff]
  %v97 = vld [vmem:[%s1 + $0x168] sm:$0xff]
  %v98 = vld [vmem:[%s1 + $0x170] sm:$0xff]
  %v99 = vld [vmem:[%s1 + $0x178] sm:$0xff]
  %v100 = vld [vmem:[%s1 + $0x180] sm:$0xff]
  %v101 = vld [vmem:[%s1 + $0x188] sm:$0xff]
  %v102 = vld [vmem:[%s1 + $0x190] sm:$0xff]
  %v103 = vld [vmem:[%s1 + $0x198] sm:$0xff]
  %v104 = vld [vmem:[%s1 + $0x1a0] sm:$0xff]
  %v105 = vld [vmem:[%s1 + $0x1a8] sm:$0xff]
  %v106 = vld [vmem:[%s1 + $0x1b0] sm:$0xff]
  %v107 = vld [vmem:[%s1 + $0x1b8] sm:$0xff]
  %v108 = vld [vmem:[%s1 + $0x1c0] sm:$0xff]
  %v109 = vld [vmem:[%s1 + $0x1c8] sm:$0xff]
  %v110 = vld [vmem:[%s1 + $0x1d0] sm:$0xff]
  %v111 = vld [vmem:[%s1 + $0x1d8] sm:$0xff]
  %v112 = vld [vmem:[%s1 + $0x1e0] sm:$0xff]
  %v113 = vld [vmem:[%s1 + $0x1e8] sm:$0xff]
  %v114 = vld [vmem:[%s1 + $0x1f0] sm:$0xff]
  %v115 = vld [vmem:[%s1 + $0x1f8] sm:$0xff]
  %v116 = vld [vmem:[%s1 + $0x200] sm:$0xff]
  %v117 = vld [vmem:[%s1 + $0x208] sm:$0xff]
  %v118 = vld [vmem:[%s1 + $0x210] sm:$0xff]
  %v119 = vld [vmem:[%s1 + $0x218] sm:$0xff]
  %v120 = vld [vmem:[%s1 + $0x220] sm:$0xff]
  %v121 = vld [vmem:[%s1 + $0x228] sm:$0xff]
  %v122 = vld [vmem:[%s1 + $0x230] sm:$0xff]
  %v123 = vld [vmem:[%s1 + $0x238] sm:$0xff]
  %v124 = vld [vmem:[%s1 + $0x240] sm:$0xff]
  %v125 = vld [vmem:[%s1 + $0x248] sm:$0xff]
  %v126 = vld [vmem:[%s1 + $0x250] sm:$0xff]
  %v127 = vld [vmem:[%s1 + $0x258] sm:$0xff]
  %v128 = vld [vmem:[%s1 + $0x260] sm:$0xff]
  %v129 = vld [vmem:[%s1 + $0x268] sm:$0xff]
  %v130 = vld [vmem:[%s1 + $0x270] sm:$0xff]
  %v131 = vld [vmem:[%s1 + $0x278] sm:$0xff]
  %v132 = vld [vmem:[%s1 + $0x280] sm:$0xff]
  %v133 = vld [vmem:[%s1 + $0x288] sm:$0xff]
  %v134 = vld [vmem:[%s1 + $0x290] sm:$0xff]
  %v135 = vld [vmem:[%s1 + $0x298] sm:$0xff]
  %v136 = vld [vmem:[%s1 + $0x2a0] sm:$0xff]
  %v137 = vld [vmem:[%s1 + $0x2a8] sm:$0xff]
  %v138 = vld [vmem:[%s1 + $0x2b0] sm:$0xff]
  %v139 = vld [vmem:[%s1 + $0x2b8] sm:$0xff]
  %v140 = vld [vmem:[%s1 + $0x2c0] sm:$0xff]
  %v141 = vld [vmem:[%s1 + $0x2c8] sm:$0xff]
  %v142 = vld [vmem:[%s1 + $0x2d0] sm:$0xff]
  %v143 = vld [vmem:[%s1 + $0x2d8] sm:$0xff]
  %v144 = vld [vmem:[%s1 + $0x2e0] sm:$0xff]
  %v145 = vld [vmem:[%s1 + $0x2e8] sm:$0xff]
  %v146 = vld [vmem:[%s1 + $0x2f0] sm:$0xff]
  %v147 = vld [vmem:[%s1 + $0x2f8] sm:$0xff]
  %v148 = vld [vmem:[%s1 + $0x300] sm:$0xff]
  %v149 = vld [vmem:[%s1 + $0x308] sm:$0xff]
  %v150 = vld [vmem:[%s1 + $0x310] sm:$0xff]
  %v151 = vld [vmem:[%s1 + $0x318] sm:$0xff]
  %v152 = vld [vmem:[%s1 + $0x320] sm:$0xff]
  %v153 = vld [vmem:[%s1 + $0x328] sm:$0xff]
  %v154 = vld [vmem:[%s1 + $0x330] sm:$0xff]
  %v155 = vld [vmem:[%s1 + $0x338] sm:$0xff]
  %v156 = vld [vmem:[%s1 + $0x340] sm:$0xff]
  %v157 = vld [vmem:[%s1 + $0x348] sm:$0xff]
  %v158 = vld [vmem:[%s1 + $0x350] sm:$0xff]
  %v159 = vld [vmem:[%s1 + $0x358] sm:$0xff]
  %v160 = vld [vmem:[%s1 + $0x360] sm:$0xff]
  %v161 = vld [vmem:[%s1 + $0x368] sm:$0xff]
  %v162 = vld [vmem:[%s1 + $0x370] sm:$0xff]
  %v163 = vld [vmem:[%s1 + $0x378] sm:$0xff]
  %v164 = vld [vmem:[%s1 + $0x380] sm:$0xff]
  %v165 = vld [vmem:[%s1 + $0x388] sm:$0xff]
  %v166 = vld [vmem:[%s1 + $0x390] sm:$0xff]
  %v167 = vld [vmem:[%s1 + $0x398] sm:$0xff]
  %v168 = vld [vmem:[%s1 + $0x3a0] sm:$0xff]
  %v169 = vld [vmem:[%s1 + $0x3a8] sm:$0xff]
  %v170 = vld [vmem:[%s1 + $0x3b0] sm:$0xff]
  %v171 = vld [vmem:[%s1 + $0x3b8] sm:$0xff]
  %v172 = vld [vmem:[%s1 + $0x3c0] sm:$0xff]
  %v173 = vld [vmem:[%s1 + $0x3c8] sm:$0xff]
  %v174 = vld [vmem:[%s1 + $0x3d0] sm:$0xff]
  %v175 = vld [vmem:[%s1 + $0x3d8] sm:$0xff]
  %v176 = vld [vmem:[%s1 + $0x3e0] sm:$0xff]
  %v177 = vld [vmem:[%s1 + $0x3e8] sm:$0xff]
  %v178 = vld [vmem:[%s1 + $0x3f0] sm:$0xff]
  %v179 = vld [vmem:[%s1 + $0x3f8] sm:$0xff]
  %v180 = vld [vmem:[%s1 + $0x400] sm:$0xff]
  %v181 = vld [vmem:[%s1 + $0x408] sm:$0xff]
  %v182 = vld [vmem:[%s1 + $0x410] sm:$0xff]
  %v183 = vld [vmem:[%s1 + $0x418] sm:$0xff]
  %v184 = vld [vmem:[%s1 + $0x420] sm:$0xff]
  %v185 = vld [vmem:[%s1 + $0x428] sm:$0xff]
  %v186 = vld [vmem:[%s1 + $0x430] sm:$0xff]
  %v187 = vld [vmem:[%s1 + $0x438] sm:$0xff]
  %v188 = vld [vmem:[%s1 + $0x440] sm:$0xff]
  %v189 = vld [vmem:[%s1 + $0x448] sm:$0xff]
  %v190 = vld [vmem:[%s1 + $0x450] sm:$0xff]
  %v191 = vld [vmem:[%s1 + $0x458] sm:$0xff]
  %v192 = vld [vmem:[%s1 + $0x460] sm:$0xff]
  %v193 = vld [vmem:[%s1 + $0x468] sm:$0xff]
  %v194 = vld [vmem:[%s1 + $0x470] sm:$0xff]
  %v195 = vld [vmem:[%s1 + $0x478] sm:$0xff]
  %v196 = vld [vmem:[%s1 + $0x480] sm:$0xff]
  %v197 = vld [vmem:[%s1 + $0x488] sm:$0xff]
  %v198 = vld [vmem:[%s1 + $0x490] sm:$0xff]
  %v199 = vld [vmem:[%s1 + $0x498] sm:$0xff]
  %v200 = vld [vmem:[%s1 + $0x4a0] sm:$0xff]
  %v201 = vld [vmem:[%s1 + $0x4a8] sm:$0xff]
  %v202 = vld [vmem:[%s1 + $0x4b0] sm:$0xff]
  %v203 = vld [vmem:[%s1 + $0x4b8] sm:$0xff]
  %v204 = vld [vmem:[%s1 + $0x4c0] sm:$0xff]
  %v205 = vld [vmem:[%s1 + $0x4c8] sm:$0xff]
  %v206 = vld [vmem:[%s1 + $0x4d0] sm:$0xff]
  %v207 = vld [vmem:[%s1 + $0x4d8] sm:$0xff]
  %v208 = vld [vmem:[%s1 + $0x4e0] sm:$0xff]
  %v209 = vld [vmem:[%s1 + $0x4e8] sm:$0xff]
  %v210 = vld [vmem:[%s1 + $0x4f0] sm:$0xff]
  %v211 = vld [vmem:[%s1 + $0x4f8] sm:$0xff]
  %v212 = vld [vmem:[%s1 + $0x500] sm:$0xff]
  %v213 = vld [vmem:[%s1 + $0x508] sm:$0xff]
  %v214 = vld [vmem:[%s1 + $0x510] sm:$0xff]
  %v215 = vld [vmem:[%s1 + $0x518] sm:$0xff]
  %v216 = vld [vmem:[%s1 + $0x520] sm:$0xff]
  %v217 = vld [vmem:[%s1 + $0x528] sm:$0xff]
  %v218 = vld [vmem:[%s1 + $0x530] sm:$0xff]
  %v219 = vld [vmem:[%s1 + $0x538] sm:$0xff]
  %v220 = vld [vmem:[%s1 + $0x540] sm:$0xff]
  %v221 = vld [vmem:[%s1 + $0x548] sm:$0xff]
  %v222 = vld [vmem:[%s1 + $0x550] sm:$0xff]
  %v223 = vld [vmem:[%s1 + $0x558] sm:$0xff]
  %v224 = vld [vmem:[%s1 + $0x560] sm:$0xff]
  %v225 = vld [vmem:[%s1 + $0x568] sm:$0xff]
  %v226 = vld [vmem:[%s1 + $0x570] sm:$0xff]
  %v227 = vld [vmem:[%s1 + $0x578] sm:$0xff]
  %v228 = vld [vmem:[%s1 + $0x580] sm:$0xff]
  %v229 = vld [vmem:[%s1 + $0x588] sm:$0xff]
  %v230 = vld [vmem:[%s1 + $0x590] sm:$0xff]
  %v231 = vld [vmem:[%s1 + $0x598] sm:$0xff]
  %v232 = vld [vmem:[%s1 + $0x5a0] sm:$0xff]
  %v233 = vld [vmem:[%s1 + $0x5a8] sm:$0xff]
  %v234 = vld [vmem:[%s1 + $0x5b0] sm:$0xff]
  %v235 = vld [vmem:[%s1 + $0x5b8] sm:$0xff]
  %v236 = vld [vmem:[%s1 + $0x5c0] sm:$0xff]
  %v237 = vld [vmem:[%s1 + $0x5c8] sm:$0xff]
  %v238 = vld [vmem:[%s1 + $0x5d0] sm:$0xff]
  %v239 = vld [vmem:[%s1 + $0x5d8] sm:$0xff]
  %v240 = vld [vmem:[%s1 + $0x5e0] sm:$0xff]
  %v241 = vld [vmem:[%s1 + $0x5e8] sm:$0xff]
  %v242 = vld [vmem:[%s1 + $0x5f0] sm:$0xff]
  %v243 = vld [vmem:[%s1 + $0x5f8] sm:$0xff]
  %v244 = vld [vmem:[%s1 + $0x600] sm:$0xff]
  %v245 = vld [vmem:[%s1 + $0x608] sm:$0xff]
  %v246 = vld [vmem:[%s1 + $0x610] sm:$0xff]
  %v247 = vld [vmem:[%s1 + $0x618] sm:$0xff]
  %v248 = vld [vmem:[%s1 + $0x620] sm:$0xff]
  %v249 = vld [vmem:[%s1 + $0x628] sm:$0xff]
  %v250 = vld [vmem:[%s1 + $0x630] sm:$0xff]
  %v251 = vld [vmem:[%s1 + $0x638] sm:$0xff]
  %v252 = vld [vmem:[%s1 + $0x640] sm:$0xff]
  %v253 = vld [vmem:[%s1 + $0x648] sm:$0xff]
  %v254 = vld [vmem:[%s1 + $0x650] sm:$0xff]
  %v255 = vld [vmem:[%s1 + $0x658] sm:$0xff]
  %v256 = vld [vmem:[%s1 + $0x660] sm:$0xff]
  %v257 = vld [vmem:[%s1 + $0x668] sm:$0xff]
  %v258 = vld [vmem:[%s1 + $0x670] sm:$0xff]
  %v259 = vld [vmem:[%s1 + $0x678] sm:$0xff]
  %v260 = vld [vmem:[%s1 + $0x680] sm:$0xff]
  %v261 = vld [vmem:[%s1 + $0x688] sm:$0xff]
  %v262 = vld [vmem:[%s1 + $0x690] sm:$0xff]
  %v263 = vld [vmem:[%s1 + $0x698] sm:$0xff]
  %v264 = vld [vmem:[%s1 + $0x6a0] sm:$0xff]
  %v265 = vld [vmem:[%s1 + $0x6a8] sm:$0xff]
  %v266 = vld [vmem:[%s1 + $0x6b0] sm:$0xff]
  %v267 = vld [vmem:[%s1 + $0x6b8] sm:$0xff]
  %v268 = vld [vmem:[%s1 + $0x6c0] sm:$0xff]
  %v269 = vld [vmem:[%s1 + $0x6c8] sm:$0xff]
  %v270 = vld [vmem:[%s1 + $0x6d0] sm:$0xff]
  %v271 = vld [vmem:[%s1 + $0x6d8] sm:$0xff]
  %v272 = vld [vmem:[%s1 + $0x6e0] sm:$0xff]
  %v273 = vld [vmem:[%s1 + $0x6e8] sm:$0xff]
  %v274 = vld [vmem:[%s1 + $0x6f0] sm:$0xff]
  %v275 = vld [vmem:[%s1 + $0x6f8] sm:$0xff]
  %v276 = vld [vmem:[%s1 + $0x700] sm:$0xff]
  %v277 = vld [vmem:[%s1 + $0x708] sm:$0xff]
  %v278 = vld [vmem:[%s1 + $0x710] sm:$0xff]
  %v279 = vld [vmem:[%s1 + $0x718] sm:$0xff]
  %v280 = vld [vmem:[%s1 + $0x720] sm:$0xff]
  %v281 = vld [vmem:[%s1 + $0x728] sm:$0xff]
  %v282 = vld [vmem:[%s1 + $0x730] sm:$0xff]
  %v283 = vld [vmem:[%s1 + $0x738] sm:$0xff]
  %v284 = vld [vmem:[%s1 + $0x740] sm:$0xff]
  %v285 = vld [vmem:[%s1 + $0x748] sm:$0xff]
  %v286 = vld [vmem:[%s1 + $0x750] sm:$0xff]
  %v287 = vld [vmem:[%s1 + $0x758] sm:$0xff]
  %v288 = vld [vmem:[%s1 + $0x760] sm:$0xff]
  %v289 = vld [vmem:[%s1 + $0x768] sm:$0xff]
  %v290 = vld [vmem:[%s1 + $0x770] sm:$0xff]
  %v291 = vld [vmem:[%s1 + $0x778] sm:$0xff]
  %v292 = vld [vmem:[%s1 + $0x780] sm:$0xff]
  %v293 = vld [vmem:[%s1 + $0x788] sm:$0xff]
  %v294 = vld [vmem:[%s1 + $0x790] sm:$0xff]
  %v295 = vld [vmem:[%s1 + $0x798] sm:$0xff]
  %v296 = vld [vmem:[%s1 + $0x7a0] sm:$0xff]
  %v297 = vld [vmem:[%s1 + $0x7a8] sm:$0xff]
  %v298 = vld [vmem:[%s1 + $0x7b0] sm:$0xff]
  %v299 = vld [vmem:[%s1 + $0x7b8] sm:$0xff]
  %v300 = vld [vmem:[%s1 + $0x7c0] sm:$0xff]
  %v301 = vld [vmem:[%s1 + $0x7c8] sm:$0xff]
  %v302 = vld [vmem:[%s1 + $0x7d0] sm:$0xff]
  %v303 = vld [vmem:[%s1 + $0x7d8] sm:$0xff]
  %v304 = vld [vmem:[%s1 + $0x7e0] sm:$0xff]
  %v305 = vld [vmem:[%s1 + $0x7e8] sm:$0xff]
  %v306 = vld [vmem:[%s1 + $0x7f0] sm:$0xff]
  %v307 = vld [vmem:[%s1 + $0x7f8] sm:$0xff]
  %v308 = vld [vmem:[%s1 + $0x800] sm:$0xff]
  %v309 = vld [vmem:[%s1 + $0x808] sm:$0xff]
  %v310 = vld [vmem:[%s1 + $0x810] sm:$0xff]
  %v311 = vld [vmem:[%s1 + $0x818] sm:$0xff]
  %v312 = vld [vmem:[%s1 + $0x820] sm:$0xff]
  %v313 = vld [vmem:[%s1 + $0x828] sm:$0xff]
  %v314 = vld [vmem:[%s1 + $0x830] sm:$0xff]
  %v315 = vld [vmem:[%s1 + $0x838] sm:$0xff]
  %v316 = vld [vmem:[%s1 + $0x840] sm:$0xff]
  %v317 = vld [vmem:[%s1 + $0x848] sm:$0xff]
  %v318 = vld [vmem:[%s1 + $0x850] sm:$0xff]
  %v319 = vld [vmem:[%s1 + $0x858] sm:$0xff]
  %v320 = vld [vmem:[%s1 + $0x860] sm:$0xff]
  %v321 = vld [vmem:[%s1 + $0x868] sm:$0xff]
  %v322 = vld [vmem:[%s1 + $0x870] sm:$0xff]
  %v323 = vld [vmem:[%s1 + $0x878] sm:$0xff]
  %v324 = vld [vmem:[%s1 + $0x880] sm:$0xff]
  %v325 = vld [vmem:[%s1 + $0x888] sm:$0xff]
  %v326 = vld [vmem:[%s1 + $0x890] sm:$0xff]
  %v327 = vld [vmem:[%s1 + $0x898] sm:$0xff]
  %v328 = vld [vmem:[%s1 + $0x8a0] sm:$0xff]
  %v329 = vld [vmem:[%s1 + $0x8a8] sm:$0xff]
  %v330 = vld [vmem:[%s1 + $0x8b0] sm:$0xff]
  %v331 = vld [vmem:[%s1 + $0x8b8] sm:$0xff]
  %v332 = vld [vmem:[%s1 + $0x8c0] sm:$0xff]
  %v333 = vld [vmem:[%s1 + $0x8c8] sm:$0xff]
  %v334 = vld [vmem:[%s1 + $0x8d0] sm:$0xff]
  %v335 = vld [vmem:[%s1 + $0x8d8] sm:$0xff]
  %v336 = vld [vmem:[%s1 + $0x8e0] sm:$0xff]
  %v337 = vld [vmem:[%s1 + $0x8e8] sm:$0xff]
  %v338 = vld [vmem:[%s1 + $0x8f0] sm:$0xff]
  %v339 = vld [vmem:[%s1 + $0x8f8] sm:$0xff]
  %v340 = vld [vmem:[%s1 + $0x900] sm:$0xff]
  %v341 = vld [vmem:[%s1 + $0x908] sm:$0xff]
  %v342 = vld [vmem:[%s1 + $0x910] sm:$0xff]
  %v343 = vld [vmem:[%s1 + $0x918] sm:$0xff]
  %v344 = vld [vmem:[%s1 + $0x920] sm:$0xff]
  %v345 = vld [vmem:[%s1 + $0x928] sm:$0xff]
  %v346 = vld [vmem:[%s1 + $0x930] sm:$0xff]
  %v347 = vld [vmem:[%s1 + $0x938] sm:$0xff]
  %v348 = vld [vmem:[%s1 + $0x940] sm:$0xff]
  %v349 = vld [vmem:[%s1 + $0x948] sm:$0xff]
  %v350 = vld [vmem:[%s1 + $0x950] sm:$0xff]
  %v351 = vld [vmem:[%s1 + $0x958] sm:$0xff]
  %v352 = vld [vmem:[%s1 + $0x960] sm:$0xff]
  %v353 = vld [vmem:[%s1 + $0x968] sm:$0xff]
  %v354 = vld [vmem:[%s1 + $0x970] sm:$0xff]
  %v355 = vld [vmem:[%s1 + $0x978] sm:$0xff]
  %v356 = vld [vmem:[%s1 + $0x980] sm:$0xff]
  %v357 = vld [vmem:[%s1 + $0x988] sm:$0xff]
  %v358 = vld [vmem:[%s1 + $0x990] sm:$0xff]
  %v359 = vld [vmem:[%s1 + $0x998] sm:$0xff]
  %v360 = vld [vmem:[%s1 + $0x9a0] sm:$0xff]
  %v361 = vld [vmem:[%s1 + $0x9a8] sm:$0xff]
  %v362 = vld [vmem:[%s1 + $0x9b0] sm:$0xff]
  %v363 = vld [vmem:[%s1 + $0x9b8] sm:$0xff]
  %v364 = vld [vmem:[%s1 + $0x9c0] sm:$0xff]
  %v365 = vld [vmem:[%s1 + $0x9c8] sm:$0xff]
  %v366 = vld [vmem:[%s1 + $0x9d0] sm:$0xff]
  %v367 = vld [vmem:[%s1 + $0x9d8] sm:$0xff]
  %v368 = vld [vmem:[%s1 + $0x9e0] sm:$0xff]
  %v369 = vld [vmem:[%s1 + $0x9e8] sm:$0xff]
  %v370 = vld [vmem:[%s1 + $0x9f0] sm:$0xff]
  %v371 = vld [vmem:[%s1 + $0x9f8] sm:$0xff]
  %v372 = vld [vmem:[%s1 + $0xa00] sm:$0xff]
  %v373 = vld [vmem:[%s1 + $0xa08] sm:$0xff]
  %v374 = vld [vmem:[%s1 + $0xa10] sm:$0xff]
  %v375 = vld [vmem:[%s1 + $0xa18] sm:$0xff]
  %v376 = vld [vmem:[%s1 + $0xa20] sm:$0xff]
  %v377 = vld [vmem:[%s1 + $0xa28] sm:$0xff]
  %v378 = vld [vmem:[%s1 + $0xa30] sm:$0xff]
  %v379 = vld [vmem:[%s1 + $0xa38] sm:$0xff]
  %v380 = vld [vmem:[%s1 + $0xa40] sm:$0xff]
  %v381 = vld [vmem:[%s1 + $0xa48] sm:$0xff]
  %v382 = vld [vmem:[%s1 + $0xa50] sm:$0xff]
  %v383 = vld [vmem:[%s1 + $0xa58] sm:$0xff]
  %v384 = vld [vmem:[%s1 + $0xa60] sm:$0xff]
  %v385 = vld [vmem:[%s1 + $0xa68] sm:$0xff]
  %v386 = vld [vmem:[%s1 + $0xa70] sm:$0xff]
  %v387 = vld [vmem:[%s1 + $0xa78] sm:$0xff]
  %v388 = vld [vmem:[%s1 + $0xa80] sm:$0xff]
  %v389 = vld [vmem:[%s1 + $0xa88] sm:$0xff]
  %v390 = vld [vmem:[%s1 + $0xa90] sm:$0xff]
  %v391 = vld [vmem:[%s1 + $0xa98] sm:$0xff]
  %v392 = vld [vmem:[%s1 + $0xaa0] sm:$0xff]
  %v393 = vld [vmem:[%s1 + $0xaa8] sm:$0xff]
  %v394 = vld [vmem:[%s1 + $0xab0] sm:$0xff]
  %v395 = vld [vmem:[%s1 + $0xab8] sm:$0xff]
  %v396 = vld [vmem:[%s1 + $0xac0] sm:$0xff]
  %v397 = vld [vmem:[%s1 + $0xac8] sm:$0xff]
  %v398 = vld [vmem:[%s1 + $0xad0] sm:$0xff]
  %v399 = vld [vmem:[%s1 + $0xad8] sm:$0xff]
  %v400 = vld [vmem:[%s1 + $0xae0] sm:$0xff]
  %v401 = vld [vmem:[%s1 + $0xae8] sm:$0xff]
  %v402 = vld [vmem:[%s1 + $0xaf0] sm:$0xff]
  %v403 = vld [vmem:[%s1 + $0xaf8] sm:$0xff]
  %v404 = vld [vmem:[%s1 + $0xb00] sm:$0xff]
  %v405 = vld [vmem:[%s1 + $0xb08] sm:$0xff]
  %v406 = vld [vmem:[%s1 + $0xb10] sm:$0xff]
  %v407 = vld [vmem:[%s1 + $0xb18] sm:$0xff]
  %v408 = vld [vmem:[%s1 + $0xb20] sm:$0xff]
  %v409 = vld [vmem:[%s1 + $0xb28] sm:$0xff]
  %v410 = vld [vmem:[%s1 + $0xb30] sm:$0xff]
  %v411 = vld [vmem:[%s1 + $0xb38] sm:$0xff]
  %v412 = vld [vmem:[%s1 + $0xb40] sm:$0xff]
  %v413 = vld [vmem:[%s1 + $0xb48] sm:$0xff]
  %v414 = vld [vmem:[%s1 + $0xb50] sm:$0xff]
  %v415 = vld [vmem:[%s1 + $0xb58] sm:$0xff]
  %v416 = vld [vmem:[%s1 + $0xb60] sm:$0xff]
  %v417 = vld [vmem:[%s1 + $0xb68] sm:$0xff]
  %v418 = vld [vmem:[%s1 + $0xb70] sm:$0xff]
  %v419 = vld [vmem:[%s1 + $0xb78] sm:$0xff]
  %v420 = vld [vmem:[%s1 + $0xb80] sm:$0xff]
  %v421 = vld [vmem:[%s1 + $0xb88] sm:$0xff]
  %v422 = vld [vmem:[%s1 + $0xb90] sm:$0xff]
  %v423 = vld [vmem:[%s1 + $0xb98] sm:$0xff]
  %v424 = vld [vmem:[%s1 + $0xba0] sm:$0xff]
  %v425 = vld [vmem:[%s1 + $0xba8] sm:$0xff]
  %v426 = vld [vmem:[%s1 + $0xbb0] sm:$0xff]
  %v427 = vld [vmem:[%s1 + $0xbb8] sm:$0xff]
  %v428 = vld [vmem:[%s1 + $0xbc0] sm:$0xff]
  %v429 = vld [vmem:[%s1 + $0xbc8] sm:$0xff]
  %v430 = vld [vmem:[%s1 + $0xbd0] sm:$0xff]
  %v431 = vld [vmem:[%s1 + $0xbd8] sm:$0xff]
  %v432 = vld [vmem:[%s1 + $0xbe0] sm:$0xff]
  %v433 = vld [vmem:[%s1 + $0xbe8] sm:$0xff]
  %v434 = vld [vmem:[%s1 + $0xbf0] sm:$0xff]
  %v435 = vld [vmem:[%s1 + $0xbf8] sm:$0xff]
  %v436 = vld [vmem:[%s1 + $0xc00] sm:$0xff]
  %v437 = vld [vmem:[%s1 + $0xc08] sm:$0xff]
  %v438 = vld [vmem:[%s1 + $0xc10] sm:$0xff]
  %v439 = vld [vmem:[%s1 + $0xc18] sm:$0xff]
  %v440 = vld [vmem:[%s1 + $0xc20] sm:$0xff]
  %v441 = vld [vmem:[%s1 + $0xc28] sm:$0xff]
  %v442 = vld [vmem:[%s1 + $0xc30] sm:$0xff]
  %v443 = vld [vmem:[%s1 + $0xc38] sm:$0xff]
  %v444 = vld [vmem:[%s1 + $0xc40] sm:$0xff]
  %v445 = vld [vmem:[%s1 + $0xc48] sm:$0xff]
  %v446 = vld [vmem:[%s1 + $0xc50] sm:$0xff]
  %v447 = vld [vmem:[%s1 + $0xc58] sm:$0xff]
  %v448 = vld [vmem:[%s1 + $0xc60] sm:$0xff]
  %v449 = vld [vmem:[%s1 + $0xc68] sm:$0xff]
  %v450 = vld [vmem:[%s1 + $0xc70] sm:$0xff]
  %v451 = vld [vmem:[%s1 + $0xc78] sm:$0xff]
  %v452 = vld [vmem:[%s2] sm:$0x3]
  %v454 = vperm.slane %v452, 0
  %v455 = vperm.slane %v452, 1
  %v484 = vunpack.c.l.b16 %v26
  %v485 = vunpack.c.h.b16 %v26
  %v486 = vunpack.c.l.b16 %v27
  %v487 = vunpack.c.h.b16 %v27
  %v488 = vunpack.c.l.b16 %v28
  %v489 = vunpack.c.h.b16 %v28
  %v490 = vunpack.c.l.b16 %v29
  %v491 = vunpack.c.h.b16 %v29
  %v492 = vunpack.c.l.b16 %v30
  %v493 = vunpack.c.h.b16 %v30
  %v494 = vunpack.c.l.b16 %v31
  %v495 = vunpack.c.h.b16 %v31
  %v496 = vunpack.c.l.b16 %v32
  %v497 = vunpack.c.h.b16 %v32
  %v498 = vunpack.c.l.b16 %v33
  %v499 = vunpack.c.h.b16 %v33
  %v500 = vunpack.c.l.b16 %v34
  %v501 = vunpack.c.h.b16 %v34
  %v502 = vunpack.c.l.b16 %v35
  %v503 = vunpack.c.h.b16 %v35
  %v504 = vunpack.c.l.b16 %v36
  %v505 = vunpack.c.h.b16 %v36
  %v506 = vunpack.c.l.b16 %v37
  %v507 = vunpack.c.h.b16 %v37
  %v508 = vunpack.c.l.b16 %v38
  %v509 = vunpack.c.l.b16 %v39
  %v510 = vunpack.c.h.b16 %v39
  %v511 = vunpack.c.l.b16 %v40
  %v512 = vunpack.c.h.b16 %v40
  %v513 = vunpack.c.l.b16 %v41
  %v514 = vunpack.c.h.b16 %v41
  %v515 = vunpack.c.l.b16 %v42
  %v516 = vunpack.c.h.b16 %v42
  %v517 = vunpack.c.l.b16 %v43
  %v518 = vunpack.c.h.b16 %v43
  %v519 = vunpack.c.l.b16 %v44
  %v520 = vunpack.c.h.b16 %v44
  %v521 = vunpack.c.l.b16 %v45
  %v522 = vunpack.c.h.b16 %v45
  %v523 = vunpack.c.l.b16 %v46
  %v524 = vunpack.c.h.b16 %v46
  %v525 = vunpack.c.l.b16 %v47
  %v526 = vunpack.c.h.b16 %v47
  %v527 = vunpack.c.l.b16 %v48
  %v528 = vunpack.c.h.b16 %v48
  %v529 = vunpack.c.l.b16 %v49
  %v530 = vunpack.c.h.b16 %v49
  %v531 = vunpack.c.l.b16 %v50
  %v532 = vunpack.c.h.b16 %v50
  %v533 = vunpack.c.l.b16 %v51
  %v534 = vpack.c.b16 %v509, %v484
  %v535 = vpack.c.b16 %v510, %v485
  %v536 = vpack.c.b16 %v511, %v486
  %v537 = vpack.c.b16 %v512, %v487
  %v538 = vpack.c.b16 %v513, %v488
  %v539 = vpack.c.b16 %v514, %v489
  %v540 = vpack.c.b16 %v515, %v490
  %v541 = vpack.c.b16 %v516, %v491
  %v542 = vpack.c.b16 %v517, %v492
  %v543 = vpack.c.b16 %v518, %v493
  %v544 = vpack.c.b16 %v519, %v494
  %v545 = vpack.c.b16 %v520, %v495
  %v546 = vpack.c.b16 %v521, %v496
  %v547 = vpack.c.b16 %v522, %v497
  %v548 = vpack.c.b16 %v523, %v498
  %v549 = vpack.c.b16 %v524, %v499
  %v550 = vpack.c.b16 %v525, %v500
  %v551 = vpack.c.b16 %v526, %v501
  %v552 = vpack.c.b16 %v527, %v502
  %v553 = vpack.c.b16 %v528, %v503
  %v554 = vpack.c.b16 %v529, %v504
  %v555 = vpack.c.b16 %v530, %v505
  %v556 = vpack.c.b16 %v531, %v506
  %v557 = vpack.c.b16 %v532, %v507
  %v558 = vpack.c.b16 %v533, %v508
  %v984 = vunpack.c.l.b16 %v52
  %v985 = vunpack.c.h.b16 %v52
  %v986 = vunpack.c.l.b16 %v53
  %v987 = vunpack.c.h.b16 %v53
  %v988 = vunpack.c.l.b16 %v54
  %v989 = vunpack.c.h.b16 %v54
  %v990 = vunpack.c.l.b16 %v55
  %v991 = vunpack.c.h.b16 %v55
  %v992 = vunpack.c.l.b16 %v56
  %v993 = vunpack.c.h.b16 %v56
  %v994 = vunpack.c.l.b16 %v57
  %v995 = vunpack.c.h.b16 %v57
  %v996 = vunpack.c.l.b16 %v58
  %v997 = vunpack.c.h.b16 %v58
  %v998 = vunpack.c.l.b16 %v59
  %v999 = vunpack.c.h.b16 %v59
  %v1000 = vunpack.c.l.b16 %v60
  %v1001 = vunpack.c.h.b16 %v60
  %v1002 = vunpack.c.l.b16 %v61
  %v1003 = vunpack.c.h.b16 %v61
  %v1004 = vunpack.c.l.b16 %v62
  %v1005 = vunpack.c.h.b16 %v62
  %v1006 = vunpack.c.l.b16 %v63
  %v1007 = vunpack.c.h.b16 %v63
  %v1008 = vunpack.c.l.b16 %v64
  %v1009 = vunpack.c.h.b16 %v64
  %v1010 = vunpack.c.l.b16 %v65
  %v1011 = vunpack.c.h.b16 %v65
  %v1012 = vunpack.c.l.b16 %v66
  %v1013 = vunpack.c.h.b16 %v66
  %v1014 = vunpack.c.l.b16 %v67
  %v1015 = vunpack.c.h.b16 %v67
  %v1016 = vunpack.c.l.b16 %v68
  %v1017 = vunpack.c.h.b16 %v68
  %v1018 = vunpack.c.l.b16 %v69
  %v1019 = vunpack.c.h.b16 %v69
  %v1020 = vunpack.c.l.b16 %v70
  %v1021 = vunpack.c.h.b16 %v70
  %v1022 = vunpack.c.l.b16 %v71
  %v1023 = vunpack.c.h.b16 %v71
  %v1024 = vunpack.c.l.b16 %v72
  %v1025 = vunpack.c.h.b16 %v72
  %v1026 = vunpack.c.l.b16 %v73
  %v1027 = vunpack.c.h.b16 %v73
  %v1028 = vunpack.c.l.b16 %v74
  %v1029 = vunpack.c.h.b16 %v74
  %v1030 = vunpack.c.l.b16 %v75
  %v1031 = vunpack.c.h.b16 %v75
  %v1032 = vunpack.c.l.b16 %v76
  %v1033 = vunpack.c.h.b16 %v76
  %v1034 = vunpack.c.l.b16 %v77
  %v1035 = vunpack.c.h.b16 %v77
  %v1036 = vunpack.c.l.b16 %v78
  %v1037 = vunpack.c.h.b16 %v78
  %v1038 = vunpack.c.l.b16 %v79
  %v1039 = vunpack.c.h.b16 %v79
  %v1040 = vunpack.c.l.b16 %v80
  %v1041 = vunpack.c.h.b16 %v80
  %v1042 = vunpack.c.l.b16 %v81
  %v1043 = vunpack.c.h.b16 %v81
  %v1044 = vunpack.c.l.b16 %v82
  %v1045 = vunpack.c.h.b16 %v82
  %v1046 = vunpack.c.l.b16 %v83
  %v1047 = vunpack.c.h.b16 %v83
  %v1048 = vunpack.c.l.b16 %v84
  %v1049 = vunpack.c.h.b16 %v84
  %v1050 = vunpack.c.l.b16 %v85
  %v1051 = vunpack.c.h.b16 %v85
  %v1052 = vunpack.c.l.b16 %v86
  %v1053 = vunpack.c.h.b16 %v86
  %v1054 = vunpack.c.l.b16 %v87
  %v1055 = vunpack.c.h.b16 %v87
  %v1056 = vunpack.c.l.b16 %v88
  %v1057 = vunpack.c.h.b16 %v88
  %v1058 = vunpack.c.l.b16 %v89
  %v1059 = vunpack.c.h.b16 %v89
  %v1060 = vunpack.c.l.b16 %v90
  %v1061 = vunpack.c.h.b16 %v90
  %v1062 = vunpack.c.l.b16 %v91
  %v1063 = vunpack.c.h.b16 %v91
  %v1064 = vunpack.c.l.b16 %v92
  %v1065 = vunpack.c.h.b16 %v92
  %v1066 = vunpack.c.l.b16 %v93
  %v1067 = vunpack.c.h.b16 %v93
  %v1068 = vunpack.c.l.b16 %v94
  %v1069 = vunpack.c.h.b16 %v94
  %v1070 = vunpack.c.l.b16 %v95
  %v1071 = vunpack.c.h.b16 %v95
  %v1072 = vunpack.c.l.b16 %v96
  %v1073 = vunpack.c.h.b16 %v96
  %v1074 = vunpack.c.l.b16 %v97
  %v1075 = vunpack.c.h.b16 %v97
  %v1076 = vunpack.c.l.b16 %v98
  %v1077 = vunpack.c.h.b16 %v98
  %v1078 = vunpack.c.l.b16 %v99
  %v1079 = vunpack.c.h.b16 %v99
  %v1080 = vunpack.c.l.b16 %v100
  %v1081 = vunpack.c.h.b16 %v100
  %v1082 = vunpack.c.l.b16 %v101
  %v1083 = vunpack.c.h.b16 %v101
  %v1084 = vunpack.c.l.b16 %v102
  %v1085 = vunpack.c.h.b16 %v102
  %v1086 = vunpack.c.l.b16 %v103
  %v1087 = vunpack.c.h.b16 %v103
  %v1088 = vunpack.c.l.b16 %v104
  %v1089 = vunpack.c.h.b16 %v104
  %v1090 = vunpack.c.l.b16 %v105
  %v1091 = vunpack.c.h.b16 %v105
  %v1092 = vunpack.c.l.b16 %v106
  %v1093 = vunpack.c.h.b16 %v106
  %v1094 = vunpack.c.l.b16 %v107
  %v1095 = vunpack.c.h.b16 %v107
  %v1096 = vunpack.c.l.b16 %v108
  %v1097 = vunpack.c.h.b16 %v108
  %v1098 = vunpack.c.l.b16 %v109
  %v1099 = vunpack.c.h.b16 %v109
  %v1100 = vunpack.c.l.b16 %v110
  %v1101 = vunpack.c.h.b16 %v110
  %v1102 = vunpack.c.l.b16 %v111
  %v1103 = vunpack.c.h.b16 %v111
  %v1104 = vunpack.c.l.b16 %v112
  %v1105 = vunpack.c.h.b16 %v112
  %v1106 = vunpack.c.l.b16 %v113
  %v1107 = vunpack.c.h.b16 %v113
  %v1108 = vunpack.c.l.b16 %v114
  %v1109 = vunpack.c.h.b16 %v114
  %v1110 = vunpack.c.l.b16 %v115
  %v1111 = vunpack.c.h.b16 %v115
  %v1112 = vunpack.c.l.b16 %v116
  %v1113 = vunpack.c.h.b16 %v116
  %v1114 = vunpack.c.l.b16 %v117
  %v1115 = vunpack.c.h.b16 %v117
  %v1116 = vunpack.c.l.b16 %v118
  %v1117 = vunpack.c.h.b16 %v118
  %v1118 = vunpack.c.l.b16 %v119
  %v1119 = vunpack.c.h.b16 %v119
  %v1120 = vunpack.c.l.b16 %v120
  %v1121 = vunpack.c.h.b16 %v120
  %v1122 = vunpack.c.l.b16 %v121
  %v1123 = vunpack.c.h.b16 %v121
  %v1124 = vunpack.c.l.b16 %v122
  %v1125 = vunpack.c.h.b16 %v122
  %v1126 = vunpack.c.l.b16 %v123
  %v1127 = vunpack.c.h.b16 %v123
  %v1128 = vunpack.c.l.b16 %v124
  %v1129 = vunpack.c.h.b16 %v124
  %v1130 = vunpack.c.l.b16 %v125
  %v1131 = vunpack.c.h.b16 %v125
  %v1132 = vunpack.c.l.b16 %v126
  %v1133 = vunpack.c.h.b16 %v126
  %v1134 = vunpack.c.l.b16 %v127
  %v1135 = vunpack.c.h.b16 %v127
  %v1136 = vunpack.c.l.b16 %v128
  %v1137 = vunpack.c.h.b16 %v128
  %v1138 = vunpack.c.l.b16 %v129
  %v1139 = vunpack.c.h.b16 %v129
  %v1140 = vunpack.c.l.b16 %v130
  %v1141 = vunpack.c.h.b16 %v130
  %v1142 = vunpack.c.l.b16 %v131
  %v1143 = vunpack.c.h.b16 %v131
  %v1144 = vunpack.c.l.b16 %v132
  %v1145 = vunpack.c.h.b16 %v132
  %v1146 = vunpack.c.l.b16 %v133
  %v1147 = vunpack.c.h.b16 %v133
  %v1148 = vunpack.c.l.b16 %v134
  %v1149 = vunpack.c.h.b16 %v134
  %v1150 = vunpack.c.l.b16 %v135
  %v1151 = vunpack.c.h.b16 %v135
  %v1152 = vunpack.c.l.b16 %v136
  %v1153 = vunpack.c.h.b16 %v136
  %v1154 = vunpack.c.l.b16 %v137
  %v1155 = vunpack.c.h.b16 %v137
  %v1156 = vunpack.c.l.b16 %v138
  %v1157 = vunpack.c.h.b16 %v138
  %v1158 = vunpack.c.l.b16 %v139
  %v1159 = vunpack.c.h.b16 %v139
  %v1160 = vunpack.c.l.b16 %v140
  %v1161 = vunpack.c.h.b16 %v140
  %v1162 = vunpack.c.l.b16 %v141
  %v1163 = vunpack.c.h.b16 %v141
  %v1164 = vunpack.c.l.b16 %v142
  %v1165 = vunpack.c.h.b16 %v142
  %v1166 = vunpack.c.l.b16 %v143
  %v1167 = vunpack.c.h.b16 %v143
  %v1168 = vunpack.c.l.b16 %v144
  %v1169 = vunpack.c.h.b16 %v144
  %v1170 = vunpack.c.l.b16 %v145
  %v1171 = vunpack.c.h.b16 %v145
  %v1172 = vunpack.c.l.b16 %v146
  %v1173 = vunpack.c.h.b16 %v146
  %v1174 = vunpack.c.l.b16 %v147
  %v1175 = vunpack.c.h.b16 %v147
  %v1176 = vunpack.c.l.b16 %v148
  %v1177 = vunpack.c.h.b16 %v148
  %v1178 = vunpack.c.l.b16 %v149
  %v1179 = vunpack.c.h.b16 %v149
  %v1180 = vunpack.c.l.b16 %v150
  %v1181 = vunpack.c.h.b16 %v150
  %v1182 = vunpack.c.l.b16 %v151
  %v1183 = vunpack.c.h.b16 %v151
  %v1184 = vunpack.c.l.b16 %v152
  %v1185 = vunpack.c.h.b16 %v152
  %v1186 = vunpack.c.l.b16 %v153
  %v1187 = vunpack.c.h.b16 %v153
  %v1188 = vunpack.c.l.b16 %v154
  %v1189 = vunpack.c.h.b16 %v154
  %v1190 = vunpack.c.l.b16 %v155
  %v1191 = vunpack.c.h.b16 %v155
  %v1192 = vunpack.c.l.b16 %v156
  %v1193 = vunpack.c.h.b16 %v156
  %v1194 = vunpack.c.l.b16 %v157
  %v1195 = vunpack.c.h.b16 %v157
  %v1196 = vunpack.c.l.b16 %v158
  %v1197 = vunpack.c.h.b16 %v158
  %v1198 = vunpack.c.l.b16 %v159
  %v1199 = vunpack.c.h.b16 %v159
  %v1200 = vunpack.c.l.b16 %v160
  %v1201 = vunpack.c.h.b16 %v160
  %v1202 = vunpack.c.l.b16 %v161
  %v1203 = vunpack.c.h.b16 %v161
  %v1204 = vunpack.c.l.b16 %v162
  %v1205 = vunpack.c.h.b16 %v162
  %v1206 = vunpack.c.l.b16 %v163
  %v1207 = vunpack.c.h.b16 %v163
  %v1208 = vunpack.c.l.b16 %v164
  %v1209 = vunpack.c.h.b16 %v164
  %v1210 = vunpack.c.l.b16 %v165
  %v1211 = vunpack.c.h.b16 %v165
  %v1212 = vunpack.c.l.b16 %v166
  %v1213 = vunpack.c.h.b16 %v166
  %v1214 = vunpack.c.l.b16 %v167
  %v1215 = vunpack.c.h.b16 %v167
  %v1216 = vunpack.c.l.b16 %v168
  %v1217 = vunpack.c.h.b16 %v168
  %v1218 = vunpack.c.l.b16 %v169
  %v1219 = vunpack.c.h.b16 %v169
  %v1220 = vunpack.c.l.b16 %v170
  %v1221 = vunpack.c.h.b16 %v170
  %v1222 = vunpack.c.l.b16 %v171
  %v1223 = vunpack.c.h.b16 %v171
  %v1224 = vunpack.c.l.b16 %v172
  %v1225 = vunpack.c.h.b16 %v172
  %v1226 = vunpack.c.l.b16 %v173
  %v1227 = vunpack.c.h.b16 %v173
  %v1228 = vunpack.c.l.b16 %v174
  %v1229 = vunpack.c.h.b16 %v174
  %v1230 = vunpack.c.l.b16 %v175
  %v1231 = vunpack.c.h.b16 %v175
  %v1232 = vunpack.c.l.b16 %v176
  %v1233 = vunpack.c.h.b16 %v176
  %v1234 = vunpack.c.l.b16 %v177
  %v1235 = vunpack.c.h.b16 %v177
  %v1236 = vunpack.c.l.b16 %v178
  %v1237 = vunpack.c.h.b16 %v178
  %v1238 = vunpack.c.l.b16 %v179
  %v1239 = vunpack.c.h.b16 %v179
  %v1240 = vunpack.c.l.b16 %v180
  %v1241 = vunpack.c.h.b16 %v180
  %v1242 = vunpack.c.l.b16 %v181
  %v1243 = vunpack.c.h.b16 %v181
  %v1244 = vunpack.c.l.b16 %v182
  %v1245 = vunpack.c.h.b16 %v182
  %v1246 = vunpack.c.l.b16 %v183
  %v1247 = vunpack.c.h.b16 %v183
  %v1248 = vunpack.c.l.b16 %v184
  %v1249 = vunpack.c.h.b16 %v184
  %v1250 = vunpack.c.l.b16 %v185
  %v1251 = vunpack.c.h.b16 %v185
  %v1252 = vunpack.c.l.b16 %v186
  %v1253 = vunpack.c.h.b16 %v186
  %v1254 = vunpack.c.l.b16 %v187
  %v1255 = vunpack.c.h.b16 %v187
  %v1256 = vunpack.c.l.b16 %v188
  %v1257 = vunpack.c.h.b16 %v188
  %v1258 = vunpack.c.l.b16 %v189
  %v1259 = vunpack.c.h.b16 %v189
  %v1260 = vunpack.c.l.b16 %v190
  %v1261 = vunpack.c.h.b16 %v190
  %v1262 = vunpack.c.l.b16 %v191
  %v1263 = vunpack.c.h.b16 %v191
  %v1264 = vunpack.c.l.b16 %v192
  %v1265 = vunpack.c.h.b16 %v192
  %v1266 = vunpack.c.l.b16 %v193
  %v1267 = vunpack.c.h.b16 %v193
  %v1268 = vunpack.c.l.b16 %v194
  %v1269 = vunpack.c.h.b16 %v194
  %v1270 = vunpack.c.l.b16 %v195
  %v1271 = vunpack.c.h.b16 %v195
  %v1272 = vunpack.c.l.b16 %v196
  %v1273 = vunpack.c.h.b16 %v196
  %v1274 = vunpack.c.l.b16 %v197
  %v1275 = vunpack.c.h.b16 %v197
  %v1276 = vunpack.c.l.b16 %v198
  %v1277 = vunpack.c.h.b16 %v198
  %v1278 = vunpack.c.l.b16 %v199
  %v1279 = vunpack.c.h.b16 %v199
  %v1280 = vunpack.c.l.b16 %v200
  %v1281 = vunpack.c.h.b16 %v200
  %v1282 = vunpack.c.l.b16 %v201
  %v1283 = vunpack.c.h.b16 %v201
  %v1284 = vunpack.c.l.b16 %v202
  %v1285 = vunpack.c.h.b16 %v202
  %v1286 = vunpack.c.l.b16 %v203
  %v1287 = vunpack.c.h.b16 %v203
  %v1288 = vunpack.c.l.b16 %v204
  %v1289 = vunpack.c.h.b16 %v204
  %v1290 = vunpack.c.l.b16 %v205
  %v1291 = vunpack.c.h.b16 %v205
  %v1292 = vunpack.c.l.b16 %v206
  %v1293 = vunpack.c.h.b16 %v206
  %v1294 = vunpack.c.l.b16 %v207
  %v1295 = vunpack.c.h.b16 %v207
  %v1296 = vunpack.c.l.b16 %v208
  %v1297 = vunpack.c.h.b16 %v208
  %v1298 = vunpack.c.l.b16 %v209
  %v1299 = vunpack.c.h.b16 %v209
  %v1300 = vunpack.c.l.b16 %v210
  %v1301 = vunpack.c.h.b16 %v210
  %v1302 = vunpack.c.l.b16 %v211
  %v1303 = vunpack.c.h.b16 %v211
  %v1304 = vunpack.c.l.b16 %v212
  %v1305 = vunpack.c.h.b16 %v212
  %v1306 = vunpack.c.l.b16 %v213
  %v1307 = vunpack.c.h.b16 %v213
  %v1308 = vunpack.c.l.b16 %v214
  %v1309 = vunpack.c.h.b16 %v214
  %v1310 = vunpack.c.l.b16 %v215
  %v1311 = vunpack.c.h.b16 %v215
  %v1312 = vunpack.c.l.b16 %v216
  %v1313 = vunpack.c.h.b16 %v216
  %v1314 = vunpack.c.l.b16 %v217
  %v1315 = vunpack.c.h.b16 %v217
  %v1316 = vunpack.c.l.b16 %v218
  %v1317 = vunpack.c.h.b16 %v218
  %v1318 = vunpack.c.l.b16 %v219
  %v1319 = vunpack.c.h.b16 %v219
  %v1320 = vunpack.c.l.b16 %v220
  %v1321 = vunpack.c.h.b16 %v220
  %v1322 = vunpack.c.l.b16 %v221
  %v1323 = vunpack.c.h.b16 %v221
  %v1324 = vunpack.c.l.b16 %v222
  %v1325 = vunpack.c.h.b16 %v222
  %v1326 = vunpack.c.l.b16 %v223
  %v1327 = vunpack.c.h.b16 %v223
  %v1328 = vunpack.c.l.b16 %v224
  %v1329 = vunpack.c.h.b16 %v224
  %v1330 = vunpack.c.l.b16 %v225
  %v1331 = vunpack.c.h.b16 %v225
  %v1332 = vunpack.c.l.b16 %v226
  %v1333 = vunpack.c.h.b16 %v226
  %v1334 = vunpack.c.l.b16 %v227
  %v1335 = vunpack.c.h.b16 %v227
  %v1336 = vunpack.c.l.b16 %v228
  %v1337 = vunpack.c.h.b16 %v228
  %v1338 = vunpack.c.l.b16 %v229
  %v1339 = vunpack.c.h.b16 %v229
  %v1340 = vunpack.c.l.b16 %v230
  %v1341 = vunpack.c.h.b16 %v230
  %v1342 = vunpack.c.l.b16 %v231
  %v1343 = vunpack.c.h.b16 %v231
  %v1344 = vunpack.c.l.b16 %v232
  %v1345 = vunpack.c.h.b16 %v232
  %v1346 = vunpack.c.l.b16 %v233
  %v1347 = vunpack.c.h.b16 %v233
  %v1348 = vunpack.c.l.b16 %v234
  %v1349 = vunpack.c.h.b16 %v234
  %v1350 = vunpack.c.l.b16 %v235
  %v1351 = vunpack.c.h.b16 %v235
  %v1352 = vunpack.c.l.b16 %v236
  %v1353 = vunpack.c.h.b16 %v236
  %v1354 = vunpack.c.l.b16 %v237
  %v1355 = vunpack.c.h.b16 %v237
  %v1356 = vunpack.c.l.b16 %v238
  %v1357 = vunpack.c.h.b16 %v238
  %v1358 = vunpack.c.l.b16 %v239
  %v1359 = vunpack.c.h.b16 %v239
  %v1360 = vunpack.c.l.b16 %v240
  %v1361 = vunpack.c.h.b16 %v240
  %v1362 = vunpack.c.l.b16 %v241
  %v1363 = vunpack.c.h.b16 %v241
  %v1364 = vunpack.c.l.b16 %v242
  %v1365 = vunpack.c.h.b16 %v242
  %v1366 = vunpack.c.l.b16 %v243
  %v1367 = vunpack.c.h.b16 %v243
  %v1368 = vunpack.c.l.b16 %v244
  %v1369 = vunpack.c.h.b16 %v244
  %v1370 = vunpack.c.l.b16 %v245
  %v1371 = vunpack.c.h.b16 %v245
  %v1372 = vunpack.c.l.b16 %v246
  %v1373 = vunpack.c.h.b16 %v246
  %v1374 = vunpack.c.l.b16 %v247
  %v1375 = vunpack.c.h.b16 %v247
  %v1376 = vunpack.c.l.b16 %v248
  %v1377 = vunpack.c.h.b16 %v248
  %v1378 = vunpack.c.l.b16 %v249
  %v1379 = vunpack.c.h.b16 %v249
  %v1380 = vunpack.c.l.b16 %v250
  %v1381 = vunpack.c.h.b16 %v250
  %v1382 = vunpack.c.l.b16 %v251
  %v1383 = vunpack.c.h.b16 %v251
  %v1384 = vunpack.c.l.b16 %v252
  %v1385 = vunpack.c.h.b16 %v252
  %v1386 = vunpack.c.l.b16 %v253
  %v1387 = vunpack.c.h.b16 %v253
  %v1388 = vunpack.c.l.b16 %v254
  %v1389 = vunpack.c.h.b16 %v254
  %v1390 = vunpack.c.l.b16 %v255
  %v1391 = vunpack.c.h.b16 %v255
  %v1392 = vunpack.c.l.b16 %v256
  %v1393 = vunpack.c.h.b16 %v256
  %v1394 = vunpack.c.l.b16 %v257
  %v1395 = vunpack.c.h.b16 %v257
  %v1396 = vunpack.c.l.b16 %v258
  %v1397 = vunpack.c.h.b16 %v258
  %v1398 = vunpack.c.l.b16 %v259
  %v1399 = vunpack.c.h.b16 %v259
  %v1400 = vunpack.c.l.b16 %v260
  %v1401 = vunpack.c.h.b16 %v260
  %v1402 = vunpack.c.l.b16 %v261
  %v1403 = vunpack.c.h.b16 %v261
  %v1404 = vunpack.c.l.b16 %v262
  %v1405 = vunpack.c.h.b16 %v262
  %v1406 = vunpack.c.l.b16 %v263
  %v1407 = vunpack.c.h.b16 %v263
  %v1408 = vunpack.c.l.b16 %v264
  %v1409 = vunpack.c.h.b16 %v264
  %v1410 = vunpack.c.l.b16 %v265
  %v1411 = vunpack.c.h.b16 %v265
  %v1412 = vunpack.c.l.b16 %v266
  %v1413 = vunpack.c.h.b16 %v266
  %v1414 = vunpack.c.l.b16 %v267
  %v1415 = vunpack.c.h.b16 %v267
  %v1416 = vunpack.c.l.b16 %v268
  %v1417 = vunpack.c.h.b16 %v268
  %v1418 = vunpack.c.l.b16 %v269
  %v1419 = vunpack.c.h.b16 %v269
  %v1420 = vunpack.c.l.b16 %v270
  %v1421 = vunpack.c.h.b16 %v270
  %v1422 = vunpack.c.l.b16 %v271
  %v1423 = vunpack.c.h.b16 %v271
  %v1424 = vunpack.c.l.b16 %v272
  %v1425 = vunpack.c.h.b16 %v272
  %v1426 = vunpack.c.l.b16 %v273
  %v1427 = vunpack.c.h.b16 %v273
  %v1428 = vunpack.c.l.b16 %v274
  %v1429 = vunpack.c.h.b16 %v274
  %v1430 = vunpack.c.l.b16 %v275
  %v1431 = vunpack.c.h.b16 %v275
  %v1432 = vunpack.c.l.b16 %v276
  %v1433 = vunpack.c.h.b16 %v276
  %v1434 = vunpack.c.l.b16 %v277
  %v1435 = vunpack.c.h.b16 %v277
  %v1436 = vunpack.c.l.b16 %v278
  %v1437 = vunpack.c.h.b16 %v278
  %v1438 = vunpack.c.l.b16 %v279
  %v1439 = vunpack.c.h.b16 %v279
  %v1440 = vunpack.c.l.b16 %v280
  %v1441 = vunpack.c.h.b16 %v280
  %v1442 = vunpack.c.l.b16 %v281
  %v1443 = vunpack.c.h.b16 %v281
  %v1444 = vunpack.c.l.b16 %v282
  %v1445 = vunpack.c.h.b16 %v282
  %v1446 = vunpack.c.l.b16 %v283
  %v1447 = vunpack.c.h.b16 %v283
  %v1448 = vunpack.c.l.b16 %v284
  %v1449 = vunpack.c.h.b16 %v284
  %v1450 = vunpack.c.l.b16 %v285
  %v1451 = vunpack.c.h.b16 %v285
  %v1452 = vunpack.c.l.b16 %v286
  %v1453 = vunpack.c.h.b16 %v286
  %v1454 = vunpack.c.l.b16 %v287
  %v1455 = vunpack.c.h.b16 %v287
  %v1456 = vunpack.c.l.b16 %v288
  %v1457 = vunpack.c.h.b16 %v288
  %v1458 = vunpack.c.l.b16 %v289
  %v1459 = vunpack.c.h.b16 %v289
  %v1460 = vunpack.c.l.b16 %v290
  %v1461 = vunpack.c.h.b16 %v290
  %v1462 = vunpack.c.l.b16 %v291
  %v1463 = vunpack.c.h.b16 %v291
  %v1464 = vunpack.c.l.b16 %v292
  %v1465 = vunpack.c.h.b16 %v292
  %v1466 = vunpack.c.l.b16 %v293
  %v1467 = vunpack.c.h.b16 %v293
  %v1468 = vunpack.c.l.b16 %v294
  %v1469 = vunpack.c.h.b16 %v294
  %v1470 = vunpack.c.l.b16 %v295
  %v1471 = vunpack.c.h.b16 %v295
  %v1472 = vunpack.c.l.b16 %v296
  %v1473 = vunpack.c.h.b16 %v296
  %v1474 = vunpack.c.l.b16 %v297
  %v1475 = vunpack.c.h.b16 %v297
  %v1476 = vunpack.c.l.b16 %v298
  %v1477 = vunpack.c.h.b16 %v298
  %v1478 = vunpack.c.l.b16 %v299
  %v1479 = vunpack.c.h.b16 %v299
  %v1480 = vunpack.c.l.b16 %v300
  %v1481 = vunpack.c.h.b16 %v300
  %v1482 = vunpack.c.l.b16 %v301
  %v1483 = vunpack.c.h.b16 %v301
  %v1484 = vunpack.c.l.b16 %v302
  %v1485 = vunpack.c.h.b16 %v302
  %v1486 = vunpack.c.l.b16 %v303
  %v1487 = vunpack.c.h.b16 %v303
  %v1488 = vunpack.c.l.b16 %v304
  %v1489 = vunpack.c.h.b16 %v304
  %v1490 = vunpack.c.l.b16 %v305
  %v1491 = vunpack.c.h.b16 %v305
  %v1492 = vunpack.c.l.b16 %v306
  %v1493 = vunpack.c.h.b16 %v306
  %v1494 = vunpack.c.l.b16 %v307
  %v1495 = vunpack.c.h.b16 %v307
  %v1496 = vunpack.c.l.b16 %v308
  %v1497 = vunpack.c.h.b16 %v308
  %v1498 = vunpack.c.l.b16 %v309
  %v1499 = vunpack.c.h.b16 %v309
  %v1500 = vunpack.c.l.b16 %v310
  %v1501 = vunpack.c.h.b16 %v310
  %v1502 = vunpack.c.l.b16 %v311
  %v1503 = vunpack.c.h.b16 %v311
  %v1504 = vunpack.c.l.b16 %v312
  %v1505 = vunpack.c.h.b16 %v312
  %v1506 = vunpack.c.l.b16 %v313
  %v1507 = vunpack.c.h.b16 %v313
  %v1508 = vunpack.c.l.b16 %v314
  %v1509 = vunpack.c.h.b16 %v314
  %v1510 = vunpack.c.l.b16 %v315
  %v1511 = vunpack.c.h.b16 %v315
  %v1512 = vunpack.c.l.b16 %v316
  %v1513 = vunpack.c.h.b16 %v316
  %v1514 = vunpack.c.l.b16 %v317
  %v1515 = vunpack.c.h.b16 %v317
  %v1516 = vunpack.c.l.b16 %v318
  %v1517 = vunpack.c.h.b16 %v318
  %v1518 = vunpack.c.l.b16 %v319
  %v1519 = vunpack.c.h.b16 %v319
  %v1520 = vunpack.c.l.b16 %v320
  %v1521 = vunpack.c.h.b16 %v320
  %v1522 = vunpack.c.l.b16 %v321
  %v1523 = vunpack.c.h.b16 %v321
  %v1524 = vunpack.c.l.b16 %v322
  %v1525 = vunpack.c.h.b16 %v322
  %v1526 = vunpack.c.l.b16 %v323
  %v1527 = vunpack.c.h.b16 %v323
  %v1528 = vunpack.c.l.b16 %v324
  %v1529 = vunpack.c.h.b16 %v324
  %v1530 = vunpack.c.l.b16 %v325
  %v1531 = vunpack.c.h.b16 %v325
  %v1532 = vunpack.c.l.b16 %v326
  %v1533 = vunpack.c.h.b16 %v326
  %v1534 = vunpack.c.l.b16 %v327
  %v1535 = vunpack.c.h.b16 %v327
  %v1536 = vunpack.c.l.b16 %v328
  %v1537 = vunpack.c.h.b16 %v328
  %v1538 = vunpack.c.l.b16 %v329
  %v1539 = vunpack.c.h.b16 %v329
  %v1540 = vunpack.c.l.b16 %v330
  %v1541 = vunpack.c.h.b16 %v330
  %v1542 = vunpack.c.l.b16 %v331
  %v1543 = vunpack.c.h.b16 %v331
  %v1544 = vunpack.c.l.b16 %v332
  %v1545 = vunpack.c.h.b16 %v332
  %v1546 = vunpack.c.l.b16 %v333
  %v1547 = vunpack.c.h.b16 %v333
  %v1548 = vunpack.c.l.b16 %v334
  %v1549 = vunpack.c.h.b16 %v334
  %v1550 = vunpack.c.l.b16 %v335
  %v1551 = vunpack.c.h.b16 %v335
  %v1552 = vunpack.c.l.b16 %v336
  %v1553 = vunpack.c.h.b16 %v336
  %v1554 = vunpack.c.l.b16 %v337
  %v1555 = vunpack.c.h.b16 %v337
  %v1556 = vunpack.c.l.b16 %v338
  %v1557 = vunpack.c.h.b16 %v338
  %v1558 = vunpack.c.l.b16 %v339
  %v1559 = vunpack.c.h.b16 %v339
  %v1560 = vunpack.c.l.b16 %v340
  %v1561 = vunpack.c.h.b16 %v340
  %v1562 = vunpack.c.l.b16 %v341
  %v1563 = vunpack.c.h.b16 %v341
  %v1564 = vunpack.c.l.b16 %v342
  %v1565 = vunpack.c.h.b16 %v342
  %v1566 = vunpack.c.l.b16 %v343
  %v1567 = vunpack.c.h.b16 %v343
  %v1568 = vunpack.c.l.b16 %v344
  %v1569 = vunpack.c.h.b16 %v344
  %v1570 = vunpack.c.l.b16 %v345
  %v1571 = vunpack.c.h.b16 %v345
  %v1572 = vunpack.c.l.b16 %v346
  %v1573 = vunpack.c.h.b16 %v346
  %v1574 = vunpack.c.l.b16 %v347
  %v1575 = vunpack.c.h.b16 %v347
  %v1576 = vunpack.c.l.b16 %v348
  %v1577 = vunpack.c.h.b16 %v348
  %v1578 = vunpack.c.l.b16 %v349
  %v1579 = vunpack.c.h.b16 %v349
  %v1580 = vunpack.c.l.b16 %v350
  %v1581 = vunpack.c.h.b16 %v350
  %v1582 = vunpack.c.l.b16 %v351
  %v1583 = vunpack.c.h.b16 %v351
  %v1584 = vunpack.c.l.b16 %v352
  %v1585 = vunpack.c.h.b16 %v352
  %v1586 = vunpack.c.l.b16 %v353
  %v1587 = vunpack.c.h.b16 %v353
  %v1588 = vunpack.c.l.b16 %v354
  %v1589 = vunpack.c.h.b16 %v354
  %v1590 = vunpack.c.l.b16 %v355
  %v1591 = vunpack.c.h.b16 %v355
  %v1592 = vunpack.c.l.b16 %v356
  %v1593 = vunpack.c.h.b16 %v356
  %v1594 = vunpack.c.l.b16 %v357
  %v1595 = vunpack.c.h.b16 %v357
  %v1596 = vunpack.c.l.b16 %v358
  %v1597 = vunpack.c.h.b16 %v358
  %v1598 = vunpack.c.l.b16 %v359
  %v1599 = vunpack.c.h.b16 %v359
  %v1600 = vunpack.c.l.b16 %v360
  %v1601 = vunpack.c.h.b16 %v360
  %v1602 = vunpack.c.l.b16 %v361
  %v1603 = vunpack.c.h.b16 %v361
  %v1604 = vunpack.c.l.b16 %v362
  %v1605 = vunpack.c.h.b16 %v362
  %v1606 = vunpack.c.l.b16 %v363
  %v1607 = vunpack.c.h.b16 %v363
  %v1608 = vunpack.c.l.b16 %v364
  %v1609 = vunpack.c.h.b16 %v364
  %v1610 = vunpack.c.l.b16 %v365
  %v1611 = vunpack.c.h.b16 %v365
  %v1612 = vunpack.c.l.b16 %v366
  %v1613 = vunpack.c.h.b16 %v366
  %v1614 = vunpack.c.l.b16 %v367
  %v1615 = vunpack.c.h.b16 %v367
  %v1616 = vunpack.c.l.b16 %v368
  %v1617 = vunpack.c.h.b16 %v368
  %v1618 = vunpack.c.l.b16 %v369
  %v1619 = vunpack.c.h.b16 %v369
  %v1620 = vunpack.c.l.b16 %v370
  %v1621 = vunpack.c.h.b16 %v370
  %v1622 = vunpack.c.l.b16 %v371
  %v1623 = vunpack.c.h.b16 %v371
  %v1624 = vunpack.c.l.b16 %v372
  %v1625 = vunpack.c.h.b16 %v372
  %v1626 = vunpack.c.l.b16 %v373
  %v1627 = vunpack.c.h.b16 %v373
  %v1628 = vunpack.c.l.b16 %v374
  %v1629 = vunpack.c.h.b16 %v374
  %v1630 = vunpack.c.l.b16 %v375
  %v1631 = vunpack.c.h.b16 %v375
  %v1632 = vunpack.c.l.b16 %v376
  %v1633 = vunpack.c.h.b16 %v376
  %v1634 = vunpack.c.l.b16 %v377
  %v1635 = vunpack.c.h.b16 %v377
  %v1636 = vunpack.c.l.b16 %v378
  %v1637 = vunpack.c.h.b16 %v378
  %v1638 = vunpack.c.l.b16 %v379
  %v1639 = vunpack.c.h.b16 %v379
  %v1640 = vunpack.c.l.b16 %v380
  %v1641 = vunpack.c.h.b16 %v380
  %v1642 = vunpack.c.l.b16 %v381
  %v1643 = vunpack.c.h.b16 %v381
  %v1644 = vunpack.c.l.b16 %v382
  %v1645 = vunpack.c.h.b16 %v382
  %v1646 = vunpack.c.l.b16 %v383
  %v1647 = vunpack.c.h.b16 %v383
  %v1648 = vunpack.c.l.b16 %v384
  %v1649 = vunpack.c.h.b16 %v384
  %v1650 = vunpack.c.l.b16 %v385
  %v1651 = vunpack.c.h.b16 %v385
  %v1652 = vunpack.c.l.b16 %v386
  %v1653 = vunpack.c.h.b16 %v386
  %v1654 = vunpack.c.l.b16 %v387
  %v1655 = vunpack.c.h.b16 %v387
  %v1656 = vunpack.c.l.b16 %v388
  %v1657 = vunpack.c.h.b16 %v388
  %v1658 = vunpack.c.l.b16 %v389
  %v1659 = vunpack.c.h.b16 %v389
  %v1660 = vunpack.c.l.b16 %v390
  %v1661 = vunpack.c.h.b16 %v390
  %v1662 = vunpack.c.l.b16 %v391
  %v1663 = vunpack.c.h.b16 %v391
  %v1664 = vunpack.c.l.b16 %v392
  %v1665 = vunpack.c.h.b16 %v392
  %v1666 = vunpack.c.l.b16 %v393
  %v1667 = vunpack.c.h.b16 %v393
  %v1668 = vunpack.c.l.b16 %v394
  %v1669 = vunpack.c.h.b16 %v394
  %v1670 = vunpack.c.l.b16 %v395
  %v1671 = vunpack.c.h.b16 %v395
  %v1672 = vunpack.c.l.b16 %v396
  %v1673 = vunpack.c.h.b16 %v396
  %v1674 = vunpack.c.l.b16 %v397
  %v1675 = vunpack.c.h.b16 %v397
  %v1676 = vunpack.c.l.b16 %v398
  %v1677 = vunpack.c.h.b16 %v398
  %v1678 = vunpack.c.l.b16 %v399
  %v1679 = vunpack.c.h.b16 %v399
  %v1680 = vunpack.c.l.b16 %v400
  %v1681 = vunpack.c.h.b16 %v400
  %v1682 = vunpack.c.l.b16 %v401
  %v1683 = vunpack.c.h.b16 %v401
  %v1684 = vunpack.c.l.b16 %v402
  %v1685 = vunpack.c.h.b16 %v402
  %v1686 = vunpack.c.l.b16 %v403
  %v1687 = vunpack.c.h.b16 %v403
  %v1688 = vunpack.c.l.b16 %v404
  %v1689 = vunpack.c.h.b16 %v404
  %v1690 = vunpack.c.l.b16 %v405
  %v1691 = vunpack.c.h.b16 %v405
  %v1692 = vunpack.c.l.b16 %v406
  %v1693 = vunpack.c.h.b16 %v406
  %v1694 = vunpack.c.l.b16 %v407
  %v1695 = vunpack.c.h.b16 %v407
  %v1696 = vunpack.c.l.b16 %v408
  %v1697 = vunpack.c.h.b16 %v408
  %v1698 = vunpack.c.l.b16 %v409
  %v1699 = vunpack.c.h.b16 %v409
  %v1700 = vunpack.c.l.b16 %v410
  %v1701 = vunpack.c.h.b16 %v410
  %v1702 = vunpack.c.l.b16 %v411
  %v1703 = vunpack.c.h.b16 %v411
  %v1704 = vunpack.c.l.b16 %v412
  %v1705 = vunpack.c.h.b16 %v412
  %v1706 = vunpack.c.l.b16 %v413
  %v1707 = vunpack.c.h.b16 %v413
  %v1708 = vunpack.c.l.b16 %v414
  %v1709 = vunpack.c.h.b16 %v414
  %v1710 = vunpack.c.l.b16 %v415
  %v1711 = vunpack.c.h.b16 %v415
  %v1712 = vunpack.c.l.b16 %v416
  %v1713 = vunpack.c.h.b16 %v416
  %v1714 = vunpack.c.l.b16 %v417
  %v1715 = vunpack.c.h.b16 %v417
  %v1716 = vunpack.c.l.b16 %v418
  %v1717 = vunpack.c.h.b16 %v418
  %v1718 = vunpack.c.l.b16 %v419
  %v1719 = vunpack.c.h.b16 %v419
  %v1720 = vunpack.c.l.b16 %v420
  %v1721 = vunpack.c.h.b16 %v420
  %v1722 = vunpack.c.l.b16 %v421
  %v1723 = vunpack.c.h.b16 %v421
  %v1724 = vunpack.c.l.b16 %v422
  %v1725 = vunpack.c.h.b16 %v422
  %v1726 = vunpack.c.l.b16 %v423
  %v1727 = vunpack.c.h.b16 %v423
  %v1728 = vunpack.c.l.b16 %v424
  %v1729 = vunpack.c.h.b16 %v424
  %v1730 = vunpack.c.l.b16 %v425
  %v1731 = vunpack.c.h.b16 %v425
  %v1732 = vunpack.c.l.b16 %v426
  %v1733 = vunpack.c.h.b16 %v426
  %v1734 = vunpack.c.l.b16 %v427
  %v1735 = vunpack.c.h.b16 %v427
  %v1736 = vunpack.c.l.b16 %v428
  %v1737 = vunpack.c.h.b16 %v428
  %v1738 = vunpack.c.l.b16 %v429
  %v1739 = vunpack.c.h.b16 %v429
  %v1740 = vunpack.c.l.b16 %v430
  %v1741 = vunpack.c.h.b16 %v430
  %v1742 = vunpack.c.l.b16 %v431
  %v1743 = vunpack.c.h.b16 %v431
  %v1744 = vunpack.c.l.b16 %v432
  %v1745 = vunpack.c.h.b16 %v432
  %v1746 = vunpack.c.l.b16 %v433
  %v1747 = vunpack.c.h.b16 %v433
  %v1748 = vunpack.c.l.b16 %v434
  %v1749 = vunpack.c.h.b16 %v434
  %v1750 = vunpack.c.l.b16 %v435
  %v1751 = vunpack.c.h.b16 %v435
  %v1752 = vunpack.c.l.b16 %v436
  %v1753 = vunpack.c.h.b16 %v436
  %v1754 = vunpack.c.l.b16 %v437
  %v1755 = vunpack.c.h.b16 %v437
  %v1756 = vunpack.c.l.b16 %v438
  %v1757 = vunpack.c.h.b16 %v438
  %v1758 = vunpack.c.l.b16 %v439
  %v1759 = vunpack.c.h.b16 %v439
  %v1760 = vunpack.c.l.b16 %v440
  %v1761 = vunpack.c.h.b16 %v440
  %v1762 = vunpack.c.l.b16 %v441
  %v1763 = vunpack.c.h.b16 %v441
  %v1764 = vunpack.c.l.b16 %v442
  %v1765 = vunpack.c.h.b16 %v442
  %v1766 = vunpack.c.l.b16 %v443
  %v1767 = vunpack.c.h.b16 %v443
  %v1768 = vunpack.c.l.b16 %v444
  %v1769 = vunpack.c.h.b16 %v444
  %v1770 = vunpack.c.l.b16 %v445
  %v1771 = vunpack.c.h.b16 %v445
  %v1772 = vunpack.c.l.b16 %v446
  %v1773 = vunpack.c.h.b16 %v446
  %v1774 = vunpack.c.l.b16 %v447
  %v1775 = vunpack.c.h.b16 %v447
  %v1776 = vunpack.c.l.b16 %v448
  %v1777 = vunpack.c.h.b16 %v448
  %v1778 = vunpack.c.l.b16 %v449
  %v1779 = vunpack.c.h.b16 %v449
  %v1780 = vunpack.c.l.b16 %v450
  %v1781 = vunpack.c.h.b16 %v450
  %v1782 = vunpack.c.l.b16 %v451
  %v1783 = vunpack.c.h.b16 %v451
  %v1784 = vpack.c.b16 %v986, %v984
  %v1785 = vpack.c.b16 %v987, %v985
  %v1786 = vpack.c.b16 %v990, %v988
  %v1787 = vpack.c.b16 %v991, %v989
  %v1788 = vpack.c.b16 %v994, %v992
  %v1789 = vpack.c.b16 %v995, %v993
  %v1790 = vpack.c.b16 %v998, %v996
  %v1791 = vpack.c.b16 %v999, %v997
  %v1792 = vpack.c.b16 %v1002, %v1000
  %v1793 = vpack.c.b16 %v1003, %v1001
  %v1794 = vpack.c.b16 %v1006, %v1004
  %v1795 = vpack.c.b16 %v1007, %v1005
  %v1796 = vpack.c.b16 %v1010, %v1008
  %v1797 = vpack.c.b16 %v1011, %v1009
  %v1798 = vpack.c.b16 %v1014, %v1012
  %v1799 = vpack.c.b16 %v1015, %v1013
  %v1800 = vpack.c.b16 %v1018, %v1016
  %v1801 = vpack.c.b16 %v1019, %v1017
  %v1802 = vpack.c.b16 %v1022, %v1020
  %v1803 = vpack.c.b16 %v1023, %v1021
  %v1804 = vpack.c.b16 %v1026, %v1024
  %v1805 = vpack.c.b16 %v1027, %v1025
  %v1806 = vpack.c.b16 %v1030, %v1028
  %v1807 = vpack.c.b16 %v1031, %v1029
  %v1808 = vpack.c.b16 %v1034, %v1032
  %v1809 = vpack.c.b16 %v1035, %v1033
  %v1810 = vpack.c.b16 %v1038, %v1036
  %v1811 = vpack.c.b16 %v1039, %v1037
  %v1812 = vpack.c.b16 %v1042, %v1040
  %v1813 = vpack.c.b16 %v1043, %v1041
  %v1814 = vpack.c.b16 %v1046, %v1044
  %v1815 = vpack.c.b16 %v1047, %v1045
  %v1816 = vpack.c.b16 %v1050, %v1048
  %v1817 = vpack.c.b16 %v1051, %v1049
  %v1818 = vpack.c.b16 %v1054, %v1052
  %v1819 = vpack.c.b16 %v1055, %v1053
  %v1820 = vpack.c.b16 %v1058, %v1056
  %v1821 = vpack.c.b16 %v1059, %v1057
  %v1822 = vpack.c.b16 %v1062, %v1060
  %v1823 = vpack.c.b16 %v1063, %v1061
  %v1824 = vpack.c.b16 %v1066, %v1064
  %v1825 = vpack.c.b16 %v1067, %v1065
  %v1826 = vpack.c.b16 %v1070, %v1068
  %v1827 = vpack.c.b16 %v1071, %v1069
  %v1828 = vpack.c.b16 %v1074, %v1072
  %v1829 = vpack.c.b16 %v1075, %v1073
  %v1830 = vpack.c.b16 %v1078, %v1076
  %v1831 = vpack.c.b16 %v1079, %v1077
  %v1832 = vpack.c.b16 %v1082, %v1080
  %v1833 = vpack.c.b16 %v1083, %v1081
  %v1834 = vpack.c.b16 %v1086, %v1084
  %v1835 = vpack.c.b16 %v1087, %v1085
  %v1836 = vpack.c.b16 %v1090, %v1088
  %v1837 = vpack.c.b16 %v1091, %v1089
  %v1838 = vpack.c.b16 %v1094, %v1092
  %v1839 = vpack.c.b16 %v1095, %v1093
  %v1840 = vpack.c.b16 %v1098, %v1096
  %v1841 = vpack.c.b16 %v1099, %v1097
  %v1842 = vpack.c.b16 %v1102, %v1100
  %v1843 = vpack.c.b16 %v1103, %v1101
  %v1844 = vpack.c.b16 %v1106, %v1104
  %v1845 = vpack.c.b16 %v1107, %v1105
  %v1846 = vpack.c.b16 %v1110, %v1108
  %v1847 = vpack.c.b16 %v1111, %v1109
  %v1848 = vpack.c.b16 %v1114, %v1112
  %v1849 = vpack.c.b16 %v1115, %v1113
  %v1850 = vpack.c.b16 %v1118, %v1116
  %v1851 = vpack.c.b16 %v1119, %v1117
  %v1852 = vpack.c.b16 %v1122, %v1120
  %v1853 = vpack.c.b16 %v1123, %v1121
  %v1854 = vpack.c.b16 %v1126, %v1124
  %v1855 = vpack.c.b16 %v1127, %v1125
  %v1856 = vpack.c.b16 %v1130, %v1128
  %v1857 = vpack.c.b16 %v1131, %v1129
  %v1858 = vpack.c.b16 %v1134, %v1132
  %v1859 = vpack.c.b16 %v1135, %v1133
  %v1860 = vpack.c.b16 %v1138, %v1136
  %v1861 = vpack.c.b16 %v1139, %v1137
  %v1862 = vpack.c.b16 %v1142, %v1140
  %v1863 = vpack.c.b16 %v1143, %v1141
  %v1864 = vpack.c.b16 %v1146, %v1144
  %v1865 = vpack.c.b16 %v1147, %v1145
  %v1866 = vpack.c.b16 %v1150, %v1148
  %v1867 = vpack.c.b16 %v1151, %v1149
  %v1868 = vpack.c.b16 %v1154, %v1152
  %v1869 = vpack.c.b16 %v1155, %v1153
  %v1870 = vpack.c.b16 %v1158, %v1156
  %v1871 = vpack.c.b16 %v1159, %v1157
  %v1872 = vpack.c.b16 %v1162, %v1160
  %v1873 = vpack.c.b16 %v1163, %v1161
  %v1874 = vpack.c.b16 %v1166, %v1164
  %v1875 = vpack.c.b16 %v1167, %v1165
  %v1876 = vpack.c.b16 %v1170, %v1168
  %v1877 = vpack.c.b16 %v1171, %v1169
  %v1878 = vpack.c.b16 %v1174, %v1172
  %v1879 = vpack.c.b16 %v1175, %v1173
  %v1880 = vpack.c.b16 %v1178, %v1176
  %v1881 = vpack.c.b16 %v1179, %v1177
  %v1882 = vpack.c.b16 %v1182, %v1180
  %v1883 = vpack.c.b16 %v1183, %v1181
  %v1884 = vpack.c.b16 %v1186, %v1184
  %v1885 = vpack.c.b16 %v1187, %v1185
  %v1886 = vpack.c.b16 %v1190, %v1188
  %v1887 = vpack.c.b16 %v1191, %v1189
  %v1888 = vpack.c.b16 %v1194, %v1192
  %v1889 = vpack.c.b16 %v1195, %v1193
  %v1890 = vpack.c.b16 %v1198, %v1196
  %v1891 = vpack.c.b16 %v1199, %v1197
  %v1892 = vpack.c.b16 %v1202, %v1200
  %v1893 = vpack.c.b16 %v1203, %v1201
  %v1894 = vpack.c.b16 %v1206, %v1204
  %v1895 = vpack.c.b16 %v1207, %v1205
  %v1896 = vpack.c.b16 %v1210, %v1208
  %v1897 = vpack.c.b16 %v1211, %v1209
  %v1898 = vpack.c.b16 %v1214, %v1212
  %v1899 = vpack.c.b16 %v1215, %v1213
  %v1900 = vpack.c.b16 %v1218, %v1216
  %v1901 = vpack.c.b16 %v1219, %v1217
  %v1902 = vpack.c.b16 %v1222, %v1220
  %v1903 = vpack.c.b16 %v1223, %v1221
  %v1904 = vpack.c.b16 %v1226, %v1224
  %v1905 = vpack.c.b16 %v1227, %v1225
  %v1906 = vpack.c.b16 %v1230, %v1228
  %v1907 = vpack.c.b16 %v1231, %v1229
  %v1908 = vpack.c.b16 %v1234, %v1232
  %v1909 = vpack.c.b16 %v1235, %v1233
  %v1910 = vpack.c.b16 %v1238, %v1236
  %v1911 = vpack.c.b16 %v1239, %v1237
  %v1912 = vpack.c.b16 %v1242, %v1240
  %v1913 = vpack.c.b16 %v1243, %v1241
  %v1914 = vpack.c.b16 %v1246, %v1244
  %v1915 = vpack.c.b16 %v1247, %v1245
  %v1916 = vpack.c.b16 %v1250, %v1248
  %v1917 = vpack.c.b16 %v1251, %v1249
  %v1918 = vpack.c.b16 %v1254, %v1252
  %v1919 = vpack.c.b16 %v1255, %v1253
  %v1920 = vpack.c.b16 %v1258, %v1256
  %v1921 = vpack.c.b16 %v1259, %v1257
  %v1922 = vpack.c.b16 %v1262, %v1260
  %v1923 = vpack.c.b16 %v1263, %v1261
  %v1924 = vpack.c.b16 %v1266, %v1264
  %v1925 = vpack.c.b16 %v1267, %v1265
  %v1926 = vpack.c.b16 %v1270, %v1268
  %v1927 = vpack.c.b16 %v1271, %v1269
  %v1928 = vpack.c.b16 %v1274, %v1272
  %v1929 = vpack.c.b16 %v1275, %v1273
  %v1930 = vpack.c.b16 %v1278, %v1276
  %v1931 = vpack.c.b16 %v1279, %v1277
  %v1932 = vpack.c.b16 %v1282, %v1280
  %v1933 = vpack.c.b16 %v1283, %v1281
  %v1934 = vpack.c.b16 %v1286, %v1284
  %v1935 = vpack.c.b16 %v1287, %v1285
  %v1936 = vpack.c.b16 %v1290, %v1288
  %v1937 = vpack.c.b16 %v1291, %v1289
  %v1938 = vpack.c.b16 %v1294, %v1292
  %v1939 = vpack.c.b16 %v1295, %v1293
  %v1940 = vpack.c.b16 %v1298, %v1296
  %v1941 = vpack.c.b16 %v1299, %v1297
  %v1942 = vpack.c.b16 %v1302, %v1300
  %v1943 = vpack.c.b16 %v1303, %v1301
  %v1944 = vpack.c.b16 %v1306, %v1304
  %v1945 = vpack.c.b16 %v1307, %v1305
  %v1946 = vpack.c.b16 %v1310, %v1308
  %v1947 = vpack.c.b16 %v1311, %v1309
  %v1948 = vpack.c.b16 %v1314, %v1312
  %v1949 = vpack.c.b16 %v1315, %v1313
  %v1950 = vpack.c.b16 %v1318, %v1316
  %v1951 = vpack.c.b16 %v1319, %v1317
  %v1952 = vpack.c.b16 %v1322, %v1320
  %v1953 = vpack.c.b16 %v1323, %v1321
  %v1954 = vpack.c.b16 %v1326, %v1324
  %v1955 = vpack.c.b16 %v1327, %v1325
  %v1956 = vpack.c.b16 %v1330, %v1328
  %v1957 = vpack.c.b16 %v1331, %v1329
  %v1958 = vpack.c.b16 %v1334, %v1332
  %v1959 = vpack.c.b16 %v1335, %v1333
  %v1960 = vpack.c.b16 %v1338, %v1336
  %v1961 = vpack.c.b16 %v1339, %v1337
  %v1962 = vpack.c.b16 %v1342, %v1340
  %v1963 = vpack.c.b16 %v1343, %v1341
  %v1964 = vpack.c.b16 %v1346, %v1344
  %v1965 = vpack.c.b16 %v1347, %v1345
  %v1966 = vpack.c.b16 %v1350, %v1348
  %v1967 = vpack.c.b16 %v1351, %v1349
  %v1968 = vpack.c.b16 %v1354, %v1352
  %v1969 = vpack.c.b16 %v1355, %v1353
  %v1970 = vpack.c.b16 %v1358, %v1356
  %v1971 = vpack.c.b16 %v1359, %v1357
  %v1972 = vpack.c.b16 %v1362, %v1360
  %v1973 = vpack.c.b16 %v1363, %v1361
  %v1974 = vpack.c.b16 %v1366, %v1364
  %v1975 = vpack.c.b16 %v1367, %v1365
  %v1976 = vpack.c.b16 %v1370, %v1368
  %v1977 = vpack.c.b16 %v1371, %v1369
  %v1978 = vpack.c.b16 %v1374, %v1372
  %v1979 = vpack.c.b16 %v1375, %v1373
  %v1980 = vpack.c.b16 %v1378, %v1376
  %v1981 = vpack.c.b16 %v1379, %v1377
  %v1982 = vpack.c.b16 %v1382, %v1380
  %v1983 = vpack.c.b16 %v1383, %v1381
  %v1984 = vpack.c.b16 %v1386, %v1384
  %v1985 = vpack.c.b16 %v1387, %v1385
  %v1986 = vpack.c.b16 %v1390, %v1388
  %v1987 = vpack.c.b16 %v1391, %v1389
  %v1988 = vpack.c.b16 %v1394, %v1392
  %v1989 = vpack.c.b16 %v1395, %v1393
  %v1990 = vpack.c.b16 %v1398, %v1396
  %v1991 = vpack.c.b16 %v1399, %v1397
  %v1992 = vpack.c.b16 %v1402, %v1400
  %v1993 = vpack.c.b16 %v1403, %v1401
  %v1994 = vpack.c.b16 %v1406, %v1404
  %v1995 = vpack.c.b16 %v1407, %v1405
  %v1996 = vpack.c.b16 %v1410, %v1408
  %v1997 = vpack.c.b16 %v1411, %v1409
  %v1998 = vpack.c.b16 %v1414, %v1412
  %v1999 = vpack.c.b16 %v1415, %v1413
  %v2000 = vpack.c.b16 %v1418, %v1416
  %v2001 = vpack.c.b16 %v1419, %v1417
  %v2002 = vpack.c.b16 %v1422, %v1420
  %v2003 = vpack.c.b16 %v1423, %v1421
  %v2004 = vpack.c.b16 %v1426, %v1424
  %v2005 = vpack.c.b16 %v1427, %v1425
  %v2006 = vpack.c.b16 %v1430, %v1428
  %v2007 = vpack.c.b16 %v1431, %v1429
  %v2008 = vpack.c.b16 %v1434, %v1432
  %v2009 = vpack.c.b16 %v1435, %v1433
  %v2010 = vpack.c.b16 %v1438, %v1436
  %v2011 = vpack.c.b16 %v1439, %v1437
  %v2012 = vpack.c.b16 %v1442, %v1440
  %v2013 = vpack.c.b16 %v1443, %v1441
  %v2014 = vpack.c.b16 %v1446, %v1444
  %v2015 = vpack.c.b16 %v1447, %v1445
  %v2016 = vpack.c.b16 %v1450, %v1448
  %v2017 = vpack.c.b16 %v1451, %v1449
  %v2018 = vpack.c.b16 %v1454, %v1452
  %v2019 = vpack.c.b16 %v1455, %v1453
  %v2020 = vpack.c.b16 %v1458, %v1456
  %v2021 = vpack.c.b16 %v1459, %v1457
  %v2022 = vpack.c.b16 %v1462, %v1460
  %v2023 = vpack.c.b16 %v1463, %v1461
  %v2024 = vpack.c.b16 %v1466, %v1464
  %v2025 = vpack.c.b16 %v1467, %v1465
  %v2026 = vpack.c.b16 %v1470, %v1468
  %v2027 = vpack.c.b16 %v1471, %v1469
  %v2028 = vpack.c.b16 %v1474, %v1472
  %v2029 = vpack.c.b16 %v1475, %v1473
  %v2030 = vpack.c.b16 %v1478, %v1476
  %v2031 = vpack.c.b16 %v1479, %v1477
  %v2032 = vpack.c.b16 %v1482, %v1480
  %v2033 = vpack.c.b16 %v1483, %v1481
  %v2034 = vpack.c.b16 %v1486, %v1484
  %v2035 = vpack.c.b16 %v1487, %v1485
  %v2036 = vpack.c.b16 %v1490, %v1488
  %v2037 = vpack.c.b16 %v1491, %v1489
  %v2038 = vpack.c.b16 %v1494, %v1492
  %v2039 = vpack.c.b16 %v1495, %v1493
  %v2040 = vpack.c.b16 %v1498, %v1496
  %v2041 = vpack.c.b16 %v1499, %v1497
  %v2042 = vpack.c.b16 %v1502, %v1500
  %v2043 = vpack.c.b16 %v1503, %v1501
  %v2044 = vpack.c.b16 %v1506, %v1504
  %v2045 = vpack.c.b16 %v1507, %v1505
  %v2046 = vpack.c.b16 %v1510, %v1508
  %v2047 = vpack.c.b16 %v1511, %v1509
  %v2048 = vpack.c.b16 %v1514, %v1512
  %v2049 = vpack.c.b16 %v1515, %v1513
  %v2050 = vpack.c.b16 %v1518, %v1516
  %v2051 = vpack.c.b16 %v1519, %v1517
  %v2052 = vpack.c.b16 %v1522, %v1520
  %v2053 = vpack.c.b16 %v1523, %v1521
  %v2054 = vpack.c.b16 %v1526, %v1524
  %v2055 = vpack.c.b16 %v1527, %v1525
  %v2056 = vpack.c.b16 %v1530, %v1528
  %v2057 = vpack.c.b16 %v1531, %v1529
  %v2058 = vpack.c.b16 %v1534, %v1532
  %v2059 = vpack.c.b16 %v1535, %v1533
  %v2060 = vpack.c.b16 %v1538, %v1536
  %v2061 = vpack.c.b16 %v1539, %v1537
  %v2062 = vpack.c.b16 %v1542, %v1540
  %v2063 = vpack.c.b16 %v1543, %v1541
  %v2064 = vpack.c.b16 %v1546, %v1544
  %v2065 = vpack.c.b16 %v1547, %v1545
  %v2066 = vpack.c.b16 %v1550, %v1548
  %v2067 = vpack.c.b16 %v1551, %v1549
  %v2068 = vpack.c.b16 %v1554, %v1552
  %v2069 = vpack.c.b16 %v1555, %v1553
  %v2070 = vpack.c.b16 %v1558, %v1556
  %v2071 = vpack.c.b16 %v1559, %v1557
  %v2072 = vpack.c.b16 %v1562, %v1560
  %v2073 = vpack.c.b16 %v1563, %v1561
  %v2074 = vpack.c.b16 %v1566, %v1564
  %v2075 = vpack.c.b16 %v1567, %v1565
  %v2076 = vpack.c.b16 %v1570, %v1568
  %v2077 = vpack.c.b16 %v1571, %v1569
  %v2078 = vpack.c.b16 %v1574, %v1572
  %v2079 = vpack.c.b16 %v1575, %v1573
  %v2080 = vpack.c.b16 %v1578, %v1576
  %v2081 = vpack.c.b16 %v1579, %v1577
  %v2082 = vpack.c.b16 %v1582, %v1580
  %v2083 = vpack.c.b16 %v1583, %v1581
  %v2084 = vpack.c.b16 %v1586, %v1584
  %v2085 = vpack.c.b16 %v1587, %v1585
  %v2086 = vpack.c.b16 %v1590, %v1588
  %v2087 = vpack.c.b16 %v1591, %v1589
  %v2088 = vpack.c.b16 %v1594, %v1592
  %v2089 = vpack.c.b16 %v1595, %v1593
  %v2090 = vpack.c.b16 %v1598, %v1596
  %v2091 = vpack.c.b16 %v1599, %v1597
  %v2092 = vpack.c.b16 %v1602, %v1600
  %v2093 = vpack.c.b16 %v1603, %v1601
  %v2094 = vpack.c.b16 %v1606, %v1604
  %v2095 = vpack.c.b16 %v1607, %v1605
  %v2096 = vpack.c.b16 %v1610, %v1608
  %v2097 = vpack.c.b16 %v1611, %v1609
  %v2098 = vpack.c.b16 %v1614, %v1612
  %v2099 = vpack.c.b16 %v1615, %v1613
  %v2100 = vpack.c.b16 %v1618, %v1616
  %v2101 = vpack.c.b16 %v1619, %v1617
  %v2102 = vpack.c.b16 %v1622, %v1620
  %v2103 = vpack.c.b16 %v1623, %v1621
  %v2104 = vpack.c.b16 %v1626, %v1624
  %v2105 = vpack.c.b16 %v1627, %v1625
  %v2106 = vpack.c.b16 %v1630, %v1628
  %v2107 = vpack.c.b16 %v1631, %v1629
  %v2108 = vpack.c.b16 %v1634, %v1632
  %v2109 = vpack.c.b16 %v1635, %v1633
  %v2110 = vpack.c.b16 %v1638, %v1636
  %v2111 = vpack.c.b16 %v1639, %v1637
  %v2112 = vpack.c.b16 %v1642, %v1640
  %v2113 = vpack.c.b16 %v1643, %v1641
  %v2114 = vpack.c.b16 %v1646, %v1644
  %v2115 = vpack.c.b16 %v1647, %v1645
  %v2116 = vpack.c.b16 %v1650, %v1648
  %v2117 = vpack.c.b16 %v1651, %v1649
  %v2118 = vpack.c.b16 %v1654, %v1652
  %v2119 = vpack.c.b16 %v1655, %v1653
  %v2120 = vpack.c.b16 %v1658, %v1656
  %v2121 = vpack.c.b16 %v1659, %v1657
  %v2122 = vpack.c.b16 %v1662, %v1660
  %v2123 = vpack.c.b16 %v1663, %v1661
  %v2124 = vpack.c.b16 %v1666, %v1664
  %v2125 = vpack.c.b16 %v1667, %v1665
  %v2126 = vpack.c.b16 %v1670, %v1668
  %v2127 = vpack.c.b16 %v1671, %v1669
  %v2128 = vpack.c.b16 %v1674, %v1672
  %v2129 = vpack.c.b16 %v1675, %v1673
  %v2130 = vpack.c.b16 %v1678, %v1676
  %v2131 = vpack.c.b16 %v1679, %v1677
  %v2132 = vpack.c.b16 %v1682, %v1680
  %v2133 = vpack.c.b16 %v1683, %v1681
  %v2134 = vpack.c.b16 %v1686, %v1684
  %v2135 = vpack.c.b16 %v1687, %v1685
  %v2136 = vpack.c.b16 %v1690, %v1688
  %v2137 = vpack.c.b16 %v1691, %v1689
  %v2138 = vpack.c.b16 %v1694, %v1692
  %v2139 = vpack.c.b16 %v1695, %v1693
  %v2140 = vpack.c.b16 %v1698, %v1696
  %v2141 = vpack.c.b16 %v1699, %v1697
  %v2142 = vpack.c.b16 %v1702, %v1700
  %v2143 = vpack.c.b16 %v1703, %v1701
  %v2144 = vpack.c.b16 %v1706, %v1704
  %v2145 = vpack.c.b16 %v1707, %v1705
  %v2146 = vpack.c.b16 %v1710, %v1708
  %v2147 = vpack.c.b16 %v1711, %v1709
  %v2148 = vpack.c.b16 %v1714, %v1712
  %v2149 = vpack.c.b16 %v1715, %v1713
  %v2150 = vpack.c.b16 %v1718, %v1716
  %v2151 = vpack.c.b16 %v1719, %v1717
  %v2152 = vpack.c.b16 %v1722, %v1720
  %v2153 = vpack.c.b16 %v1723, %v1721
  %v2154 = vpack.c.b16 %v1726, %v1724
  %v2155 = vpack.c.b16 %v1727, %v1725
  %v2156 = vpack.c.b16 %v1730, %v1728
  %v2157 = vpack.c.b16 %v1731, %v1729
  %v2158 = vpack.c.b16 %v1734, %v1732
  %v2159 = vpack.c.b16 %v1735, %v1733
  %v2160 = vpack.c.b16 %v1738, %v1736
  %v2161 = vpack.c.b16 %v1739, %v1737
  %v2162 = vpack.c.b16 %v1742, %v1740
  %v2163 = vpack.c.b16 %v1743, %v1741
  %v2164 = vpack.c.b16 %v1746, %v1744
  %v2165 = vpack.c.b16 %v1747, %v1745
  %v2166 = vpack.c.b16 %v1750, %v1748
  %v2167 = vpack.c.b16 %v1751, %v1749
  %v2168 = vpack.c.b16 %v1754, %v1752
  %v2169 = vpack.c.b16 %v1755, %v1753
  %v2170 = vpack.c.b16 %v1758, %v1756
  %v2171 = vpack.c.b16 %v1759, %v1757
  %v2172 = vpack.c.b16 %v1762, %v1760
  %v2173 = vpack.c.b16 %v1763, %v1761
  %v2174 = vpack.c.b16 %v1766, %v1764
  %v2175 = vpack.c.b16 %v1767, %v1765
  %v2176 = vpack.c.b16 %v1770, %v1768
  %v2177 = vpack.c.b16 %v1771, %v1769
  %v2178 = vpack.c.b16 %v1774, %v1772
  %v2179 = vpack.c.b16 %v1775, %v1773
  %v2180 = vpack.c.b16 %v1778, %v1776
  %v2181 = vpack.c.b16 %v1779, %v1777
  %v2182 = vpack.c.b16 %v1782, %v1780
  %v2183 = vpack.c.b16 %v1783, %v1781
  %2584 = vmatpush.bf16.msra.mxu0 %v1798
  %2585 = vmatpush.bf16.msra.mxu0 %v1796
  %2586 = vmatpush.bf16.msra.mxu0 %v1794
  %2587 = vmatpush.bf16.msra.mxu0 %v1792
  %2588 = vmatpush.bf16.msra.mxu0 %v1790
  %2589 = vmatpush.bf16.msra.mxu0 %v1788
  %2590 = vmatpush.bf16.msra.mxu0 %v1786
  %2591 = vmatpush.bf16.msra.mxu0 %v1784
  %2592 = vmatmul.bf16.gmra.mxu0 %v534
  %v2593 = vpop.f32.mrf.mxu0
  %v2594 = vadd.f32 %v454, %v2593
  %v2595 = vpop.f32.mrf.mxu0
  %v2596 = vadd.f32 %v454, %v2595
  %2597 = vdwg.mxu0
  %2598 = vmatpush.bf16.msra.mxu0 %v1814
  %2599 = vmatpush.bf16.msra.mxu0 %v1812
  %2600 = vmatpush.bf16.msra.mxu0 %v1810
  %2601 = vmatpush.bf16.msra.mxu0 %v1808
  %2602 = vmatpush.bf16.msra.mxu0 %v1806
  %2603 = vmatpush.bf16.msra.mxu0 %v1804
  %2604 = vmatpush.bf16.msra.mxu0 %v1802
  %2605 = vmatpush.bf16.msra.mxu0 %v1800
  %2606 = vmatmul.bf16.gmra.mxu0 %v535
  %v2607 = vpop.f32.mrf.mxu0
  %v2608 = vadd.f32 %v2594, %v2607
  %v2609 = vpop.f32.mrf.mxu0
  %v2610 = vadd.f32 %v2596, %v2609
  %2611 = vdwg.mxu0
  %2612 = vmatpush.bf16.msra.mxu0 %v1830
  %2613 = vmatpush.bf16.msra.mxu0 %v1828
  %2614 = vmatpush.bf16.msra.mxu0 %v1826
  %2615 = vmatpush.bf16.msra.mxu0 %v1824
  %2616 = vmatpush.bf16.msra.mxu0 %v1822
  %2617 = vmatpush.bf16.msra.mxu0 %v1820
  %2618 = vmatpush.bf16.msra.mxu0 %v1818
  %2619 = vmatpush.bf16.msra.mxu0 %v1816
  %2620 = vmatmul.bf16.gmra.mxu0 %v536
  %v2621 = vpop.f32.mrf.mxu0
  %v2622 = vadd.f32 %v2608, %v2621
  %v2623 = vpop.f32.mrf.mxu0
  %v2624 = vadd.f32 %v2610, %v2623
  %2625 = vdwg.mxu0
  %2626 = vmatpush.bf16.msra.mxu0 %v1846
  %2627 = vmatpush.bf16.msra.mxu0 %v1844
  %2628 = vmatpush.bf16.msra.mxu0 %v1842
  %2629 = vmatpush.bf16.msra.mxu0 %v1840
  %2630 = vmatpush.bf16.msra.mxu0 %v1838
  %2631 = vmatpush.bf16.msra.mxu0 %v1836
  %2632 = vmatpush.bf16.msra.mxu0 %v1834
  %2633 = vmatpush.bf16.msra.mxu0 %v1832
  %2634 = vmatmul.bf16.gmra.mxu0 %v537
  %v2635 = vpop.f32.mrf.mxu0
  %v2636 = vadd.f32 %v2622, %v2635
  %v2637 = vpop.f32.mrf.mxu0
  %v2638 = vadd.f32 %v2624, %v2637
  %2639 = vdwg.mxu0
  %2640 = vmatpush.bf16.msra.mxu0 %v1862
  %2641 = vmatpush.bf16.msra.mxu0 %v1860
  %2642 = vmatpush.bf16.msra.mxu0 %v1858
  %2643 = vmatpush.bf16.msra.mxu0 %v1856
  %2644 = vmatpush.bf16.msra.mxu0 %v1854
  %2645 = vmatpush.bf16.msra.mxu0 %v1852
  %2646 = vmatpush.bf16.msra.mxu0 %v1850
  %2647 = vmatpush.bf16.msra.mxu0 %v1848
  %2648 = vmatmul.bf16.gmra.mxu0 %v538
  %v2649 = vpop.f32.mrf.mxu0
  %v2650 = vadd.f32 %v2636, %v2649
  %v2651 = vpop.f32.mrf.mxu0
  %v2652 = vadd.f32 %v2638, %v2651
  %2653 = vdwg.mxu0
  %2654 = vmatpush.bf16.msra.mxu0 %v1878
  %2655 = vmatpush.bf16.msra.mxu0 %v1876
  %2656 = vmatpush.bf16.msra.mxu0 %v1874
  %2657 = vmatpush.bf16.msra.mxu0 %v1872
  %2658 = vmatpush.bf16.msra.mxu0 %v1870
  %2659 = vmatpush.bf16.msra.mxu0 %v1868
  %2660 = vmatpush.bf16.msra.mxu0 %v1866
  %2661 = vmatpush.bf16.msra.mxu0 %v1864
  %2662 = vmatmul.bf16.gmra.mxu0 %v539
  %v2663 = vpop.f32.mrf.mxu0
  %v2664 = vadd.f32 %v2650, %v2663
  %v2665 = vpop.f32.mrf.mxu0
  %v2666 = vadd.f32 %v2652, %v2665
  %2667 = vdwg.mxu0
  %2668 = vmatpush.bf16.msra.mxu0 %v1894
  %2669 = vmatpush.bf16.msra.mxu0 %v1892
  %2670 = vmatpush.bf16.msra.mxu0 %v1890
  %2671 = vmatpush.bf16.msra.mxu0 %v1888
  %2672 = vmatpush.bf16.msra.mxu0 %v1886
  %2673 = vmatpush.bf16.msra.mxu0 %v1884
  %2674 = vmatpush.bf16.msra.mxu0 %v1882
  %2675 = vmatpush.bf16.msra.mxu0 %v1880
  %2676 = vmatmul.bf16.gmra.mxu0 %v540
  %v2677 = vpop.f32.mrf.mxu0
  %v2678 = vadd.f32 %v2664, %v2677
  %v2679 = vpop.f32.mrf.mxu0
  %v2680 = vadd.f32 %v2666, %v2679
  %2681 = vdwg.mxu0
  %2682 = vmatpush.bf16.msra.mxu0 %v1910
  %2683 = vmatpush.bf16.msra.mxu0 %v1908
  %2684 = vmatpush.bf16.msra.mxu0 %v1906
  %2685 = vmatpush.bf16.msra.mxu0 %v1904
  %2686 = vmatpush.bf16.msra.mxu0 %v1902
  %2687 = vmatpush.bf16.msra.mxu0 %v1900
  %2688 = vmatpush.bf16.msra.mxu0 %v1898
  %2689 = vmatpush.bf16.msra.mxu0 %v1896
  %2690 = vmatmul.bf16.gmra.mxu0 %v541
  %v2691 = vpop.f32.mrf.mxu0
  %v2692 = vadd.f32 %v2678, %v2691
  %v2693 = vpop.f32.mrf.mxu0
  %v2694 = vadd.f32 %v2680, %v2693
  %2695 = vdwg.mxu0
  %2696 = vmatpush.bf16.msra.mxu0 %v1926
  %2697 = vmatpush.bf16.msra.mxu0 %v1924
  %2698 = vmatpush.bf16.msra.mxu0 %v1922
  %2699 = vmatpush.bf16.msra.mxu0 %v1920
  %2700 = vmatpush.bf16.msra.mxu0 %v1918
  %2701 = vmatpush.bf16.msra.mxu0 %v1916
  %2702 = vmatpush.bf16.msra.mxu0 %v1914
  %2703 = vmatpush.bf16.msra.mxu0 %v1912
  %2704 = vmatmul.bf16.gmra.mxu0 %v542
  %v2705 = vpop.f32.mrf.mxu0
  %v2706 = vadd.f32 %v2692, %v2705
  %v2707 = vpop.f32.mrf.mxu0
  %v2708 = vadd.f32 %v2694, %v2707
  %2709 = vdwg.mxu0
  %2710 = vmatpush.bf16.msra.mxu0 %v1942
  %2711 = vmatpush.bf16.msra.mxu0 %v1940
  %2712 = vmatpush.bf16.msra.mxu0 %v1938
  %2713 = vmatpush.bf16.msra.mxu0 %v1936
  %2714 = vmatpush.bf16.msra.mxu0 %v1934
  %2715 = vmatpush.bf16.msra.mxu0 %v1932
  %2716 = vmatpush.bf16.msra.mxu0 %v1930
  %2717 = vmatpush.bf16.msra.mxu0 %v1928
  %2718 = vmatmul.bf16.gmra.mxu0 %v543
  %v2719 = vpop.f32.mrf.mxu0
  %v2720 = vadd.f32 %v2706, %v2719
  %v2721 = vpop.f32.mrf.mxu0
  %v2722 = vadd.f32 %v2708, %v2721
  %2723 = vdwg.mxu0
  %2724 = vmatpush.bf16.msra.mxu0 %v1958
  %2725 = vmatpush.bf16.msra.mxu0 %v1956
  %2726 = vmatpush.bf16.msra.mxu0 %v1954
  %2727 = vmatpush.bf16.msra.mxu0 %v1952
  %2728 = vmatpush.bf16.msra.mxu0 %v1950
  %2729 = vmatpush.bf16.msra.mxu0 %v1948
  %2730 = vmatpush.bf16.msra.mxu0 %v1946
  %2731 = vmatpush.bf16.msra.mxu0 %v1944
  %2732 = vmatmul.bf16.gmra.mxu0 %v544
  %v2733 = vpop.f32.mrf.mxu0
  %v2734 = vadd.f32 %v2720, %v2733
  %v2735 = vpop.f32.mrf.mxu0
  %v2736 = vadd.f32 %v2722, %v2735
  %2737 = vdwg.mxu0
  %2738 = vmatpush.bf16.msra.mxu0 %v1974
  %2739 = vmatpush.bf16.msra.mxu0 %v1972
  %2740 = vmatpush.bf16.msra.mxu0 %v1970
  %2741 = vmatpush.bf16.msra.mxu0 %v1968
  %2742 = vmatpush.bf16.msra.mxu0 %v1966
  %2743 = vmatpush.bf16.msra.mxu0 %v1964
  %2744 = vmatpush.bf16.msra.mxu0 %v1962
  %2745 = vmatpush.bf16.msra.mxu0 %v1960
  %2746 = vmatmul.bf16.gmra.mxu0 %v545
  %v2747 = vpop.f32.mrf.mxu0
  %v2748 = vadd.f32 %v2734, %v2747
  %v2749 = vpop.f32.mrf.mxu0
  %v2750 = vadd.f32 %v2736, %v2749
  %2751 = vdwg.mxu0
  %2752 = vmatpush.bf16.msra.mxu0 %v1990
  %2753 = vmatpush.bf16.msra.mxu0 %v1988
  %2754 = vmatpush.bf16.msra.mxu0 %v1986
  %2755 = vmatpush.bf16.msra.mxu0 %v1984
  %2756 = vmatpush.bf16.msra.mxu0 %v1982
  %2757 = vmatpush.bf16.msra.mxu0 %v1980
  %2758 = vmatpush.bf16.msra.mxu0 %v1978
  %2759 = vmatpush.bf16.msra.mxu0 %v1976
  %2760 = vmatmul.bf16.gmra.mxu0 %v546
  %v2761 = vpop.f32.mrf.mxu0
  %v2762 = vadd.f32 %v2748, %v2761
  %v2763 = vpop.f32.mrf.mxu0
  %v2764 = vadd.f32 %v2750, %v2763
  %2765 = vdwg.mxu0
  %2766 = vmatpush.bf16.msra.mxu0 %v2006
  %2767 = vmatpush.bf16.msra.mxu0 %v2004
  %2768 = vmatpush.bf16.msra.mxu0 %v2002
  %2769 = vmatpush.bf16.msra.mxu0 %v2000
  %2770 = vmatpush.bf16.msra.mxu0 %v1998
  %2771 = vmatpush.bf16.msra.mxu0 %v1996
  %2772 = vmatpush.bf16.msra.mxu0 %v1994
  %2773 = vmatpush.bf16.msra.mxu0 %v1992
  %2774 = vmatmul.bf16.gmra.mxu0 %v547
  %v2775 = vpop.f32.mrf.mxu0
  %v2776 = vadd.f32 %v2762, %v2775
  %v2777 = vpop.f32.mrf.mxu0
  %v2778 = vadd.f32 %v2764, %v2777
  %2779 = vdwg.mxu0
  %2780 = vmatpush.bf16.msra.mxu0 %v2022
  %2781 = vmatpush.bf16.msra.mxu0 %v2020
  %2782 = vmatpush.bf16.msra.mxu0 %v2018
  %2783 = vmatpush.bf16.msra.mxu0 %v2016
  %2784 = vmatpush.bf16.msra.mxu0 %v2014
  %2785 = vmatpush.bf16.msra.mxu0 %v2012
  %2786 = vmatpush.bf16.msra.mxu0 %v2010
  %2787 = vmatpush.bf16.msra.mxu0 %v2008
  %2788 = vmatmul.bf16.gmra.mxu0 %v548
  %v2789 = vpop.f32.mrf.mxu0
  %v2790 = vadd.f32 %v2776, %v2789
  %v2791 = vpop.f32.mrf.mxu0
  %v2792 = vadd.f32 %v2778, %v2791
  %2793 = vdwg.mxu0
  %2794 = vmatpush.bf16.msra.mxu0 %v2038
  %2795 = vmatpush.bf16.msra.mxu0 %v2036
  %2796 = vmatpush.bf16.msra.mxu0 %v2034
  %2797 = vmatpush.bf16.msra.mxu0 %v2032
  %2798 = vmatpush.bf16.msra.mxu0 %v2030
  %2799 = vmatpush.bf16.msra.mxu0 %v2028
  %2800 = vmatpush.bf16.msra.mxu0 %v2026
  %2801 = vmatpush.bf16.msra.mxu0 %v2024
  %2802 = vmatmul.bf16.gmra.mxu0 %v549
  %v2803 = vpop.f32.mrf.mxu0
  %v2804 = vadd.f32 %v2790, %v2803
  %v2805 = vpop.f32.mrf.mxu0
  %v2806 = vadd.f32 %v2792, %v2805
  %2807 = vdwg.mxu0
  %2808 = vmatpush.bf16.msra.mxu0 %v2054
  %2809 = vmatpush.bf16.msra.mxu0 %v2052
  %2810 = vmatpush.bf16.msra.mxu0 %v2050
  %2811 = vmatpush.bf16.msra.mxu0 %v2048
  %2812 = vmatpush.bf16.msra.mxu0 %v2046
  %2813 = vmatpush.bf16.msra.mxu0 %v2044
  %2814 = vmatpush.bf16.msra.mxu0 %v2042
  %2815 = vmatpush.bf16.msra.mxu0 %v2040
  %2816 = vmatmul.bf16.gmra.mxu0 %v550
  %v2817 = vpop.f32.mrf.mxu0
  %v2818 = vadd.f32 %v2804, %v2817
  %v2819 = vpop.f32.mrf.mxu0
  %v2820 = vadd.f32 %v2806, %v2819
  %2821 = vdwg.mxu0
  %2822 = vmatpush.bf16.msra.mxu0 %v2070
  %2823 = vmatpush.bf16.msra.mxu0 %v2068
  %2824 = vmatpush.bf16.msra.mxu0 %v2066
  %2825 = vmatpush.bf16.msra.mxu0 %v2064
  %2826 = vmatpush.bf16.msra.mxu0 %v2062
  %2827 = vmatpush.bf16.msra.mxu0 %v2060
  %2828 = vmatpush.bf16.msra.mxu0 %v2058
  %2829 = vmatpush.bf16.msra.mxu0 %v2056
  %2830 = vmatmul.bf16.gmra.mxu0 %v551
  %v2831 = vpop.f32.mrf.mxu0
  %v2832 = vadd.f32 %v2818, %v2831
  %v2833 = vpop.f32.mrf.mxu0
  %v2834 = vadd.f32 %v2820, %v2833
  %2835 = vdwg.mxu0
  %2836 = vmatpush.bf16.msra.mxu0 %v2086
  %2837 = vmatpush.bf16.msra.mxu0 %v2084
  %2838 = vmatpush.bf16.msra.mxu0 %v2082
  %2839 = vmatpush.bf16.msra.mxu0 %v2080
  %2840 = vmatpush.bf16.msra.mxu0 %v2078
  %2841 = vmatpush.bf16.msra.mxu0 %v2076
  %2842 = vmatpush.bf16.msra.mxu0 %v2074
  %2843 = vmatpush.bf16.msra.mxu0 %v2072
  %2844 = vmatmul.bf16.gmra.mxu0 %v552
  %v2845 = vpop.f32.mrf.mxu0
  %v2846 = vadd.f32 %v2832, %v2845
  %v2847 = vpop.f32.mrf.mxu0
  %v2848 = vadd.f32 %v2834, %v2847
  %2849 = vdwg.mxu0
  %2850 = vmatpush.bf16.msra.mxu0 %v2102
  %2851 = vmatpush.bf16.msra.mxu0 %v2100
  %2852 = vmatpush.bf16.msra.mxu0 %v2098
  %2853 = vmatpush.bf16.msra.mxu0 %v2096
  %2854 = vmatpush.bf16.msra.mxu0 %v2094
  %2855 = vmatpush.bf16.msra.mxu0 %v2092
  %2856 = vmatpush.bf16.msra.mxu0 %v2090
  %2857 = vmatpush.bf16.msra.mxu0 %v2088
  %2858 = vmatmul.bf16.gmra.mxu0 %v553
  %v2859 = vpop.f32.mrf.mxu0
  %v2860 = vadd.f32 %v2846, %v2859
  %v2861 = vpop.f32.mrf.mxu0
  %v2862 = vadd.f32 %v2848, %v2861
  %2863 = vdwg.mxu0
  %2864 = vmatpush.bf16.msra.mxu0 %v2118
  %2865 = vmatpush.bf16.msra.mxu0 %v2116
  %2866 = vmatpush.bf16.msra.mxu0 %v2114
  %2867 = vmatpush.bf16.msra.mxu0 %v2112
  %2868 = vmatpush.bf16.msra.mxu0 %v2110
  %2869 = vmatpush.bf16.msra.mxu0 %v2108
  %2870 = vmatpush.bf16.msra.mxu0 %v2106
  %2871 = vmatpush.bf16.msra.mxu0 %v2104
  %2872 = vmatmul.bf16.gmra.mxu0 %v554
  %v2873 = vpop.f32.mrf.mxu0
  %v2874 = vadd.f32 %v2860, %v2873
  %v2875 = vpop.f32.mrf.mxu0
  %v2876 = vadd.f32 %v2862, %v2875
  %2877 = vdwg.mxu0
  %2878 = vmatpush.bf16.msra.mxu0 %v2134
  %2879 = vmatpush.bf16.msra.mxu0 %v2132
  %2880 = vmatpush.bf16.msra.mxu0 %v2130
  %2881 = vmatpush.bf16.msra.mxu0 %v2128
  %2882 = vmatpush.bf16.msra.mxu0 %v2126
  %2883 = vmatpush.bf16.msra.mxu0 %v2124
  %2884 = vmatpush.bf16.msra.mxu0 %v2122
  %2885 = vmatpush.bf16.msra.mxu0 %v2120
  %2886 = vmatmul.bf16.gmra.mxu0 %v555
  %v2887 = vpop.f32.mrf.mxu0
  %v2888 = vadd.f32 %v2874, %v2887
  %v2889 = vpop.f32.mrf.mxu0
  %v2890 = vadd.f32 %v2876, %v2889
  %2891 = vdwg.mxu0
  %2892 = vmatpush.bf16.msra.mxu0 %v2150
  %2893 = vmatpush.bf16.msra.mxu0 %v2148
  %2894 = vmatpush.bf16.msra.mxu0 %v2146
  %2895 = vmatpush.bf16.msra.mxu0 %v2144
  %2896 = vmatpush.bf16.msra.mxu0 %v2142
  %2897 = vmatpush.bf16.msra.mxu0 %v2140
  %2898 = vmatpush.bf16.msra.mxu0 %v2138
  %2899 = vmatpush.bf16.msra.mxu0 %v2136
  %2900 = vmatmul.bf16.gmra.mxu0 %v556
  %v2901 = vpop.f32.mrf.mxu0
  %v2902 = vadd.f32 %v2888, %v2901
  %v2903 = vpop.f32.mrf.mxu0
  %v2904 = vadd.f32 %v2890, %v2903
  %2905 = vdwg.mxu0
  %2906 = vmatpush.bf16.msra.mxu0 %v2166
  %2907 = vmatpush.bf16.msra.mxu0 %v2164
  %2908 = vmatpush.bf16.msra.mxu0 %v2162
  %2909 = vmatpush.bf16.msra.mxu0 %v2160
  %2910 = vmatpush.bf16.msra.mxu0 %v2158
  %2911 = vmatpush.bf16.msra.mxu0 %v2156
  %2912 = vmatpush.bf16.msra.mxu0 %v2154
  %2913 = vmatpush.bf16.msra.mxu0 %v2152
  %2914 = vmatmul.bf16.gmra.mxu0 %v557
  %v2915 = vpop.f32.mrf.mxu0
  %v2916 = vadd.f32 %v2902, %v2915
  %v2917 = vpop.f32.mrf.mxu0
  %v2918 = vadd.f32 %v2904, %v2917
  %2919 = vdwg.mxu0
  %2920 = vmatpush.bf16.msra.mxu0 %v2182
  %2921 = vmatpush.bf16.msra.mxu0 %v2180
  %2922 = vmatpush.bf16.msra.mxu0 %v2178
  %2923 = vmatpush.bf16.msra.mxu0 %v2176
  %2924 = vmatpush.bf16.msra.mxu0 %v2174
  %2925 = vmatpush.bf16.msra.mxu0 %v2172
  %2926 = vmatpush.bf16.msra.mxu0 %v2170
  %2927 = vmatpush.bf16.msra.mxu0 %v2168
  %2928 = vmatmul.bf16.gmra.mxu0 %v558
  %v2929 = vpop.f32.mrf.mxu0
  %v2930 = vadd.f32 %v2916, %v2929
  %v2931 = vpop.f32.mrf.mxu0
  %v2932 = vadd.f32 %v2918, %v2931
  %2933 = vdwg.mxu0
  %2934 = vmatpush.bf16.msra.mxu0 %v1799
  %2935 = vmatpush.bf16.msra.mxu0 %v1797
  %2936 = vmatpush.bf16.msra.mxu0 %v1795
  %2937 = vmatpush.bf16.msra.mxu0 %v1793
  %2938 = vmatpush.bf16.msra.mxu0 %v1791
  %2939 = vmatpush.bf16.msra.mxu0 %v1789
  %2940 = vmatpush.bf16.msra.mxu0 %v1787
  %2941 = vmatpush.bf16.msra.mxu0 %v1785
  %2942 = vmatmul.bf16.gmra.mxu0 %v534
  %v2943 = vpop.f32.mrf.mxu0
  %v2944 = vadd.f32 %v455, %v2943
  %v2945 = vpop.f32.mrf.mxu0
  %v2946 = vadd.f32 %v455, %v2945
  %2947 = vdwg.mxu0
  %2948 = vmatpush.bf16.msra.mxu0 %v1815
  %2949 = vmatpush.bf16.msra.mxu0 %v1813
  %2950 = vmatpush.bf16.msra.mxu0 %v1811
  %2951 = vmatpush.bf16.msra.mxu0 %v1809
  %2952 = vmatpush.bf16.msra.mxu0 %v1807
  %2953 = vmatpush.bf16.msra.mxu0 %v1805
  %2954 = vmatpush.bf16.msra.mxu0 %v1803
  %2955 = vmatpush.bf16.msra.mxu0 %v1801
  %2956 = vmatmul.bf16.gmra.mxu0 %v535
  %v2957 = vpop.f32.mrf.mxu0
  %v2958 = vadd.f32 %v2944, %v2957
  %v2959 = vpop.f32.mrf.mxu0
  %v2960 = vadd.f32 %v2946, %v2959
  %2961 = vdwg.mxu0
  %2962 = vmatpush.bf16.msra.mxu0 %v1831
  %2963 = vmatpush.bf16.msra.mxu0 %v1829
  %2964 = vmatpush.bf16.msra.mxu0 %v1827
  %2965 = vmatpush.bf16.msra.mxu0 %v1825
  %2966 = vmatpush.bf16.msra.mxu0 %v1823
  %2967 = vmatpush.bf16.msra.mxu0 %v1821
  %2968 = vmatpush.bf16.msra.mxu0 %v1819
  %2969 = vmatpush.bf16.msra.mxu0 %v1817
  %2970 = vmatmul.bf16.gmra.mxu0 %v536
  %v2971 = vpop.f32.mrf.mxu0
  %v2972 = vadd.f32 %v2958, %v2971
  %v2973 = vpop.f32.mrf.mxu0
  %v2974 = vadd.f32 %v2960, %v2973
  %2975 = vdwg.mxu0
  %2976 = vmatpush.bf16.msra.mxu0 %v1847
  %2977 = vmatpush.bf16.msra.mxu0 %v1845
  %2978 = vmatpush.bf16.msra.mxu0 %v1843
  %2979 = vmatpush.bf16.msra.mxu0 %v1841
  %2980 = vmatpush.bf16.msra.mxu0 %v1839
  %2981 = vmatpush.bf16.msra.mxu0 %v1837
  %2982 = vmatpush.bf16.msra.mxu0 %v1835
  %2983 = vmatpush.bf16.msra.mxu0 %v1833
  %2984 = vmatmul.bf16.gmra.mxu0 %v537
  %v2985 = vpop.f32.mrf.mxu0
  %v2986 = vadd.f32 %v2972, %v2985
  %v2987 = vpop.f32.mrf.mxu0
  %v2988 = vadd.f32 %v2974, %v2987
  %2989 = vdwg.mxu0
  %2990 = vmatpush.bf16.msra.mxu0 %v1863
  %2991 = vmatpush.bf16.msra.mxu0 %v1861
  %2992 = vmatpush.bf16.msra.mxu0 %v1859
  %2993 = vmatpush.bf16.msra.mxu0 %v1857
  %2994 = vmatpush.bf16.msra.mxu0 %v1855
  %2995 = vmatpush.bf16.msra.mxu0 %v1853
  %2996 = vmatpush.bf16.msra.mxu0 %v1851
  %2997 = vmatpush.bf16.msra.mxu0 %v1849
  %2998 = vmatmul.bf16.gmra.mxu0 %v538
  %v2999 = vpop.f32.mrf.mxu0
  %v3000 = vadd.f32 %v2986, %v2999
  %v3001 = vpop.f32.mrf.mxu0
  %v3002 = vadd.f32 %v2988, %v3001
  %3003 = vdwg.mxu0
  %3004 = vmatpush.bf16.msra.mxu0 %v1879
  %3005 = vmatpush.bf16.msra.mxu0 %v1877
  %3006 = vmatpush.bf16.msra.mxu0 %v1875
  %3007 = vmatpush.bf16.msra.mxu0 %v1873
  %3008 = vmatpush.bf16.msra.mxu0 %v1871
  %3009 = vmatpush.bf16.msra.mxu0 %v1869
  %3010 = vmatpush.bf16.msra.mxu0 %v1867
  %3011 = vmatpush.bf16.msra.mxu0 %v1865
  %3012 = vmatmul.bf16.gmra.mxu0 %v539
  %v3013 = vpop.f32.mrf.mxu0
  %v3014 = vadd.f32 %v3000, %v3013
  %v3015 = vpop.f32.mrf.mxu0
  %v3016 = vadd.f32 %v3002, %v3015
  %3017 = vdwg.mxu0
  %3018 = vmatpush.bf16.msra.mxu0 %v1895
  %3019 = vmatpush.bf16.msra.mxu0 %v1893
  %3020 = vmatpush.bf16.msra.mxu0 %v1891
  %3021 = vmatpush.bf16.msra.mxu0 %v1889
  %3022 = vmatpush.bf16.msra.mxu0 %v1887
  %3023 = vmatpush.bf16.msra.mxu0 %v1885
  %3024 = vmatpush.bf16.msra.mxu0 %v1883
  %3025 = vmatpush.bf16.msra.mxu0 %v1881
  %3026 = vmatmul.bf16.gmra.mxu0 %v540
  %v3027 = vpop.f32.mrf.mxu0
  %v3028 = vadd.f32 %v3014, %v3027
  %v3029 = vpop.f32.mrf.mxu0
  %v3030 = vadd.f32 %v3016, %v3029
  %3031 = vdwg.mxu0
  %3032 = vmatpush.bf16.msra.mxu0 %v1911
  %3033 = vmatpush.bf16.msra.mxu0 %v1909
  %3034 = vmatpush.bf16.msra.mxu0 %v1907
  %3035 = vmatpush.bf16.msra.mxu0 %v1905
  %3036 = vmatpush.bf16.msra.mxu0 %v1903
  %3037 = vmatpush.bf16.msra.mxu0 %v1901
  %3038 = vmatpush.bf16.msra.mxu0 %v1899
  %3039 = vmatpush.bf16.msra.mxu0 %v1897
  %3040 = vmatmul.bf16.gmra.mxu0 %v541
  %v3041 = vpop.f32.mrf.mxu0
  %v3042 = vadd.f32 %v3028, %v3041
  %v3043 = vpop.f32.mrf.mxu0
  %v3044 = vadd.f32 %v3030, %v3043
  %3045 = vdwg.mxu0
  %3046 = vmatpush.bf16.msra.mxu0 %v1927
  %3047 = vmatpush.bf16.msra.mxu0 %v1925
  %3048 = vmatpush.bf16.msra.mxu0 %v1923
  %3049 = vmatpush.bf16.msra.mxu0 %v1921
  %3050 = vmatpush.bf16.msra.mxu0 %v1919
  %3051 = vmatpush.bf16.msra.mxu0 %v1917
  %3052 = vmatpush.bf16.msra.mxu0 %v1915
  %3053 = vmatpush.bf16.msra.mxu0 %v1913
  %3054 = vmatmul.bf16.gmra.mxu0 %v542
  %v3055 = vpop.f32.mrf.mxu0
  %v3056 = vadd.f32 %v3042, %v3055
  %v3057 = vpop.f32.mrf.mxu0
  %v3058 = vadd.f32 %v3044, %v3057
  %3059 = vdwg.mxu0
  %3060 = vmatpush.bf16.msra.mxu0 %v1943
  %3061 = vmatpush.bf16.msra.mxu0 %v1941
  %3062 = vmatpush.bf16.msra.mxu0 %v1939
  %3063 = vmatpush.bf16.msra.mxu0 %v1937
  %3064 = vmatpush.bf16.msra.mxu0 %v1935
  %3065 = vmatpush.bf16.msra.mxu0 %v1933
  %3066 = vmatpush.bf16.msra.mxu0 %v1931
  %3067 = vmatpush.bf16.msra.mxu0 %v1929
  %3068 = vmatmul.bf16.gmra.mxu0 %v543
  %v3069 = vpop.f32.mrf.mxu0
  %v3070 = vadd.f32 %v3056, %v3069
  %v3071 = vpop.f32.mrf.mxu0
  %v3072 = vadd.f32 %v3058, %v3071
  %3073 = vdwg.mxu0
  %3074 = vmatpush.bf16.msra.mxu0 %v1959
  %3075 = vmatpush.bf16.msra.mxu0 %v1957
  %3076 = vmatpush.bf16.msra.mxu0 %v1955
  %3077 = vmatpush.bf16.msra.mxu0 %v1953
  %3078 = vmatpush.bf16.msra.mxu0 %v1951
  %3079 = vmatpush.bf16.msra.mxu0 %v1949
  %3080 = vmatpush.bf16.msra.mxu0 %v1947
  %3081 = vmatpush.bf16.msra.mxu0 %v1945
  %3082 = vmatmul.bf16.gmra.mxu0 %v544
  %v3083 = vpop.f32.mrf.mxu0
  %v3084 = vadd.f32 %v3070, %v3083
  %v3085 = vpop.f32.mrf.mxu0
  %v3086 = vadd.f32 %v3072, %v3085
  %3087 = vdwg.mxu0
  %3088 = vmatpush.bf16.msra.mxu0 %v1975
  %3089 = vmatpush.bf16.msra.mxu0 %v1973
  %3090 = vmatpush.bf16.msra.mxu0 %v1971
  %3091 = vmatpush.bf16.msra.mxu0 %v1969
  %3092 = vmatpush.bf16.msra.mxu0 %v1967
  %3093 = vmatpush.bf16.msra.mxu0 %v1965
  %3094 = vmatpush.bf16.msra.mxu0 %v1963
  %3095 = vmatpush.bf16.msra.mxu0 %v1961
  %3096 = vmatmul.bf16.gmra.mxu0 %v545
  %v3097 = vpop.f32.mrf.mxu0
  %v3098 = vadd.f32 %v3084, %v3097
  %v3099 = vpop.f32.mrf.mxu0
  %v3100 = vadd.f32 %v3086, %v3099
  %3101 = vdwg.mxu0
  %3102 = vmatpush.bf16.msra.mxu0 %v1991
  %3103 = vmatpush.bf16.msra.mxu0 %v1989
  %3104 = vmatpush.bf16.msra.mxu0 %v1987
  %3105 = vmatpush.bf16.msra.mxu0 %v1985
  %3106 = vmatpush.bf16.msra.mxu0 %v1983
  %3107 = vmatpush.bf16.msra.mxu0 %v1981
  %3108 = vmatpush.bf16.msra.mxu0 %v1979
  %3109 = vmatpush.bf16.msra.mxu0 %v1977
  %3110 = vmatmul.bf16.gmra.mxu0 %v546
  %v3111 = vpop.f32.mrf.mxu0
  %v3112 = vadd.f32 %v3098, %v3111
  %v3113 = vpop.f32.mrf.mxu0
  %v3114 = vadd.f32 %v3100, %v3113
  %3115 = vdwg.mxu0
  %3116 = vmatpush.bf16.msra.mxu0 %v2007
  %3117 = vmatpush.bf16.msra.mxu0 %v2005
  %3118 = vmatpush.bf16.msra.mxu0 %v2003
  %3119 = vmatpush.bf16.msra.mxu0 %v2001
  %3120 = vmatpush.bf16.msra.mxu0 %v1999
  %3121 = vmatpush.bf16.msra.mxu0 %v1997
  %3122 = vmatpush.bf16.msra.mxu0 %v1995
  %3123 = vmatpush.bf16.msra.mxu0 %v1993
  %3124 = vmatmul.bf16.gmra.mxu0 %v547
  %v3125 = vpop.f32.mrf.mxu0
  %v3126 = vadd.f32 %v3112, %v3125
  %v3127 = vpop.f32.mrf.mxu0
  %v3128 = vadd.f32 %v3114, %v3127
  %3129 = vdwg.mxu0
  %3130 = vmatpush.bf16.msra.mxu0 %v2023
  %3131 = vmatpush.bf16.msra.mxu0 %v2021
  %3132 = vmatpush.bf16.msra.mxu0 %v2019
  %3133 = vmatpush.bf16.msra.mxu0 %v2017
  %3134 = vmatpush.bf16.msra.mxu0 %v2015
  %3135 = vmatpush.bf16.msra.mxu0 %v2013
  %3136 = vmatpush.bf16.msra.mxu0 %v2011
  %3137 = vmatpush.bf16.msra.mxu0 %v2009
  %3138 = vmatmul.bf16.gmra.mxu0 %v548
  %v3139 = vpop.f32.mrf.mxu0
  %v3140 = vadd.f32 %v3126, %v3139
  %v3141 = vpop.f32.mrf.mxu0
  %v3142 = vadd.f32 %v3128, %v3141
  %3143 = vdwg.mxu0
  %3144 = vmatpush.bf16.msra.mxu0 %v2039
  %3145 = vmatpush.bf16.msra.mxu0 %v2037
  %3146 = vmatpush.bf16.msra.mxu0 %v2035
  %3147 = vmatpush.bf16.msra.mxu0 %v2033
  %3148 = vmatpush.bf16.msra.mxu0 %v2031
  %3149 = vmatpush.bf16.msra.mxu0 %v2029
  %3150 = vmatpush.bf16.msra.mxu0 %v2027
  %3151 = vmatpush.bf16.msra.mxu0 %v2025
  %3152 = vmatmul.bf16.gmra.mxu0 %v549
  %v3153 = vpop.f32.mrf.mxu0
  %v3154 = vadd.f32 %v3140, %v3153
  %v3155 = vpop.f32.mrf.mxu0
  %v3156 = vadd.f32 %v3142, %v3155
  %3157 = vdwg.mxu0
  %3158 = vmatpush.bf16.msra.mxu0 %v2055
  %3159 = vmatpush.bf16.msra.mxu0 %v2053
  %3160 = vmatpush.bf16.msra.mxu0 %v2051
  %3161 = vmatpush.bf16.msra.mxu0 %v2049
  %3162 = vmatpush.bf16.msra.mxu0 %v2047
  %3163 = vmatpush.bf16.msra.mxu0 %v2045
  %3164 = vmatpush.bf16.msra.mxu0 %v2043
  %3165 = vmatpush.bf16.msra.mxu0 %v2041
  %3166 = vmatmul.bf16.gmra.mxu0 %v550
  %v3167 = vpop.f32.mrf.mxu0
  %v3168 = vadd.f32 %v3154, %v3167
  %v3169 = vpop.f32.mrf.mxu0
  %v3170 = vadd.f32 %v3156, %v3169
  %3171 = vdwg.mxu0
  %3172 = vmatpush.bf16.msra.mxu0 %v2071
  %3173 = vmatpush.bf16.msra.mxu0 %v2069
  %3174 = vmatpush.bf16.msra.mxu0 %v2067
  %3175 = vmatpush.bf16.msra.mxu0 %v2065
  %3176 = vmatpush.bf16.msra.mxu0 %v2063
  %3177 = vmatpush.bf16.msra.mxu0 %v2061
  %3178 = vmatpush.bf16.msra.mxu0 %v2059
  %3179 = vmatpush.bf16.msra.mxu0 %v2057
  %3180 = vmatmul.bf16.gmra.mxu0 %v551
  %v3181 = vpop.f32.mrf.mxu0
  %v3182 = vadd.f32 %v3168, %v3181
  %v3183 = vpop.f32.mrf.mxu0
  %v3184 = vadd.f32 %v3170, %v3183
  %3185 = vdwg.mxu0
  %3186 = vmatpush.bf16.msra.mxu0 %v2087
  %3187 = vmatpush.bf16.msra.mxu0 %v2085
  %3188 = vmatpush.bf16.msra.mxu0 %v2083
  %3189 = vmatpush.bf16.msra.mxu0 %v2081
  %3190 = vmatpush.bf16.msra.mxu0 %v2079
  %3191 = vmatpush.bf16.msra.mxu0 %v2077
  %3192 = vmatpush.bf16.msra.mxu0 %v2075
  %3193 = vmatpush.bf16.msra.mxu0 %v2073
  %3194 = vmatmul.bf16.gmra.mxu0 %v552
  %v3195 = vpop.f32.mrf.mxu0
  %v3196 = vadd.f32 %v3182, %v3195
  %v3197 = vpop.f32.mrf.mxu0
  %v3198 = vadd.f32 %v3184, %v3197
  %3199 = vdwg.mxu0
  %3200 = vmatpush.bf16.msra.mxu0 %v2103
  %3201 = vmatpush.bf16.msra.mxu0 %v2101
  %3202 = vmatpush.bf16.msra.mxu0 %v2099
  %3203 = vmatpush.bf16.msra.mxu0 %v2097
  %3204 = vmatpush.bf16.msra.mxu0 %v2095
  %3205 = vmatpush.bf16.msra.mxu0 %v2093
  %3206 = vmatpush.bf16.msra.mxu0 %v2091
  %3207 = vmatpush.bf16.msra.mxu0 %v2089
  %3208 = vmatmul.bf16.gmra.mxu0 %v553
  %v3209 = vpop.f32.mrf.mxu0
  %v3210 = vadd.f32 %v3196, %v3209
  %v3211 = vpop.f32.mrf.mxu0
  %v3212 = vadd.f32 %v3198, %v3211
  %3213 = vdwg.mxu0
  %3214 = vmatpush.bf16.msra.mxu0 %v2119
  %3215 = vmatpush.bf16.msra.mxu0 %v2117
  %3216 = vmatpush.bf16.msra.mxu0 %v2115
  %3217 = vmatpush.bf16.msra.mxu0 %v2113
  %3218 = vmatpush.bf16.msra.mxu0 %v2111
  %3219 = vmatpush.bf16.msra.mxu0 %v2109
  %3220 = vmatpush.bf16.msra.mxu0 %v2107
  %3221 = vmatpush.bf16.msra.mxu0 %v2105
  %3222 = vmatmul.bf16.gmra.mxu0 %v554
  %v3223 = vpop.f32.mrf.mxu0
  %v3224 = vadd.f32 %v3210, %v3223
  %v3225 = vpop.f32.mrf.mxu0
  %v3226 = vadd.f32 %v3212, %v3225
  %3227 = vdwg.mxu0
  %3228 = vmatpush.bf16.msra.mxu0 %v2135
  %3229 = vmatpush.bf16.msra.mxu0 %v2133
  %3230 = vmatpush.bf16.msra.mxu0 %v2131
  %3231 = vmatpush.bf16.msra.mxu0 %v2129
  %3232 = vmatpush.bf16.msra.mxu0 %v2127
  %3233 = vmatpush.bf16.msra.mxu0 %v2125
  %3234 = vmatpush.bf16.msra.mxu0 %v2123
  %3235 = vmatpush.bf16.msra.mxu0 %v2121
  %3236 = vmatmul.bf16.gmra.mxu0 %v555
  %v3237 = vpop.f32.mrf.mxu0
  %v3238 = vadd.f32 %v3224, %v3237
  %v3239 = vpop.f32.mrf.mxu0
  %v3240 = vadd.f32 %v3226, %v3239
  %3241 = vdwg.mxu0
  %3242 = vmatpush.bf16.msra.mxu0 %v2151
  %3243 = vmatpush.bf16.msra.mxu0 %v2149
  %3244 = vmatpush.bf16.msra.mxu0 %v2147
  %3245 = vmatpush.bf16.msra.mxu0 %v2145
  %3246 = vmatpush.bf16.msra.mxu0 %v2143
  %3247 = vmatpush.bf16.msra.mxu0 %v2141
  %3248 = vmatpush.bf16.msra.mxu0 %v2139
  %3249 = vmatpush.bf16.msra.mxu0 %v2137
  %3250 = vmatmul.bf16.gmra.mxu0 %v556
  %v3251 = vpop.f32.mrf.mxu0
  %v3252 = vadd.f32 %v3238, %v3251
  %v3253 = vpop.f32.mrf.mxu0
  %v3254 = vadd.f32 %v3240, %v3253
  %3255 = vdwg.mxu0
  %3256 = vmatpush.bf16.msra.mxu0 %v2167
  %3257 = vmatpush.bf16.msra.mxu0 %v2165
  %3258 = vmatpush.bf16.msra.mxu0 %v2163
  %3259 = vmatpush.bf16.msra.mxu0 %v2161
  %3260 = vmatpush.bf16.msra.mxu0 %v2159
  %3261 = vmatpush.bf16.msra.mxu0 %v2157
  %3262 = vmatpush.bf16.msra.mxu0 %v2155
  %3263 = vmatpush.bf16.msra.mxu0 %v2153
  %3264 = vmatmul.bf16.gmra.mxu0 %v557
  %v3265 = vpop.f32.mrf.mxu0
  %v3266 = vadd.f32 %v3252, %v3265
  %v3267 = vpop.f32.mrf.mxu0
  %v3268 = vadd.f32 %v3254, %v3267
  %3269 = vdwg.mxu0
  %3270 = vmatpush.bf16.msra.mxu0 %v2183
  %3271 = vmatpush.bf16.msra.mxu0 %v2181
  %3272 = vmatpush.bf16.msra.mxu0 %v2179
  %3273 = vmatpush.bf16.msra.mxu0 %v2177
  %3274 = vmatpush.bf16.msra.mxu0 %v2175
  %3275 = vmatpush.bf16.msra.mxu0 %v2173
  %3276 = vmatpush.bf16.msra.mxu0 %v2171
  %3277 = vmatpush.bf16.msra.mxu0 %v2169
  %3278 = vmatmul.bf16.gmra.mxu0 %v558
  %v3279 = vpop.f32.mrf.mxu0
  %v3280 = vadd.f32 %v3266, %v3279
  %v3281 = vpop.f32.mrf.mxu0
  %v3282 = vadd.f32 %v3268, %v3281
  %3283 = vdwg.mxu0
  %v3284 = vmax.f32 %v2930, 0.0
  %v3285 = vmax.f32 %v3280, 0.0
  %v3286 = vmax.f32 %v2932, 0.0
  %v3287 = vmax.f32 %v3282, 0.0
  %v3288 = vpack.c.bf16 %v3286, %v3284
  %v3289 = vpack.c.bf16 %v3287, %v3285
  %v3290 = vld [vmem:[%s3] sm:$0xf]
  %v3291 = vld [vmem:[%s3 + $0x4] sm:$0xf]
  %v3292 = vld [vmem:[%s3 + $0x8] sm:$0xf]
  %v3293 = vld [vmem:[%s3 + $0xc] sm:$0xf]
  %v3294 = vld [vmem:[%s3 + $0x10] sm:$0xf]
  %v3295 = vld [vmem:[%s3 + $0x14] sm:$0xf]
  %v3296 = vld [vmem:[%s3 + $0x18] sm:$0xf]
  %v3297 = vld [vmem:[%s3 + $0x1c] sm:$0xf]
  %v3298 = vld [vmem:[%s3 + $0x20] sm:$0xf]
  %v3299 = vld [vmem:[%s3 + $0x24] sm:$0xf]
  %v3300 = vld [vmem:[%s3 + $0x28] sm:$0xf]
  %v3301 = vld [vmem:[%s3 + $0x2c] sm:$0xf]
  %v3302 = vld [vmem:[%s3 + $0x30] sm:$0xf]
  %v3303 = vld [vmem:[%s3 + $0x34] sm:$0xf]
  %v3304 = vld [vmem:[%s3 + $0x38] sm:$0xf]
  %v3305 = vld [vmem:[%s3 + $0x3c] sm:$0xf]
  %v3306 = vld [vmem:[%s3 + $0x40] sm:$0xf]
  %v3307 = vld [vmem:[%s3 + $0x44] sm:$0xf]
  %v3308 = vld [vmem:[%s3 + $0x48] sm:$0xf]
  %v3309 = vld [vmem:[%s3 + $0x4c] sm:$0xf]
  %v3310 = vld [vmem:[%s3 + $0x50] sm:$0xf]
  %v3311 = vld [vmem:[%s3 + $0x54] sm:$0xf]
  %v3312 = vld [vmem:[%s3 + $0x58] sm:$0xf]
  %v3313 = vld [vmem:[%s3 + $0x5c] sm:$0xf]
  %v3314 = vld [vmem:[%s3 + $0x60] sm:$0xf]
  %v3315 = vld [vmem:[%s3 + $0x64] sm:$0xf]
  %v3316 = vld [vmem:[%s3 + $0x68] sm:$0xf]
  %v3317 = vld [vmem:[%s3 + $0x6c] sm:$0xf]
  %v3318 = vld [vmem:[%s3 + $0x70] sm:$0xf]
  %v3319 = vld [vmem:[%s3 + $0x74] sm:$0xf]
  %v3320 = vld [vmem:[%s3 + $0x78] sm:$0xf]
  %v3321 = vld [vmem:[%s3 + $0x7c] sm:$0xf]
  %v3322 = vld [vmem:[%s4] sm:$0x1]
  %v3324 = vperm.slane %v3322, 0
  %v3358 = vunpack.c.l.b16 %v3290
  %v3359 = vunpack.c.l.b16 %v3291
  %v3360 = vunpack.c.l.b16 %v3292
  %v3361 = vunpack.c.l.b16 %v3293
  %v3362 = vunpack.c.l.b16 %v3294
  %v3363 = vunpack.c.l.b16 %v3295
  %v3364 = vunpack.c.l.b16 %v3296
  %v3365 = vunpack.c.l.b16 %v3297
  %v3366 = vunpack.c.l.b16 %v3298
  %v3367 = vunpack.c.l.b16 %v3299
  %v3368 = vunpack.c.l.b16 %v3300
  %v3369 = vunpack.c.l.b16 %v3301
  %v3370 = vunpack.c.l.b16 %v3302
  %v3371 = vunpack.c.l.b16 %v3303
  %v3372 = vunpack.c.l.b16 %v3304
  %v3373 = vunpack.c.l.b16 %v3305
  %v3374 = vunpack.c.l.b16 %v3306
  %v3375 = vunpack.c.l.b16 %v3307
  %v3376 = vunpack.c.l.b16 %v3308
  %v3377 = vunpack.c.l.b16 %v3309
  %v3378 = vunpack.c.l.b16 %v3310
  %v3379 = vunpack.c.l.b16 %v3311
  %v3380 = vunpack.c.l.b16 %v3312
  %v3381 = vunpack.c.l.b16 %v3313
  %v3382 = vunpack.c.l.b16 %v3314
  %v3383 = vunpack.c.l.b16 %v3315
  %v3384 = vunpack.c.l.b16 %v3316
  %v3385 = vunpack.c.l.b16 %v3317
  %v3386 = vunpack.c.l.b16 %v3318
  %v3387 = vunpack.c.l.b16 %v3319
  %v3388 = vunpack.c.l.b16 %v3320
  %v3389 = vunpack.c.l.b16 %v3321
  %v3390 = vpack.c.b16 %v3359, %v3358
  %v3391 = vpack.c.b16 %v3361, %v3360
  %v3392 = vpack.c.b16 %v3363, %v3362
  %v3393 = vpack.c.b16 %v3365, %v3364
  %v3394 = vpack.c.b16 %v3367, %v3366
  %v3395 = vpack.c.b16 %v3369, %v3368
  %v3396 = vpack.c.b16 %v3371, %v3370
  %v3397 = vpack.c.b16 %v3373, %v3372
  %v3398 = vpack.c.b16 %v3375, %v3374
  %v3399 = vpack.c.b16 %v3377, %v3376
  %v3400 = vpack.c.b16 %v3379, %v3378
  %v3401 = vpack.c.b16 %v3381, %v3380
  %v3402 = vpack.c.b16 %v3383, %v3382
  %v3403 = vpack.c.b16 %v3385, %v3384
  %v3404 = vpack.c.b16 %v3387, %v3386
  %v3405 = vpack.c.b16 %v3389, %v3388
  %3422 = vmatpush.bf16.msra.mxu0 %v3397
  %3423 = vmatpush.bf16.msra.mxu0 %v3396
  %3424 = vmatpush.bf16.msra.mxu0 %v3395
  %3425 = vmatpush.bf16.msra.mxu0 %v3394
  %3426 = vmatpush.bf16.msra.mxu0 %v3393
  %3427 = vmatpush.bf16.msra.mxu0 %v3392
  %3428 = vmatpush.bf16.msra.mxu0 %v3391
  %3429 = vmatpush.bf16.msra.mxu0 %v3390
  %3430 = vmatmul.bf16.gmra.mxu0 %v3288
  %v3431 = vpop.f32.mrf.mxu0
  %v3432 = vadd.f32 %v3324, %v3431
  %v3433 = vpop.f32.mrf.mxu0
  %v3434 = vadd.f32 %v3324, %v3433
  %3435 = vdwg.mxu0
  %3436 = vmatpush.bf16.msra.mxu0 %v3405
  %3437 = vmatpush.bf16.msra.mxu0 %v3404
  %3438 = vmatpush.bf16.msra.mxu0 %v3403
  %3439 = vmatpush.bf16.msra.mxu0 %v3402
  %3440 = vmatpush.bf16.msra.mxu0 %v3401
  %3441 = vmatpush.bf16.msra.mxu0 %v3400
  %3442 = vmatpush.bf16.msra.mxu0 %v3399
  %3443 = vmatpush.bf16.msra.mxu0 %v3398
  %3444 = vmatmul.bf16.gmra.mxu0 %v3289
  %v3445 = vpop.f32.mrf.mxu0
  %v3446 = vadd.f32 %v3432, %v3445
  %v3447 = vpop.f32.mrf.mxu0
  %v3448 = vadd.f32 %v3434, %v3447
  %3449 = vdwg.mxu0
  %v3450 = vmax.f32 %v3446, 0.0
  %v3451 = vmax.f32 %v3448, 0.0
  %v3452 = vpack.c.bf16 %v3451, %v3450
  %v3453 = vld [vmem:[%s5] sm:$0xf]
  %v3454 = vld [vmem:[%s5 + $0x4] sm:$0xf]
  %v3455 = vld [vmem:[%s5 + $0x8] sm:$0xf]
  %v3456 = vld [vmem:[%s5 + $0xc] sm:$0xf]
  %v3457 = vld [vmem:[%s5 + $0x10] sm:$0xf]
  %v3458 = vld [vmem:[%s5 + $0x14] sm:$0xf]
  %v3459 = vld [vmem:[%s5 + $0x18] sm:$0xf]
  %v3460 = vld [vmem:[%s5 + $0x1c] sm:$0xf]
  %v3461 = vld [vmem:[%s5 + $0x20] sm:$0xf]
  %v3462 = vld [vmem:[%s5 + $0x24] sm:$0xf]
  %v3463 = vld [vmem:[%s5 + $0x28] sm:$0xf]
  %v3464 = vld [vmem:[%s5 + $0x2c] sm:$0xf]
  %v3465 = vld [vmem:[%s5 + $0x30] sm:$0xf]
  %v3466 = vld [vmem:[%s5 + $0x34] sm:$0xf]
  %v3467 = vld [vmem:[%s5 + $0x38] sm:$0xf]
  %v3468 = vld [vmem:[%s5 + $0x3c] sm:$0xf]
  %v3469 = vld [vmem:[%s6] sm:$0x1]
  %v3471 = vperm.slane %v3469, 0
  %v3489 = vunpack.c.l.b16 %v3453
  %v3490 = vunpack.c.l.b16 %v3454
  %v3491 = vunpack.c.l.b16 %v3455
  %v3492 = vunpack.c.l.b16 %v3456
  %v3493 = vunpack.c.l.b16 %v3457
  %v3494 = vunpack.c.l.b16 %v3458
  %v3495 = vunpack.c.l.b16 %v3459
  %v3496 = vunpack.c.l.b16 %v3460
  %v3497 = vunpack.c.l.b16 %v3461
  %v3498 = vunpack.c.l.b16 %v3462
  %v3499 = vunpack.c.l.b16 %v3463
  %v3500 = vunpack.c.l.b16 %v3464
  %v3501 = vunpack.c.l.b16 %v3465
  %v3502 = vunpack.c.l.b16 %v3466
  %v3503 = vunpack.c.l.b16 %v3467
  %v3504 = vunpack.c.l.b16 %v3468
  %v3505 = vpack.c.b16 %v3490, %v3489
  %v3506 = vpack.c.b16 %v3492, %v3491
  %v3507 = vpack.c.b16 %v3494, %v3493
  %v3508 = vpack.c.b16 %v3496, %v3495
  %v3509 = vpack.c.b16 %v3498, %v3497
  %v3510 = vpack.c.b16 %v3500, %v3499
  %v3511 = vpack.c.b16 %v3502, %v3501
  %v3512 = vpack.c.b16 %v3504, %v3503
  %3521 = vmatpush.bf16.msra.mxu0 %v3512
  %3522 = vmatpush.bf16.msra.mxu0 %v3511
  %3523 = vmatpush.bf16.msra.mxu0 %v3510
  %3524 = vmatpush.bf16.msra.mxu0 %v3509
  %3525 = vmatpush.bf16.msra.mxu0 %v3508
  %3526 = vmatpush.bf16.msra.mxu0 %v3507
  %3527 = vmatpush.bf16.msra.mxu0 %v3506
  %3528 = vmatpush.bf16.msra.mxu0 %v3505
  %3529 = vmatmul.bf16.gmra.mxu0 %v3452
  %v3530 = vpop.f32.mrf.mxu0
  %v3531 = vadd.f32 %v3471, %v3530
  %v3532 = vpop.f32.mrf.mxu0
  %v3533 = vadd.f32 %v3471, %v3532
  %3534 = vdwg.mxu0
  %vm3535 = vcmask 80896
  %3536 = vst.msk [vmem:[%s7] sm:$0xff] %vm3535, %v3531
  %3537 = vst.msk [vmem:[%s7 + $0x8] sm:$0xff] %vm3535, %v3533
  // Predicated region
  $region30: #{cnn_forward.5} parent=0 // pred_check
    _
  $region31: #{cnn_forward.5} parent=0 // pred_check_branch
    %3539 = sbr.rel (0) target = $region33
  $region32: #{cnn_forward.5} parent=0 // pred_region
    _
  $region33: #{cnn_forward.5} parent=0 // pred_fallthru
    _
  // Predicated region
  $region34: #{cnn_forward.5} parent=0 // pred_check
    _
  $region35: #{cnn_forward.5} parent=0 // pred_check_branch
    %3541 = sbr.rel (0) target = $region37
  $region36: #{cnn_forward.5} parent=0 // pred_region
    _
  $region37: #{cnn_forward.5} parent=0 // pred_fallthru
    _

</llo_original>
